<compile_context>
chip_gen: v6e
topology: v6e:2x2x1
jax: 0.10.0
libtpu: 0.0.40
codegen_flags: <defaults>
</compile_context>

<pallas_src>
import functools
import numpy as np

import jax
import jax.numpy as jnp
from jax.experimental import pallas as pl
from jax.experimental.pallas import tpu as pltpu


# ------------------------- in-kernel helpers (traced) -------------------------

def _zero_vpad(pb_ref):
    """Zero the first/last row of a padded scratch image (vertical conv padding).

    Horizontal padding is folded into the banded weight matrices, so the scratch
    images have no pad columns and every store is full-lane-width."""
    rows, cols = pb_ref.shape
    z = jnp.zeros((1, cols), pb_ref.dtype)
    pb_ref[0:1, :] = z
    pb_ref[rows - 1:rows, :] = z


def _conv3_relu_bn(branches, e_ref, H):
    """3x3 conv + bias + ReLU + folded eval-mode BatchNorm on the (H, W*C) layout.

    branches: list of (padded_image_ref (H+2, W*Cin), banded_weights_ref (3, W*Cin, W*Cout)).
    Several branches (e.g. upsampled path + skip path) accumulate into ONE f32
    accumulator -> the channel concat never materializes.  Each dy tap is one wide-K
    bf16 matmul (K = W*Cin, N = W*Cout)."""
    acc = None
    for pb_ref, b_ref in branches:
        for dy in range(3):
            d = jnp.dot(pb_ref[dy:dy + H, :].astype(jnp.bfloat16), b_ref[dy],
                        preferred_element_type=jnp.float32)
            acc = d if acc is None else acc + d
    y = jnp.maximum(acc + e_ref[0], 0.0)        # conv bias + ReLU
    return y * e_ref[1] + e_ref[2]              # folded BatchNorm (eval stats)


def _avg_pool2(a, ph_ref, pq_ref):
    """2x2 average pool on the (H, W*C) layout: separable small matmuls
    (P_h from the left, kron(P_w, I_C) from the right) -- no dense spatial kron."""
    t = jnp.dot(ph_ref[...], a.astype(jnp.bfloat16), preferred_element_type=jnp.float32)
    return jnp.dot(t.astype(jnp.bfloat16), pq_ref[...], preferred_element_type=jnp.float32)


def _up1x1_bilinear(a, w_ref, b_ref, uh_ref, ur_ref):
    """UpBlock 'up' path: 1x1 conv FIRST (channel reduction), then separable
    bilinear x2 upsample (align_corners=False) via small row/col matrices."""
    t = jnp.dot(a.astype(jnp.bfloat16), w_ref[...], preferred_element_type=jnp.float32)
    t = t + b_ref[...]
    t = jnp.dot(uh_ref[...], t.astype(jnp.bfloat16), preferred_element_type=jnp.float32)
    return jnp.dot(t.astype(jnp.bfloat16), ur_ref[...], preferred_element_type=jnp.float32)


# --------------------------------- the kernel ---------------------------------

def _unet_kernel(x_ref,
                 be0, be1, be2, ee0, ee1, ee2,
                 ph0, pq0, ph1, pq1,
                 up0w, up0b, uh0, ur0, bd0u, bd0s, ed0,
                 up1w, up1b, uh1, ur1, bd1u, bd1s, ed1,
                 fw, fb,
                 o_ref,
                 pb_x, pb_p0, pb_p1, pb_s0, pb_s1, pb_u0, pb_u1):
    """Whole UNet forward for one batch element, entirely VMEM-resident."""
    H = pb_x.shape[0] - 2
    H1 = pb_p0.shape[0] - 2
    H2 = pb_p1.shape[0] - 2
    bf16 = jnp.bfloat16

    for pb in (pb_x, pb_p0, pb_p1, pb_s0, pb_s1, pb_u0, pb_u1):
        _zero_vpad(pb)

    # ------------------------------ encoder ------------------------------
    pb_x[1:H + 1, :] = x_ref[0]
    a0 = _conv3_relu_bn([(pb_x, be0)], ee0, H)                 # (H, W*C0)
    pb_s0[1:H + 1, :] = a0                                     # skip 0 (padded, reused by dec1)
    p0 = _avg_pool2(a0, ph0, pq0)                              # (H/2, W/2*C0)
    pb_p0[1:H1 + 1, :] = p0

    a1 = _conv3_relu_bn([(pb_p0, be1)], ee1, H1)               # (H/2, W/2*C1)
    pb_s1[1:H1 + 1, :] = a1                                    # skip 1 (padded, reused by dec0)
    p1 = _avg_pool2(a1, ph1, pq1)                              # (H/4, W/4*C1)
    pb_p1[1:H2 + 1, :] = p1

    a2 = _conv3_relu_bn([(pb_p1, be2)], ee2, H2)               # (H/4, W/4*C2)

    # --------------------------- decoder stage 0 ---------------------------
    u0 = _up1x1_bilinear(a2, up0w, up0b, uh0, ur0)             # (H/2, W/2*C1)
    pb_u0[1:H1 + 1, :] = u0
    # concat([upsampled, skip1]) fused as two accumulating matmul branches
    a3 = _conv3_relu_bn([(pb_u0, bd0u), (pb_s1, bd0s)], ed0, H1)

    # --------------------------- decoder stage 1 ---------------------------
    u1 = _up1x1_bilinear(a3, up1w, up1b, uh1, ur1)             # (H, W*C0)
    pb_u1[1:H + 1, :] = u1
    a4 = _conv3_relu_bn([(pb_u1, bd1u), (pb_s0, bd1s)], ed1, H)

    # ------------------------ final 1x1 conv + clamp(0,1) ------------------------
    y = jnp.dot(a4.astype(bf16), fw[...], preferred_element_type=jnp.float32) + fb[...]
    o_ref[0] = jnp.clip(y, 0.0, 1.0)


# ------------------------- host-side constant packing -------------------------

def _pool_mat(n):
    m = np.zeros((n // 2, n), np.float32)
    for i in range(n // 2):
        m[i, 2 * i] = 0.5
        m[i, 2 * i + 1] = 0.5
    return m


def _bilinear_up_mat(n):
    """PyTorch Upsample(mode='bilinear', align_corners=False), scale factor 2."""
    m = np.zeros((2 * n, n), np.float32)
    for o in range(2 * n):
        src = (o + 0.5) / 2.0 - 0.5
        i0 = int(np.floor(src))
        t = src - i0
        i0c = min(max(i0, 0), n - 1)
        i1c = min(max(i0 + 1, 0), n - 1)
        m[o, i0c] += 1.0 - t
        m[o, i1c] += t
    return m


def _shift_mat(W, dx):
    """(W, W) selector: input column w+dx-1 feeds output column w (zero-pad taps dropped)."""
    S = np.zeros((W, W), np.float32)
    for w in range(W):
        wi = w + dx - 1
        if 0 <= wi < W:
            S[wi, w] = 1.0
    return S


def _band_matrices(k_hwio, W):
    """(3,3,Cin,Cout) conv kernel -> (3, W*Cin, W*Cout) banded matrices (bf16).

    B_dy[(wi*Cin+ci), (w*Cout+co)] = sum_dx [wi == w+dx-1] * K[dy,dx,ci,co]."""
    mats = []
    for dy in range(3):
        B = None
        for dx in range(3):
            t = jnp.kron(jnp.asarray(_shift_mat(W, dx)), k_hwio[dy, dx])
            B = t if B is None else B + t
        mats.append(B)
    return jnp.stack(mats).astype(jnp.bfloat16)


def _tile_cols(v, W):
    # (1, C) -> (1, W*C): value for lane column w*C + c is v[0, c]
    return jnp.tile(v, (1, W))


def _epilogue(cp, W):
    # stacked (3, 1, W*C) f32: [conv bias, BN scale, BN shift], tiled across W
    return jnp.stack([_tile_cols(cp["b"], W),
                      _tile_cols(cp["scale"], W),
                      _tile_cols(cp["shift"], W)], axis=0)


def _conv1x1_mat(w1, W):
    # (Cin, Cout) -> (W*Cin, W*Cout): block-diagonal channel mixing in (H, W*C) layout
    return jnp.kron(jnp.eye(W, dtype=jnp.float32), w1).astype(jnp.bfloat16)


def _pool_consts(H, W, C):
    ph = jnp.asarray(_pool_mat(H), jnp.bfloat16)                                   # (H/2, H)
    pq = jnp.asarray(np.kron(_pool_mat(W).T, np.eye(C, dtype=np.float32)),
                     jnp.bfloat16)                                                 # (W*C, W/2*C)
    return ph, pq


def _up_consts(h, w, C):
    uh = jnp.asarray(_bilinear_up_mat(h), jnp.bfloat16)                            # (2h, h)
    ur = jnp.asarray(np.kron(_bilinear_up_mat(w).T, np.eye(C, dtype=np.float32)),
                     jnp.bfloat16)                                                 # (w*C, 2w*C)
    return uh, ur


def _pack_constants(params, H, W):
    enc, dec = params["enc"], params["dec"]
    assert len(enc) == 3 and len(dec) == 2, "fused kernel is specialized to depth=3"
    C0 = enc[0]["w"].shape[-1]
    C1 = enc[1]["w"].shape[-1]
    H1, W1, H2, W2 = H // 2, W // 2, H // 4, W // 4

    be0 = _band_matrices(enc[0]["w"], W)
    be1 = _band_matrices(enc[1]["w"], W1)
    be2 = _band_matrices(enc[2]["w"], W2)
    ee0 = _epilogue(enc[0], W)
    ee1 = _epilogue(enc[1], W1)
    ee2 = _epilogue(enc[2], W2)

    ph0, pq0 = _pool_consts(H, W, C0)
    ph1, pq1 = _pool_consts(H1, W1, C1)

    d0, d1 = dec[0], dec[1]
    up0w = _conv1x1_mat(d0["up_w"], W2)
    up0b = _tile_cols(d0["up_b"], W2)
    uh0, ur0 = _up_consts(H2, W2, C1)
    w0 = d0["conv"]["w"]                                   # (3,3, 2*C1, C1): [up | skip]
    bd0u = _band_matrices(w0[:, :, :C1, :], W1)
    bd0s = _band_matrices(w0[:, :, C1:, :], W1)
    ed0 = _epilogue(d0["conv"], W1)

    up1w = _conv1x1_mat(d1["up_w"], W1)
    up1b = _tile_cols(d1["up_b"], W1)
    uh1, ur1 = _up_consts(H1, W1, C0)
    w1k = d1["conv"]["w"]                                  # (3,3, 2*C0, C0): [up | skip]
    bd1u = _band_matrices(w1k[:, :, :C0, :], W)
    bd1s = _band_matrices(w1k[:, :, C0:, :], W)
    ed1 = _epilogue(d1["conv"], W)

    fw = _conv1x1_mat(params["final_w"], W)
    fb = _tile_cols(params["final_b"], W)

    return (be0, be1, be2, ee0, ee1, ee2,
            ph0, pq0, ph1, pq1,
            up0w, up0b, uh0, ur0, bd0u, bd0s, ed0,
            up1w, up1b, uh1, ur1, bd1u, bd1s, ed1,
            fw, fb)


def _const_spec(shape):
    nd = len(shape)
    return pl.BlockSpec(shape, lambda n, _nd=nd: (0,) * _nd)


# --------------------------------- parameters ---------------------------------

def _conv_block_params(key, cin, cout, eps=1e-5):
    k1, k2, k3, k4, k5, k6 = jax.random.split(key, 6)
    w = 0.2 * jax.random.normal(k1, (3, 3, cin, cout), jnp.float32)
    b = 0.05 * jax.random.normal(k2, (1, cout), jnp.float32)
    gamma = 1.0 + 0.1 * jax.random.normal(k3, (1, cout), jnp.float32)
    beta = 0.05 * jax.random.normal(k4, (1, cout), jnp.float32)
    mean = 0.05 * jax.random.normal(k5, (1, cout), jnp.float32)
    var = 1.0 + 0.1 * jnp.abs(jax.random.normal(k6, (1, cout), jnp.float32))
    scale = gamma / jnp.sqrt(var + eps)
    shift = beta - mean * scale
    return {"w": w, "b": b, "scale": scale, "shift": shift}


def init_params(key, in_ch=1, out_ch=1, depth=3, wf=3):
    params = {"enc": [], "dec": []}
    keys = jax.random.split(key, 64)
    ki = 0

    def nk():
        nonlocal ki
        k = keys[ki]
        ki += 1
        return k

    prev = in_ch
    for i in range(depth):
        c = 2 ** (wf + i)
        params["enc"].append(_conv_block_params(nk(), prev, c))
        prev = c
    for i in reversed(range(depth - 1)):
        c = 2 ** (wf + i)
        params["dec"].append({
            "up_w": 0.2 * jax.random.normal(nk(), (prev, c), jnp.float32),   # 1x1 conv of the up path
            "up_b": 0.05 * jax.random.normal(nk(), (1, c), jnp.float32),
            "conv": _conv_block_params(nk(), prev, c),                       # concat (up|skip) -> prev ch
        })
        prev = c
    params["final_w"] = 0.2 * jax.random.normal(nk(), (prev, out_ch), jnp.float32)
    params["final_b"] = 0.05 * jax.random.normal(nk(), (1, out_ch), jnp.float32)
    return params


# ----------------------------------- forward -----------------------------------

def unet_forward(params, x_nchw):
    N, Cin, H, W = x_nchw.shape
    assert H % 4 == 0 and W % 4 == 0, "depth=3 UNet needs spatial dims divisible by 4"
    C0 = params["enc"][0]["w"].shape[-1]
    C1 = params["enc"][1]["w"].shape[-1]
    out_ch = params["final_w"].shape[-1]
    H1, W1, H2, W2 = H // 2, W // 2, H // 4, W // 4

    consts = _pack_constants(params, H, W)
    # NCHW -> (N, H, W*Cin): row-major image rows, channel fastest within a row.
    x2d = jnp.transpose(x_nchw, (0, 2, 3, 1)).reshape(N, H, W * Cin)

    out2d = pl.pallas_call(
        _unet_kernel,
        out_shape=jax.ShapeDtypeStruct((N, H, W * out_ch), jnp.float32),
        grid=(N,),
        in_specs=[pl.BlockSpec((1, H, W * Cin), lambda n: (n, 0, 0))]
                 + [_const_spec(c.shape) for c in consts],
        out_specs=pl.BlockSpec((1, H, W * out_ch), lambda n: (n, 0, 0)),
        scratch_shapes=[
            pltpu.VMEM((H + 2, W * Cin), jnp.float32),     # padded network input
            pltpu.VMEM((H1 + 2, W1 * C0), jnp.float32),    # padded pooled enc0 (enc1 input)
            pltpu.VMEM((H2 + 2, W2 * C1), jnp.float32),    # padded pooled enc1 (enc2 input)
            pltpu.VMEM((H + 2, W * C0), jnp.float32),      # padded skip 0 (enc0 out)
            pltpu.VMEM((H1 + 2, W1 * C1), jnp.float32),    # padded skip 1 (enc1 out)
            pltpu.VMEM((H1 + 2, W1 * C1), jnp.float32),    # padded upsampled path, dec0
            pltpu.VMEM((H + 2, W * C0), jnp.float32),      # padded upsampled path, dec1
        ],
        compiler_params=pltpu.CompilerParams(
            dimension_semantics=("parallel",)),            # batch axis -> megacore on v7x
    )(x2d, *consts)

    out = out2d.reshape(N, H, W, out_ch)
    return jnp.transpose(out, (0, 3, 1, 2))                # NCHW, like the PyTorch module


if __name__ == "__main__":
    key = jax.random.PRNGKey(0)
    kp, kx = jax.random.split(key)
    params = init_params(kp, in_ch=1, out_ch=1, depth=3, wf=3)

    # PyTorch-layout input: NCHW (2, 1, 32, 32).
    x = jax.random.normal(kx, (2, 1, 32, 32), jnp.float32)

    out = unet_forward(params, x)
    out = jax.block_until_ready(out)
    assert out.shape == (2, 1, 32, 32), out.shape
    assert bool(jnp.all(jnp.isfinite(out)))
    assert bool(jnp.all(out >= 0.0)) and bool(jnp.all(out <= 1.0))
    print("KERNEL_OK")
</pallas_src>

<mosaic_0001>
module attributes {stable_mosaic.version = 11 : i64} {
  func.func @_unet_kernel(%arg0: i32, %arg1: memref<1x32x32xf32, #tpu.memory_space<vmem>>, %arg2: memref<3x32x256xbf16, #tpu.memory_space<vmem>>, %arg3: memref<3x128x256xbf16, #tpu.memory_space<vmem>>, %arg4: memref<3x128x256xbf16, #tpu.memory_space<vmem>>, %arg5: memref<3x1x256xf32, #tpu.memory_space<vmem>>, %arg6: memref<3x1x256xf32, #tpu.memory_space<vmem>>, %arg7: memref<3x1x256xf32, #tpu.memory_space<vmem>>, %arg8: memref<16x32xbf16, #tpu.memory_space<vmem>>, %arg9: memref<256x128xbf16, #tpu.memory_space<vmem>>, %arg10: memref<8x16xbf16, #tpu.memory_space<vmem>>, %arg11: memref<256x128xbf16, #tpu.memory_space<vmem>>, %arg12: memref<256x128xbf16, #tpu.memory_space<vmem>>, %arg13: memref<1x128xf32, #tpu.memory_space<vmem>>, %arg14: memref<16x8xbf16, #tpu.memory_space<vmem>>, %arg15: memref<128x256xbf16, #tpu.memory_space<vmem>>, %arg16: memref<3x256x256xbf16, #tpu.memory_space<vmem>>, %arg17: memref<3x256x256xbf16, #tpu.memory_space<vmem>>, %arg18: memref<3x1x256xf32, #tpu.memory_space<vmem>>, %arg19: memref<256x128xbf16, #tpu.memory_space<vmem>>, %arg20: memref<1x128xf32, #tpu.memory_space<vmem>>, %arg21: memref<32x16xbf16, #tpu.memory_space<vmem>>, %arg22: memref<128x256xbf16, #tpu.memory_space<vmem>>, %arg23: memref<3x256x256xbf16, #tpu.memory_space<vmem>>, %arg24: memref<3x256x256xbf16, #tpu.memory_space<vmem>>, %arg25: memref<3x1x256xf32, #tpu.memory_space<vmem>>, %arg26: memref<256x32xbf16, #tpu.memory_space<vmem>>, %arg27: memref<1x32xf32, #tpu.memory_space<vmem>>, %arg28: memref<1x32x32xf32, #tpu.memory_space<vmem>>, %arg29: memref<34x32xf32, #tpu.memory_space<vmem>>, %arg30: memref<18x128xf32, #tpu.memory_space<vmem>>, %arg31: memref<10x128xf32, #tpu.memory_space<vmem>>, %arg32: memref<34x256xf32, #tpu.memory_space<vmem>>, %arg33: memref<18x256xf32, #tpu.memory_space<vmem>>, %arg34: memref<18x256xf32, #tpu.memory_space<vmem>>, %arg35: memref<34x256xf32, #tpu.memory_space<vmem>>) attributes {dimension_semantics = [#tpu.dimension_semantics<parallel>], iteration_bounds = array<i64: 2>, scalar_prefetch = 0 : i64, scratch_operands = 7 : i64, tpu.core_type = #tpu.core_type<tc>, window_params = [{transform_indices = @transform_0, window_bounds = array<i64: 1, 32, 32>}, {pipeline_mode = #tpu.pipeline_mode<synchronous>, transform_indices = @transform_1, window_bounds = array<i64: 3, 32, 256>}, {pipeline_mode = #tpu.pipeline_mode<synchronous>, transform_indices = @transform_2, window_bounds = array<i64: 3, 128, 256>}, {pipeline_mode = #tpu.pipeline_mode<synchronous>, transform_indices = @transform_3, window_bounds = array<i64: 3, 128, 256>}, {pipeline_mode = #tpu.pipeline_mode<synchronous>, transform_indices = @transform_4, window_bounds = array<i64: 3, 1, 256>}, {pipeline_mode = #tpu.pipeline_mode<synchronous>, transform_indices = @transform_5, window_bounds = array<i64: 3, 1, 256>}, {pipeline_mode = #tpu.pipeline_mode<synchronous>, transform_indices = @transform_6, window_bounds = array<i64: 3, 1, 256>}, {pipeline_mode = #tpu.pipeline_mode<synchronous>, transform_indices = @transform_7, window_bounds = array<i64: 16, 32>}, {pipeline_mode = #tpu.pipeline_mode<synchronous>, transform_indices = @transform_8, window_bounds = array<i64: 256, 128>}, {pipeline_mode = #tpu.pipeline_mode<synchronous>, transform_indices = @transform_9, window_bounds = array<i64: 8, 16>}, {pipeline_mode = #tpu.pipeline_mode<synchronous>, transform_indices = @transform_10, window_bounds = array<i64: 256, 128>}, {pipeline_mode = #tpu.pipeline_mode<synchronous>, transform_indices = @transform_11, window_bounds = array<i64: 256, 128>}, {pipeline_mode = #tpu.pipeline_mode<synchronous>, transform_indices = @transform_12, window_bounds = array<i64: 1, 128>}, {pipeline_mode = #tpu.pipeline_mode<synchronous>, transform_indices = @transform_13, window_bounds = array<i64: 16, 8>}, {pipeline_mode = #tpu.pipeline_mode<synchronous>, transform_indices = @transform_14, window_bounds = array<i64: 128, 256>}, {pipeline_mode = #tpu.pipeline_mode<synchronous>, transform_indices = @transform_15, window_bounds = array<i64: 3, 256, 256>}, {pipeline_mode = #tpu.pipeline_mode<synchronous>, transform_indices = @transform_16, window_bounds = array<i64: 3, 256, 256>}, {pipeline_mode = #tpu.pipeline_mode<synchronous>, transform_indices = @transform_17, window_bounds = array<i64: 3, 1, 256>}, {pipeline_mode = #tpu.pipeline_mode<synchronous>, transform_indices = @transform_18, window_bounds = array<i64: 256, 128>}, {pipeline_mode = #tpu.pipeline_mode<synchronous>, transform_indices = @transform_19, window_bounds = array<i64: 1, 128>}, {pipeline_mode = #tpu.pipeline_mode<synchronous>, transform_indices = @transform_20, window_bounds = array<i64: 32, 16>}, {pipeline_mode = #tpu.pipeline_mode<synchronous>, transform_indices = @transform_21, window_bounds = array<i64: 128, 256>}, {pipeline_mode = #tpu.pipeline_mode<synchronous>, transform_indices = @transform_22, window_bounds = array<i64: 3, 256, 256>}, {pipeline_mode = #tpu.pipeline_mode<synchronous>, transform_indices = @transform_23, window_bounds = array<i64: 3, 256, 256>}, {pipeline_mode = #tpu.pipeline_mode<synchronous>, transform_indices = @transform_24, window_bounds = array<i64: 3, 1, 256>}, {pipeline_mode = #tpu.pipeline_mode<synchronous>, transform_indices = @transform_25, window_bounds = array<i64: 256, 32>}, {pipeline_mode = #tpu.pipeline_mode<synchronous>, transform_indices = @transform_26, window_bounds = array<i64: 1, 32>}, {transform_indices = @transform_27, window_bounds = array<i64: 1, 32, 32>}]} {
    %cst = arith.constant 0.000000e+00 : f32
    %0 = vector.broadcast %cst : f32 to vector<1x32xf32>
    %c0 = arith.constant 0 : index
    %c0_0 = arith.constant 0 : index
    %1 = vector.load %arg29[%c0, %c0_0] : memref<34x32xf32, #tpu.memory_space<vmem>>, vector<1x32xf32>
    tpu.vector_store %arg29[%c0, %c0_0], %0 {strides = array<i32>} : memref<34x32xf32, #tpu.memory_space<vmem>>, vector<1x32xf32>,
    %c33 = arith.constant 33 : index
    %c0_1 = arith.constant 0 : index
    %2 = vector.load %arg29[%c33, %c0_1] : memref<34x32xf32, #tpu.memory_space<vmem>>, vector<1x32xf32>
    tpu.vector_store %arg29[%c33, %c0_1], %0 {strides = array<i32>} : memref<34x32xf32, #tpu.memory_space<vmem>>, vector<1x32xf32>,
    %cst_2 = arith.constant 0.000000e+00 : f32
    %3 = vector.broadcast %cst_2 : f32 to vector<1x128xf32>
    %c0_3 = arith.constant 0 : index
    %c0_4 = arith.constant 0 : index
    %4 = vector.load %arg30[%c0_3, %c0_4] : memref<18x128xf32, #tpu.memory_space<vmem>>, vector<1x128xf32>
    tpu.vector_store %arg30[%c0_3, %c0_4], %3 {strides = array<i32>} : memref<18x128xf32, #tpu.memory_space<vmem>>, vector<1x128xf32>,
    %c17 = arith.constant 17 : index
    %c0_5 = arith.constant 0 : index
    %5 = vector.load %arg30[%c17, %c0_5] : memref<18x128xf32, #tpu.memory_space<vmem>>, vector<1x128xf32>
    tpu.vector_store %arg30[%c17, %c0_5], %3 {strides = array<i32>} : memref<18x128xf32, #tpu.memory_space<vmem>>, vector<1x128xf32>,
    %cst_6 = arith.constant 0.000000e+00 : f32
    %6 = vector.broadcast %cst_6 : f32 to vector<1x128xf32>
    %c0_7 = arith.constant 0 : index
    %c0_8 = arith.constant 0 : index
    %7 = vector.load %arg31[%c0_7, %c0_8] : memref<10x128xf32, #tpu.memory_space<vmem>>, vector<1x128xf32>
    tpu.vector_store %arg31[%c0_7, %c0_8], %6 {strides = array<i32>} : memref<10x128xf32, #tpu.memory_space<vmem>>, vector<1x128xf32>,
    %c9 = arith.constant 9 : index
    %c0_9 = arith.constant 0 : index
    %8 = vector.load %arg31[%c9, %c0_9] : memref<10x128xf32, #tpu.memory_space<vmem>>, vector<1x128xf32>
    tpu.vector_store %arg31[%c9, %c0_9], %6 {strides = array<i32>} : memref<10x128xf32, #tpu.memory_space<vmem>>, vector<1x128xf32>,
    %cst_10 = arith.constant 0.000000e+00 : f32
    %9 = vector.broadcast %cst_10 : f32 to vector<1x256xf32>
    %c0_11 = arith.constant 0 : index
    %c0_12 = arith.constant 0 : index
    %10 = vector.load %arg32[%c0_11, %c0_12] : memref<34x256xf32, #tpu.memory_space<vmem>>, vector<1x256xf32>
    tpu.vector_store %arg32[%c0_11, %c0_12], %9 {strides = array<i32>} : memref<34x256xf32, #tpu.memory_space<vmem>>, vector<1x256xf32>,
    %c33_13 = arith.constant 33 : index
    %c0_14 = arith.constant 0 : index
    %11 = vector.load %arg32[%c33_13, %c0_14] : memref<34x256xf32, #tpu.memory_space<vmem>>, vector<1x256xf32>
    tpu.vector_store %arg32[%c33_13, %c0_14], %9 {strides = array<i32>} : memref<34x256xf32, #tpu.memory_space<vmem>>, vector<1x256xf32>,
    %cst_15 = arith.constant 0.000000e+00 : f32
    %12 = vector.broadcast %cst_15 : f32 to vector<1x256xf32>
    %c0_16 = arith.constant 0 : index
    %c0_17 = arith.constant 0 : index
    %13 = vector.load %arg33[%c0_16, %c0_17] : memref<18x256xf32, #tpu.memory_space<vmem>>, vector<1x256xf32>
    tpu.vector_store %arg33[%c0_16, %c0_17], %12 {strides = array<i32>} : memref<18x256xf32, #tpu.memory_space<vmem>>, vector<1x256xf32>,
    %c17_18 = arith.constant 17 : index
    %c0_19 = arith.constant 0 : index
    %14 = vector.load %arg33[%c17_18, %c0_19] : memref<18x256xf32, #tpu.memory_space<vmem>>, vector<1x256xf32>
    tpu.vector_store %arg33[%c17_18, %c0_19], %12 {strides = array<i32>} : memref<18x256xf32, #tpu.memory_space<vmem>>, vector<1x256xf32>,
    %cst_20 = arith.constant 0.000000e+00 : f32
    %15 = vector.broadcast %cst_20 : f32 to vector<1x256xf32>
    %c0_21 = arith.constant 0 : index
    %c0_22 = arith.constant 0 : index
    %16 = vector.load %arg34[%c0_21, %c0_22] : memref<18x256xf32, #tpu.memory_space<vmem>>, vector<1x256xf32>
    tpu.vector_store %arg34[%c0_21, %c0_22], %15 {strides = array<i32>} : memref<18x256xf32, #tpu.memory_space<vmem>>, vector<1x256xf32>,
    %c17_23 = arith.constant 17 : index
    %c0_24 = arith.constant 0 : index
    %17 = vector.load %arg34[%c17_23, %c0_24] : memref<18x256xf32, #tpu.memory_space<vmem>>, vector<1x256xf32>
    tpu.vector_store %arg34[%c17_23, %c0_24], %15 {strides = array<i32>} : memref<18x256xf32, #tpu.memory_space<vmem>>, vector<1x256xf32>,
    %cst_25 = arith.constant 0.000000e+00 : f32
    %18 = vector.broadcast %cst_25 : f32 to vector<1x256xf32>
    %c0_26 = arith.constant 0 : index
    %c0_27 = arith.constant 0 : index
    %19 = vector.load %arg35[%c0_26, %c0_27] : memref<34x256xf32, #tpu.memory_space<vmem>>, vector<1x256xf32>
    tpu.vector_store %arg35[%c0_26, %c0_27], %18 {strides = array<i32>} : memref<34x256xf32, #tpu.memory_space<vmem>>, vector<1x256xf32>,
    %c33_28 = arith.constant 33 : index
    %c0_29 = arith.constant 0 : index
    %20 = vector.load %arg35[%c33_28, %c0_29] : memref<34x256xf32, #tpu.memory_space<vmem>>, vector<1x256xf32>
    tpu.vector_store %arg35[%c33_28, %c0_29], %18 {strides = array<i32>} : memref<34x256xf32, #tpu.memory_space<vmem>>, vector<1x256xf32>,
    %c0_30 = arith.constant 0 : index
    %c0_31 = arith.constant 0 : index
    %c0_32 = arith.constant 0 : index
    %21 = vector.load %arg1[%c0_30, %c0_31, %c0_32] : memref<1x32x32xf32, #tpu.memory_space<vmem>>, vector<1x32x32xf32>
    %22 = vector.shape_cast %21 : vector<1x32x32xf32> to vector<32x32xf32>
    %c1 = arith.constant 1 : index
    %c0_33 = arith.constant 0 : index
    %23 = vector.load %arg29[%c1, %c0_33] : memref<34x32xf32, #tpu.memory_space<vmem>>, vector<32x32xf32>
    tpu.vector_store %arg29[%c1, %c0_33], %22 {strides = array<i32>} : memref<34x32xf32, #tpu.memory_space<vmem>>, vector<32x32xf32>,
    %c0_34 = arith.constant 0 : index
    %c0_35 = arith.constant 0 : index
    %24 = vector.load %arg29[%c0_34, %c0_35] : memref<34x32xf32, #tpu.memory_space<vmem>>, vector<32x32xf32>
    %25 = arith.truncf %24 : vector<32x32xf32> to vector<32x32xbf16>
    %c0_36 = arith.constant 0 : index
    %c0_37 = arith.constant 0 : index
    %c0_38 = arith.constant 0 : index
    %26 = vector.load %arg2[%c0_36, %c0_37, %c0_38] : memref<3x32x256xbf16, #tpu.memory_space<vmem>>, vector<1x32x256xbf16>
    %27 = vector.shape_cast %26 : vector<1x32x256xbf16> to vector<32x256xbf16>
    %cst_39 = arith.constant dense<0.000000e+00> : vector<32x256xf32>
    %28 = tpu.matmul %25, %27, %cst_39 {dimension_numbers = #tpu.dot_dimension_numbers<[1], [0], [0], [1], [0, 0, 1, 1], [], []>} : vector<32x32xbf16>, vector<32x256xbf16>, vector<32x256xf32> -> vector<32x256xf32>
    %c1_40 = arith.constant 1 : index
    %c0_41 = arith.constant 0 : index
    %29 = vector.load %arg29[%c1_40, %c0_41] : memref<34x32xf32, #tpu.memory_space<vmem>>, vector<32x32xf32>
    %30 = arith.truncf %29 : vector<32x32xf32> to vector<32x32xbf16>
    %c1_42 = arith.constant 1 : index
    %c0_43 = arith.constant 0 : index
    %c0_44 = arith.constant 0 : index
    %31 = vector.load %arg2[%c1_42, %c0_43, %c0_44] : memref<3x32x256xbf16, #tpu.memory_space<vmem>>, vector<1x32x256xbf16>
    %32 = vector.shape_cast %31 : vector<1x32x256xbf16> to vector<32x256xbf16>
    %cst_45 = arith.constant dense<0.000000e+00> : vector<32x256xf32>
    %33 = tpu.matmul %30, %32, %cst_45 {dimension_numbers = #tpu.dot_dimension_numbers<[1], [0], [0], [1], [0, 0, 1, 1], [], []>} : vector<32x32xbf16>, vector<32x256xbf16>, vector<32x256xf32> -> vector<32x256xf32>
    %34 = arith.addf %28, %33 : vector<32x256xf32>
    %c2 = arith.constant 2 : index
    %c0_46 = arith.constant 0 : index
    %35 = vector.load %arg29[%c2, %c0_46] : memref<34x32xf32, #tpu.memory_space<vmem>>, vector<32x32xf32>
    %36 = arith.truncf %35 : vector<32x32xf32> to vector<32x32xbf16>
    %c2_47 = arith.constant 2 : index
    %c0_48 = arith.constant 0 : index
    %c0_49 = arith.constant 0 : index
    %37 = vector.load %arg2[%c2_47, %c0_48, %c0_49] : memref<3x32x256xbf16, #tpu.memory_space<vmem>>, vector<1x32x256xbf16>
    %38 = vector.shape_cast %37 : vector<1x32x256xbf16> to vector<32x256xbf16>
    %cst_50 = arith.constant dense<0.000000e+00> : vector<32x256xf32>
    %39 = tpu.matmul %36, %38, %cst_50 {dimension_numbers = #tpu.dot_dimension_numbers<[1], [0], [0], [1], [0, 0, 1, 1], [], []>} : vector<32x32xbf16>, vector<32x256xbf16>, vector<32x256xf32> -> vector<32x256xf32>
    %40 = arith.addf %34, %39 : vector<32x256xf32>
    %c0_51 = arith.constant 0 : index
    %c0_52 = arith.constant 0 : index
    %c0_53 = arith.constant 0 : index
    %41 = vector.load %arg5[%c0_51, %c0_52, %c0_53] : memref<3x1x256xf32, #tpu.memory_space<vmem>>, vector<1x1x256xf32>
    %42 = vector.shape_cast %41 : vector<1x1x256xf32> to vector<1x256xf32>
    %43 = vector.broadcast %42 : vector<1x256xf32> to vector<32x256xf32>
    %44 = arith.addf %40, %43 : vector<32x256xf32>
    %cst_54 = arith.constant 0.000000e+00 : f32
    %45 = vector.broadcast %cst_54 : f32 to vector<32x256xf32>
    %46 = arith.maximumf %44, %45 : vector<32x256xf32>
    %c1_55 = arith.constant 1 : index
    %c0_56 = arith.constant 0 : index
    %c0_57 = arith.constant 0 : index
    %47 = vector.load %arg5[%c1_55, %c0_56, %c0_57] : memref<3x1x256xf32, #tpu.memory_space<vmem>>, vector<1x1x256xf32>
    %48 = vector.shape_cast %47 : vector<1x1x256xf32> to vector<1x256xf32>
    %49 = vector.broadcast %48 : vector<1x256xf32> to vector<32x256xf32>
    %50 = arith.mulf %46, %49 : vector<32x256xf32>
    %c2_58 = arith.constant 2 : index
    %c0_59 = arith.constant 0 : index
    %c0_60 = arith.constant 0 : index
    %51 = vector.load %arg5[%c2_58, %c0_59, %c0_60] : memref<3x1x256xf32, #tpu.memory_space<vmem>>, vector<1x1x256xf32>
    %52 = vector.shape_cast %51 : vector<1x1x256xf32> to vector<1x256xf32>
    %53 = vector.broadcast %52 : vector<1x256xf32> to vector<32x256xf32>
    %54 = arith.addf %50, %53 : vector<32x256xf32>
    %c1_61 = arith.constant 1 : index
    %c0_62 = arith.constant 0 : index
    %55 = vector.load %arg32[%c1_61, %c0_62] : memref<34x256xf32, #tpu.memory_space<vmem>>, vector<32x256xf32>
    tpu.vector_store %arg32[%c1_61, %c0_62], %54 {strides = array<i32>} : memref<34x256xf32, #tpu.memory_space<vmem>>, vector<32x256xf32>,
    %c0_63 = arith.constant 0 : index
    %c0_64 = arith.constant 0 : index
    %56 = vector.load %arg8[%c0_63, %c0_64] : memref<16x32xbf16, #tpu.memory_space<vmem>>, vector<16x32xbf16>
    %57 = arith.truncf %54 : vector<32x256xf32> to vector<32x256xbf16>
    %cst_65 = arith.constant dense<0.000000e+00> : vector<16x256xf32>
    %58 = tpu.matmul %56, %57, %cst_65 {dimension_numbers = #tpu.dot_dimension_numbers<[1], [0], [0], [1], [0, 0, 1, 1], [], []>} : vector<16x32xbf16>, vector<32x256xbf16>, vector<16x256xf32> -> vector<16x256xf32>
    %59 = arith.truncf %58 : vector<16x256xf32> to vector<16x256xbf16>
    %c0_66 = arith.constant 0 : index
    %c0_67 = arith.constant 0 : index
    %60 = vector.load %arg9[%c0_66, %c0_67] : memref<256x128xbf16, #tpu.memory_space<vmem>>, vector<256x128xbf16>
    %cst_68 = arith.constant dense<0.000000e+00> : vector<16x128xf32>
    %61 = tpu.matmul %59, %60, %cst_68 {dimension_numbers = #tpu.dot_dimension_numbers<[1], [0], [0], [1], [0, 0, 1, 1], [], []>} : vector<16x256xbf16>, vector<256x128xbf16>, vector<16x128xf32> -> vector<16x128xf32>
    %c1_69 = arith.constant 1 : index
    %c0_70 = arith.constant 0 : index
    %62 = vector.load %arg30[%c1_69, %c0_70] : memref<18x128xf32, #tpu.memory_space<vmem>>, vector<16x128xf32>
    tpu.vector_store %arg30[%c1_69, %c0_70], %61 {strides = array<i32>} : memref<18x128xf32, #tpu.memory_space<vmem>>, vector<16x128xf32>,
    %c0_71 = arith.constant 0 : index
    %c0_72 = arith.constant 0 : index
    %63 = vector.load %arg30[%c0_71, %c0_72] : memref<18x128xf32, #tpu.memory_space<vmem>>, vector<16x128xf32>
    %64 = arith.truncf %63 : vector<16x128xf32> to vector<16x128xbf16>
    %c0_73 = arith.constant 0 : index
    %c0_74 = arith.constant 0 : index
    %c0_75 = arith.constant 0 : index
    %65 = vector.load %arg3[%c0_73, %c0_74, %c0_75] : memref<3x128x256xbf16, #tpu.memory_space<vmem>>, vector<1x128x256xbf16>
    %66 = vector.shape_cast %65 : vector<1x128x256xbf16> to vector<128x256xbf16>
    %cst_76 = arith.constant dense<0.000000e+00> : vector<16x256xf32>
    %67 = tpu.matmul %64, %66, %cst_76 {dimension_numbers = #tpu.dot_dimension_numbers<[1], [0], [0], [1], [0, 0, 1, 1], [], []>} : vector<16x128xbf16>, vector<128x256xbf16>, vector<16x256xf32> -> vector<16x256xf32>
    %c1_77 = arith.constant 1 : index
    %c0_78 = arith.constant 0 : index
    %68 = vector.load %arg30[%c1_77, %c0_78] : memref<18x128xf32, #tpu.memory_space<vmem>>, vector<16x128xf32>
    %69 = arith.truncf %68 : vector<16x128xf32> to vector<16x128xbf16>
    %c1_79 = arith.constant 1 : index
    %c0_80 = arith.constant 0 : index
    %c0_81 = arith.constant 0 : index
    %70 = vector.load %arg3[%c1_79, %c0_80, %c0_81] : memref<3x128x256xbf16, #tpu.memory_space<vmem>>, vector<1x128x256xbf16>
    %71 = vector.shape_cast %70 : vector<1x128x256xbf16> to vector<128x256xbf16>
    %cst_82 = arith.constant dense<0.000000e+00> : vector<16x256xf32>
    %72 = tpu.matmul %69, %71, %cst_82 {dimension_numbers = #tpu.dot_dimension_numbers<[1], [0], [0], [1], [0, 0, 1, 1], [], []>} : vector<16x128xbf16>, vector<128x256xbf16>, vector<16x256xf32> -> vector<16x256xf32>
    %73 = arith.addf %67, %72 : vector<16x256xf32>
    %c2_83 = arith.constant 2 : index
    %c0_84 = arith.constant 0 : index
    %74 = vector.load %arg30[%c2_83, %c0_84] : memref<18x128xf32, #tpu.memory_space<vmem>>, vector<16x128xf32>
    %75 = arith.truncf %74 : vector<16x128xf32> to vector<16x128xbf16>
    %c2_85 = arith.constant 2 : index
    %c0_86 = arith.constant 0 : index
    %c0_87 = arith.constant 0 : index
    %76 = vector.load %arg3[%c2_85, %c0_86, %c0_87] : memref<3x128x256xbf16, #tpu.memory_space<vmem>>, vector<1x128x256xbf16>
    %77 = vector.shape_cast %76 : vector<1x128x256xbf16> to vector<128x256xbf16>
    %cst_88 = arith.constant dense<0.000000e+00> : vector<16x256xf32>
    %78 = tpu.matmul %75, %77, %cst_88 {dimension_numbers = #tpu.dot_dimension_numbers<[1], [0], [0], [1], [0, 0, 1, 1], [], []>} : vector<16x128xbf16>, vector<128x256xbf16>, vector<16x256xf32> -> vector<16x256xf32>
    %79 = arith.addf %73, %78 : vector<16x256xf32>
    %c0_89 = arith.constant 0 : index
    %c0_90 = arith.constant 0 : index
    %c0_91 = arith.constant 0 : index
    %80 = vector.load %arg6[%c0_89, %c0_90, %c0_91] : memref<3x1x256xf32, #tpu.memory_space<vmem>>, vector<1x1x256xf32>
    %81 = vector.shape_cast %80 : vector<1x1x256xf32> to vector<1x256xf32>
    %82 = vector.broadcast %81 : vector<1x256xf32> to vector<16x256xf32>
    %83 = arith.addf %79, %82 : vector<16x256xf32>
    %cst_92 = arith.constant 0.000000e+00 : f32
    %84 = vector.broadcast %cst_92 : f32 to vector<16x256xf32>
    %85 = arith.maximumf %83, %84 : vector<16x256xf32>
    %c1_93 = arith.constant 1 : index
    %c0_94 = arith.constant 0 : index
    %c0_95 = arith.constant 0 : index
    %86 = vector.load %arg6[%c1_93, %c0_94, %c0_95] : memref<3x1x256xf32, #tpu.memory_space<vmem>>, vector<1x1x256xf32>
    %87 = vector.shape_cast %86 : vector<1x1x256xf32> to vector<1x256xf32>
    %88 = vector.broadcast %87 : vector<1x256xf32> to vector<16x256xf32>
    %89 = arith.mulf %85, %88 : vector<16x256xf32>
    %c2_96 = arith.constant 2 : index
    %c0_97 = arith.constant 0 : index
    %c0_98 = arith.constant 0 : index
    %90 = vector.load %arg6[%c2_96, %c0_97, %c0_98] : memref<3x1x256xf32, #tpu.memory_space<vmem>>, vector<1x1x256xf32>
    %91 = vector.shape_cast %90 : vector<1x1x256xf32> to vector<1x256xf32>
    %92 = vector.broadcast %91 : vector<1x256xf32> to vector<16x256xf32>
    %93 = arith.addf %89, %92 : vector<16x256xf32>
    %c1_99 = arith.constant 1 : index
    %c0_100 = arith.constant 0 : index
    %94 = vector.load %arg33[%c1_99, %c0_100] : memref<18x256xf32, #tpu.memory_space<vmem>>, vector<16x256xf32>
    tpu.vector_store %arg33[%c1_99, %c0_100], %93 {strides = array<i32>} : memref<18x256xf32, #tpu.memory_space<vmem>>, vector<16x256xf32>,
    %c0_101 = arith.constant 0 : index
    %c0_102 = arith.constant 0 : index
    %95 = vector.load %arg10[%c0_101, %c0_102] : memref<8x16xbf16, #tpu.memory_space<vmem>>, vector<8x16xbf16>
    %96 = arith.truncf %93 : vector<16x256xf32> to vector<16x256xbf16>
    %cst_103 = arith.constant dense<0.000000e+00> : vector<8x256xf32>
    %97 = tpu.matmul %95, %96, %cst_103 {dimension_numbers = #tpu.dot_dimension_numbers<[1], [0], [0], [1], [0, 0, 1, 1], [], []>} : vector<8x16xbf16>, vector<16x256xbf16>, vector<8x256xf32> -> vector<8x256xf32>
    %98 = arith.truncf %97 : vector<8x256xf32> to vector<8x256xbf16>
    %c0_104 = arith.constant 0 : index
    %c0_105 = arith.constant 0 : index
    %99 = vector.load %arg11[%c0_104, %c0_105] : memref<256x128xbf16, #tpu.memory_space<vmem>>, vector<256x128xbf16>
    %cst_106 = arith.constant dense<0.000000e+00> : vector<8x128xf32>
    %100 = tpu.matmul %98, %99, %cst_106 {dimension_numbers = #tpu.dot_dimension_numbers<[1], [0], [0], [1], [0, 0, 1, 1], [], []>} : vector<8x256xbf16>, vector<256x128xbf16>, vector<8x128xf32> -> vector<8x128xf32>
    %c1_107 = arith.constant 1 : index
    %c0_108 = arith.constant 0 : index
    %101 = vector.load %arg31[%c1_107, %c0_108] : memref<10x128xf32, #tpu.memory_space<vmem>>, vector<8x128xf32>
    tpu.vector_store %arg31[%c1_107, %c0_108], %100 {strides = array<i32>} : memref<10x128xf32, #tpu.memory_space<vmem>>, vector<8x128xf32>,
    %c0_109 = arith.constant 0 : index
    %c0_110 = arith.constant 0 : index
    %102 = vector.load %arg31[%c0_109, %c0_110] : memref<10x128xf32, #tpu.memory_space<vmem>>, vector<8x128xf32>
    %103 = arith.truncf %102 : vector<8x128xf32> to vector<8x128xbf16>
    %c0_111 = arith.constant 0 : index
    %c0_112 = arith.constant 0 : index
    %c0_113 = arith.constant 0 : index
    %104 = vector.load %arg4[%c0_111, %c0_112, %c0_113] : memref<3x128x256xbf16, #tpu.memory_space<vmem>>, vector<1x128x256xbf16>
    %105 = vector.shape_cast %104 : vector<1x128x256xbf16> to vector<128x256xbf16>
    %cst_114 = arith.constant dense<0.000000e+00> : vector<8x256xf32>
    %106 = tpu.matmul %103, %105, %cst_114 {dimension_numbers = #tpu.dot_dimension_numbers<[1], [0], [0], [1], [0, 0, 1, 1], [], []>} : vector<8x128xbf16>, vector<128x256xbf16>, vector<8x256xf32> -> vector<8x256xf32>
    %c1_115 = arith.constant 1 : index
    %c0_116 = arith.constant 0 : index
    %107 = vector.load %arg31[%c1_115, %c0_116] : memref<10x128xf32, #tpu.memory_space<vmem>>, vector<8x128xf32>
    %108 = arith.truncf %107 : vector<8x128xf32> to vector<8x128xbf16>
    %c1_117 = arith.constant 1 : index
    %c0_118 = arith.constant 0 : index
    %c0_119 = arith.constant 0 : index
    %109 = vector.load %arg4[%c1_117, %c0_118, %c0_119] : memref<3x128x256xbf16, #tpu.memory_space<vmem>>, vector<1x128x256xbf16>
    %110 = vector.shape_cast %109 : vector<1x128x256xbf16> to vector<128x256xbf16>
    %cst_120 = arith.constant dense<0.000000e+00> : vector<8x256xf32>
    %111 = tpu.matmul %108, %110, %cst_120 {dimension_numbers = #tpu.dot_dimension_numbers<[1], [0], [0], [1], [0, 0, 1, 1], [], []>} : vector<8x128xbf16>, vector<128x256xbf16>, vector<8x256xf32> -> vector<8x256xf32>
    %112 = arith.addf %106, %111 : vector<8x256xf32>
    %c2_121 = arith.constant 2 : index
    %c0_122 = arith.constant 0 : index
    %113 = vector.load %arg31[%c2_121, %c0_122] : memref<10x128xf32, #tpu.memory_space<vmem>>, vector<8x128xf32>
    %114 = arith.truncf %113 : vector<8x128xf32> to vector<8x128xbf16>
    %c2_123 = arith.constant 2 : index
    %c0_124 = arith.constant 0 : index
    %c0_125 = arith.constant 0 : index
    %115 = vector.load %arg4[%c2_123, %c0_124, %c0_125] : memref<3x128x256xbf16, #tpu.memory_space<vmem>>, vector<1x128x256xbf16>
    %116 = vector.shape_cast %115 : vector<1x128x256xbf16> to vector<128x256xbf16>
    %cst_126 = arith.constant dense<0.000000e+00> : vector<8x256xf32>
    %117 = tpu.matmul %114, %116, %cst_126 {dimension_numbers = #tpu.dot_dimension_numbers<[1], [0], [0], [1], [0, 0, 1, 1], [], []>} : vector<8x128xbf16>, vector<128x256xbf16>, vector<8x256xf32> -> vector<8x256xf32>
    %118 = arith.addf %112, %117 : vector<8x256xf32>
    %c0_127 = arith.constant 0 : index
    %c0_128 = arith.constant 0 : index
    %c0_129 = arith.constant 0 : index
    %119 = vector.load %arg7[%c0_127, %c0_128, %c0_129] : memref<3x1x256xf32, #tpu.memory_space<vmem>>, vector<1x1x256xf32>
    %120 = vector.shape_cast %119 : vector<1x1x256xf32> to vector<1x256xf32>
    %121 = vector.broadcast %120 : vector<1x256xf32> to vector<8x256xf32>
    %122 = arith.addf %118, %121 : vector<8x256xf32>
    %cst_130 = arith.constant 0.000000e+00 : f32
    %123 = vector.broadcast %cst_130 : f32 to vector<8x256xf32>
    %124 = arith.maximumf %122, %123 : vector<8x256xf32>
    %c1_131 = arith.constant 1 : index
    %c0_132 = arith.constant 0 : index
    %c0_133 = arith.constant 0 : index
    %125 = vector.load %arg7[%c1_131, %c0_132, %c0_133] : memref<3x1x256xf32, #tpu.memory_space<vmem>>, vector<1x1x256xf32>
    %126 = vector.shape_cast %125 : vector<1x1x256xf32> to vector<1x256xf32>
    %127 = vector.broadcast %126 : vector<1x256xf32> to vector<8x256xf32>
    %128 = arith.mulf %124, %127 : vector<8x256xf32>
    %c2_134 = arith.constant 2 : index
    %c0_135 = arith.constant 0 : index
    %c0_136 = arith.constant 0 : index
    %129 = vector.load %arg7[%c2_134, %c0_135, %c0_136] : memref<3x1x256xf32, #tpu.memory_space<vmem>>, vector<1x1x256xf32>
    %130 = vector.shape_cast %129 : vector<1x1x256xf32> to vector<1x256xf32>
    %131 = vector.broadcast %130 : vector<1x256xf32> to vector<8x256xf32>
    %132 = arith.addf %128, %131 : vector<8x256xf32>
    %133 = arith.truncf %132 : vector<8x256xf32> to vector<8x256xbf16>
    %c0_137 = arith.constant 0 : index
    %c0_138 = arith.constant 0 : index
    %134 = vector.load %arg12[%c0_137, %c0_138] : memref<256x128xbf16, #tpu.memory_space<vmem>>, vector<256x128xbf16>
    %cst_139 = arith.constant dense<0.000000e+00> : vector<8x128xf32>
    %135 = tpu.matmul %133, %134, %cst_139 {dimension_numbers = #tpu.dot_dimension_numbers<[1], [0], [0], [1], [0, 0, 1, 1], [], []>} : vector<8x256xbf16>, vector<256x128xbf16>, vector<8x128xf32> -> vector<8x128xf32>
    %c0_140 = arith.constant 0 : index
    %c0_141 = arith.constant 0 : index
    %136 = vector.load %arg13[%c0_140, %c0_141] : memref<1x128xf32, #tpu.memory_space<vmem>>, vector<1x128xf32>
    %137 = vector.broadcast %136 : vector<1x128xf32> to vector<8x128xf32>
    %138 = arith.addf %135, %137 : vector<8x128xf32>
    %c0_142 = arith.constant 0 : index
    %c0_143 = arith.constant 0 : index
    %139 = vector.load %arg14[%c0_142, %c0_143] : memref<16x8xbf16, #tpu.memory_space<vmem>>, vector<16x8xbf16>
    %140 = arith.truncf %138 : vector<8x128xf32> to vector<8x128xbf16>
    %cst_144 = arith.constant dense<0.000000e+00> : vector<16x128xf32>
    %141 = tpu.matmul %139, %140, %cst_144 {dimension_numbers = #tpu.dot_dimension_numbers<[1], [0], [0], [1], [0, 0, 1, 1], [], []>} : vector<16x8xbf16>, vector<8x128xbf16>, vector<16x128xf32> -> vector<16x128xf32>
    %142 = arith.truncf %141 : vector<16x128xf32> to vector<16x128xbf16>
    %c0_145 = arith.constant 0 : index
    %c0_146 = arith.constant 0 : index
    %143 = vector.load %arg15[%c0_145, %c0_146] : memref<128x256xbf16, #tpu.memory_space<vmem>>, vector<128x256xbf16>
    %cst_147 = arith.constant dense<0.000000e+00> : vector<16x256xf32>
    %144 = tpu.matmul %142, %143, %cst_147 {dimension_numbers = #tpu.dot_dimension_numbers<[1], [0], [0], [1], [0, 0, 1, 1], [], []>} : vector<16x128xbf16>, vector<128x256xbf16>, vector<16x256xf32> -> vector<16x256xf32>
    %c1_148 = arith.constant 1 : index
    %c0_149 = arith.constant 0 : index
    %145 = vector.load %arg34[%c1_148, %c0_149] : memref<18x256xf32, #tpu.memory_space<vmem>>, vector<16x256xf32>
    tpu.vector_store %arg34[%c1_148, %c0_149], %144 {strides = array<i32>} : memref<18x256xf32, #tpu.memory_space<vmem>>, vector<16x256xf32>,
    %c0_150 = arith.constant 0 : index
    %c0_151 = arith.constant 0 : index
    %146 = vector.load %arg34[%c0_150, %c0_151] : memref<18x256xf32, #tpu.memory_space<vmem>>, vector<16x256xf32>
    %147 = arith.truncf %146 : vector<16x256xf32> to vector<16x256xbf16>
    %c0_152 = arith.constant 0 : index
    %c0_153 = arith.constant 0 : index
    %c0_154 = arith.constant 0 : index
    %148 = vector.load %arg16[%c0_152, %c0_153, %c0_154] : memref<3x256x256xbf16, #tpu.memory_space<vmem>>, vector<1x256x256xbf16>
    %149 = vector.shape_cast %148 : vector<1x256x256xbf16> to vector<256x256xbf16>
    %cst_155 = arith.constant dense<0.000000e+00> : vector<16x256xf32>
    %150 = tpu.matmul %147, %149, %cst_155 {dimension_numbers = #tpu.dot_dimension_numbers<[1], [0], [0], [1], [0, 0, 1, 1], [], []>} : vector<16x256xbf16>, vector<256x256xbf16>, vector<16x256xf32> -> vector<16x256xf32>
    %c1_156 = arith.constant 1 : index
    %c0_157 = arith.constant 0 : index
    %151 = vector.load %arg34[%c1_156, %c0_157] : memref<18x256xf32, #tpu.memory_space<vmem>>, vector<16x256xf32>
    %152 = arith.truncf %151 : vector<16x256xf32> to vector<16x256xbf16>
    %c1_158 = arith.constant 1 : index
    %c0_159 = arith.constant 0 : index
    %c0_160 = arith.constant 0 : index
    %153 = vector.load %arg16[%c1_158, %c0_159, %c0_160] : memref<3x256x256xbf16, #tpu.memory_space<vmem>>, vector<1x256x256xbf16>
    %154 = vector.shape_cast %153 : vector<1x256x256xbf16> to vector<256x256xbf16>
    %cst_161 = arith.constant dense<0.000000e+00> : vector<16x256xf32>
    %155 = tpu.matmul %152, %154, %cst_161 {dimension_numbers = #tpu.dot_dimension_numbers<[1], [0], [0], [1], [0, 0, 1, 1], [], []>} : vector<16x256xbf16>, vector<256x256xbf16>, vector<16x256xf32> -> vector<16x256xf32>
    %156 = arith.addf %150, %155 : vector<16x256xf32>
    %c2_162 = arith.constant 2 : index
    %c0_163 = arith.constant 0 : index
    %157 = vector.load %arg34[%c2_162, %c0_163] : memref<18x256xf32, #tpu.memory_space<vmem>>, vector<16x256xf32>
    %158 = arith.truncf %157 : vector<16x256xf32> to vector<16x256xbf16>
    %c2_164 = arith.constant 2 : index
    %c0_165 = arith.constant 0 : index
    %c0_166 = arith.constant 0 : index
    %159 = vector.load %arg16[%c2_164, %c0_165, %c0_166] : memref<3x256x256xbf16, #tpu.memory_space<vmem>>, vector<1x256x256xbf16>
    %160 = vector.shape_cast %159 : vector<1x256x256xbf16> to vector<256x256xbf16>
    %cst_167 = arith.constant dense<0.000000e+00> : vector<16x256xf32>
    %161 = tpu.matmul %158, %160, %cst_167 {dimension_numbers = #tpu.dot_dimension_numbers<[1], [0], [0], [1], [0, 0, 1, 1], [], []>} : vector<16x256xbf16>, vector<256x256xbf16>, vector<16x256xf32> -> vector<16x256xf32>
    %162 = arith.addf %156, %161 : vector<16x256xf32>
    %c0_168 = arith.constant 0 : index
    %c0_169 = arith.constant 0 : index
    %163 = vector.load %arg33[%c0_168, %c0_169] : memref<18x256xf32, #tpu.memory_space<vmem>>, vector<16x256xf32>
    %164 = arith.truncf %163 : vector<16x256xf32> to vector<16x256xbf16>
    %c0_170 = arith.constant 0 : index
    %c0_171 = arith.constant 0 : index
    %c0_172 = arith.constant 0 : index
    %165 = vector.load %arg17[%c0_170, %c0_171, %c0_172] : memref<3x256x256xbf16, #tpu.memory_space<vmem>>, vector<1x256x256xbf16>
    %166 = vector.shape_cast %165 : vector<1x256x256xbf16> to vector<256x256xbf16>
    %cst_173 = arith.constant dense<0.000000e+00> : vector<16x256xf32>
    %167 = tpu.matmul %164, %166, %cst_173 {dimension_numbers = #tpu.dot_dimension_numbers<[1], [0], [0], [1], [0, 0, 1, 1], [], []>} : vector<16x256xbf16>, vector<256x256xbf16>, vector<16x256xf32> -> vector<16x256xf32>
    %168 = arith.addf %162, %167 : vector<16x256xf32>
    %c1_174 = arith.constant 1 : index
    %c0_175 = arith.constant 0 : index
    %169 = vector.load %arg33[%c1_174, %c0_175] : memref<18x256xf32, #tpu.memory_space<vmem>>, vector<16x256xf32>
    %170 = arith.truncf %169 : vector<16x256xf32> to vector<16x256xbf16>
    %c1_176 = arith.constant 1 : index
    %c0_177 = arith.constant 0 : index
    %c0_178 = arith.constant 0 : index
    %171 = vector.load %arg17[%c1_176, %c0_177, %c0_178] : memref<3x256x256xbf16, #tpu.memory_space<vmem>>, vector<1x256x256xbf16>
    %172 = vector.shape_cast %171 : vector<1x256x256xbf16> to vector<256x256xbf16>
    %cst_179 = arith.constant dense<0.000000e+00> : vector<16x256xf32>
    %173 = tpu.matmul %170, %172, %cst_179 {dimension_numbers = #tpu.dot_dimension_numbers<[1], [0], [0], [1], [0, 0, 1, 1], [], []>} : vector<16x256xbf16>, vector<256x256xbf16>, vector<16x256xf32> -> vector<16x256xf32>
    %174 = arith.addf %168, %173 : vector<16x256xf32>
    %c2_180 = arith.constant 2 : index
    %c0_181 = arith.constant 0 : index
    %175 = vector.load %arg33[%c2_180, %c0_181] : memref<18x256xf32, #tpu.memory_space<vmem>>, vector<16x256xf32>
    %176 = arith.truncf %175 : vector<16x256xf32> to vector<16x256xbf16>
    %c2_182 = arith.constant 2 : index
    %c0_183 = arith.constant 0 : index
    %c0_184 = arith.constant 0 : index
    %177 = vector.load %arg17[%c2_182, %c0_183, %c0_184] : memref<3x256x256xbf16, #tpu.memory_space<vmem>>, vector<1x256x256xbf16>
    %178 = vector.shape_cast %177 : vector<1x256x256xbf16> to vector<256x256xbf16>
    %cst_185 = arith.constant dense<0.000000e+00> : vector<16x256xf32>
    %179 = tpu.matmul %176, %178, %cst_185 {dimension_numbers = #tpu.dot_dimension_numbers<[1], [0], [0], [1], [0, 0, 1, 1], [], []>} : vector<16x256xbf16>, vector<256x256xbf16>, vector<16x256xf32> -> vector<16x256xf32>
    %180 = arith.addf %174, %179 : vector<16x256xf32>
    %c0_186 = arith.constant 0 : index
    %c0_187 = arith.constant 0 : index
    %c0_188 = arith.constant 0 : index
    %181 = vector.load %arg18[%c0_186, %c0_187, %c0_188] : memref<3x1x256xf32, #tpu.memory_space<vmem>>, vector<1x1x256xf32>
    %182 = vector.shape_cast %181 : vector<1x1x256xf32> to vector<1x256xf32>
    %183 = vector.broadcast %182 : vector<1x256xf32> to vector<16x256xf32>
    %184 = arith.addf %180, %183 : vector<16x256xf32>
    %cst_189 = arith.constant 0.000000e+00 : f32
    %185 = vector.broadcast %cst_189 : f32 to vector<16x256xf32>
    %186 = arith.maximumf %184, %185 : vector<16x256xf32>
    %c1_190 = arith.constant 1 : index
    %c0_191 = arith.constant 0 : index
    %c0_192 = arith.constant 0 : index
    %187 = vector.load %arg18[%c1_190, %c0_191, %c0_192] : memref<3x1x256xf32, #tpu.memory_space<vmem>>, vector<1x1x256xf32>
    %188 = vector.shape_cast %187 : vector<1x1x256xf32> to vector<1x256xf32>
    %189 = vector.broadcast %188 : vector<1x256xf32> to vector<16x256xf32>
    %190 = arith.mulf %186, %189 : vector<16x256xf32>
    %c2_193 = arith.constant 2 : index
    %c0_194 = arith.constant 0 : index
    %c0_195 = arith.constant 0 : index
    %191 = vector.load %arg18[%c2_193, %c0_194, %c0_195] : memref<3x1x256xf32, #tpu.memory_space<vmem>>, vector<1x1x256xf32>
    %192 = vector.shape_cast %191 : vector<1x1x256xf32> to vector<1x256xf32>
    %193 = vector.broadcast %192 : vector<1x256xf32> to vector<16x256xf32>
    %194 = arith.addf %190, %193 : vector<16x256xf32>
    %195 = arith.truncf %194 : vector<16x256xf32> to vector<16x256xbf16>
    %c0_196 = arith.constant 0 : index
    %c0_197 = arith.constant 0 : index
    %196 = vector.load %arg19[%c0_196, %c0_197] : memref<256x128xbf16, #tpu.memory_space<vmem>>, vector<256x128xbf16>
    %cst_198 = arith.constant dense<0.000000e+00> : vector<16x128xf32>
    %197 = tpu.matmul %195, %196, %cst_198 {dimension_numbers = #tpu.dot_dimension_numbers<[1], [0], [0], [1], [0, 0, 1, 1], [], []>} : vector<16x256xbf16>, vector<256x128xbf16>, vector<16x128xf32> -> vector<16x128xf32>
    %c0_199 = arith.constant 0 : index
    %c0_200 = arith.constant 0 : index
    %198 = vector.load %arg20[%c0_199, %c0_200] : memref<1x128xf32, #tpu.memory_space<vmem>>, vector<1x128xf32>
    %199 = vector.broadcast %198 : vector<1x128xf32> to vector<16x128xf32>
    %200 = arith.addf %197, %199 : vector<16x128xf32>
    %c0_201 = arith.constant 0 : index
    %c0_202 = arith.constant 0 : index
    %201 = vector.load %arg21[%c0_201, %c0_202] : memref<32x16xbf16, #tpu.memory_space<vmem>>, vector<32x16xbf16>
    %202 = arith.truncf %200 : vector<16x128xf32> to vector<16x128xbf16>
    %cst_203 = arith.constant dense<0.000000e+00> : vector<32x128xf32>
    %203 = tpu.matmul %201, %202, %cst_203 {dimension_numbers = #tpu.dot_dimension_numbers<[1], [0], [0], [1], [0, 0, 1, 1], [], []>} : vector<32x16xbf16>, vector<16x128xbf16>, vector<32x128xf32> -> vector<32x128xf32>
    %204 = arith.truncf %203 : vector<32x128xf32> to vector<32x128xbf16>
    %c0_204 = arith.constant 0 : index
    %c0_205 = arith.constant 0 : index
    %205 = vector.load %arg22[%c0_204, %c0_205] : memref<128x256xbf16, #tpu.memory_space<vmem>>, vector<128x256xbf16>
    %cst_206 = arith.constant dense<0.000000e+00> : vector<32x256xf32>
    %206 = tpu.matmul %204, %205, %cst_206 {dimension_numbers = #tpu.dot_dimension_numbers<[1], [0], [0], [1], [0, 0, 1, 1], [], []>} : vector<32x128xbf16>, vector<128x256xbf16>, vector<32x256xf32> -> vector<32x256xf32>
    %c1_207 = arith.constant 1 : index
    %c0_208 = arith.constant 0 : index
    %207 = vector.load %arg35[%c1_207, %c0_208] : memref<34x256xf32, #tpu.memory_space<vmem>>, vector<32x256xf32>
    tpu.vector_store %arg35[%c1_207, %c0_208], %206 {strides = array<i32>} : memref<34x256xf32, #tpu.memory_space<vmem>>, vector<32x256xf32>,
    %c0_209 = arith.constant 0 : index
    %c0_210 = arith.constant 0 : index
    %208 = vector.load %arg35[%c0_209, %c0_210] : memref<34x256xf32, #tpu.memory_space<vmem>>, vector<32x256xf32>
    %209 = arith.truncf %208 : vector<32x256xf32> to vector<32x256xbf16>
    %c0_211 = arith.constant 0 : index
    %c0_212 = arith.constant 0 : index
    %c0_213 = arith.constant 0 : index
    %210 = vector.load %arg23[%c0_211, %c0_212, %c0_213] : memref<3x256x256xbf16, #tpu.memory_space<vmem>>, vector<1x256x256xbf16>
    %211 = vector.shape_cast %210 : vector<1x256x256xbf16> to vector<256x256xbf16>
    %cst_214 = arith.constant dense<0.000000e+00> : vector<32x256xf32>
    %212 = tpu.matmul %209, %211, %cst_214 {dimension_numbers = #tpu.dot_dimension_numbers<[1], [0], [0], [1], [0, 0, 1, 1], [], []>} : vector<32x256xbf16>, vector<256x256xbf16>, vector<32x256xf32> -> vector<32x256xf32>
    %c1_215 = arith.constant 1 : index
    %c0_216 = arith.constant 0 : index
    %213 = vector.load %arg35[%c1_215, %c0_216] : memref<34x256xf32, #tpu.memory_space<vmem>>, vector<32x256xf32>
    %214 = arith.truncf %213 : vector<32x256xf32> to vector<32x256xbf16>
    %c1_217 = arith.constant 1 : index
    %c0_218 = arith.constant 0 : index
    %c0_219 = arith.constant 0 : index
    %215 = vector.load %arg23[%c1_217, %c0_218, %c0_219] : memref<3x256x256xbf16, #tpu.memory_space<vmem>>, vector<1x256x256xbf16>
    %216 = vector.shape_cast %215 : vector<1x256x256xbf16> to vector<256x256xbf16>
    %cst_220 = arith.constant dense<0.000000e+00> : vector<32x256xf32>
    %217 = tpu.matmul %214, %216, %cst_220 {dimension_numbers = #tpu.dot_dimension_numbers<[1], [0], [0], [1], [0, 0, 1, 1], [], []>} : vector<32x256xbf16>, vector<256x256xbf16>, vector<32x256xf32> -> vector<32x256xf32>
    %218 = arith.addf %212, %217 : vector<32x256xf32>
    %c2_221 = arith.constant 2 : index
    %c0_222 = arith.constant 0 : index
    %219 = vector.load %arg35[%c2_221, %c0_222] : memref<34x256xf32, #tpu.memory_space<vmem>>, vector<32x256xf32>
    %220 = arith.truncf %219 : vector<32x256xf32> to vector<32x256xbf16>
    %c2_223 = arith.constant 2 : index
    %c0_224 = arith.constant 0 : index
    %c0_225 = arith.constant 0 : index
    %221 = vector.load %arg23[%c2_223, %c0_224, %c0_225] : memref<3x256x256xbf16, #tpu.memory_space<vmem>>, vector<1x256x256xbf16>
    %222 = vector.shape_cast %221 : vector<1x256x256xbf16> to vector<256x256xbf16>
    %cst_226 = arith.constant dense<0.000000e+00> : vector<32x256xf32>
    %223 = tpu.matmul %220, %222, %cst_226 {dimension_numbers = #tpu.dot_dimension_numbers<[1], [0], [0], [1], [0, 0, 1, 1], [], []>} : vector<32x256xbf16>, vector<256x256xbf16>, vector<32x256xf32> -> vector<32x256xf32>
    %224 = arith.addf %218, %223 : vector<32x256xf32>
    %c0_227 = arith.constant 0 : index
    %c0_228 = arith.constant 0 : index
    %225 = vector.load %arg32[%c0_227, %c0_228] : memref<34x256xf32, #tpu.memory_space<vmem>>, vector<32x256xf32>
    %226 = arith.truncf %225 : vector<32x256xf32> to vector<32x256xbf16>
    %c0_229 = arith.constant 0 : index
    %c0_230 = arith.constant 0 : index
    %c0_231 = arith.constant 0 : index
    %227 = vector.load %arg24[%c0_229, %c0_230, %c0_231] : memref<3x256x256xbf16, #tpu.memory_space<vmem>>, vector<1x256x256xbf16>
    %228 = vector.shape_cast %227 : vector<1x256x256xbf16> to vector<256x256xbf16>
    %cst_232 = arith.constant dense<0.000000e+00> : vector<32x256xf32>
    %229 = tpu.matmul %226, %228, %cst_232 {dimension_numbers = #tpu.dot_dimension_numbers<[1], [0], [0], [1], [0, 0, 1, 1], [], []>} : vector<32x256xbf16>, vector<256x256xbf16>, vector<32x256xf32> -> vector<32x256xf32>
    %230 = arith.addf %224, %229 : vector<32x256xf32>
    %c1_233 = arith.constant 1 : index
    %c0_234 = arith.constant 0 : index
    %231 = vector.load %arg32[%c1_233, %c0_234] : memref<34x256xf32, #tpu.memory_space<vmem>>, vector<32x256xf32>
    %232 = arith.truncf %231 : vector<32x256xf32> to vector<32x256xbf16>
    %c1_235 = arith.constant 1 : index
    %c0_236 = arith.constant 0 : index
    %c0_237 = arith.constant 0 : index
    %233 = vector.load %arg24[%c1_235, %c0_236, %c0_237] : memref<3x256x256xbf16, #tpu.memory_space<vmem>>, vector<1x256x256xbf16>
    %234 = vector.shape_cast %233 : vector<1x256x256xbf16> to vector<256x256xbf16>
    %cst_238 = arith.constant dense<0.000000e+00> : vector<32x256xf32>
    %235 = tpu.matmul %232, %234, %cst_238 {dimension_numbers = #tpu.dot_dimension_numbers<[1], [0], [0], [1], [0, 0, 1, 1], [], []>} : vector<32x256xbf16>, vector<256x256xbf16>, vector<32x256xf32> -> vector<32x256xf32>
    %236 = arith.addf %230, %235 : vector<32x256xf32>
    %c2_239 = arith.constant 2 : index
    %c0_240 = arith.constant 0 : index
    %237 = vector.load %arg32[%c2_239, %c0_240] : memref<34x256xf32, #tpu.memory_space<vmem>>, vector<32x256xf32>
    %238 = arith.truncf %237 : vector<32x256xf32> to vector<32x256xbf16>
    %c2_241 = arith.constant 2 : index
    %c0_242 = arith.constant 0 : index
    %c0_243 = arith.constant 0 : index
    %239 = vector.load %arg24[%c2_241, %c0_242, %c0_243] : memref<3x256x256xbf16, #tpu.memory_space<vmem>>, vector<1x256x256xbf16>
    %240 = vector.shape_cast %239 : vector<1x256x256xbf16> to vector<256x256xbf16>
    %cst_244 = arith.constant dense<0.000000e+00> : vector<32x256xf32>
    %241 = tpu.matmul %238, %240, %cst_244 {dimension_numbers = #tpu.dot_dimension_numbers<[1], [0], [0], [1], [0, 0, 1, 1], [], []>} : vector<32x256xbf16>, vector<256x256xbf16>, vector<32x256xf32> -> vector<32x256xf32>
    %242 = arith.addf %236, %241 : vector<32x256xf32>
    %c0_245 = arith.constant 0 : index
    %c0_246 = arith.constant 0 : index
    %c0_247 = arith.constant 0 : index
    %243 = vector.load %arg25[%c0_245, %c0_246, %c0_247] : memref<3x1x256xf32, #tpu.memory_space<vmem>>, vector<1x1x256xf32>
    %244 = vector.shape_cast %243 : vector<1x1x256xf32> to vector<1x256xf32>
    %245 = vector.broadcast %244 : vector<1x256xf32> to vector<32x256xf32>
    %246 = arith.addf %242, %245 : vector<32x256xf32>
    %cst_248 = arith.constant 0.000000e+00 : f32
    %247 = vector.broadcast %cst_248 : f32 to vector<32x256xf32>
    %248 = arith.maximumf %246, %247 : vector<32x256xf32>
    %c1_249 = arith.constant 1 : index
    %c0_250 = arith.constant 0 : index
    %c0_251 = arith.constant 0 : index
    %249 = vector.load %arg25[%c1_249, %c0_250, %c0_251] : memref<3x1x256xf32, #tpu.memory_space<vmem>>, vector<1x1x256xf32>
    %250 = vector.shape_cast %249 : vector<1x1x256xf32> to vector<1x256xf32>
    %251 = vector.broadcast %250 : vector<1x256xf32> to vector<32x256xf32>
    %252 = arith.mulf %248, %251 : vector<32x256xf32>
    %c2_252 = arith.constant 2 : index
    %c0_253 = arith.constant 0 : index
    %c0_254 = arith.constant 0 : index
    %253 = vector.load %arg25[%c2_252, %c0_253, %c0_254] : memref<3x1x256xf32, #tpu.memory_space<vmem>>, vector<1x1x256xf32>
    %254 = vector.shape_cast %253 : vector<1x1x256xf32> to vector<1x256xf32>
    %255 = vector.broadcast %254 : vector<1x256xf32> to vector<32x256xf32>
    %256 = arith.addf %252, %255 : vector<32x256xf32>
    %257 = arith.truncf %256 : vector<32x256xf32> to vector<32x256xbf16>
    %c0_255 = arith.constant 0 : index
    %c0_256 = arith.constant 0 : index
    %258 = vector.load %arg26[%c0_255, %c0_256] : memref<256x32xbf16, #tpu.memory_space<vmem>>, vector<256x32xbf16>
    %cst_257 = arith.constant dense<0.000000e+00> : vector<32x32xf32>
    %259 = tpu.matmul %257, %258, %cst_257 {dimension_numbers = #tpu.dot_dimension_numbers<[1], [0], [0], [1], [0, 0, 1, 1], [], []>} : vector<32x256xbf16>, vector<256x32xbf16>, vector<32x32xf32> -> vector<32x32xf32>
    %c0_258 = arith.constant 0 : index
    %c0_259 = arith.constant 0 : index
    %260 = vector.load %arg27[%c0_258, %c0_259] : memref<1x32xf32, #tpu.memory_space<vmem>>, vector<1x32xf32>
    %261 = vector.broadcast %260 : vector<1x32xf32> to vector<32x32xf32>
    %262 = arith.addf %259, %261 : vector<32x32xf32>
    %cst_260 = arith.constant 0.000000e+00 : f32
    %cst_261 = arith.constant 1.000000e+00 : f32
    %263 = vector.broadcast %cst_260 : f32 to vector<32x32xf32>
    %264 = arith.maximumf %263, %262 : vector<32x32xf32>
    %265 = vector.broadcast %cst_261 : f32 to vector<32x32xf32>
    %266 = arith.minimumf %265, %264 : vector<32x32xf32>
    %c0_262 = arith.constant 0 : index
    %c0_263 = arith.constant 0 : index
    %c0_264 = arith.constant 0 : index
    %267 = vector.load %arg28[%c0_262, %c0_263, %c0_264] : memref<1x32x32xf32, #tpu.memory_space<vmem>>, vector<1x32x32xf32>
    %268 = vector.shape_cast %267 : vector<1x32x32xf32> to vector<32x32xf32>
    %269 = vector.shape_cast %266 : vector<32x32xf32> to vector<1x32x32xf32>
    tpu.vector_store %arg28[%c0_262, %c0_263, %c0_264], %269 {strides = array<i32>} : memref<1x32x32xf32, #tpu.memory_space<vmem>>, vector<1x32x32xf32>,
    return
  }
  func.func @transform_0(%arg0: i32) -> (i32, i32, i32) {
    %c0_i32 = arith.constant 0 : i32
    %c0_i32_0 = arith.constant 0 : i32
    %c0_i32_1 = arith.constant 0 : i32
    return %arg0, %c0_i32, %c0_i32_0 : i32, i32, i32
  }
  func.func @transform_1(%arg0: i32) -> (i32, i32, i32) {
    %c0_i32 = arith.constant 0 : i32
    %c0_i32_0 = arith.constant 0 : i32
    %c0_i32_1 = arith.constant 0 : i32
    %c0_i32_2 = arith.constant 0 : i32
    return %c0_i32, %c0_i32_0, %c0_i32_1 : i32, i32, i32
  }
  func.func @transform_2(%arg0: i32) -> (i32, i32, i32) {
    %c0_i32 = arith.constant 0 : i32
    %c0_i32_0 = arith.constant 0 : i32
    %c0_i32_1 = arith.constant 0 : i32
    %c0_i32_2 = arith.constant 0 : i32
    return %c0_i32, %c0_i32_0, %c0_i32_1 : i32, i32, i32
  }
  func.func @transform_3(%arg0: i32) -> (i32, i32, i32) {
    %c0_i32 = arith.constant 0 : i32
    %c0_i32_0 = arith.constant 0 : i32
    %c0_i32_1 = arith.constant 0 : i32
    %c0_i32_2 = arith.constant 0 : i32
    return %c0_i32, %c0_i32_0, %c0_i32_1 : i32, i32, i32
  }
  func.func @transform_4(%arg0: i32) -> (i32, i32, i32) {
    %c0_i32 = arith.constant 0 : i32
    %c0_i32_0 = arith.constant 0 : i32
    %c0_i32_1 = arith.constant 0 : i32
    %c0_i32_2 = arith.constant 0 : i32
    return %c0_i32, %c0_i32_0, %c0_i32_1 : i32, i32, i32
  }
  func.func @transform_5(%arg0: i32) -> (i32, i32, i32) {
    %c0_i32 = arith.constant 0 : i32
    %c0_i32_0 = arith.constant 0 : i32
    %c0_i32_1 = arith.constant 0 : i32
    %c0_i32_2 = arith.constant 0 : i32
    return %c0_i32, %c0_i32_0, %c0_i32_1 : i32, i32, i32
  }
  func.func @transform_6(%arg0: i32) -> (i32, i32, i32) {
    %c0_i32 = arith.constant 0 : i32
    %c0_i32_0 = arith.constant 0 : i32
    %c0_i32_1 = arith.constant 0 : i32
    %c0_i32_2 = arith.constant 0 : i32
    return %c0_i32, %c0_i32_0, %c0_i32_1 : i32, i32, i32
  }
  func.func @transform_7(%arg0: i32) -> (i32, i32) {
    %c0_i32 = arith.constant 0 : i32
    %c0_i32_0 = arith.constant 0 : i32
    %c0_i32_1 = arith.constant 0 : i32
    return %c0_i32, %c0_i32_0 : i32, i32
  }
  func.func @transform_8(%arg0: i32) -> (i32, i32) {
    %c0_i32 = arith.constant 0 : i32
    %c0_i32_0 = arith.constant 0 : i32
    %c0_i32_1 = arith.constant 0 : i32
    return %c0_i32, %c0_i32_0 : i32, i32
  }
  func.func @transform_9(%arg0: i32) -> (i32, i32) {
    %c0_i32 = arith.constant 0 : i32
    %c0_i32_0 = arith.constant 0 : i32
    %c0_i32_1 = arith.constant 0 : i32
    return %c0_i32, %c0_i32_0 : i32, i32
  }
  func.func @transform_10(%arg0: i32) -> (i32, i32) {
    %c0_i32 = arith.constant 0 : i32
    %c0_i32_0 = arith.constant 0 : i32
    %c0_i32_1 = arith.constant 0 : i32
    return %c0_i32, %c0_i32_0 : i32, i32
  }
  func.func @transform_11(%arg0: i32) -> (i32, i32) {
    %c0_i32 = arith.constant 0 : i32
    %c0_i32_0 = arith.constant 0 : i32
    %c0_i32_1 = arith.constant 0 : i32
    return %c0_i32, %c0_i32_0 : i32, i32
  }
  func.func @transform_12(%arg0: i32) -> (i32, i32) {
    %c0_i32 = arith.constant 0 : i32
    %c0_i32_0 = arith.constant 0 : i32
    %c0_i32_1 = arith.constant 0 : i32
    return %c0_i32, %c0_i32_0 : i32, i32
  }
  func.func @transform_13(%arg0: i32) -> (i32, i32) {
    %c0_i32 = arith.constant 0 : i32
    %c0_i32_0 = arith.constant 0 : i32
    %c0_i32_1 = arith.constant 0 : i32
    return %c0_i32, %c0_i32_0 : i32, i32
  }
  func.func @transform_14(%arg0: i32) -> (i32, i32) {
    %c0_i32 = arith.constant 0 : i32
    %c0_i32_0 = arith.constant 0 : i32
    %c0_i32_1 = arith.constant 0 : i32
    return %c0_i32, %c0_i32_0 : i32, i32
  }
  func.func @transform_15(%arg0: i32) -> (i32, i32, i32) {
    %c0_i32 = arith.constant 0 : i32
    %c0_i32_0 = arith.constant 0 : i32
    %c0_i32_1 = arith.constant 0 : i32
    %c0_i32_2 = arith.constant 0 : i32
    return %c0_i32, %c0_i32_0, %c0_i32_1 : i32, i32, i32
  }
  func.func @transform_16(%arg0: i32) -> (i32, i32, i32) {
    %c0_i32 = arith.constant 0 : i32
    %c0_i32_0 = arith.constant 0 : i32
    %c0_i32_1 = arith.constant 0 : i32
    %c0_i32_2 = arith.constant 0 : i32
    return %c0_i32, %c0_i32_0, %c0_i32_1 : i32, i32, i32
  }
  func.func @transform_17(%arg0: i32) -> (i32, i32, i32) {
    %c0_i32 = arith.constant 0 : i32
    %c0_i32_0 = arith.constant 0 : i32
    %c0_i32_1 = arith.constant 0 : i32
    %c0_i32_2 = arith.constant 0 : i32
    return %c0_i32, %c0_i32_0, %c0_i32_1 : i32, i32, i32
  }
  func.func @transform_18(%arg0: i32) -> (i32, i32) {
    %c0_i32 = arith.constant 0 : i32
    %c0_i32_0 = arith.constant 0 : i32
    %c0_i32_1 = arith.constant 0 : i32
    return %c0_i32, %c0_i32_0 : i32, i32
  }
  func.func @transform_19(%arg0: i32) -> (i32, i32) {
    %c0_i32 = arith.constant 0 : i32
    %c0_i32_0 = arith.constant 0 : i32
    %c0_i32_1 = arith.constant 0 : i32
    return %c0_i32, %c0_i32_0 : i32, i32
  }
  func.func @transform_20(%arg0: i32) -> (i32, i32) {
    %c0_i32 = arith.constant 0 : i32
    %c0_i32_0 = arith.constant 0 : i32
    %c0_i32_1 = arith.constant 0 : i32
    return %c0_i32, %c0_i32_0 : i32, i32
  }
  func.func @transform_21(%arg0: i32) -> (i32, i32) {
    %c0_i32 = arith.constant 0 : i32
    %c0_i32_0 = arith.constant 0 : i32
    %c0_i32_1 = arith.constant 0 : i32
    return %c0_i32, %c0_i32_0 : i32, i32
  }
  func.func @transform_22(%arg0: i32) -> (i32, i32, i32) {
    %c0_i32 = arith.constant 0 : i32
    %c0_i32_0 = arith.constant 0 : i32
    %c0_i32_1 = arith.constant 0 : i32
    %c0_i32_2 = arith.constant 0 : i32
    return %c0_i32, %c0_i32_0, %c0_i32_1 : i32, i32, i32
  }
  func.func @transform_23(%arg0: i32) -> (i32, i32, i32) {
    %c0_i32 = arith.constant 0 : i32
    %c0_i32_0 = arith.constant 0 : i32
    %c0_i32_1 = arith.constant 0 : i32
    %c0_i32_2 = arith.constant 0 : i32
    return %c0_i32, %c0_i32_0, %c0_i32_1 : i32, i32, i32
  }
  func.func @transform_24(%arg0: i32) -> (i32, i32, i32) {
    %c0_i32 = arith.constant 0 : i32
    %c0_i32_0 = arith.constant 0 : i32
    %c0_i32_1 = arith.constant 0 : i32
    %c0_i32_2 = arith.constant 0 : i32
    return %c0_i32, %c0_i32_0, %c0_i32_1 : i32, i32, i32
  }
  func.func @transform_25(%arg0: i32) -> (i32, i32) {
    %c0_i32 = arith.constant 0 : i32
    %c0_i32_0 = arith.constant 0 : i32
    %c0_i32_1 = arith.constant 0 : i32
    return %c0_i32, %c0_i32_0 : i32, i32
  }
  func.func @transform_26(%arg0: i32) -> (i32, i32) {
    %c0_i32 = arith.constant 0 : i32
    %c0_i32_0 = arith.constant 0 : i32
    %c0_i32_1 = arith.constant 0 : i32
    return %c0_i32, %c0_i32_0 : i32, i32
  }
  func.func @transform_27(%arg0: i32) -> (i32, i32, i32) {
    %c0_i32 = arith.constant 0 : i32
    %c0_i32_0 = arith.constant 0 : i32
    %c0_i32_1 = arith.constant 0 : i32
    return %arg0, %c0_i32, %c0_i32_0 : i32, i32, i32
  }
}

</mosaic_0001>

<llo_original>
// kernel: tpu_custom_call.1
$region0: #{tpu_custom_call.1}
  #allocation0 [shape = 'u32[]', space=smem, size = 0x4, offset = 0x4, fixed_abs, tag = 'smem constant byte address 0x4 - core index']
  #allocation1 [shape = 'u32[144,128]{1,0:T(1,128)}', space=vmem, size = 0x12000, scoped, tag = 'internal scratch']
  #allocation2 [shape = 'f32[34,32]{1,0:T(8,128)}', space=vmem, size = 0x5000, scoped, tag = 'scratch operand']
  #allocation3 [shape = 'f32[18,128]{1,0:T(8,128)}', space=vmem, size = 0x3000, scoped, tag = 'scratch operand']
  #allocation4 [shape = 'f32[10,128]{1,0:T(8,128)}', space=vmem, size = 0x2000, scoped, tag = 'scratch operand']
  #allocation5 [shape = 'f32[34,256]{1,0:T(8,128)}', space=vmem, size = 0xa000, scoped, tag = 'scratch operand']
  #allocation6 [shape = 'f32[18,256]{1,0:T(8,128)}', space=vmem, size = 0x6000, scoped, tag = 'scratch operand']
  #allocation7 [shape = 'f32[18,256]{1,0:T(8,128)}', space=vmem, size = 0x6000, scoped, tag = 'scratch operand']
  #allocation8 [shape = 'f32[34,256]{1,0:T(8,128)}', space=vmem, size = 0xa000, scoped, tag = 'scratch operand']
  %s0 = inlined_call_operand.vmem [shape: f32[2,32,32], index: 0, kind: input, shape index: {}]
  %s1 = inlined_call_operand.hbm [shape: bf16[3,32,256], index: 1, kind: input, shape index: {}]
  %s2 = inlined_call_operand.hbm [shape: bf16[3,128,256], index: 2, kind: input, shape index: {}]
  %s3 = inlined_call_operand.hbm [shape: bf16[3,128,256], index: 3, kind: input, shape index: {}]
  %s4 = inlined_call_operand.hbm [shape: f32[3,1,256], index: 4, kind: input, shape index: {}]
  %s5 = inlined_call_operand.hbm [shape: f32[3,1,256], index: 5, kind: input, shape index: {}]
  %s6 = inlined_call_operand.hbm [shape: f32[3,1,256], index: 6, kind: input, shape index: {}]
  %s7 = inlined_call_operand.hbm [shape: bf16[16,32], index: 7, kind: input, shape index: {}]
  %s8 = inlined_call_operand.vmem [shape: bf16[256,128], index: 8, kind: input, shape index: {}]
  %s9 = inlined_call_operand.hbm [shape: bf16[8,16], index: 9, kind: input, shape index: {}]
  %s10 = inlined_call_operand.hbm [shape: bf16[256,128], index: 10, kind: input, shape index: {}]
  %s11 = inlined_call_operand.hbm [shape: bf16[256,128], index: 11, kind: input, shape index: {}]
  %s12 = inlined_call_operand.hbm [shape: f32[1,128], index: 12, kind: input, shape index: {}]
  %s13 = inlined_call_operand.vmem [shape: bf16[16,8], index: 13, kind: input, shape index: {}]
  %s14 = inlined_call_operand.hbm [shape: bf16[128,256], index: 14, kind: input, shape index: {}]
  %s15 = inlined_call_operand.hbm [shape: bf16[3,256,256], index: 15, kind: input, shape index: {}]
  %s16 = inlined_call_operand.hbm [shape: bf16[3,256,256], index: 16, kind: input, shape index: {}]
  %s17 = inlined_call_operand.hbm [shape: f32[3,1,256], index: 17, kind: input, shape index: {}]
  %s18 = inlined_call_operand.hbm [shape: bf16[256,128], index: 18, kind: input, shape index: {}]
  %s19 = inlined_call_operand.hbm [shape: f32[1,128], index: 19, kind: input, shape index: {}]
  %s20 = inlined_call_operand.vmem [shape: bf16[32,16], index: 20, kind: input, shape index: {}]
  %s21 = inlined_call_operand.hbm [shape: bf16[128,256], index: 21, kind: input, shape index: {}]
  %s22 = inlined_call_operand.hbm [shape: bf16[3,256,256], index: 22, kind: input, shape index: {}]
  %s23 = inlined_call_operand.hbm [shape: bf16[3,256,256], index: 23, kind: input, shape index: {}]
  %s24 = inlined_call_operand.vmem [shape: f32[3,1,256], index: 24, kind: input, shape index: {}]
  %s25 = inlined_call_operand.vmem [shape: bf16[256,32], index: 25, kind: input, shape index: {}]
  %s26 = inlined_call_operand.vmem [shape: f32[1,32], index: 26, kind: input, shape index: {}]
  %s27 = inlined_call_operand.hbm [shape: f32[2,32,32], index: 27, kind: output, shape index: {}]
  %s28 = sld [smem:[#allocation0]]
  $region221: #{tpu_custom_call.1} parent=0
    _
  %s30 = ssub.s32 1, %s28
  %s31 = scalar_select 0, %s30, %s28
  $region1: #{tpu_custom_call.1} parent=0
    #allocation9 [shape = 'u8[49152]{0}', space=vmem, size = 0xc000, scoped, tag = 'input window, operand 1, single buffered']
    #allocation10 [shape = 's32[2]{0}', space=sflag, size = 0x8, scoped, tag = 'scoped memory for tpu_custom_call.1']
    #allocation11 [shape = 's32[2]{0}', space=sflag, size = 0x8, scoped, tag = 'scoped memory for tpu_custom_call.1']
    #allocation12 [shape = 'u8[196608]{0}', space=vmem, size = 0x30000, scoped, tag = 'input window, operand 2, single buffered']
    #allocation13 [shape = 's32[1]{0}', space=sflag, size = 0x4, scoped, tag = 'scoped memory for tpu_custom_call.1']
    #allocation14 [shape = 'u8[196608]{0}', space=vmem, size = 0x30000, scoped, tag = 'input window, operand 3, single buffered']
    #allocation15 [shape = 'u8[3072]{0}', space=vmem, size = 0xc00, scoped, tag = 'input window, operand 4, single buffered']
    #allocation16 [shape = 's32[1]{0}', space=sflag, size = 0x4, scoped, tag = 'scoped memory for tpu_custom_call.1']
    #allocation17 [shape = 'u8[3072]{0}', space=vmem, size = 0xc00, scoped, tag = 'input window, operand 5, single buffered']
    #allocation18 [shape = 'u8[3072]{0}', space=vmem, size = 0xc00, scoped, tag = 'input window, operand 6, single buffered']
    #allocation19 [shape = 's32[1]{0}', space=sflag, size = 0x4, scoped, tag = 'scoped memory for tpu_custom_call.1']
    #allocation20 [shape = 'u8[4096]{0}', space=vmem, size = 0x1000, scoped, tag = 'input window, operand 7, single buffered']
    #allocation21 [shape = 'u8[2048]{0}', space=vmem, size = 0x800, scoped, tag = 'input window, operand 9, single buffered']
    #allocation22 [shape = 's32[1]{0}', space=sflag, size = 0x4, scoped, tag = 'scoped memory for tpu_custom_call.1']
    #allocation23 [shape = 'u8[65536]{0}', space=vmem, size = 0x10000, scoped, tag = 'input window, operand 10, single buffered']
    #allocation24 [shape = 'u8[65536]{0}', space=vmem, size = 0x10000, scoped, tag = 'input window, operand 11, single buffered']
    #allocation25 [shape = 's32[1]{0}', space=sflag, size = 0x4, scoped, tag = 'scoped memory for tpu_custom_call.1']
    #allocation26 [shape = 'u8[512]{0}', space=vmem, size = 0x400, scoped, tag = 'input window, operand 12, single buffered']
    #allocation27 [shape = 'u8[65536]{0}', space=vmem, size = 0x10000, scoped, tag = 'input window, operand 14, single buffered']
    #allocation28 [shape = 's32[1]{0}', space=sflag, size = 0x4, scoped, tag = 'scoped memory for tpu_custom_call.1']
    #allocation29 [shape = 'u8[393216]{0}', space=vmem, size = 0x60000, scoped, tag = 'input window, operand 15, single buffered']
    #allocation30 [shape = 'u8[393216]{0}', space=vmem, size = 0x60000, scoped, tag = 'input window, operand 16, single buffered']
    #allocation31 [shape = 's32[1]{0}', space=sflag, size = 0x4, scoped, tag = 'scoped memory for tpu_custom_call.1']
    #allocation32 [shape = 'u8[3072]{0}', space=vmem, size = 0xc00, scoped, tag = 'input window, operand 17, single buffered']
    #allocation33 [shape = 'u8[65536]{0}', space=vmem, size = 0x10000, scoped, tag = 'input window, operand 18, single buffered']
    #allocation34 [shape = 's32[1]{0}', space=sflag, size = 0x4, scoped, tag = 'scoped memory for tpu_custom_call.1']
    #allocation35 [shape = 'u8[512]{0}', space=vmem, size = 0x400, scoped, tag = 'input window, operand 19, single buffered']
    #allocation36 [shape = 'u8[65536]{0}', space=vmem, size = 0x10000, scoped, tag = 'input window, operand 21, single buffered']
    #allocation37 [shape = 's32[1]{0}', space=sflag, size = 0x4, scoped, tag = 'scoped memory for tpu_custom_call.1']
    #allocation38 [shape = 'u8[393216]{0}', space=vmem, size = 0x60000, scoped, tag = 'input window, operand 22, single buffered']
    #allocation39 [shape = 'u8[393216]{0}', space=vmem, size = 0x60000, scoped, tag = 'input window, operand 23, single buffered']
    #allocation40 [shape = 's32[1]{0}', space=sflag, size = 0x4, scoped, tag = 'scoped memory for tpu_custom_call.1']
    #allocation41 [shape = 'u8[32768]{0}', space=vmem, size = 0x8000, scoped, tag = 'output window, operand 0']
    %32 = vsyncpa [#allocation10], 0
    %33 = vsyncpa [#allocation13], 0
    %34 = vsyncpa [#allocation16], 0
    %35 = vsyncpa [#allocation19], 0
    %36 = vsyncpa [#allocation22], 0
    %37 = vsyncpa [#allocation25], 0
    %38 = vsyncpa [#allocation28], 0
    %39 = vsyncpa [#allocation31], 0
    %40 = vsyncpa [#allocation34], 0
    %41 = vsyncpa [#allocation37], 0
    %42 = vsyncpa [#allocation40], 0
    %43 = vsyncpa [#allocation11], 0
    %s44 = scalar_lea.sflag [#allocation11], 1
    %45 = vsyncpa %s44, 0
    loop: start=0, step=1, limit=4
    $region2: #{tpu_custom_call.1} parent=1 // loop_pre_header
      _
    $region3: #{tpu_custom_call.1} parent=1 // loop_header
      %s47 = sphi 0, %s51
      %p48 = scmp.ge.s32.totalorder %s47, 4
      %s57 = sphi 0, %s59
      %s60 = sphi 0, %s57
      %s61 = sphi 0, %s60
      %s77 = sphi 0, %s61
      %s81 = sphi 0, %s81
      %s83 = sphi 0, %s81
      %s84 = sphi 0, %s83
      %s98 = sphi 0, %s84
      %s102 = sphi 0, %s102
      %s104 = sphi 0, %s102
      %s105 = sphi 0, %s104
      %s119 = sphi 0, %s105
      %s123 = sphi 0, %s123
      %s125 = sphi 0, %s123
      %s126 = sphi 0, %s125
      %s140 = sphi 0, %s126
      %s144 = sphi 0, %s144
      %s146 = sphi 0, %s144
      %s147 = sphi 0, %s146
      %s161 = sphi 0, %s147
      %s165 = sphi 0, %s165
      %s167 = sphi 0, %s165
      %s168 = sphi 0, %s167
      %s182 = sphi 0, %s168
      %s186 = sphi 0, %s186
      %s188 = sphi 0, %s186
      %s189 = sphi 0, %s188
      %s203 = sphi 0, %s189
      %s207 = sphi 0, %s207
      %s209 = sphi 0, %s207
      %s210 = sphi 0, %s209
      %s224 = sphi 0, %s210
      %s228 = sphi 0, %s228
      %s230 = sphi 0, %s228
      %s231 = sphi 0, %s230
      %s245 = sphi 0, %s231
      %s249 = sphi 0, %s249
      %s251 = sphi 0, %s249
      %s252 = sphi 0, %s251
      %s266 = sphi 0, %s252
      %s270 = sphi 0, %s270
      %s272 = sphi 0, %s270
      %s273 = sphi 0, %s272
      %s287 = sphi 0, %s273
      %s291 = sphi 0, %s291
      %s293 = sphi 0, %s291
      %s294 = sphi 0, %s293
      %s308 = sphi 0, %s294
      %s312 = sphi 0, %s312
      %s314 = sphi 0, %s312
      %s315 = sphi 0, %s314
      %s329 = sphi 0, %s315
      %s333 = sphi 0, %s333
      %s335 = sphi 0, %s333
      %s336 = sphi 0, %s335
      %s350 = sphi 0, %s336
      %s354 = sphi 0, %s354
      %s356 = sphi 0, %s354
      %s357 = sphi 0, %s356
      %s371 = sphi 0, %s357
      %s375 = sphi 0, %s375
      %s377 = sphi 0, %s375
      %s378 = sphi 0, %s377
      %s392 = sphi 0, %s378
      %s396 = sphi 0, %s396
      %s398 = sphi 0, %s396
      %s399 = sphi 0, %s398
      %s413 = sphi 0, %s399
      %s417 = sphi 0, %s417
      %s419 = sphi 0, %s417
      %s420 = sphi 0, %s419
      %s434 = sphi 0, %s420
      %s438 = sphi 0, %s438
      %s440 = sphi 0, %s438
      %s441 = sphi 0, %s440
      %s455 = sphi 0, %s441
      %s459 = sphi 0, %s459
      %s461 = sphi 0, %s459
      %s462 = sphi 0, %s461
      %s476 = sphi 0, %s462
      %s480 = sphi 0, %s480
      %s482 = sphi 0, %s480
      %s483 = sphi 0, %s482
      %s497 = sphi 0, %s483
      %s501 = sphi 0, %s501
      %s503 = sphi 0, %s501
      %s504 = sphi 0, %s503
      %s518 = sphi 0, %s504
      %s522 = sphi 0, %s522
      %s524 = sphi 0, %s522
      %s525 = sphi 0, %s524
      %s539 = sphi 0, %s525
      %s543 = sphi 0, %s543
      %s545 = sphi 0, %s543
      %s546 = sphi 0, %s545
      %s560 = sphi 0, %s546
      %s564 = sphi 0, %s564
      %s566 = sphi 0, %s564
      %s567 = sphi 0, %s566
      %s581 = sphi 0, %s567
      %s585 = sphi 0, %s585
      %s587 = sphi 0, %s585
      %s588 = sphi 0, %s587
      %s602 = sphi 0, %s588
      %s606 = sphi 0, %s606
      %s608 = sphi 0, %s606
      %s609 = sphi 0, %s608
      %s623 = sphi 0, %s609
      %s629 = sphi 0, %s631
      %s632 = sphi 0, %s629
      %s633 = sphi 0, %s632
      %s649 = sphi 0, %s633
    $region4: #{tpu_custom_call.1} parent=1 // loop_header_branch
      %50 = sbr.rel (%p48) target = $region8
    $region5: #{tpu_custom_call.1} parent=1 // loop_body
      %s52 = ssub.s32 %s47, 1
      %s53 = ssub.s32 %s47, 2
      %s54 = sadd.s32 %s47, 1
      %s55 = ssub.s32 %s47, %s54
      %p56 = scmp.eq.s32.totalorder %s55, 0
      %s58 = sadd.s32 %s57, 1
      %s59 = scalar_select %p56, %s57, %s58
      %p62 = pneg %p56
      %p63 = scmp.eq.s32.totalorder %s47, 1
      %p64 = por %p62, %p63
      %p65 = scmp.ne.s32.totalorder %s57, %s60
      %p66 = scmp.eq.s32.totalorder %s47, 0
      %p67 = por %p65, %p66
      %p68 = scmp.ne.s32.totalorder %s57, %s60
      %p69 = scmp.eq.s32.totalorder %s52, 1
      %p70 = por %p68, %p69
      %p71 = scmp.ne.s32.totalorder %s60, %s61
      %p72 = scmp.eq.s32.totalorder %s52, 0
      %p73 = por %p71, %p72
      %p74 = scmp.ne.s32.totalorder %s60, %s61
      %p75 = scmp.eq.s32.totalorder %s53, 1
      %p76 = por %p74, %p75
      %p78 = scmp.ne.s32.totalorder %s61, %s77
      %p79 = scmp.eq.s32.totalorder %s53, 0
      %p80 = por %p78, %p79
      %s82 = sadd.s32 %s81, 1
      %p85 = scmp.eq.s32.totalorder %s47, 1
      %p86 = scmp.ne.s32.totalorder %s81, %s83
      %p87 = scmp.eq.s32.totalorder %s47, 0
      %p88 = por %p86, %p87
      %p89 = scmp.ne.s32.totalorder %s81, %s83
      %p90 = scmp.eq.s32.totalorder %s52, 1
      %p91 = por %p89, %p90
      %p92 = scmp.ne.s32.totalorder %s83, %s84
      %p93 = scmp.eq.s32.totalorder %s52, 0
      %p94 = por %p92, %p93
      %p95 = scmp.ne.s32.totalorder %s83, %s84
      %p96 = scmp.eq.s32.totalorder %s53, 1
      %p97 = por %p95, %p96
      %p99 = scmp.ne.s32.totalorder %s84, %s98
      %p100 = scmp.eq.s32.totalorder %s53, 0
      %p101 = por %p99, %p100
      %s103 = sadd.s32 %s102, 1
      %p106 = scmp.eq.s32.totalorder %s47, 1
      %p107 = scmp.ne.s32.totalorder %s102, %s104
      %p108 = scmp.eq.s32.totalorder %s47, 0
      %p109 = por %p107, %p108
      %p110 = scmp.ne.s32.totalorder %s102, %s104
      %p111 = scmp.eq.s32.totalorder %s52, 1
      %p112 = por %p110, %p111
      %p113 = scmp.ne.s32.totalorder %s104, %s105
      %p114 = scmp.eq.s32.totalorder %s52, 0
      %p115 = por %p113, %p114
      %p116 = scmp.ne.s32.totalorder %s104, %s105
      %p117 = scmp.eq.s32.totalorder %s53, 1
      %p118 = por %p116, %p117
      %p120 = scmp.ne.s32.totalorder %s105, %s119
      %p121 = scmp.eq.s32.totalorder %s53, 0
      %p122 = por %p120, %p121
      %s124 = sadd.s32 %s123, 1
      %p127 = scmp.eq.s32.totalorder %s47, 1
      %p128 = scmp.ne.s32.totalorder %s123, %s125
      %p129 = scmp.eq.s32.totalorder %s47, 0
      %p130 = por %p128, %p129
      %p131 = scmp.ne.s32.totalorder %s123, %s125
      %p132 = scmp.eq.s32.totalorder %s52, 1
      %p133 = por %p131, %p132
      %p134 = scmp.ne.s32.totalorder %s125, %s126
      %p135 = scmp.eq.s32.totalorder %s52, 0
      %p136 = por %p134, %p135
      %p137 = scmp.ne.s32.totalorder %s125, %s126
      %p138 = scmp.eq.s32.totalorder %s53, 1
      %p139 = por %p137, %p138
      %p141 = scmp.ne.s32.totalorder %s126, %s140
      %p142 = scmp.eq.s32.totalorder %s53, 0
      %p143 = por %p141, %p142
      %s145 = sadd.s32 %s144, 1
      %p148 = scmp.eq.s32.totalorder %s47, 1
      %p149 = scmp.ne.s32.totalorder %s144, %s146
      %p150 = scmp.eq.s32.totalorder %s47, 0
      %p151 = por %p149, %p150
      %p152 = scmp.ne.s32.totalorder %s144, %s146
      %p153 = scmp.eq.s32.totalorder %s52, 1
      %p154 = por %p152, %p153
      %p155 = scmp.ne.s32.totalorder %s146, %s147
      %p156 = scmp.eq.s32.totalorder %s52, 0
      %p157 = por %p155, %p156
      %p158 = scmp.ne.s32.totalorder %s146, %s147
      %p159 = scmp.eq.s32.totalorder %s53, 1
      %p160 = por %p158, %p159
      %p162 = scmp.ne.s32.totalorder %s147, %s161
      %p163 = scmp.eq.s32.totalorder %s53, 0
      %p164 = por %p162, %p163
      %s166 = sadd.s32 %s165, 1
      %p169 = scmp.eq.s32.totalorder %s47, 1
      %p170 = scmp.ne.s32.totalorder %s165, %s167
      %p171 = scmp.eq.s32.totalorder %s47, 0
      %p172 = por %p170, %p171
      %p173 = scmp.ne.s32.totalorder %s165, %s167
      %p174 = scmp.eq.s32.totalorder %s52, 1
      %p175 = por %p173, %p174
      %p176 = scmp.ne.s32.totalorder %s167, %s168
      %p177 = scmp.eq.s32.totalorder %s52, 0
      %p178 = por %p176, %p177
      %p179 = scmp.ne.s32.totalorder %s167, %s168
      %p180 = scmp.eq.s32.totalorder %s53, 1
      %p181 = por %p179, %p180
      %p183 = scmp.ne.s32.totalorder %s168, %s182
      %p184 = scmp.eq.s32.totalorder %s53, 0
      %p185 = por %p183, %p184
      %s187 = sadd.s32 %s186, 1
      %p190 = scmp.eq.s32.totalorder %s47, 1
      %p191 = scmp.ne.s32.totalorder %s186, %s188
      %p192 = scmp.eq.s32.totalorder %s47, 0
      %p193 = por %p191, %p192
      %p194 = scmp.ne.s32.totalorder %s186, %s188
      %p195 = scmp.eq.s32.totalorder %s52, 1
      %p196 = por %p194, %p195
      %p197 = scmp.ne.s32.totalorder %s188, %s189
      %p198 = scmp.eq.s32.totalorder %s52, 0
      %p199 = por %p197, %p198
      %p200 = scmp.ne.s32.totalorder %s188, %s189
      %p201 = scmp.eq.s32.totalorder %s53, 1
      %p202 = por %p200, %p201
      %p204 = scmp.ne.s32.totalorder %s189, %s203
      %p205 = scmp.eq.s32.totalorder %s53, 0
      %p206 = por %p204, %p205
      %s208 = sadd.s32 %s207, 1
      %p211 = scmp.eq.s32.totalorder %s47, 1
      %p212 = scmp.ne.s32.totalorder %s207, %s209
      %p213 = scmp.eq.s32.totalorder %s47, 0
      %p214 = por %p212, %p213
      %p215 = scmp.ne.s32.totalorder %s207, %s209
      %p216 = scmp.eq.s32.totalorder %s52, 1
      %p217 = por %p215, %p216
      %p218 = scmp.ne.s32.totalorder %s209, %s210
      %p219 = scmp.eq.s32.totalorder %s52, 0
      %p220 = por %p218, %p219
      %p221 = scmp.ne.s32.totalorder %s209, %s210
      %p222 = scmp.eq.s32.totalorder %s53, 1
      %p223 = por %p221, %p222
      %p225 = scmp.ne.s32.totalorder %s210, %s224
      %p226 = scmp.eq.s32.totalorder %s53, 0
      %p227 = por %p225, %p226
      %s229 = sadd.s32 %s228, 1
      %p232 = scmp.eq.s32.totalorder %s47, 1
      %p233 = scmp.ne.s32.totalorder %s228, %s230
      %p234 = scmp.eq.s32.totalorder %s47, 0
      %p235 = por %p233, %p234
      %p236 = scmp.ne.s32.totalorder %s228, %s230
      %p237 = scmp.eq.s32.totalorder %s52, 1
      %p238 = por %p236, %p237
      %p239 = scmp.ne.s32.totalorder %s230, %s231
      %p240 = scmp.eq.s32.totalorder %s52, 0
      %p241 = por %p239, %p240
      %p242 = scmp.ne.s32.totalorder %s230, %s231
      %p243 = scmp.eq.s32.totalorder %s53, 1
      %p244 = por %p242, %p243
      %p246 = scmp.ne.s32.totalorder %s231, %s245
      %p247 = scmp.eq.s32.totalorder %s53, 0
      %p248 = por %p246, %p247
      %s250 = sadd.s32 %s249, 1
      %p253 = scmp.eq.s32.totalorder %s47, 1
      %p254 = scmp.ne.s32.totalorder %s249, %s251
      %p255 = scmp.eq.s32.totalorder %s47, 0
      %p256 = por %p254, %p255
      %p257 = scmp.ne.s32.totalorder %s249, %s251
      %p258 = scmp.eq.s32.totalorder %s52, 1
      %p259 = por %p257, %p258
      %p260 = scmp.ne.s32.totalorder %s251, %s252
      %p261 = scmp.eq.s32.totalorder %s52, 0
      %p262 = por %p260, %p261
      %p263 = scmp.ne.s32.totalorder %s251, %s252
      %p264 = scmp.eq.s32.totalorder %s53, 1
      %p265 = por %p263, %p264
      %p267 = scmp.ne.s32.totalorder %s252, %s266
      %p268 = scmp.eq.s32.totalorder %s53, 0
      %p269 = por %p267, %p268
      %s271 = sadd.s32 %s270, 1
      %p274 = scmp.eq.s32.totalorder %s47, 1
      %p275 = scmp.ne.s32.totalorder %s270, %s272
      %p276 = scmp.eq.s32.totalorder %s47, 0
      %p277 = por %p275, %p276
      %p278 = scmp.ne.s32.totalorder %s270, %s272
      %p279 = scmp.eq.s32.totalorder %s52, 1
      %p280 = por %p278, %p279
      %p281 = scmp.ne.s32.totalorder %s272, %s273
      %p282 = scmp.eq.s32.totalorder %s52, 0
      %p283 = por %p281, %p282
      %p284 = scmp.ne.s32.totalorder %s272, %s273
      %p285 = scmp.eq.s32.totalorder %s53, 1
      %p286 = por %p284, %p285
      %p288 = scmp.ne.s32.totalorder %s273, %s287
      %p289 = scmp.eq.s32.totalorder %s53, 0
      %p290 = por %p288, %p289
      %s292 = sadd.s32 %s291, 1
      %p295 = scmp.eq.s32.totalorder %s47, 1
      %p296 = scmp.ne.s32.totalorder %s291, %s293
      %p297 = scmp.eq.s32.totalorder %s47, 0
      %p298 = por %p296, %p297
      %p299 = scmp.ne.s32.totalorder %s291, %s293
      %p300 = scmp.eq.s32.totalorder %s52, 1
      %p301 = por %p299, %p300
      %p302 = scmp.ne.s32.totalorder %s293, %s294
      %p303 = scmp.eq.s32.totalorder %s52, 0
      %p304 = por %p302, %p303
      %p305 = scmp.ne.s32.totalorder %s293, %s294
      %p306 = scmp.eq.s32.totalorder %s53, 1
      %p307 = por %p305, %p306
      %p309 = scmp.ne.s32.totalorder %s294, %s308
      %p310 = scmp.eq.s32.totalorder %s53, 0
      %p311 = por %p309, %p310
      %s313 = sadd.s32 %s312, 1
      %p316 = scmp.eq.s32.totalorder %s47, 1
      %p317 = scmp.ne.s32.totalorder %s312, %s314
      %p318 = scmp.eq.s32.totalorder %s47, 0
      %p319 = por %p317, %p318
      %p320 = scmp.ne.s32.totalorder %s312, %s314
      %p321 = scmp.eq.s32.totalorder %s52, 1
      %p322 = por %p320, %p321
      %p323 = scmp.ne.s32.totalorder %s314, %s315
      %p324 = scmp.eq.s32.totalorder %s52, 0
      %p325 = por %p323, %p324
      %p326 = scmp.ne.s32.totalorder %s314, %s315
      %p327 = scmp.eq.s32.totalorder %s53, 1
      %p328 = por %p326, %p327
      %p330 = scmp.ne.s32.totalorder %s315, %s329
      %p331 = scmp.eq.s32.totalorder %s53, 0
      %p332 = por %p330, %p331
      %s334 = sadd.s32 %s333, 1
      %p337 = scmp.eq.s32.totalorder %s47, 1
      %p338 = scmp.ne.s32.totalorder %s333, %s335
      %p339 = scmp.eq.s32.totalorder %s47, 0
      %p340 = por %p338, %p339
      %p341 = scmp.ne.s32.totalorder %s333, %s335
      %p342 = scmp.eq.s32.totalorder %s52, 1
      %p343 = por %p341, %p342
      %p344 = scmp.ne.s32.totalorder %s335, %s336
      %p345 = scmp.eq.s32.totalorder %s52, 0
      %p346 = por %p344, %p345
      %p347 = scmp.ne.s32.totalorder %s335, %s336
      %p348 = scmp.eq.s32.totalorder %s53, 1
      %p349 = por %p347, %p348
      %p351 = scmp.ne.s32.totalorder %s336, %s350
      %p352 = scmp.eq.s32.totalorder %s53, 0
      %p353 = por %p351, %p352
      %s355 = sadd.s32 %s354, 1
      %p358 = scmp.eq.s32.totalorder %s47, 1
      %p359 = scmp.ne.s32.totalorder %s354, %s356
      %p360 = scmp.eq.s32.totalorder %s47, 0
      %p361 = por %p359, %p360
      %p362 = scmp.ne.s32.totalorder %s354, %s356
      %p363 = scmp.eq.s32.totalorder %s52, 1
      %p364 = por %p362, %p363
      %p365 = scmp.ne.s32.totalorder %s356, %s357
      %p366 = scmp.eq.s32.totalorder %s52, 0
      %p367 = por %p365, %p366
      %p368 = scmp.ne.s32.totalorder %s356, %s357
      %p369 = scmp.eq.s32.totalorder %s53, 1
      %p370 = por %p368, %p369
      %p372 = scmp.ne.s32.totalorder %s357, %s371
      %p373 = scmp.eq.s32.totalorder %s53, 0
      %p374 = por %p372, %p373
      %s376 = sadd.s32 %s375, 1
      %p379 = scmp.eq.s32.totalorder %s47, 1
      %p380 = scmp.ne.s32.totalorder %s375, %s377
      %p381 = scmp.eq.s32.totalorder %s47, 0
      %p382 = por %p380, %p381
      %p383 = scmp.ne.s32.totalorder %s375, %s377
      %p384 = scmp.eq.s32.totalorder %s52, 1
      %p385 = por %p383, %p384
      %p386 = scmp.ne.s32.totalorder %s377, %s378
      %p387 = scmp.eq.s32.totalorder %s52, 0
      %p388 = por %p386, %p387
      %p389 = scmp.ne.s32.totalorder %s377, %s378
      %p390 = scmp.eq.s32.totalorder %s53, 1
      %p391 = por %p389, %p390
      %p393 = scmp.ne.s32.totalorder %s378, %s392
      %p394 = scmp.eq.s32.totalorder %s53, 0
      %p395 = por %p393, %p394
      %s397 = sadd.s32 %s396, 1
      %p400 = scmp.eq.s32.totalorder %s47, 1
      %p401 = scmp.ne.s32.totalorder %s396, %s398
      %p402 = scmp.eq.s32.totalorder %s47, 0
      %p403 = por %p401, %p402
      %p404 = scmp.ne.s32.totalorder %s396, %s398
      %p405 = scmp.eq.s32.totalorder %s52, 1
      %p406 = por %p404, %p405
      %p407 = scmp.ne.s32.totalorder %s398, %s399
      %p408 = scmp.eq.s32.totalorder %s52, 0
      %p409 = por %p407, %p408
      %p410 = scmp.ne.s32.totalorder %s398, %s399
      %p411 = scmp.eq.s32.totalorder %s53, 1
      %p412 = por %p410, %p411
      %p414 = scmp.ne.s32.totalorder %s399, %s413
      %p415 = scmp.eq.s32.totalorder %s53, 0
      %p416 = por %p414, %p415
      %s418 = sadd.s32 %s417, 1
      %p421 = scmp.eq.s32.totalorder %s47, 1
      %p422 = scmp.ne.s32.totalorder %s417, %s419
      %p423 = scmp.eq.s32.totalorder %s47, 0
      %p424 = por %p422, %p423
      %p425 = scmp.ne.s32.totalorder %s417, %s419
      %p426 = scmp.eq.s32.totalorder %s52, 1
      %p427 = por %p425, %p426
      %p428 = scmp.ne.s32.totalorder %s419, %s420
      %p429 = scmp.eq.s32.totalorder %s52, 0
      %p430 = por %p428, %p429
      %p431 = scmp.ne.s32.totalorder %s419, %s420
      %p432 = scmp.eq.s32.totalorder %s53, 1
      %p433 = por %p431, %p432
      %p435 = scmp.ne.s32.totalorder %s420, %s434
      %p436 = scmp.eq.s32.totalorder %s53, 0
      %p437 = por %p435, %p436
      %s439 = sadd.s32 %s438, 1
      %p442 = scmp.eq.s32.totalorder %s47, 1
      %p443 = scmp.ne.s32.totalorder %s438, %s440
      %p444 = scmp.eq.s32.totalorder %s47, 0
      %p445 = por %p443, %p444
      %p446 = scmp.ne.s32.totalorder %s438, %s440
      %p447 = scmp.eq.s32.totalorder %s52, 1
      %p448 = por %p446, %p447
      %p449 = scmp.ne.s32.totalorder %s440, %s441
      %p450 = scmp.eq.s32.totalorder %s52, 0
      %p451 = por %p449, %p450
      %p452 = scmp.ne.s32.totalorder %s440, %s441
      %p453 = scmp.eq.s32.totalorder %s53, 1
      %p454 = por %p452, %p453
      %p456 = scmp.ne.s32.totalorder %s441, %s455
      %p457 = scmp.eq.s32.totalorder %s53, 0
      %p458 = por %p456, %p457
      %s460 = sadd.s32 %s459, 1
      %p463 = scmp.eq.s32.totalorder %s47, 1
      %p464 = scmp.ne.s32.totalorder %s459, %s461
      %p465 = scmp.eq.s32.totalorder %s47, 0
      %p466 = por %p464, %p465
      %p467 = scmp.ne.s32.totalorder %s459, %s461
      %p468 = scmp.eq.s32.totalorder %s52, 1
      %p469 = por %p467, %p468
      %p470 = scmp.ne.s32.totalorder %s461, %s462
      %p471 = scmp.eq.s32.totalorder %s52, 0
      %p472 = por %p470, %p471
      %p473 = scmp.ne.s32.totalorder %s461, %s462
      %p474 = scmp.eq.s32.totalorder %s53, 1
      %p475 = por %p473, %p474
      %p477 = scmp.ne.s32.totalorder %s462, %s476
      %p478 = scmp.eq.s32.totalorder %s53, 0
      %p479 = por %p477, %p478
      %s481 = sadd.s32 %s480, 1
      %p484 = scmp.eq.s32.totalorder %s47, 1
      %p485 = scmp.ne.s32.totalorder %s480, %s482
      %p486 = scmp.eq.s32.totalorder %s47, 0
      %p487 = por %p485, %p486
      %p488 = scmp.ne.s32.totalorder %s480, %s482
      %p489 = scmp.eq.s32.totalorder %s52, 1
      %p490 = por %p488, %p489
      %p491 = scmp.ne.s32.totalorder %s482, %s483
      %p492 = scmp.eq.s32.totalorder %s52, 0
      %p493 = por %p491, %p492
      %p494 = scmp.ne.s32.totalorder %s482, %s483
      %p495 = scmp.eq.s32.totalorder %s53, 1
      %p496 = por %p494, %p495
      %p498 = scmp.ne.s32.totalorder %s483, %s497
      %p499 = scmp.eq.s32.totalorder %s53, 0
      %p500 = por %p498, %p499
      %s502 = sadd.s32 %s501, 1
      %p505 = scmp.eq.s32.totalorder %s47, 1
      %p506 = scmp.ne.s32.totalorder %s501, %s503
      %p507 = scmp.eq.s32.totalorder %s47, 0
      %p508 = por %p506, %p507
      %p509 = scmp.ne.s32.totalorder %s501, %s503
      %p510 = scmp.eq.s32.totalorder %s52, 1
      %p511 = por %p509, %p510
      %p512 = scmp.ne.s32.totalorder %s503, %s504
      %p513 = scmp.eq.s32.totalorder %s52, 0
      %p514 = por %p512, %p513
      %p515 = scmp.ne.s32.totalorder %s503, %s504
      %p516 = scmp.eq.s32.totalorder %s53, 1
      %p517 = por %p515, %p516
      %p519 = scmp.ne.s32.totalorder %s504, %s518
      %p520 = scmp.eq.s32.totalorder %s53, 0
      %p521 = por %p519, %p520
      %s523 = sadd.s32 %s522, 1
      %p526 = scmp.eq.s32.totalorder %s47, 1
      %p527 = scmp.ne.s32.totalorder %s522, %s524
      %p528 = scmp.eq.s32.totalorder %s47, 0
      %p529 = por %p527, %p528
      %p530 = scmp.ne.s32.totalorder %s522, %s524
      %p531 = scmp.eq.s32.totalorder %s52, 1
      %p532 = por %p530, %p531
      %p533 = scmp.ne.s32.totalorder %s524, %s525
      %p534 = scmp.eq.s32.totalorder %s52, 0
      %p535 = por %p533, %p534
      %p536 = scmp.ne.s32.totalorder %s524, %s525
      %p537 = scmp.eq.s32.totalorder %s53, 1
      %p538 = por %p536, %p537
      %p540 = scmp.ne.s32.totalorder %s525, %s539
      %p541 = scmp.eq.s32.totalorder %s53, 0
      %p542 = por %p540, %p541
      %s544 = sadd.s32 %s543, 1
      %p547 = scmp.eq.s32.totalorder %s47, 1
      %p548 = scmp.ne.s32.totalorder %s543, %s545
      %p549 = scmp.eq.s32.totalorder %s47, 0
      %p550 = por %p548, %p549
      %p551 = scmp.ne.s32.totalorder %s543, %s545
      %p552 = scmp.eq.s32.totalorder %s52, 1
      %p553 = por %p551, %p552
      %p554 = scmp.ne.s32.totalorder %s545, %s546
      %p555 = scmp.eq.s32.totalorder %s52, 0
      %p556 = por %p554, %p555
      %p557 = scmp.ne.s32.totalorder %s545, %s546
      %p558 = scmp.eq.s32.totalorder %s53, 1
      %p559 = por %p557, %p558
      %p561 = scmp.ne.s32.totalorder %s546, %s560
      %p562 = scmp.eq.s32.totalorder %s53, 0
      %p563 = por %p561, %p562
      %s565 = sadd.s32 %s564, 1
      %p568 = scmp.eq.s32.totalorder %s47, 1
      %p569 = scmp.ne.s32.totalorder %s564, %s566
      %p570 = scmp.eq.s32.totalorder %s47, 0
      %p571 = por %p569, %p570
      %p572 = scmp.ne.s32.totalorder %s564, %s566
      %p573 = scmp.eq.s32.totalorder %s52, 1
      %p574 = por %p572, %p573
      %p575 = scmp.ne.s32.totalorder %s566, %s567
      %p576 = scmp.eq.s32.totalorder %s52, 0
      %p577 = por %p575, %p576
      %p578 = scmp.ne.s32.totalorder %s566, %s567
      %p579 = scmp.eq.s32.totalorder %s53, 1
      %p580 = por %p578, %p579
      %p582 = scmp.ne.s32.totalorder %s567, %s581
      %p583 = scmp.eq.s32.totalorder %s53, 0
      %p584 = por %p582, %p583
      %s586 = sadd.s32 %s585, 1
      %p589 = scmp.eq.s32.totalorder %s47, 1
      %p590 = scmp.ne.s32.totalorder %s585, %s587
      %p591 = scmp.eq.s32.totalorder %s47, 0
      %p592 = por %p590, %p591
      %p593 = scmp.ne.s32.totalorder %s585, %s587
      %p594 = scmp.eq.s32.totalorder %s52, 1
      %p595 = por %p593, %p594
      %p596 = scmp.ne.s32.totalorder %s587, %s588
      %p597 = scmp.eq.s32.totalorder %s52, 0
      %p598 = por %p596, %p597
      %p599 = scmp.ne.s32.totalorder %s587, %s588
      %p600 = scmp.eq.s32.totalorder %s53, 1
      %p601 = por %p599, %p600
      %p603 = scmp.ne.s32.totalorder %s588, %s602
      %p604 = scmp.eq.s32.totalorder %s53, 0
      %p605 = por %p603, %p604
      %s607 = sadd.s32 %s606, 1
      %p610 = scmp.eq.s32.totalorder %s47, 1
      %p611 = scmp.ne.s32.totalorder %s606, %s608
      %p612 = scmp.eq.s32.totalorder %s47, 0
      %p613 = por %p611, %p612
      %p614 = scmp.ne.s32.totalorder %s606, %s608
      %p615 = scmp.eq.s32.totalorder %s52, 1
      %p616 = por %p614, %p615
      %p617 = scmp.ne.s32.totalorder %s608, %s609
      %p618 = scmp.eq.s32.totalorder %s52, 0
      %p619 = por %p617, %p618
      %p620 = scmp.ne.s32.totalorder %s608, %s609
      %p621 = scmp.eq.s32.totalorder %s53, 1
      %p622 = por %p620, %p621
      %p624 = scmp.ne.s32.totalorder %s609, %s623
      %p625 = scmp.eq.s32.totalorder %s53, 0
      %p626 = por %p624, %p625
      %s627 = ssub.s32 %s47, %s54
      %p628 = scmp.eq.s32.totalorder %s627, 0
      %s630 = sadd.s32 %s629, 1
      %s631 = scalar_select %p628, %s629, %s630
      %p634 = pneg %p628
      %p635 = scmp.eq.s32.totalorder %s47, 1
      %p636 = por %p634, %p635
      %p637 = scmp.ne.s32.totalorder %s629, %s632
      %p638 = scmp.eq.s32.totalorder %s47, 0
      %p639 = por %p637, %p638
      %p640 = scmp.ne.s32.totalorder %s629, %s632
      %p641 = scmp.eq.s32.totalorder %s52, 1
      %p642 = por %p640, %p641
      %p643 = scmp.ne.s32.totalorder %s632, %s633
      %p644 = scmp.eq.s32.totalorder %s52, 0
      %p645 = por %p643, %p644
      %p646 = scmp.ne.s32.totalorder %s632, %s633
      %p647 = scmp.eq.s32.totalorder %s53, 1
      %p648 = por %p646, %p647
      %p650 = scmp.ne.s32.totalorder %s633, %s649
      %p651 = scmp.eq.s32.totalorder %s53, 0
      %p652 = por %p650, %p651
      %p653 = scmp.le.s32.totalorder 1, %s47
      %p654 = scmp.lt.s32.totalorder %s47, 3
      %p655 = pnand %p653, %p654
      %p656 = pneg %p655
      // Predicated region
      $region9: #{tpu_custom_call.1} parent=5 // pred_check
        _
      $region10: #{tpu_custom_call.1} parent=5 // pred_check_branch
        %658 = sbr.rel (%p655) target = $region12
      $region11: #{tpu_custom_call.1} parent=5 // pred_region
        %s659 = ssub.s32 %s47, 1
        // Predicated region
        $region13: #{tpu_custom_call.1} parent=11 // pred_check
          %p660 = pneg %p94
        $region14: #{tpu_custom_call.1} parent=11 // pred_check_branch
          %662 = sbr.rel (%p660) target = $region16
        $region15: #{tpu_custom_call.1} parent=11 // pred_region
          %s664 = ssub.s32 1536, 1536
          %665 = vsyncadd [#allocation10], %s664
          %s666 = sshll.u32 [#allocation9], 4
          %s667 = int_to_ptr.vmem [resolvable:$true] %s666
          %672 = dma.hbm_to_vmem [thread:$0]  %s1, 1536, %s667, [#allocation10], 128, 128, 8
        $region16: #{tpu_custom_call.1} parent=11 // pred_fallthru
          _
        // Predicated region
        $region17: #{tpu_custom_call.1} parent=11 // pred_check
          %p673 = pneg %p115
        $region18: #{tpu_custom_call.1} parent=11 // pred_check_branch
          %675 = sbr.rel (%p673) target = $region20
        $region19: #{tpu_custom_call.1} parent=11 // pred_region
          %s677 = ssub.s32 6144, 6144
          %678 = vsyncadd [#allocation13], %s677
          %s679 = sshll.u32 [#allocation12], 4
          %s680 = int_to_ptr.vmem [resolvable:$true] %s679
          %685 = dma.hbm_to_vmem [thread:$0]  %s2, 6144, %s680, [#allocation13], 128, 128, 8
        $region20: #{tpu_custom_call.1} parent=11 // pred_fallthru
          _
        // Predicated region
        $region21: #{tpu_custom_call.1} parent=11 // pred_check
          %p686 = pneg %p136
        $region22: #{tpu_custom_call.1} parent=11 // pred_check_branch
          %688 = sbr.rel (%p686) target = $region24
        $region23: #{tpu_custom_call.1} parent=11 // pred_region
          %s690 = ssub.s32 6144, 6144
          %691 = vsyncadd [#allocation13], %s690
          %s692 = sshll.u32 [#allocation14], 4
          %s693 = int_to_ptr.vmem [resolvable:$true] %s692
          %698 = dma.hbm_to_vmem [thread:$0]  %s3, 6144, %s693, [#allocation13], 128, 128, 8
        $region24: #{tpu_custom_call.1} parent=11 // pred_fallthru
          _
        // Predicated region
        $region25: #{tpu_custom_call.1} parent=11 // pred_check
          %p699 = pneg %p157
        $region26: #{tpu_custom_call.1} parent=11 // pred_check_branch
          %701 = sbr.rel (%p699) target = $region28
        $region27: #{tpu_custom_call.1} parent=11 // pred_region
          %s703 = ssub.s32 96, 96
          %704 = vsyncadd [#allocation16], %s703
          %s705 = sshll.u32 [#allocation15], 4
          %s706 = int_to_ptr.vmem [resolvable:$true] %s705
          %711 = dma.hbm_to_vmem [thread:$0]  %s4, 96, %s706, [#allocation16], 32, 32, 2
        $region28: #{tpu_custom_call.1} parent=11 // pred_fallthru
          _
        // Predicated region
        $region29: #{tpu_custom_call.1} parent=11 // pred_check
          %p712 = pneg %p178
        $region30: #{tpu_custom_call.1} parent=11 // pred_check_branch
          %714 = sbr.rel (%p712) target = $region32
        $region31: #{tpu_custom_call.1} parent=11 // pred_region
          %s716 = ssub.s32 96, 96
          %717 = vsyncadd [#allocation16], %s716
          %s718 = sshll.u32 [#allocation17], 4
          %s719 = int_to_ptr.vmem [resolvable:$true] %s718
          %724 = dma.hbm_to_vmem [thread:$0]  %s5, 96, %s719, [#allocation16], 32, 32, 2
        $region32: #{tpu_custom_call.1} parent=11 // pred_fallthru
          _
        // Predicated region
        $region33: #{tpu_custom_call.1} parent=11 // pred_check
          %p725 = pneg %p199
        $region34: #{tpu_custom_call.1} parent=11 // pred_check_branch
          %727 = sbr.rel (%p725) target = $region36
        $region35: #{tpu_custom_call.1} parent=11 // pred_region
          %s729 = ssub.s32 96, 96
          %730 = vsyncadd [#allocation19], %s729
          %s731 = sshll.u32 [#allocation18], 4
          %s732 = int_to_ptr.vmem [resolvable:$true] %s731
          %737 = dma.hbm_to_vmem [thread:$0]  %s6, 96, %s732, [#allocation19], 32, 32, 2
        $region36: #{tpu_custom_call.1} parent=11 // pred_fallthru
          _
        // Predicated region
        $region37: #{tpu_custom_call.1} parent=11 // pred_check
          %p738 = pneg %p220
        $region38: #{tpu_custom_call.1} parent=11 // pred_check_branch
          %740 = sbr.rel (%p738) target = $region40
        $region39: #{tpu_custom_call.1} parent=11 // pred_region
          %s742 = ssub.s32 128, 128
          %743 = vsyncadd [#allocation19], %s742
          %s744 = sshll.u32 [#allocation20], 4
          %s745 = int_to_ptr.vmem [resolvable:$true] %s744
          %750 = dma.hbm_to_vmem [thread:$0]  %s7, 128, %s745, [#allocation19], 64, 64, 4
        $region40: #{tpu_custom_call.1} parent=11 // pred_fallthru
          _
        // Predicated region
        $region41: #{tpu_custom_call.1} parent=11 // pred_check
          %p751 = pneg %p241
        $region42: #{tpu_custom_call.1} parent=11 // pred_check_branch
          %753 = sbr.rel (%p751) target = $region44
        $region43: #{tpu_custom_call.1} parent=11 // pred_region
          _
        $region44: #{tpu_custom_call.1} parent=11 // pred_fallthru
          _
        // Predicated region
        $region45: #{tpu_custom_call.1} parent=11 // pred_check
          %p754 = pneg %p262
        $region46: #{tpu_custom_call.1} parent=11 // pred_check_branch
          %756 = sbr.rel (%p754) target = $region48
        $region47: #{tpu_custom_call.1} parent=11 // pred_region
          %s758 = ssub.s32 64, 64
          %759 = vsyncadd [#allocation22], %s758
          %s761 = sshll.u32 [#allocation21], 4
          %s762 = int_to_ptr.vmem [resolvable:$true] %s761
          %764 = dma.hbm_to_vmem [thread:$0]  %s9, 64, %s762, [#allocation22]
        $region48: #{tpu_custom_call.1} parent=11 // pred_fallthru
          _
        // Predicated region
        $region49: #{tpu_custom_call.1} parent=11 // pred_check
          %p765 = pneg %p283
        $region50: #{tpu_custom_call.1} parent=11 // pred_check_branch
          %767 = sbr.rel (%p765) target = $region52
        $region51: #{tpu_custom_call.1} parent=11 // pred_region
          %s769 = ssub.s32 2048, 2048
          %770 = vsyncadd [#allocation22], %s769
          %s771 = sshll.u32 [#allocation23], 4
          %s772 = int_to_ptr.vmem [resolvable:$true] %s771
          %777 = dma.hbm_to_vmem [thread:$0]  %s10, 2048, %s772, [#allocation22], 64, 64, 4
        $region52: #{tpu_custom_call.1} parent=11 // pred_fallthru
          _
        // Predicated region
        $region53: #{tpu_custom_call.1} parent=11 // pred_check
          %p778 = pneg %p304
        $region54: #{tpu_custom_call.1} parent=11 // pred_check_branch
          %780 = sbr.rel (%p778) target = $region56
        $region55: #{tpu_custom_call.1} parent=11 // pred_region
          %s782 = ssub.s32 2048, 2048
          %783 = vsyncadd [#allocation25], %s782
          %s784 = sshll.u32 [#allocation24], 4
          %s785 = int_to_ptr.vmem [resolvable:$true] %s784
          %790 = dma.hbm_to_vmem [thread:$0]  %s11, 2048, %s785, [#allocation25], 64, 64, 4
        $region56: #{tpu_custom_call.1} parent=11 // pred_fallthru
          _
        // Predicated region
        $region57: #{tpu_custom_call.1} parent=11 // pred_check
          %p791 = pneg %p325
        $region58: #{tpu_custom_call.1} parent=11 // pred_check_branch
          %793 = sbr.rel (%p791) target = $region60
        $region59: #{tpu_custom_call.1} parent=11 // pred_region
          %s795 = ssub.s32 16, 16
          %796 = vsyncadd [#allocation25], %s795
          %s798 = sshll.u32 [#allocation26], 4
          %s799 = int_to_ptr.vmem [resolvable:$true] %s798
          %801 = dma.hbm_to_vmem [thread:$0]  %s12, 16, %s799, [#allocation25]
        $region60: #{tpu_custom_call.1} parent=11 // pred_fallthru
          _
        // Predicated region
        $region61: #{tpu_custom_call.1} parent=11 // pred_check
          %p802 = pneg %p346
        $region62: #{tpu_custom_call.1} parent=11 // pred_check_branch
          %804 = sbr.rel (%p802) target = $region64
        $region63: #{tpu_custom_call.1} parent=11 // pred_region
          _
        $region64: #{tpu_custom_call.1} parent=11 // pred_fallthru
          _
        // Predicated region
        $region65: #{tpu_custom_call.1} parent=11 // pred_check
          %p805 = pneg %p367
        $region66: #{tpu_custom_call.1} parent=11 // pred_check_branch
          %807 = sbr.rel (%p805) target = $region68
        $region67: #{tpu_custom_call.1} parent=11 // pred_region
          %s809 = ssub.s32 2048, 2048
          %810 = vsyncadd [#allocation28], %s809
          %s811 = sshll.u32 [#allocation27], 4
          %s812 = int_to_ptr.vmem [resolvable:$true] %s811
          %817 = dma.hbm_to_vmem [thread:$0]  %s14, 2048, %s812, [#allocation28], 128, 128, 8
        $region68: #{tpu_custom_call.1} parent=11 // pred_fallthru
          _
        // Predicated region
        $region69: #{tpu_custom_call.1} parent=11 // pred_check
          %p818 = pneg %p388
        $region70: #{tpu_custom_call.1} parent=11 // pred_check_branch
          %820 = sbr.rel (%p818) target = $region72
        $region71: #{tpu_custom_call.1} parent=11 // pred_region
          %s822 = ssub.s32 12288, 12288
          %823 = vsyncadd [#allocation28], %s822
          %s824 = sshll.u32 [#allocation29], 4
          %s825 = int_to_ptr.vmem [resolvable:$true] %s824
          %830 = dma.hbm_to_vmem [thread:$0]  %s15, 12288, %s825, [#allocation28], 128, 128, 8
        $region72: #{tpu_custom_call.1} parent=11 // pred_fallthru
          _
        // Predicated region
        $region73: #{tpu_custom_call.1} parent=11 // pred_check
          %p831 = pneg %p409
        $region74: #{tpu_custom_call.1} parent=11 // pred_check_branch
          %833 = sbr.rel (%p831) target = $region76
        $region75: #{tpu_custom_call.1} parent=11 // pred_region
          %s835 = ssub.s32 12288, 12288
          %836 = vsyncadd [#allocation31], %s835
          %s837 = sshll.u32 [#allocation30], 4
          %s838 = int_to_ptr.vmem [resolvable:$true] %s837
          %843 = dma.hbm_to_vmem [thread:$0]  %s16, 12288, %s838, [#allocation31], 128, 128, 8
        $region76: #{tpu_custom_call.1} parent=11 // pred_fallthru
          _
        // Predicated region
        $region77: #{tpu_custom_call.1} parent=11 // pred_check
          %p844 = pneg %p430
        $region78: #{tpu_custom_call.1} parent=11 // pred_check_branch
          %846 = sbr.rel (%p844) target = $region80
        $region79: #{tpu_custom_call.1} parent=11 // pred_region
          %s848 = ssub.s32 96, 96
          %849 = vsyncadd [#allocation31], %s848
          %s850 = sshll.u32 [#allocation32], 4
          %s851 = int_to_ptr.vmem [resolvable:$true] %s850
          %856 = dma.hbm_to_vmem [thread:$0]  %s17, 96, %s851, [#allocation31], 32, 32, 2
        $region80: #{tpu_custom_call.1} parent=11 // pred_fallthru
          _
        // Predicated region
        $region81: #{tpu_custom_call.1} parent=11 // pred_check
          %p857 = pneg %p451
        $region82: #{tpu_custom_call.1} parent=11 // pred_check_branch
          %859 = sbr.rel (%p857) target = $region84
        $region83: #{tpu_custom_call.1} parent=11 // pred_region
          %s861 = ssub.s32 2048, 2048
          %862 = vsyncadd [#allocation34], %s861
          %s863 = sshll.u32 [#allocation33], 4
          %s864 = int_to_ptr.vmem [resolvable:$true] %s863
          %869 = dma.hbm_to_vmem [thread:$0]  %s18, 2048, %s864, [#allocation34], 64, 64, 4
        $region84: #{tpu_custom_call.1} parent=11 // pred_fallthru
          _
        // Predicated region
        $region85: #{tpu_custom_call.1} parent=11 // pred_check
          %p870 = pneg %p472
        $region86: #{tpu_custom_call.1} parent=11 // pred_check_branch
          %872 = sbr.rel (%p870) target = $region88
        $region87: #{tpu_custom_call.1} parent=11 // pred_region
          %s874 = ssub.s32 16, 16
          %875 = vsyncadd [#allocation34], %s874
          %s877 = sshll.u32 [#allocation35], 4
          %s878 = int_to_ptr.vmem [resolvable:$true] %s877
          %880 = dma.hbm_to_vmem [thread:$0]  %s19, 16, %s878, [#allocation34]
        $region88: #{tpu_custom_call.1} parent=11 // pred_fallthru
          _
        // Predicated region
        $region89: #{tpu_custom_call.1} parent=11 // pred_check
          %p881 = pneg %p493
        $region90: #{tpu_custom_call.1} parent=11 // pred_check_branch
          %883 = sbr.rel (%p881) target = $region92
        $region91: #{tpu_custom_call.1} parent=11 // pred_region
          _
        $region92: #{tpu_custom_call.1} parent=11 // pred_fallthru
          _
        // Predicated region
        $region93: #{tpu_custom_call.1} parent=11 // pred_check
          %p884 = pneg %p514
        $region94: #{tpu_custom_call.1} parent=11 // pred_check_branch
          %886 = sbr.rel (%p884) target = $region96
        $region95: #{tpu_custom_call.1} parent=11 // pred_region
          %s888 = ssub.s32 2048, 2048
          %889 = vsyncadd [#allocation37], %s888
          %s890 = sshll.u32 [#allocation36], 4
          %s891 = int_to_ptr.vmem [resolvable:$true] %s890
          %896 = dma.hbm_to_vmem [thread:$0]  %s21, 2048, %s891, [#allocation37], 128, 128, 8
        $region96: #{tpu_custom_call.1} parent=11 // pred_fallthru
          _
        // Predicated region
        $region97: #{tpu_custom_call.1} parent=11 // pred_check
          %p897 = pneg %p535
        $region98: #{tpu_custom_call.1} parent=11 // pred_check_branch
          %899 = sbr.rel (%p897) target = $region100
        $region99: #{tpu_custom_call.1} parent=11 // pred_region
          %s901 = ssub.s32 12288, 12288
          %902 = vsyncadd [#allocation37], %s901
          %s903 = sshll.u32 [#allocation38], 4
          %s904 = int_to_ptr.vmem [resolvable:$true] %s903
          %909 = dma.hbm_to_vmem [thread:$0]  %s22, 12288, %s904, [#allocation37], 128, 128, 8
        $region100: #{tpu_custom_call.1} parent=11 // pred_fallthru
          _
        // Predicated region
        $region101: #{tpu_custom_call.1} parent=11 // pred_check
          %p910 = pneg %p556
        $region102: #{tpu_custom_call.1} parent=11 // pred_check_branch
          %912 = sbr.rel (%p910) target = $region104
        $region103: #{tpu_custom_call.1} parent=11 // pred_region
          %s914 = ssub.s32 12288, 12288
          %915 = vsyncadd [#allocation40], %s914
          %s916 = sshll.u32 [#allocation39], 4
          %s917 = int_to_ptr.vmem [resolvable:$true] %s916
          %922 = dma.hbm_to_vmem [thread:$0]  %s23, 12288, %s917, [#allocation40], 128, 128, 8
        $region104: #{tpu_custom_call.1} parent=11 // pred_fallthru
          _
        // Predicated region
        $region105: #{tpu_custom_call.1} parent=11 // pred_check
          %p923 = pneg %p577
        $region106: #{tpu_custom_call.1} parent=11 // pred_check_branch
          %925 = sbr.rel (%p923) target = $region108
        $region107: #{tpu_custom_call.1} parent=11 // pred_region
          _
        $region108: #{tpu_custom_call.1} parent=11 // pred_fallthru
          _
        // Predicated region
        $region109: #{tpu_custom_call.1} parent=11 // pred_check
          %p926 = pneg %p598
        $region110: #{tpu_custom_call.1} parent=11 // pred_check_branch
          %928 = sbr.rel (%p926) target = $region112
        $region111: #{tpu_custom_call.1} parent=11 // pred_region
          _
        $region112: #{tpu_custom_call.1} parent=11 // pred_fallthru
          _
        // Predicated region
        $region113: #{tpu_custom_call.1} parent=11 // pred_check
          %p929 = pneg %p619
        $region114: #{tpu_custom_call.1} parent=11 // pred_check_branch
          %931 = sbr.rel (%p929) target = $region116
        $region115: #{tpu_custom_call.1} parent=11 // pred_region
          _
        $region116: #{tpu_custom_call.1} parent=11 // pred_fallthru
          _
      $region12: #{tpu_custom_call.1} parent=5 // pred_fallthru
        _
      %p932 = scmp.lt.s32.totalorder %s47, 2
      // Predicated region
      $region117: #{tpu_custom_call.1} parent=5 // pred_check
        %p933 = pneg %p932
      $region118: #{tpu_custom_call.1} parent=5 // pred_check_branch
        %935 = sbr.rel (%p933) target = $region120
      $region119: #{tpu_custom_call.1} parent=5 // pred_region
        // Predicated region
        $region121: #{tpu_custom_call.1} parent=119 // pred_check
          %p936 = pneg %p67
        $region122: #{tpu_custom_call.1} parent=119 // pred_check_branch
          %938 = sbr.rel (%p936) target = $region124
        $region123: #{tpu_custom_call.1} parent=119 // pred_region
          %p939 = scmp.lt.s32.totalorder %s47, 1
          %s940 = scalar_select %p939, %s47, 1
          %s941 = smul.addr %s940, 4
          %s942 = smul.addr %s941, 8
          %s943 = scalar_lea.vmem %s0, %s942
        $region124: #{tpu_custom_call.1} parent=119 // pred_fallthru
          _
      $region120: #{tpu_custom_call.1} parent=5 // pred_fallthru
        _
      %p944 = scmp.le.s32.totalorder 1, %s47
      %p945 = scmp.lt.s32.totalorder %s47, 3
      %p946 = pnand %p944, %p945
      %p947 = pneg %p946
      // Predicated region
      $region125: #{tpu_custom_call.1} parent=5 // pred_check
        _
      $region126: #{tpu_custom_call.1} parent=5 // pred_check_branch
        %949 = sbr.rel (%p946) target = $region128
      $region127: #{tpu_custom_call.1} parent=5 // pred_region
        %s950 = ssub.s32 %s47, 1
        // Predicated region
        $region129: #{tpu_custom_call.1} parent=127 // pred_check
          %p951 = pneg %p94
        $region130: #{tpu_custom_call.1} parent=127 // pred_check_branch
          %953 = sbr.rel (%p951) target = $region132
        $region131: #{tpu_custom_call.1} parent=127 // pred_region
          %954 = dma.done [#allocation10], 1536
        $region132: #{tpu_custom_call.1} parent=127 // pred_fallthru
          _
        // Predicated region
        $region133: #{tpu_custom_call.1} parent=127 // pred_check
          %p955 = pneg %p115
        $region134: #{tpu_custom_call.1} parent=127 // pred_check_branch
          %957 = sbr.rel (%p955) target = $region136
        $region135: #{tpu_custom_call.1} parent=127 // pred_region
          %958 = dma.done [#allocation13], 6144
        $region136: #{tpu_custom_call.1} parent=127 // pred_fallthru
          _
        // Predicated region
        $region137: #{tpu_custom_call.1} parent=127 // pred_check
          %p959 = pneg %p136
        $region138: #{tpu_custom_call.1} parent=127 // pred_check_branch
          %961 = sbr.rel (%p959) target = $region140
        $region139: #{tpu_custom_call.1} parent=127 // pred_region
          %962 = dma.done [#allocation13], 6144
        $region140: #{tpu_custom_call.1} parent=127 // pred_fallthru
          _
        // Predicated region
        $region141: #{tpu_custom_call.1} parent=127 // pred_check
          %p963 = pneg %p157
        $region142: #{tpu_custom_call.1} parent=127 // pred_check_branch
          %965 = sbr.rel (%p963) target = $region144
        $region143: #{tpu_custom_call.1} parent=127 // pred_region
          %966 = dma.done [#allocation16], 96
        $region144: #{tpu_custom_call.1} parent=127 // pred_fallthru
          _
        // Predicated region
        $region145: #{tpu_custom_call.1} parent=127 // pred_check
          %p967 = pneg %p178
        $region146: #{tpu_custom_call.1} parent=127 // pred_check_branch
          %969 = sbr.rel (%p967) target = $region148
        $region147: #{tpu_custom_call.1} parent=127 // pred_region
          %970 = dma.done [#allocation16], 96
        $region148: #{tpu_custom_call.1} parent=127 // pred_fallthru
          _
        // Predicated region
        $region149: #{tpu_custom_call.1} parent=127 // pred_check
          %p971 = pneg %p199
        $region150: #{tpu_custom_call.1} parent=127 // pred_check_branch
          %973 = sbr.rel (%p971) target = $region152
        $region151: #{tpu_custom_call.1} parent=127 // pred_region
          %974 = dma.done [#allocation19], 96
        $region152: #{tpu_custom_call.1} parent=127 // pred_fallthru
          _
        // Predicated region
        $region153: #{tpu_custom_call.1} parent=127 // pred_check
          %p975 = pneg %p220
        $region154: #{tpu_custom_call.1} parent=127 // pred_check_branch
          %977 = sbr.rel (%p975) target = $region156
        $region155: #{tpu_custom_call.1} parent=127 // pred_region
          %978 = dma.done [#allocation19], 128
        $region156: #{tpu_custom_call.1} parent=127 // pred_fallthru
          _
        // Predicated region
        $region157: #{tpu_custom_call.1} parent=127 // pred_check
          %p979 = pneg %p262
        $region158: #{tpu_custom_call.1} parent=127 // pred_check_branch
          %981 = sbr.rel (%p979) target = $region160
        $region159: #{tpu_custom_call.1} parent=127 // pred_region
          %982 = dma.done [#allocation22], 64
        $region160: #{tpu_custom_call.1} parent=127 // pred_fallthru
          _
        // Predicated region
        $region161: #{tpu_custom_call.1} parent=127 // pred_check
          %p983 = pneg %p283
        $region162: #{tpu_custom_call.1} parent=127 // pred_check_branch
          %985 = sbr.rel (%p983) target = $region164
        $region163: #{tpu_custom_call.1} parent=127 // pred_region
          %986 = dma.done [#allocation22], 2048
        $region164: #{tpu_custom_call.1} parent=127 // pred_fallthru
          _
        // Predicated region
        $region165: #{tpu_custom_call.1} parent=127 // pred_check
          %p987 = pneg %p304
        $region166: #{tpu_custom_call.1} parent=127 // pred_check_branch
          %989 = sbr.rel (%p987) target = $region168
        $region167: #{tpu_custom_call.1} parent=127 // pred_region
          %990 = dma.done [#allocation25], 2048
        $region168: #{tpu_custom_call.1} parent=127 // pred_fallthru
          _
        // Predicated region
        $region169: #{tpu_custom_call.1} parent=127 // pred_check
          %p991 = pneg %p325
        $region170: #{tpu_custom_call.1} parent=127 // pred_check_branch
          %993 = sbr.rel (%p991) target = $region172
        $region171: #{tpu_custom_call.1} parent=127 // pred_region
          %994 = dma.done [#allocation25], 16
        $region172: #{tpu_custom_call.1} parent=127 // pred_fallthru
          _
        // Predicated region
        $region173: #{tpu_custom_call.1} parent=127 // pred_check
          %p995 = pneg %p367
        $region174: #{tpu_custom_call.1} parent=127 // pred_check_branch
          %997 = sbr.rel (%p995) target = $region176
        $region175: #{tpu_custom_call.1} parent=127 // pred_region
          %998 = dma.done [#allocation28], 2048
        $region176: #{tpu_custom_call.1} parent=127 // pred_fallthru
          _
        // Predicated region
        $region177: #{tpu_custom_call.1} parent=127 // pred_check
          %p999 = pneg %p388
        $region178: #{tpu_custom_call.1} parent=127 // pred_check_branch
          %1001 = sbr.rel (%p999) target = $region180
        $region179: #{tpu_custom_call.1} parent=127 // pred_region
          %1002 = dma.done [#allocation28], 12288
        $region180: #{tpu_custom_call.1} parent=127 // pred_fallthru
          _
        // Predicated region
        $region181: #{tpu_custom_call.1} parent=127 // pred_check
          %p1003 = pneg %p409
        $region182: #{tpu_custom_call.1} parent=127 // pred_check_branch
          %1005 = sbr.rel (%p1003) target = $region184
        $region183: #{tpu_custom_call.1} parent=127 // pred_region
          %1006 = dma.done [#allocation31], 12288
        $region184: #{tpu_custom_call.1} parent=127 // pred_fallthru
          _
        // Predicated region
        $region185: #{tpu_custom_call.1} parent=127 // pred_check
          %p1007 = pneg %p430
        $region186: #{tpu_custom_call.1} parent=127 // pred_check_branch
          %1009 = sbr.rel (%p1007) target = $region188
        $region187: #{tpu_custom_call.1} parent=127 // pred_region
          %1010 = dma.done [#allocation31], 96
        $region188: #{tpu_custom_call.1} parent=127 // pred_fallthru
          _
        // Predicated region
        $region189: #{tpu_custom_call.1} parent=127 // pred_check
          %p1011 = pneg %p451
        $region190: #{tpu_custom_call.1} parent=127 // pred_check_branch
          %1013 = sbr.rel (%p1011) target = $region192
        $region191: #{tpu_custom_call.1} parent=127 // pred_region
          %1014 = dma.done [#allocation34], 2048
        $region192: #{tpu_custom_call.1} parent=127 // pred_fallthru
          _
        // Predicated region
        $region193: #{tpu_custom_call.1} parent=127 // pred_check
          %p1015 = pneg %p472
        $region194: #{tpu_custom_call.1} parent=127 // pred_check_branch
          %1017 = sbr.rel (%p1015) target = $region196
        $region195: #{tpu_custom_call.1} parent=127 // pred_region
          %1018 = dma.done [#allocation34], 16
        $region196: #{tpu_custom_call.1} parent=127 // pred_fallthru
          _
        // Predicated region
        $region197: #{tpu_custom_call.1} parent=127 // pred_check
          %p1019 = pneg %p514
        $region198: #{tpu_custom_call.1} parent=127 // pred_check_branch
          %1021 = sbr.rel (%p1019) target = $region200
        $region199: #{tpu_custom_call.1} parent=127 // pred_region
          %1022 = dma.done [#allocation37], 2048
        $region200: #{tpu_custom_call.1} parent=127 // pred_fallthru
          _
        // Predicated region
        $region201: #{tpu_custom_call.1} parent=127 // pred_check
          %p1023 = pneg %p535
        $region202: #{tpu_custom_call.1} parent=127 // pred_check_branch
          %1025 = sbr.rel (%p1023) target = $region204
        $region203: #{tpu_custom_call.1} parent=127 // pred_region
          %1026 = dma.done [#allocation37], 12288
        $region204: #{tpu_custom_call.1} parent=127 // pred_fallthru
          _
        // Predicated region
        $region205: #{tpu_custom_call.1} parent=127 // pred_check
          %p1027 = pneg %p556
        $region206: #{tpu_custom_call.1} parent=127 // pred_check_branch
          %1029 = sbr.rel (%p1027) target = $region208
        $region207: #{tpu_custom_call.1} parent=127 // pred_region
          %1030 = dma.done [#allocation40], 12288
        $region208: #{tpu_custom_call.1} parent=127 // pred_fallthru
          _
        %p1031 = scmp.lt.s32.totalorder %s52, 1
        %s1032 = scalar_select %p1031, %s52, 1
        %s1033 = smul.addr %s1032, 4
        %s1034 = smul.addr %s1033, 8
        %s1035 = scalar_lea.vmem %s0, %s1034
        %p1036 = pneg %p73
        %p1037 = pneg %p70
        %p1038 = pneg %p94
        %p1039 = pneg %p91
        %p1040 = pneg %p115
        %p1041 = pneg %p112
        %p1042 = pneg %p136
        %p1043 = pneg %p133
        %p1044 = pneg %p157
        %p1045 = pneg %p154
        %p1046 = pneg %p178
        %p1047 = pneg %p175
        %p1048 = pneg %p199
        %p1049 = pneg %p196
        %p1050 = pneg %p220
        %p1051 = pneg %p217
        %p1052 = pneg %p241
        %p1053 = pneg %p238
        %p1054 = pneg %p262
        %p1055 = pneg %p259
        %p1056 = pneg %p283
        %p1057 = pneg %p280
        %p1058 = pneg %p304
        %p1059 = pneg %p301
        %p1060 = pneg %p325
        %p1061 = pneg %p322
        %p1062 = pneg %p346
        %p1063 = pneg %p343
        %p1064 = pneg %p367
        %p1065 = pneg %p364
        %p1066 = pneg %p388
        %p1067 = pneg %p385
        %p1068 = pneg %p409
        %p1069 = pneg %p406
        %p1070 = pneg %p430
        %p1071 = pneg %p427
        %p1072 = pneg %p451
        %p1073 = pneg %p448
        %p1074 = pneg %p472
        %p1075 = pneg %p469
        %p1076 = pneg %p493
        %p1077 = pneg %p490
        %p1078 = pneg %p514
        %p1079 = pneg %p511
        %p1080 = pneg %p535
        %p1081 = pneg %p532
        %p1082 = pneg %p556
        %p1083 = pneg %p553
        %p1084 = pneg %p577
        %p1085 = pneg %p574
        %p1086 = pneg %p598
        %p1087 = pneg %p595
        %p1088 = pneg %p619
        %p1089 = pneg %p616
        %p1090 = pneg %p645
        %p1091 = pneg %p642
        %s1092 = sand.u32 %s632, 1
        %s1093 = scalar_lea.sflag [#allocation11], %s1092
        %s1094 = sand.u32 %s632, 1
        %s1095 = smul.addr %s1094, 32
        %s1096 = scalar_lea.vmem [#allocation41], %s1095
        %p1097 = scmp.lt.s32.totalorder %s52, 1
        %s1098 = scalar_select %p1097, %s52, 1
        %s1099 = smul.addr %s1098, 4
        %s1100 = smul.addr %s1099, 8
        %s1101 = scalar_lea.vmem %s0, %s1100
        %vm1103 = vcmask 253952
        %1104 = vst.msk [vmem:[#allocation2] sm:$0x1] %vm1103, 0.0
        %1105 = vst.msk [vmem:[#allocation2 + $0x21] sm:$0x1] %vm1103, 0.0
        %1106 = vst [vmem:[#allocation3] sm:$0x1] 0.0
        %1107 = vst [vmem:[#allocation3 + $0x11] sm:$0x1] 0.0
        %1108 = vst [vmem:[#allocation4] sm:$0x1] 0.0
        %1109 = vst [vmem:[#allocation4 + $0x9] sm:$0x1] 0.0
        %v1110 = vlaneseq
        %vm1111 = vcmp.ge.s32.totalorder %v1110, 0
        %vm1112 = vcmp.lt.s32.totalorder %v1110, 256
        %vm1113 = vmand %vm1111, %vm1112
        %1114 = vst.msk [vmem:[#allocation5] ss:$8 sm:$0x3] %vm1113, 0.0
        %1115 = vst.msk [vmem:[#allocation5] ss:$8 sm:$0x0] %vm1113, 0.0
        %s1116 = scalar_lea.vmem [#allocation5], 65
        %1117 = vst.msk [vmem:[%s1116] ss:$8 sm:$0x3] %vm1113, 0.0
        %1118 = vst.msk [vmem:[%s1116] ss:$8 sm:$0x0] %vm1113, 0.0
        %1119 = vst.msk [vmem:[#allocation6] ss:$8 sm:$0x3] %vm1113, 0.0
        %1120 = vst.msk [vmem:[#allocation6] ss:$8 sm:$0x0] %vm1113, 0.0
        %s1121 = scalar_lea.vmem [#allocation6], 33
        %1122 = vst.msk [vmem:[%s1121] ss:$8 sm:$0x3] %vm1113, 0.0
        %1123 = vst.msk [vmem:[%s1121] ss:$8 sm:$0x0] %vm1113, 0.0
        %1124 = vst.msk [vmem:[#allocation7] ss:$8 sm:$0x3] %vm1113, 0.0
        %1125 = vst.msk [vmem:[#allocation7] ss:$8 sm:$0x0] %vm1113, 0.0
        %s1126 = scalar_lea.vmem [#allocation7], 33
        %1127 = vst.msk [vmem:[%s1126] ss:$8 sm:$0x3] %vm1113, 0.0
        %1128 = vst.msk [vmem:[%s1126] ss:$8 sm:$0x0] %vm1113, 0.0
        %1129 = vst.msk [vmem:[#allocation8] ss:$8 sm:$0x3] %vm1113, 0.0
        %1130 = vst.msk [vmem:[#allocation8] ss:$8 sm:$0x0] %vm1113, 0.0
        %s1131 = scalar_lea.vmem [#allocation8], 65
        %1132 = vst.msk [vmem:[%s1131] ss:$8 sm:$0x3] %vm1113, 0.0
        %1133 = vst.msk [vmem:[%s1131] ss:$8 sm:$0x0] %vm1113, 0.0
        %v1134 = vld [vmem:[%s1101] sm:$0xff]
        %v1135 = vld [vmem:[%s1101 + $0x8] sm:$0xff]
        %v1136 = vld [vmem:[%s1101 + $0x10] sm:$0xff]
        %v1137 = vld [vmem:[%s1101 + $0x18] sm:$0xff]
        %vm1138 = vcmask 261120
        %1139 = vst.msk [vmem:[#allocation2 + $0x1] sm:$0xff] %vm1138, %v1134
        %1140 = vst.msk [vmem:[#allocation2 + $0x9] sm:$0xff] %vm1138, %v1135
        %1141 = vst.msk [vmem:[#allocation2 + $0x11] sm:$0xff] %vm1138, %v1136
        %1142 = vst.msk [vmem:[#allocation2 + $0x19] sm:$0xff] %vm1138, %v1137
        %v1143 = vld [vmem:[#allocation2] sm:$0xff]
        %v1144 = vld [vmem:[#allocation2 + $0x8] sm:$0xff]
        %v1145 = vld [vmem:[#allocation2 + $0x10] sm:$0xff]
        %v1146 = vld [vmem:[#allocation2 + $0x18] sm:$0xff]
        %v1147 = vpack.c.bf16 %v1144, %v1143
        %v1148 = vpack.c.bf16 %v1146, %v1145
        %v1149 = vld [vmem:[#allocation9] sm:$0xff]
        %v1150 = vld [vmem:[#allocation9 + $0x8] sm:$0xff]
        %v1151 = vld [vmem:[#allocation9 + $0x10] sm:$0xff]
        %v1152 = vld [vmem:[#allocation9 + $0x18] sm:$0xff]
        %v1153 = vld [vmem:[#allocation2 + $0x1] sm:$0xff]
        %v1154 = vld [vmem:[#allocation2 + $0x9] sm:$0xff]
        %v1155 = vld [vmem:[#allocation2 + $0x11] sm:$0xff]
        %v1156 = vld [vmem:[#allocation2 + $0x19] sm:$0xff]
        %v1157 = vpack.c.bf16 %v1154, %v1153
        %v1158 = vpack.c.bf16 %v1156, %v1155
        %s1159 = scalar_lea.vmem [#allocation9], 32
        %v1160 = vld [vmem:[%s1159] sm:$0xff]
        %v1161 = vld [vmem:[%s1159 + $0x8] sm:$0xff]
        %v1162 = vld [vmem:[%s1159 + $0x10] sm:$0xff]
        %v1163 = vld [vmem:[%s1159 + $0x18] sm:$0xff]
        %v1168 = vunpack.c.l.b16 %v1160
        %v1169 = vunpack.c.h.b16 %v1160
        %v1170 = vunpack.c.l.b16 %v1161
        %v1171 = vunpack.c.h.b16 %v1161
        %v1172 = vunpack.c.l.b16 %v1162
        %v1173 = vunpack.c.h.b16 %v1162
        %v1174 = vunpack.c.l.b16 %v1163
        %v1175 = vunpack.c.h.b16 %v1163
        %v1176 = vpack.c.b16 %v1170, %v1168
        %v1177 = vpack.c.b16 %v1171, %v1169
        %v1178 = vpack.c.b16 %v1174, %v1172
        %v1179 = vpack.c.b16 %v1175, %v1173
        %v1185 = vsel %vm1138, %v1157, 0
        %v1188 = vsel %vm1138, %v1158, 0
        %1190 = vmatprep.subr.bf16.mxu0 0
        %1191 = vmatpush1.bf16.msra.mxu0 0
        %1192 = vmatprep.subr.bf16.mxu0 0
        %1193 = vmatpush1.bf16.msra.mxu0 0
        %1194 = vmatprep.subr.bf16.mxu0 0
        %1195 = vmatpush1.bf16.msra.mxu0 0
        %1196 = vmatprep.subr.bf16.mxu0 0
        %1197 = vmatpush1.bf16.msra.mxu0 0
        %1198 = vmatprep.subr.bf16.mxu0 0
        %1199 = vmatpush1.bf16.msra.mxu0 0
        %1200 = vmatprep.subr.bf16.mxu0 0
        %1201 = vmatpush1.bf16.msra.mxu0 0
        %1202 = vmatprep.subr.bf16.mxu0 %v1179
        %1203 = vmatpush1.bf16.msra.mxu0 %v1178
        %1204 = vmatprep.subr.bf16.mxu0 %v1177
        %1205 = vmatpush1.bf16.msra.mxu0 %v1176
        %1206 = vmatprep.subr.bf16.mxu0 0
        %1207 = vmatpush2.bf16.msra.mxu0 0
        %1208 = vmatprep.subr.bf16.mxu0 0
        %1209 = vmatpush2.bf16.msra.mxu0 0
        %1210 = vmatprep.subr.bf16.mxu0 0
        %1211 = vmatpush2.bf16.msra.mxu0 0
        %1212 = vmatprep.subr.bf16.mxu0 0
        %1213 = vmatpush2.bf16.msra.mxu0 0
        %1214 = vmatprep.subr.bf16.mxu0 0
        %1215 = vmatpush2.bf16.msra.mxu0 0
        %1216 = vmatprep.subr.bf16.mxu0 0
        %1217 = vmatpush2.bf16.msra.mxu0 0
        %1218 = vmatprep.subr.bf16.mxu0 0
        %1219 = vmatpush2.bf16.msra.mxu0 0
        %1220 = vmatprep.subr.bf16.mxu0 0
        %1221 = vmatpush2.bf16.msra.mxu0 0
        %1222 = vmatprep.mubr.bf16.mxu0 0
        %1223 = vmatmul.mubr.bf16.gmra.mxu0 %v1185
        %v1224 = vpop.f32.mrf.mxu0
        %v1225 = vadd.f32 0.0, %v1224
        %v1226 = vpop.f32.mrf.mxu0
        %v1227 = vadd.f32 0.0, %v1226
        %v1228 = vpop.f32.mrf.mxu0
        %v1229 = vadd.f32 0.0, %v1228
        %v1230 = vpop.f32.mrf.mxu0
        %v1231 = vadd.f32 0.0, %v1230
        %1232 = vmatprep.mubr.bf16.mxu0 0
        %1233 = vmatmul.mubr.bf16.gmra.mxu0 %v1188
        %v1234 = vpop.f32.mrf.mxu0
        %v1235 = vadd.f32 0.0, %v1234
        %v1236 = vpop.f32.mrf.mxu0
        %v1237 = vadd.f32 0.0, %v1236
        %v1238 = vpop.f32.mrf.mxu0
        %v1239 = vadd.f32 0.0, %v1238
        %v1240 = vpop.f32.mrf.mxu0
        %v1241 = vadd.f32 0.0, %v1240
        %1242 = vdwg.mxu0
        %v1247 = vunpack.c.l.b16 %v1149
        %v1248 = vunpack.c.h.b16 %v1149
        %v1249 = vunpack.c.l.b16 %v1150
        %v1250 = vunpack.c.h.b16 %v1150
        %v1251 = vunpack.c.l.b16 %v1151
        %v1252 = vunpack.c.h.b16 %v1151
        %v1253 = vunpack.c.l.b16 %v1152
        %v1254 = vunpack.c.h.b16 %v1152
        %v1255 = vpack.c.b16 %v1249, %v1247
        %v1256 = vpack.c.b16 %v1250, %v1248
        %v1257 = vpack.c.b16 %v1253, %v1251
        %v1258 = vpack.c.b16 %v1254, %v1252
        %v1264 = vsel %vm1138, %v1147, 0
        %v1267 = vsel %vm1138, %v1148, 0
        %1269 = vmatprep.subr.bf16.mxu0 0
        %1270 = vmatpush1.bf16.msra.mxu0 0
        %1271 = vmatprep.subr.bf16.mxu0 0
        %1272 = vmatpush1.bf16.msra.mxu0 0
        %1273 = vmatprep.subr.bf16.mxu0 0
        %1274 = vmatpush1.bf16.msra.mxu0 0
        %1275 = vmatprep.subr.bf16.mxu0 0
        %1276 = vmatpush1.bf16.msra.mxu0 0
        %1277 = vmatprep.subr.bf16.mxu0 0
        %1278 = vmatpush1.bf16.msra.mxu0 0
        %1279 = vmatprep.subr.bf16.mxu0 0
        %1280 = vmatpush1.bf16.msra.mxu0 0
        %1281 = vmatprep.subr.bf16.mxu0 %v1258
        %1282 = vmatpush1.bf16.msra.mxu0 %v1257
        %1283 = vmatprep.subr.bf16.mxu0 %v1256
        %1284 = vmatpush1.bf16.msra.mxu0 %v1255
        %1285 = vmatprep.subr.bf16.mxu0 0
        %1286 = vmatpush2.bf16.msra.mxu0 0
        %1287 = vmatprep.subr.bf16.mxu0 0
        %1288 = vmatpush2.bf16.msra.mxu0 0
        %1289 = vmatprep.subr.bf16.mxu0 0
        %1290 = vmatpush2.bf16.msra.mxu0 0
        %1291 = vmatprep.subr.bf16.mxu0 0
        %1292 = vmatpush2.bf16.msra.mxu0 0
        %1293 = vmatprep.subr.bf16.mxu0 0
        %1294 = vmatpush2.bf16.msra.mxu0 0
        %1295 = vmatprep.subr.bf16.mxu0 0
        %1296 = vmatpush2.bf16.msra.mxu0 0
        %1297 = vmatprep.subr.bf16.mxu0 0
        %1298 = vmatpush2.bf16.msra.mxu0 0
        %1299 = vmatprep.subr.bf16.mxu0 0
        %1300 = vmatpush2.bf16.msra.mxu0 0
        %1301 = vmatprep.mubr.bf16.mxu0 0
        %1302 = vmatmul.mubr.bf16.gmra.mxu0 %v1264
        %v1303 = vpop.f32.mrf.mxu0
        %v1304 = vadd.f32 %v1225, %v1303
        %v1305 = vpop.f32.mrf.mxu0
        %v1306 = vadd.f32 %v1227, %v1305
        %v1307 = vpop.f32.mrf.mxu0
        %v1308 = vadd.f32 %v1229, %v1307
        %v1309 = vpop.f32.mrf.mxu0
        %v1310 = vadd.f32 %v1231, %v1309
        %1311 = vmatprep.mubr.bf16.mxu0 0
        %1312 = vmatmul.mubr.bf16.gmra.mxu0 %v1267
        %v1313 = vpop.f32.mrf.mxu0
        %v1314 = vadd.f32 %v1235, %v1313
        %v1315 = vpop.f32.mrf.mxu0
        %v1316 = vadd.f32 %v1237, %v1315
        %v1317 = vpop.f32.mrf.mxu0
        %v1318 = vadd.f32 %v1239, %v1317
        %v1319 = vpop.f32.mrf.mxu0
        %v1320 = vadd.f32 %v1241, %v1319
        %1321 = vdwg.mxu0
        %v1322 = vld [vmem:[#allocation2 + $0x2] sm:$0xff]
        %v1323 = vld [vmem:[#allocation2 + $0xa] sm:$0xff]
        %v1324 = vld [vmem:[#allocation2 + $0x12] sm:$0xff]
        %v1325 = vld [vmem:[#allocation2 + $0x1a] sm:$0xff]
        %v1326 = vpack.c.bf16 %v1323, %v1322
        %v1327 = vpack.c.bf16 %v1325, %v1324
        %s1328 = scalar_lea.vmem [#allocation9], 64
        %v1329 = vld [vmem:[%s1328] sm:$0xff]
        %v1330 = vld [vmem:[%s1328 + $0x8] sm:$0xff]
        %v1331 = vld [vmem:[%s1328 + $0x10] sm:$0xff]
        %v1332 = vld [vmem:[%s1328 + $0x18] sm:$0xff]
        %v1337 = vunpack.c.l.b16 %v1329
        %v1338 = vunpack.c.h.b16 %v1329
        %v1339 = vunpack.c.l.b16 %v1330
        %v1340 = vunpack.c.h.b16 %v1330
        %v1341 = vunpack.c.l.b16 %v1331
        %v1342 = vunpack.c.h.b16 %v1331
        %v1343 = vunpack.c.l.b16 %v1332
        %v1344 = vunpack.c.h.b16 %v1332
        %v1345 = vpack.c.b16 %v1339, %v1337
        %v1346 = vpack.c.b16 %v1340, %v1338
        %v1347 = vpack.c.b16 %v1343, %v1341
        %v1348 = vpack.c.b16 %v1344, %v1342
        %v1354 = vsel %vm1138, %v1326, 0
        %v1357 = vsel %vm1138, %v1327, 0
        %1359 = vmatprep.subr.bf16.mxu0 0
        %1360 = vmatpush1.bf16.msra.mxu0 0
        %1361 = vmatprep.subr.bf16.mxu0 0
        %1362 = vmatpush1.bf16.msra.mxu0 0
        %1363 = vmatprep.subr.bf16.mxu0 0
        %1364 = vmatpush1.bf16.msra.mxu0 0
        %1365 = vmatprep.subr.bf16.mxu0 0
        %1366 = vmatpush1.bf16.msra.mxu0 0
        %1367 = vmatprep.subr.bf16.mxu0 0
        %1368 = vmatpush1.bf16.msra.mxu0 0
        %1369 = vmatprep.subr.bf16.mxu0 0
        %1370 = vmatpush1.bf16.msra.mxu0 0
        %1371 = vmatprep.subr.bf16.mxu0 %v1348
        %1372 = vmatpush1.bf16.msra.mxu0 %v1347
        %1373 = vmatprep.subr.bf16.mxu0 %v1346
        %1374 = vmatpush1.bf16.msra.mxu0 %v1345
        %1375 = vmatprep.subr.bf16.mxu0 0
        %1376 = vmatpush2.bf16.msra.mxu0 0
        %1377 = vmatprep.subr.bf16.mxu0 0
        %1378 = vmatpush2.bf16.msra.mxu0 0
        %1379 = vmatprep.subr.bf16.mxu0 0
        %1380 = vmatpush2.bf16.msra.mxu0 0
        %1381 = vmatprep.subr.bf16.mxu0 0
        %1382 = vmatpush2.bf16.msra.mxu0 0
        %1383 = vmatprep.subr.bf16.mxu0 0
        %1384 = vmatpush2.bf16.msra.mxu0 0
        %1385 = vmatprep.subr.bf16.mxu0 0
        %1386 = vmatpush2.bf16.msra.mxu0 0
        %1387 = vmatprep.subr.bf16.mxu0 0
        %1388 = vmatpush2.bf16.msra.mxu0 0
        %1389 = vmatprep.subr.bf16.mxu0 0
        %1390 = vmatpush2.bf16.msra.mxu0 0
        %1391 = vmatprep.mubr.bf16.mxu0 0
        %1392 = vmatmul.mubr.bf16.gmra.mxu0 %v1354
        %v1393 = vpop.f32.mrf.mxu0
        %v1394 = vadd.f32 0.0, %v1393
        %v1395 = vpop.f32.mrf.mxu0
        %v1396 = vadd.f32 0.0, %v1395
        %v1397 = vpop.f32.mrf.mxu0
        %v1398 = vadd.f32 0.0, %v1397
        %v1399 = vpop.f32.mrf.mxu0
        %v1400 = vadd.f32 0.0, %v1399
        %1401 = vmatprep.mubr.bf16.mxu0 0
        %1402 = vmatmul.mubr.bf16.gmra.mxu0 %v1357
        %v1403 = vpop.f32.mrf.mxu0
        %v1404 = vadd.f32 0.0, %v1403
        %v1405 = vpop.f32.mrf.mxu0
        %v1406 = vadd.f32 0.0, %v1405
        %v1407 = vpop.f32.mrf.mxu0
        %v1408 = vadd.f32 0.0, %v1407
        %v1409 = vpop.f32.mrf.mxu0
        %v1410 = vadd.f32 0.0, %v1409
        %1411 = vdwg.mxu0
        %v1412 = vadd.f32 %v1304, %v1394
        %v1413 = vadd.f32 %v1306, %v1396
        %v1414 = vadd.f32 %v1308, %v1398
        %v1415 = vadd.f32 %v1310, %v1400
        %v1416 = vadd.f32 %v1314, %v1404
        %v1417 = vadd.f32 %v1316, %v1406
        %v1418 = vadd.f32 %v1318, %v1408
        %v1419 = vadd.f32 %v1320, %v1410
        %v1420 = vld [vmem:[#allocation15] sm:$0x3]
        %v1422 = vlaneseq
        %v1423 = vshrl.u32 %v1422, 7
        %v1424 = vsub.s32 0, %v1423
        %v1425 = vrot.slane %v1420, %v1424
        %v1426 = vlaneseq
        %v1427 = vshrl.u32 %v1426, 7
        %v1428 = vsub.s32 1, %v1427
        %v1429 = vrot.slane %v1420, %v1428
        %v1432 = vadd.f32 %v1412, %v1425
        %v1433 = vadd.f32 %v1413, %v1429
        %v1434 = vadd.f32 %v1414, %v1425
        %v1435 = vadd.f32 %v1415, %v1429
        %v1436 = vadd.f32 %v1416, %v1425
        %v1437 = vadd.f32 %v1417, %v1429
        %v1438 = vadd.f32 %v1418, %v1425
        %v1439 = vadd.f32 %v1419, %v1429
        %v1440 = vmax.f32 %v1432, 0.0
        %v1441 = vmax.f32 %v1433, 0.0
        %v1442 = vmax.f32 %v1434, 0.0
        %v1443 = vmax.f32 %v1435, 0.0
        %v1444 = vmax.f32 %v1436, 0.0
        %v1445 = vmax.f32 %v1437, 0.0
        %v1446 = vmax.f32 %v1438, 0.0
        %v1447 = vmax.f32 %v1439, 0.0
        %s1448 = scalar_lea.vmem [#allocation15], 2
        %v1449 = vld [vmem:[%s1448] sm:$0x3]
        %v1451 = vlaneseq
        %v1452 = vshrl.u32 %v1451, 7
        %v1453 = vsub.s32 0, %v1452
        %v1454 = vrot.slane %v1449, %v1453
        %v1455 = vlaneseq
        %v1456 = vshrl.u32 %v1455, 7
        %v1457 = vsub.s32 1, %v1456
        %v1458 = vrot.slane %v1449, %v1457
        %v1461 = vmul.f32 %v1440, %v1454
        %v1462 = vmul.f32 %v1441, %v1458
        %v1463 = vmul.f32 %v1442, %v1454
        %v1464 = vmul.f32 %v1443, %v1458
        %v1465 = vmul.f32 %v1444, %v1454
        %v1466 = vmul.f32 %v1445, %v1458
        %v1467 = vmul.f32 %v1446, %v1454
        %v1468 = vmul.f32 %v1447, %v1458
        %s1469 = scalar_lea.vmem [#allocation15], 4
        %v1470 = vld [vmem:[%s1469] sm:$0x3]
        %v1472 = vlaneseq
        %v1473 = vshrl.u32 %v1472, 7
        %v1474 = vsub.s32 0, %v1473
        %v1475 = vrot.slane %v1470, %v1474
        %v1476 = vlaneseq
        %v1477 = vshrl.u32 %v1476, 7
        %v1478 = vsub.s32 1, %v1477
        %v1479 = vrot.slane %v1470, %v1478
        %v1482 = vadd.f32 %v1461, %v1475
        %v1483 = vadd.f32 %v1462, %v1479
        %v1484 = vadd.f32 %v1463, %v1475
        %v1485 = vadd.f32 %v1464, %v1479
        %v1486 = vadd.f32 %v1465, %v1475
        %v1487 = vadd.f32 %v1466, %v1479
        %v1488 = vadd.f32 %v1467, %v1475
        %v1489 = vadd.f32 %v1468, %v1479
        %vm1498 = vcmask 1040384
        %v1499 = vrot.slane %v1482, 7
        %v1500 = vrot.slane %v1483, 7
        %v1501 = vrot.slane %v1484, 7
        %v1502 = vsel %vm1498, %v1499, %v1501
        %v1503 = vrot.slane %v1485, 7
        %v1504 = vsel %vm1498, %v1500, %v1503
        %v1505 = vrot.slane %v1486, 7
        %v1506 = vsel %vm1498, %v1501, %v1505
        %v1507 = vrot.slane %v1487, 7
        %v1508 = vsel %vm1498, %v1503, %v1507
        %v1509 = vrot.slane %v1488, 7
        %v1510 = vsel %vm1498, %v1505, %v1509
        %v1511 = vrot.slane %v1489, 7
        %v1512 = vsel %vm1498, %v1507, %v1511
        %1523 = vst [vmem:[#allocation5] sm:$0xfe] %v1499
        %1524 = vst [vmem:[#allocation5 + $0x8] sm:$0xfe] %v1500
        %1525 = vst [vmem:[#allocation5 + $0x10] sm:$0xff] %v1502
        %1526 = vst [vmem:[#allocation5 + $0x18] sm:$0xff] %v1504
        %1527 = vst [vmem:[#allocation5 + $0x20] sm:$0xff] %v1506
        %1528 = vst [vmem:[#allocation5 + $0x28] sm:$0xff] %v1508
        %1529 = vst [vmem:[#allocation5 + $0x30] sm:$0xff] %v1510
        %1530 = vst [vmem:[#allocation5 + $0x38] sm:$0xff] %v1512
        %1531 = vst [vmem:[#allocation5 + $0x40] sm:$0x1] %v1509
        %1532 = vst [vmem:[#allocation5 + $0x48] sm:$0x1] %v1511
        %v1533 = vld [vmem:[#allocation20] sm:$0xf]
        %v1534 = vld [vmem:[#allocation20 + $0x4] sm:$0xf]
        %v1535 = vpack.c.bf16 %v1484, %v1482
        %v1536 = vpack.c.bf16 %v1485, %v1483
        %v1537 = vpack.c.bf16 %v1488, %v1486
        %v1538 = vpack.c.bf16 %v1489, %v1487
        %v1541 = vunpack.c.l.b16 %v1533
        %v1542 = vunpack.c.l.b16 %v1534
        %v1543 = vpack.c.b16 %v1542, %v1541
        %v1545 = vsel %vm1138, %v1543, 0
        %1547 = vmatprep.subr.bf16.mxu0 0
        %1548 = vmatpush1.bf16.msra.mxu0 0
        %1549 = vmatprep.subr.bf16.mxu0 0
        %1550 = vmatpush1.bf16.msra.mxu0 0
        %1551 = vmatprep.subr.bf16.mxu0 0
        %1552 = vmatpush1.bf16.msra.mxu0 0
        %1553 = vmatprep.subr.bf16.mxu0 0
        %1554 = vmatpush1.bf16.msra.mxu0 0
        %1555 = vmatprep.subr.bf16.mxu0 0
        %1556 = vmatpush1.bf16.msra.mxu0 0
        %1557 = vmatprep.subr.bf16.mxu0 0
        %1558 = vmatpush1.bf16.msra.mxu0 0
        %1559 = vmatprep.subr.bf16.mxu0 %v1538
        %1560 = vmatpush1.bf16.msra.mxu0 %v1537
        %1561 = vmatprep.subr.bf16.mxu0 %v1536
        %1562 = vmatpush1.bf16.msra.mxu0 %v1535
        %1563 = vmatprep.subr.bf16.mxu0 0
        %1564 = vmatpush2.bf16.msra.mxu0 0
        %1565 = vmatprep.subr.bf16.mxu0 0
        %1566 = vmatpush2.bf16.msra.mxu0 0
        %1567 = vmatprep.subr.bf16.mxu0 0
        %1568 = vmatpush2.bf16.msra.mxu0 0
        %1569 = vmatprep.subr.bf16.mxu0 0
        %1570 = vmatpush2.bf16.msra.mxu0 0
        %1571 = vmatprep.subr.bf16.mxu0 0
        %1572 = vmatpush2.bf16.msra.mxu0 0
        %1573 = vmatprep.subr.bf16.mxu0 0
        %1574 = vmatpush2.bf16.msra.mxu0 0
        %1575 = vmatprep.subr.bf16.mxu0 0
        %1576 = vmatpush2.bf16.msra.mxu0 0
        %1577 = vmatprep.subr.bf16.mxu0 0
        %1578 = vmatpush2.bf16.msra.mxu0 0
        %1579 = vmatprep.mubr.bf16.mxu0 0
        %1580 = vmatmul.mubr.bf16.gmra.mxu0 %v1545
        %v1581 = vpop.f32.mrf.mxu0
        %v1582 = vadd.f32 0.0, %v1581
        %v1583 = vpop.f32.mrf.mxu0
        %v1584 = vadd.f32 0.0, %v1583
        %v1585 = vpop.f32.mrf.mxu0
        %v1586 = vadd.f32 0.0, %v1585
        %v1587 = vpop.f32.mrf.mxu0
        %v1588 = vadd.f32 0.0, %v1587
        %1589 = vdwg.mxu0
        %v1590 = vpack.c.bf16 %v1586, %v1582
        %v1591 = vpack.c.bf16 %v1588, %v1584
        %v1592 = vld [vmem:[%s8] sm:$0xf]
        %v1593 = vld [vmem:[%s8 + $0x4] sm:$0xf]
        %v1594 = vld [vmem:[%s8 + $0x8] sm:$0xf]
        %v1595 = vld [vmem:[%s8 + $0xc] sm:$0xf]
        %v1596 = vld [vmem:[%s8 + $0x10] sm:$0xf]
        %v1597 = vld [vmem:[%s8 + $0x14] sm:$0xf]
        %v1598 = vld [vmem:[%s8 + $0x18] sm:$0xf]
        %v1599 = vld [vmem:[%s8 + $0x1c] sm:$0xf]
        %v1600 = vld [vmem:[%s8 + $0x20] sm:$0xf]
        %v1601 = vld [vmem:[%s8 + $0x24] sm:$0xf]
        %v1602 = vld [vmem:[%s8 + $0x28] sm:$0xf]
        %v1603 = vld [vmem:[%s8 + $0x2c] sm:$0xf]
        %v1604 = vld [vmem:[%s8 + $0x30] sm:$0xf]
        %v1605 = vld [vmem:[%s8 + $0x34] sm:$0xf]
        %v1606 = vld [vmem:[%s8 + $0x38] sm:$0xf]
        %v1607 = vld [vmem:[%s8 + $0x3c] sm:$0xf]
        %v1608 = vld [vmem:[%s8 + $0x40] sm:$0xf]
        %v1609 = vld [vmem:[%s8 + $0x44] sm:$0xf]
        %v1610 = vld [vmem:[%s8 + $0x48] sm:$0xf]
        %v1611 = vld [vmem:[%s8 + $0x4c] sm:$0xf]
        %v1612 = vld [vmem:[%s8 + $0x50] sm:$0xf]
        %v1613 = vld [vmem:[%s8 + $0x54] sm:$0xf]
        %v1614 = vld [vmem:[%s8 + $0x58] sm:$0xf]
        %v1615 = vld [vmem:[%s8 + $0x5c] sm:$0xf]
        %v1616 = vld [vmem:[%s8 + $0x60] sm:$0xf]
        %v1617 = vld [vmem:[%s8 + $0x64] sm:$0xf]
        %v1618 = vld [vmem:[%s8 + $0x68] sm:$0xf]
        %v1619 = vld [vmem:[%s8 + $0x6c] sm:$0xf]
        %v1620 = vld [vmem:[%s8 + $0x70] sm:$0xf]
        %v1621 = vld [vmem:[%s8 + $0x74] sm:$0xf]
        %v1622 = vld [vmem:[%s8 + $0x78] sm:$0xf]
        %v1623 = vld [vmem:[%s8 + $0x7c] sm:$0xf]
        %v1656 = vunpack.c.l.b16 %v1592
        %v1657 = vunpack.c.l.b16 %v1593
        %v1658 = vunpack.c.l.b16 %v1594
        %v1659 = vunpack.c.l.b16 %v1595
        %v1660 = vunpack.c.l.b16 %v1596
        %v1661 = vunpack.c.l.b16 %v1597
        %v1662 = vunpack.c.l.b16 %v1598
        %v1663 = vunpack.c.l.b16 %v1599
        %v1664 = vunpack.c.l.b16 %v1600
        %v1665 = vunpack.c.l.b16 %v1601
        %v1666 = vunpack.c.l.b16 %v1602
        %v1667 = vunpack.c.l.b16 %v1603
        %v1668 = vunpack.c.l.b16 %v1604
        %v1669 = vunpack.c.l.b16 %v1605
        %v1670 = vunpack.c.l.b16 %v1606
        %v1671 = vunpack.c.l.b16 %v1607
        %v1672 = vunpack.c.l.b16 %v1608
        %v1673 = vunpack.c.l.b16 %v1609
        %v1674 = vunpack.c.l.b16 %v1610
        %v1675 = vunpack.c.l.b16 %v1611
        %v1676 = vunpack.c.l.b16 %v1612
        %v1677 = vunpack.c.l.b16 %v1613
        %v1678 = vunpack.c.l.b16 %v1614
        %v1679 = vunpack.c.l.b16 %v1615
        %v1680 = vunpack.c.l.b16 %v1616
        %v1681 = vunpack.c.l.b16 %v1617
        %v1682 = vunpack.c.l.b16 %v1618
        %v1683 = vunpack.c.l.b16 %v1619
        %v1684 = vunpack.c.l.b16 %v1620
        %v1685 = vunpack.c.l.b16 %v1621
        %v1686 = vunpack.c.l.b16 %v1622
        %v1687 = vunpack.c.l.b16 %v1623
        %v1688 = vpack.c.b16 %v1657, %v1656
        %v1689 = vpack.c.b16 %v1659, %v1658
        %v1690 = vpack.c.b16 %v1661, %v1660
        %v1691 = vpack.c.b16 %v1663, %v1662
        %v1692 = vpack.c.b16 %v1665, %v1664
        %v1693 = vpack.c.b16 %v1667, %v1666
        %v1694 = vpack.c.b16 %v1669, %v1668
        %v1695 = vpack.c.b16 %v1671, %v1670
        %v1696 = vpack.c.b16 %v1673, %v1672
        %v1697 = vpack.c.b16 %v1675, %v1674
        %v1698 = vpack.c.b16 %v1677, %v1676
        %v1699 = vpack.c.b16 %v1679, %v1678
        %v1700 = vpack.c.b16 %v1681, %v1680
        %v1701 = vpack.c.b16 %v1683, %v1682
        %v1702 = vpack.c.b16 %v1685, %v1684
        %v1703 = vpack.c.b16 %v1687, %v1686
        %1720 = vmatprep.subr.bf16.mxu0 0
        %1721 = vmatpush1.bf16.msra.mxu0 %v1695
        %1722 = vmatprep.subr.bf16.mxu0 0
        %1723 = vmatpush1.bf16.msra.mxu0 %v1694
        %1724 = vmatprep.subr.bf16.mxu0 0
        %1725 = vmatpush1.bf16.msra.mxu0 %v1693
        %1726 = vmatprep.subr.bf16.mxu0 0
        %1727 = vmatpush1.bf16.msra.mxu0 %v1692
        %1728 = vmatprep.subr.bf16.mxu0 0
        %1729 = vmatpush1.bf16.msra.mxu0 %v1691
        %1730 = vmatprep.subr.bf16.mxu0 0
        %1731 = vmatpush1.bf16.msra.mxu0 %v1690
        %1732 = vmatprep.subr.bf16.mxu0 0
        %1733 = vmatpush1.bf16.msra.mxu0 %v1689
        %1734 = vmatprep.subr.bf16.mxu0 0
        %1735 = vmatpush1.bf16.msra.mxu0 %v1688
        %1736 = vmatprep.subr.bf16.mxu0 0
        %1737 = vmatpush2.bf16.msra.mxu0 %v1703
        %1738 = vmatprep.subr.bf16.mxu0 0
        %1739 = vmatpush2.bf16.msra.mxu0 %v1702
        %1740 = vmatprep.subr.bf16.mxu0 0
        %1741 = vmatpush2.bf16.msra.mxu0 %v1701
        %1742 = vmatprep.subr.bf16.mxu0 0
        %1743 = vmatpush2.bf16.msra.mxu0 %v1700
        %1744 = vmatprep.subr.bf16.mxu0 0
        %1745 = vmatpush2.bf16.msra.mxu0 %v1699
        %1746 = vmatprep.subr.bf16.mxu0 0
        %1747 = vmatpush2.bf16.msra.mxu0 %v1698
        %1748 = vmatprep.subr.bf16.mxu0 0
        %1749 = vmatpush2.bf16.msra.mxu0 %v1697
        %1750 = vmatprep.subr.bf16.mxu0 0
        %1751 = vmatpush2.bf16.msra.mxu0 %v1696
        %1752 = vmatprep.mubr.bf16.mxu0 %v1591
        %1753 = vmatmul.mubr.bf16.gmra.mxu0 %v1590
        %v1754 = vpop.f32.mrf.mxu0
        %v1755 = vadd.f32 0.0, %v1754
        %v1756 = vpop.f32.mrf.mxu0
        %v1757 = vpop.f32.mrf.mxu0
        %v1758 = vadd.f32 0.0, %v1757
        %v1759 = vpop.f32.mrf.mxu0
        %1760 = vdwg.mxu0
        %1761 = vst [vmem:[#allocation3 + $0x1] sm:$0xff] %v1755
        %1762 = vst [vmem:[#allocation3 + $0x9] sm:$0xff] %v1758
        %v1763 = vld [vmem:[#allocation3] sm:$0xff]
        %v1764 = vld [vmem:[#allocation3 + $0x8] sm:$0xff]
        %v1765 = vpack.c.bf16 %v1764, %v1763
        %v1766 = vld [vmem:[#allocation12] sm:$0xff]
        %v1767 = vld [vmem:[#allocation12 + $0x8] sm:$0xff]
        %v1768 = vld [vmem:[#allocation12 + $0x10] sm:$0xff]
        %v1769 = vld [vmem:[#allocation12 + $0x18] sm:$0xff]
        %v1770 = vld [vmem:[#allocation12 + $0x20] sm:$0xff]
        %v1771 = vld [vmem:[#allocation12 + $0x28] sm:$0xff]
        %v1772 = vld [vmem:[#allocation12 + $0x30] sm:$0xff]
        %v1773 = vld [vmem:[#allocation12 + $0x38] sm:$0xff]
        %v1774 = vld [vmem:[#allocation12 + $0x40] sm:$0xff]
        %v1775 = vld [vmem:[#allocation12 + $0x48] sm:$0xff]
        %v1776 = vld [vmem:[#allocation12 + $0x50] sm:$0xff]
        %v1777 = vld [vmem:[#allocation12 + $0x58] sm:$0xff]
        %v1778 = vld [vmem:[#allocation12 + $0x60] sm:$0xff]
        %v1779 = vld [vmem:[#allocation12 + $0x68] sm:$0xff]
        %v1780 = vld [vmem:[#allocation12 + $0x70] sm:$0xff]
        %v1781 = vld [vmem:[#allocation12 + $0x78] sm:$0xff]
        %v1782 = vld [vmem:[#allocation3 + $0x1] sm:$0xff]
        %v1783 = vld [vmem:[#allocation3 + $0x9] sm:$0xff]
        %v1784 = vpack.c.bf16 %v1783, %v1782
        %s1785 = scalar_lea.vmem [#allocation12], 128
        %v1786 = vld [vmem:[%s1785] sm:$0xff]
        %v1787 = vld [vmem:[%s1785 + $0x8] sm:$0xff]
        %v1788 = vld [vmem:[%s1785 + $0x10] sm:$0xff]
        %v1789 = vld [vmem:[%s1785 + $0x18] sm:$0xff]
        %v1790 = vld [vmem:[%s1785 + $0x20] sm:$0xff]
        %v1791 = vld [vmem:[%s1785 + $0x28] sm:$0xff]
        %v1792 = vld [vmem:[%s1785 + $0x30] sm:$0xff]
        %v1793 = vld [vmem:[%s1785 + $0x38] sm:$0xff]
        %v1794 = vld [vmem:[%s1785 + $0x40] sm:$0xff]
        %v1795 = vld [vmem:[%s1785 + $0x48] sm:$0xff]
        %v1796 = vld [vmem:[%s1785 + $0x50] sm:$0xff]
        %v1797 = vld [vmem:[%s1785 + $0x58] sm:$0xff]
        %v1798 = vld [vmem:[%s1785 + $0x60] sm:$0xff]
        %v1799 = vld [vmem:[%s1785 + $0x68] sm:$0xff]
        %v1800 = vld [vmem:[%s1785 + $0x70] sm:$0xff]
        %v1801 = vld [vmem:[%s1785 + $0x78] sm:$0xff]
        %v1818 = vunpack.c.l.b16 %v1786
        %v1819 = vunpack.c.h.b16 %v1786
        %v1820 = vunpack.c.l.b16 %v1787
        %v1821 = vunpack.c.h.b16 %v1787
        %v1822 = vunpack.c.l.b16 %v1788
        %v1823 = vunpack.c.h.b16 %v1788
        %v1824 = vunpack.c.l.b16 %v1789
        %v1825 = vunpack.c.h.b16 %v1789
        %v1826 = vunpack.c.l.b16 %v1790
        %v1827 = vunpack.c.h.b16 %v1790
        %v1828 = vunpack.c.l.b16 %v1791
        %v1829 = vunpack.c.h.b16 %v1791
        %v1830 = vunpack.c.l.b16 %v1792
        %v1831 = vunpack.c.h.b16 %v1792
        %v1832 = vunpack.c.l.b16 %v1793
        %v1833 = vunpack.c.h.b16 %v1793
        %v1834 = vunpack.c.l.b16 %v1794
        %v1835 = vunpack.c.h.b16 %v1794
        %v1836 = vunpack.c.l.b16 %v1795
        %v1837 = vunpack.c.h.b16 %v1795
        %v1838 = vunpack.c.l.b16 %v1796
        %v1839 = vunpack.c.h.b16 %v1796
        %v1840 = vunpack.c.l.b16 %v1797
        %v1841 = vunpack.c.h.b16 %v1797
        %v1842 = vunpack.c.l.b16 %v1798
        %v1843 = vunpack.c.h.b16 %v1798
        %v1844 = vunpack.c.l.b16 %v1799
        %v1845 = vunpack.c.h.b16 %v1799
        %v1846 = vunpack.c.l.b16 %v1800
        %v1847 = vunpack.c.h.b16 %v1800
        %v1848 = vunpack.c.l.b16 %v1801
        %v1849 = vunpack.c.h.b16 %v1801
        %v1850 = vpack.c.b16 %v1820, %v1818
        %v1851 = vpack.c.b16 %v1821, %v1819
        %v1852 = vpack.c.b16 %v1824, %v1822
        %v1853 = vpack.c.b16 %v1825, %v1823
        %v1854 = vpack.c.b16 %v1828, %v1826
        %v1855 = vpack.c.b16 %v1829, %v1827
        %v1856 = vpack.c.b16 %v1832, %v1830
        %v1857 = vpack.c.b16 %v1833, %v1831
        %v1858 = vpack.c.b16 %v1836, %v1834
        %v1859 = vpack.c.b16 %v1837, %v1835
        %v1860 = vpack.c.b16 %v1840, %v1838
        %v1861 = vpack.c.b16 %v1841, %v1839
        %v1862 = vpack.c.b16 %v1844, %v1842
        %v1863 = vpack.c.b16 %v1845, %v1843
        %v1864 = vpack.c.b16 %v1848, %v1846
        %v1865 = vpack.c.b16 %v1849, %v1847
        %1882 = vmatprep.subr.bf16.mxu0 %v1865
        %1883 = vmatpush1.bf16.msra.mxu0 %v1864
        %1884 = vmatprep.subr.bf16.mxu0 %v1863
        %1885 = vmatpush1.bf16.msra.mxu0 %v1862
        %1886 = vmatprep.subr.bf16.mxu0 %v1861
        %1887 = vmatpush1.bf16.msra.mxu0 %v1860
        %1888 = vmatprep.subr.bf16.mxu0 %v1859
        %1889 = vmatpush1.bf16.msra.mxu0 %v1858
        %1890 = vmatprep.subr.bf16.mxu0 %v1857
        %1891 = vmatpush1.bf16.msra.mxu0 %v1856
        %1892 = vmatprep.subr.bf16.mxu0 %v1855
        %1893 = vmatpush1.bf16.msra.mxu0 %v1854
        %1894 = vmatprep.subr.bf16.mxu0 %v1853
        %1895 = vmatpush1.bf16.msra.mxu0 %v1852
        %1896 = vmatprep.subr.bf16.mxu0 %v1851
        %1897 = vmatpush1.bf16.msra.mxu0 %v1850
        %1898 = vmatprep.subr.bf16.mxu0 0
        %1899 = vmatpush2.bf16.msra.mxu0 0
        %1900 = vmatprep.subr.bf16.mxu0 0
        %1901 = vmatpush2.bf16.msra.mxu0 0
        %1902 = vmatprep.subr.bf16.mxu0 0
        %1903 = vmatpush2.bf16.msra.mxu0 0
        %1904 = vmatprep.subr.bf16.mxu0 0
        %1905 = vmatpush2.bf16.msra.mxu0 0
        %1906 = vmatprep.subr.bf16.mxu0 0
        %1907 = vmatpush2.bf16.msra.mxu0 0
        %1908 = vmatprep.subr.bf16.mxu0 0
        %1909 = vmatpush2.bf16.msra.mxu0 0
        %1910 = vmatprep.subr.bf16.mxu0 0
        %1911 = vmatpush2.bf16.msra.mxu0 0
        %1912 = vmatprep.subr.bf16.mxu0 0
        %1913 = vmatpush2.bf16.msra.mxu0 0
        %1914 = vmatprep.mubr.bf16.mxu0 0
        %1915 = vmatmul.mubr.bf16.gmra.mxu0 %v1784
        %v1916 = vpop.f32.mrf.mxu0
        %v1917 = vadd.f32 0.0, %v1916
        %v1918 = vpop.f32.mrf.mxu0
        %v1919 = vadd.f32 0.0, %v1918
        %v1920 = vpop.f32.mrf.mxu0
        %v1921 = vadd.f32 0.0, %v1920
        %v1922 = vpop.f32.mrf.mxu0
        %v1923 = vadd.f32 0.0, %v1922
        %1924 = vdwg.mxu0
        %v1941 = vunpack.c.l.b16 %v1766
        %v1942 = vunpack.c.h.b16 %v1766
        %v1943 = vunpack.c.l.b16 %v1767
        %v1944 = vunpack.c.h.b16 %v1767
        %v1945 = vunpack.c.l.b16 %v1768
        %v1946 = vunpack.c.h.b16 %v1768
        %v1947 = vunpack.c.l.b16 %v1769
        %v1948 = vunpack.c.h.b16 %v1769
        %v1949 = vunpack.c.l.b16 %v1770
        %v1950 = vunpack.c.h.b16 %v1770
        %v1951 = vunpack.c.l.b16 %v1771
        %v1952 = vunpack.c.h.b16 %v1771
        %v1953 = vunpack.c.l.b16 %v1772
        %v1954 = vunpack.c.h.b16 %v1772
        %v1955 = vunpack.c.l.b16 %v1773
        %v1956 = vunpack.c.h.b16 %v1773
        %v1957 = vunpack.c.l.b16 %v1774
        %v1958 = vunpack.c.h.b16 %v1774
        %v1959 = vunpack.c.l.b16 %v1775
        %v1960 = vunpack.c.h.b16 %v1775
        %v1961 = vunpack.c.l.b16 %v1776
        %v1962 = vunpack.c.h.b16 %v1776
        %v1963 = vunpack.c.l.b16 %v1777
        %v1964 = vunpack.c.h.b16 %v1777
        %v1965 = vunpack.c.l.b16 %v1778
        %v1966 = vunpack.c.h.b16 %v1778
        %v1967 = vunpack.c.l.b16 %v1779
        %v1968 = vunpack.c.h.b16 %v1779
        %v1969 = vunpack.c.l.b16 %v1780
        %v1970 = vunpack.c.h.b16 %v1780
        %v1971 = vunpack.c.l.b16 %v1781
        %v1972 = vunpack.c.h.b16 %v1781
        %v1973 = vpack.c.b16 %v1943, %v1941
        %v1974 = vpack.c.b16 %v1944, %v1942
        %v1975 = vpack.c.b16 %v1947, %v1945
        %v1976 = vpack.c.b16 %v1948, %v1946
        %v1977 = vpack.c.b16 %v1951, %v1949
        %v1978 = vpack.c.b16 %v1952, %v1950
        %v1979 = vpack.c.b16 %v1955, %v1953
        %v1980 = vpack.c.b16 %v1956, %v1954
        %v1981 = vpack.c.b16 %v1959, %v1957
        %v1982 = vpack.c.b16 %v1960, %v1958
        %v1983 = vpack.c.b16 %v1963, %v1961
        %v1984 = vpack.c.b16 %v1964, %v1962
        %v1985 = vpack.c.b16 %v1967, %v1965
        %v1986 = vpack.c.b16 %v1968, %v1966
        %v1987 = vpack.c.b16 %v1971, %v1969
        %v1988 = vpack.c.b16 %v1972, %v1970
        %2005 = vmatprep.subr.bf16.mxu0 %v1988
        %2006 = vmatpush1.bf16.msra.mxu0 %v1987
        %2007 = vmatprep.subr.bf16.mxu0 %v1986
        %2008 = vmatpush1.bf16.msra.mxu0 %v1985
        %2009 = vmatprep.subr.bf16.mxu0 %v1984
        %2010 = vmatpush1.bf16.msra.mxu0 %v1983
        %2011 = vmatprep.subr.bf16.mxu0 %v1982
        %2012 = vmatpush1.bf16.msra.mxu0 %v1981
        %2013 = vmatprep.subr.bf16.mxu0 %v1980
        %2014 = vmatpush1.bf16.msra.mxu0 %v1979
        %2015 = vmatprep.subr.bf16.mxu0 %v1978
        %2016 = vmatpush1.bf16.msra.mxu0 %v1977
        %2017 = vmatprep.subr.bf16.mxu0 %v1976
        %2018 = vmatpush1.bf16.msra.mxu0 %v1975
        %2019 = vmatprep.subr.bf16.mxu0 %v1974
        %2020 = vmatpush1.bf16.msra.mxu0 %v1973
        %2021 = vmatprep.subr.bf16.mxu0 0
        %2022 = vmatpush2.bf16.msra.mxu0 0
        %2023 = vmatprep.subr.bf16.mxu0 0
        %2024 = vmatpush2.bf16.msra.mxu0 0
        %2025 = vmatprep.subr.bf16.mxu0 0
        %2026 = vmatpush2.bf16.msra.mxu0 0
        %2027 = vmatprep.subr.bf16.mxu0 0
        %2028 = vmatpush2.bf16.msra.mxu0 0
        %2029 = vmatprep.subr.bf16.mxu0 0
        %2030 = vmatpush2.bf16.msra.mxu0 0
        %2031 = vmatprep.subr.bf16.mxu0 0
        %2032 = vmatpush2.bf16.msra.mxu0 0
        %2033 = vmatprep.subr.bf16.mxu0 0
        %2034 = vmatpush2.bf16.msra.mxu0 0
        %2035 = vmatprep.subr.bf16.mxu0 0
        %2036 = vmatpush2.bf16.msra.mxu0 0
        %2037 = vmatprep.mubr.bf16.mxu0 0
        %2038 = vmatmul.mubr.bf16.gmra.mxu0 %v1765
        %v2039 = vpop.f32.mrf.mxu0
        %v2040 = vadd.f32 %v1917, %v2039
        %v2041 = vpop.f32.mrf.mxu0
        %v2042 = vadd.f32 %v1919, %v2041
        %v2043 = vpop.f32.mrf.mxu0
        %v2044 = vadd.f32 %v1921, %v2043
        %v2045 = vpop.f32.mrf.mxu0
        %v2046 = vadd.f32 %v1923, %v2045
        %2047 = vdwg.mxu0
        %v2048 = vld [vmem:[#allocation3 + $0x2] sm:$0xff]
        %v2049 = vld [vmem:[#allocation3 + $0xa] sm:$0xff]
        %v2050 = vpack.c.bf16 %v2049, %v2048
        %s2051 = scalar_lea.vmem [#allocation12], 256
        %v2052 = vld [vmem:[%s2051] sm:$0xff]
        %v2053 = vld [vmem:[%s2051 + $0x8] sm:$0xff]
        %v2054 = vld [vmem:[%s2051 + $0x10] sm:$0xff]
        %v2055 = vld [vmem:[%s2051 + $0x18] sm:$0xff]
        %v2056 = vld [vmem:[%s2051 + $0x20] sm:$0xff]
        %v2057 = vld [vmem:[%s2051 + $0x28] sm:$0xff]
        %v2058 = vld [vmem:[%s2051 + $0x30] sm:$0xff]
        %v2059 = vld [vmem:[%s2051 + $0x38] sm:$0xff]
        %v2060 = vld [vmem:[%s2051 + $0x40] sm:$0xff]
        %v2061 = vld [vmem:[%s2051 + $0x48] sm:$0xff]
        %v2062 = vld [vmem:[%s2051 + $0x50] sm:$0xff]
        %v2063 = vld [vmem:[%s2051 + $0x58] sm:$0xff]
        %v2064 = vld [vmem:[%s2051 + $0x60] sm:$0xff]
        %v2065 = vld [vmem:[%s2051 + $0x68] sm:$0xff]
        %v2066 = vld [vmem:[%s2051 + $0x70] sm:$0xff]
        %v2067 = vld [vmem:[%s2051 + $0x78] sm:$0xff]
        %v2084 = vunpack.c.l.b16 %v2052
        %v2085 = vunpack.c.h.b16 %v2052
        %v2086 = vunpack.c.l.b16 %v2053
        %v2087 = vunpack.c.h.b16 %v2053
        %v2088 = vunpack.c.l.b16 %v2054
        %v2089 = vunpack.c.h.b16 %v2054
        %v2090 = vunpack.c.l.b16 %v2055
        %v2091 = vunpack.c.h.b16 %v2055
        %v2092 = vunpack.c.l.b16 %v2056
        %v2093 = vunpack.c.h.b16 %v2056
        %v2094 = vunpack.c.l.b16 %v2057
        %v2095 = vunpack.c.h.b16 %v2057
        %v2096 = vunpack.c.l.b16 %v2058
        %v2097 = vunpack.c.h.b16 %v2058
        %v2098 = vunpack.c.l.b16 %v2059
        %v2099 = vunpack.c.h.b16 %v2059
        %v2100 = vunpack.c.l.b16 %v2060
        %v2101 = vunpack.c.h.b16 %v2060
        %v2102 = vunpack.c.l.b16 %v2061
        %v2103 = vunpack.c.h.b16 %v2061
        %v2104 = vunpack.c.l.b16 %v2062
        %v2105 = vunpack.c.h.b16 %v2062
        %v2106 = vunpack.c.l.b16 %v2063
        %v2107 = vunpack.c.h.b16 %v2063
        %v2108 = vunpack.c.l.b16 %v2064
        %v2109 = vunpack.c.h.b16 %v2064
        %v2110 = vunpack.c.l.b16 %v2065
        %v2111 = vunpack.c.h.b16 %v2065
        %v2112 = vunpack.c.l.b16 %v2066
        %v2113 = vunpack.c.h.b16 %v2066
        %v2114 = vunpack.c.l.b16 %v2067
        %v2115 = vunpack.c.h.b16 %v2067
        %v2116 = vpack.c.b16 %v2086, %v2084
        %v2117 = vpack.c.b16 %v2087, %v2085
        %v2118 = vpack.c.b16 %v2090, %v2088
        %v2119 = vpack.c.b16 %v2091, %v2089
        %v2120 = vpack.c.b16 %v2094, %v2092
        %v2121 = vpack.c.b16 %v2095, %v2093
        %v2122 = vpack.c.b16 %v2098, %v2096
        %v2123 = vpack.c.b16 %v2099, %v2097
        %v2124 = vpack.c.b16 %v2102, %v2100
        %v2125 = vpack.c.b16 %v2103, %v2101
        %v2126 = vpack.c.b16 %v2106, %v2104
        %v2127 = vpack.c.b16 %v2107, %v2105
        %v2128 = vpack.c.b16 %v2110, %v2108
        %v2129 = vpack.c.b16 %v2111, %v2109
        %v2130 = vpack.c.b16 %v2114, %v2112
        %v2131 = vpack.c.b16 %v2115, %v2113
        %2148 = vmatprep.subr.bf16.mxu0 %v2131
        %2149 = vmatpush1.bf16.msra.mxu0 %v2130
        %2150 = vmatprep.subr.bf16.mxu0 %v2129
        %2151 = vmatpush1.bf16.msra.mxu0 %v2128
        %2152 = vmatprep.subr.bf16.mxu0 %v2127
        %2153 = vmatpush1.bf16.msra.mxu0 %v2126
        %2154 = vmatprep.subr.bf16.mxu0 %v2125
        %2155 = vmatpush1.bf16.msra.mxu0 %v2124
        %2156 = vmatprep.subr.bf16.mxu0 %v2123
        %2157 = vmatpush1.bf16.msra.mxu0 %v2122
        %2158 = vmatprep.subr.bf16.mxu0 %v2121
        %2159 = vmatpush1.bf16.msra.mxu0 %v2120
        %2160 = vmatprep.subr.bf16.mxu0 %v2119
        %2161 = vmatpush1.bf16.msra.mxu0 %v2118
        %2162 = vmatprep.subr.bf16.mxu0 %v2117
        %2163 = vmatpush1.bf16.msra.mxu0 %v2116
        %2164 = vmatprep.subr.bf16.mxu0 0
        %2165 = vmatpush2.bf16.msra.mxu0 0
        %2166 = vmatprep.subr.bf16.mxu0 0
        %2167 = vmatpush2.bf16.msra.mxu0 0
        %2168 = vmatprep.subr.bf16.mxu0 0
        %2169 = vmatpush2.bf16.msra.mxu0 0
        %2170 = vmatprep.subr.bf16.mxu0 0
        %2171 = vmatpush2.bf16.msra.mxu0 0
        %2172 = vmatprep.subr.bf16.mxu0 0
        %2173 = vmatpush2.bf16.msra.mxu0 0
        %2174 = vmatprep.subr.bf16.mxu0 0
        %2175 = vmatpush2.bf16.msra.mxu0 0
        %2176 = vmatprep.subr.bf16.mxu0 0
        %2177 = vmatpush2.bf16.msra.mxu0 0
        %2178 = vmatprep.subr.bf16.mxu0 0
        %2179 = vmatpush2.bf16.msra.mxu0 0
        %2180 = vmatprep.mubr.bf16.mxu0 0
        %2181 = vmatmul.mubr.bf16.gmra.mxu0 %v2050
        %v2182 = vpop.f32.mrf.mxu0
        %v2183 = vadd.f32 0.0, %v2182
        %v2184 = vpop.f32.mrf.mxu0
        %v2185 = vadd.f32 0.0, %v2184
        %v2186 = vpop.f32.mrf.mxu0
        %v2187 = vadd.f32 0.0, %v2186
        %v2188 = vpop.f32.mrf.mxu0
        %v2189 = vadd.f32 0.0, %v2188
        %2190 = vdwg.mxu0
        %v2191 = vadd.f32 %v2040, %v2183
        %v2192 = vadd.f32 %v2042, %v2185
        %v2193 = vadd.f32 %v2044, %v2187
        %v2194 = vadd.f32 %v2046, %v2189
        %v2195 = vld [vmem:[#allocation17] sm:$0x3]
        %v2197 = vlaneseq
        %v2198 = vshrl.u32 %v2197, 7
        %v2199 = vsub.s32 0, %v2198
        %v2200 = vrot.slane %v2195, %v2199
        %v2201 = vlaneseq
        %v2202 = vshrl.u32 %v2201, 7
        %v2203 = vsub.s32 1, %v2202
        %v2204 = vrot.slane %v2195, %v2203
        %v2207 = vadd.f32 %v2191, %v2200
        %v2208 = vadd.f32 %v2192, %v2204
        %v2209 = vadd.f32 %v2193, %v2200
        %v2210 = vadd.f32 %v2194, %v2204
        %v2211 = vmax.f32 %v2207, 0.0
        %v2212 = vmax.f32 %v2208, 0.0
        %v2213 = vmax.f32 %v2209, 0.0
        %v2214 = vmax.f32 %v2210, 0.0
        %s2215 = scalar_lea.vmem [#allocation17], 2
        %v2216 = vld [vmem:[%s2215] sm:$0x3]
        %v2218 = vlaneseq
        %v2219 = vshrl.u32 %v2218, 7
        %v2220 = vsub.s32 0, %v2219
        %v2221 = vrot.slane %v2216, %v2220
        %v2222 = vlaneseq
        %v2223 = vshrl.u32 %v2222, 7
        %v2224 = vsub.s32 1, %v2223
        %v2225 = vrot.slane %v2216, %v2224
        %v2228 = vmul.f32 %v2211, %v2221
        %v2229 = vmul.f32 %v2212, %v2225
        %v2230 = vmul.f32 %v2213, %v2221
        %v2231 = vmul.f32 %v2214, %v2225
        %s2232 = scalar_lea.vmem [#allocation17], 4
        %v2233 = vld [vmem:[%s2232] sm:$0x3]
        %v2235 = vlaneseq
        %v2236 = vshrl.u32 %v2235, 7
        %v2237 = vsub.s32 0, %v2236
        %v2238 = vrot.slane %v2233, %v2237
        %v2239 = vlaneseq
        %v2240 = vshrl.u32 %v2239, 7
        %v2241 = vsub.s32 1, %v2240
        %v2242 = vrot.slane %v2233, %v2241
        %v2245 = vadd.f32 %v2228, %v2238
        %v2246 = vadd.f32 %v2229, %v2242
        %v2247 = vadd.f32 %v2230, %v2238
        %v2248 = vadd.f32 %v2231, %v2242
        %v2253 = vrot.slane %v2245, 7
        %v2254 = vrot.slane %v2246, 7
        %v2255 = vrot.slane %v2247, 7
        %v2256 = vsel %vm1498, %v2253, %v2255
        %v2257 = vrot.slane %v2248, 7
        %v2258 = vsel %vm1498, %v2254, %v2257
        %2265 = vst [vmem:[#allocation6] sm:$0xfe] %v2253
        %2266 = vst [vmem:[#allocation6 + $0x8] sm:$0xfe] %v2254
        %2267 = vst [vmem:[#allocation6 + $0x10] sm:$0xff] %v2256
        %2268 = vst [vmem:[#allocation6 + $0x18] sm:$0xff] %v2258
        %2269 = vst [vmem:[#allocation6 + $0x20] sm:$0x1] %v2255
        %2270 = vst [vmem:[#allocation6 + $0x28] sm:$0x1] %v2257
        %v2271 = vld [vmem:[#allocation21] sm:$0xf]
        %v2272 = vpack.c.bf16 %v2247, %v2245
        %v2273 = vpack.c.bf16 %v2248, %v2246
        %vm2274 = vcmask 130048
        %v2276 = vsel %vm2274, %v2271, 0
        %2278 = vmatprep.subr.bf16.mxu0 0
        %2279 = vmatpush1.bf16.msra.mxu0 0
        %2280 = vmatprep.subr.bf16.mxu0 0
        %2281 = vmatpush1.bf16.msra.mxu0 0
        %2282 = vmatprep.subr.bf16.mxu0 0
        %2283 = vmatpush1.bf16.msra.mxu0 0
        %2284 = vmatprep.subr.bf16.mxu0 0
        %2285 = vmatpush1.bf16.msra.mxu0 0
        %2286 = vmatprep.subr.bf16.mxu0 0
        %2287 = vmatpush1.bf16.msra.mxu0 0
        %2288 = vmatprep.subr.bf16.mxu0 0
        %2289 = vmatpush1.bf16.msra.mxu0 0
        %2290 = vmatprep.subr.bf16.mxu0 0
        %2291 = vmatpush1.bf16.msra.mxu0 0
        %2292 = vmatprep.subr.bf16.mxu0 %v2273
        %2293 = vmatpush1.bf16.msra.mxu0 %v2272
        %2294 = vmatprep.subr.bf16.mxu0 0
        %2295 = vmatpush2.bf16.msra.mxu0 0
        %2296 = vmatprep.subr.bf16.mxu0 0
        %2297 = vmatpush2.bf16.msra.mxu0 0
        %2298 = vmatprep.subr.bf16.mxu0 0
        %2299 = vmatpush2.bf16.msra.mxu0 0
        %2300 = vmatprep.subr.bf16.mxu0 0
        %2301 = vmatpush2.bf16.msra.mxu0 0
        %2302 = vmatprep.subr.bf16.mxu0 0
        %2303 = vmatpush2.bf16.msra.mxu0 0
        %2304 = vmatprep.subr.bf16.mxu0 0
        %2305 = vmatpush2.bf16.msra.mxu0 0
        %2306 = vmatprep.subr.bf16.mxu0 0
        %2307 = vmatpush2.bf16.msra.mxu0 0
        %2308 = vmatprep.subr.bf16.mxu0 0
        %2309 = vmatpush2.bf16.msra.mxu0 0
        %2310 = vmatprep.mubr.bf16.mxu0 0
        %2311 = vmatmul.mubr.bf16.gmra.mxu0 %v2276
        %v2312 = vpop.f32.mrf.mxu0
        %v2313 = vadd.f32 0.0, %v2312
        %v2314 = vpop.f32.mrf.mxu0
        %v2315 = vadd.f32 0.0, %v2314
        %v2316 = vpop.f32.mrf.mxu0
        %v2317 = vpop.f32.mrf.mxu0
        %2318 = vdwg.mxu0
        %v2319 = vpack.c.bf16 %v2313, %v2313
        %v2320 = vpack.c.bf16 %v2315, %v2315
        %v2321 = vld [vmem:[#allocation23] sm:$0xf]
        %v2322 = vld [vmem:[#allocation23 + $0x4] sm:$0xf]
        %v2323 = vld [vmem:[#allocation23 + $0x8] sm:$0xf]
        %v2324 = vld [vmem:[#allocation23 + $0xc] sm:$0xf]
        %v2325 = vld [vmem:[#allocation23 + $0x10] sm:$0xf]
        %v2326 = vld [vmem:[#allocation23 + $0x14] sm:$0xf]
        %v2327 = vld [vmem:[#allocation23 + $0x18] sm:$0xf]
        %v2328 = vld [vmem:[#allocation23 + $0x1c] sm:$0xf]
        %v2329 = vld [vmem:[#allocation23 + $0x20] sm:$0xf]
        %v2330 = vld [vmem:[#allocation23 + $0x24] sm:$0xf]
        %v2331 = vld [vmem:[#allocation23 + $0x28] sm:$0xf]
        %v2332 = vld [vmem:[#allocation23 + $0x2c] sm:$0xf]
        %v2333 = vld [vmem:[#allocation23 + $0x30] sm:$0xf]
        %v2334 = vld [vmem:[#allocation23 + $0x34] sm:$0xf]
        %v2335 = vld [vmem:[#allocation23 + $0x38] sm:$0xf]
        %v2336 = vld [vmem:[#allocation23 + $0x3c] sm:$0xf]
        %v2337 = vld [vmem:[#allocation23 + $0x40] sm:$0xf]
        %v2338 = vld [vmem:[#allocation23 + $0x44] sm:$0xf]
        %v2339 = vld [vmem:[#allocation23 + $0x48] sm:$0xf]
        %v2340 = vld [vmem:[#allocation23 + $0x4c] sm:$0xf]
        %v2341 = vld [vmem:[#allocation23 + $0x50] sm:$0xf]
        %v2342 = vld [vmem:[#allocation23 + $0x54] sm:$0xf]
        %v2343 = vld [vmem:[#allocation23 + $0x58] sm:$0xf]
        %v2344 = vld [vmem:[#allocation23 + $0x5c] sm:$0xf]
        %v2345 = vld [vmem:[#allocation23 + $0x60] sm:$0xf]
        %v2346 = vld [vmem:[#allocation23 + $0x64] sm:$0xf]
        %v2347 = vld [vmem:[#allocation23 + $0x68] sm:$0xf]
        %v2348 = vld [vmem:[#allocation23 + $0x6c] sm:$0xf]
        %v2349 = vld [vmem:[#allocation23 + $0x70] sm:$0xf]
        %v2350 = vld [vmem:[#allocation23 + $0x74] sm:$0xf]
        %v2351 = vld [vmem:[#allocation23 + $0x78] sm:$0xf]
        %v2352 = vld [vmem:[#allocation23 + $0x7c] sm:$0xf]
        %v2385 = vunpack.c.l.b16 %v2321
        %v2386 = vunpack.c.l.b16 %v2322
        %v2387 = vunpack.c.l.b16 %v2323
        %v2388 = vunpack.c.l.b16 %v2324
        %v2389 = vunpack.c.l.b16 %v2325
        %v2390 = vunpack.c.l.b16 %v2326
        %v2391 = vunpack.c.l.b16 %v2327
        %v2392 = vunpack.c.l.b16 %v2328
        %v2393 = vunpack.c.l.b16 %v2329
        %v2394 = vunpack.c.l.b16 %v2330
        %v2395 = vunpack.c.l.b16 %v2331
        %v2396 = vunpack.c.l.b16 %v2332
        %v2397 = vunpack.c.l.b16 %v2333
        %v2398 = vunpack.c.l.b16 %v2334
        %v2399 = vunpack.c.l.b16 %v2335
        %v2400 = vunpack.c.l.b16 %v2336
        %v2401 = vunpack.c.l.b16 %v2337
        %v2402 = vunpack.c.l.b16 %v2338
        %v2403 = vunpack.c.l.b16 %v2339
        %v2404 = vunpack.c.l.b16 %v2340
        %v2405 = vunpack.c.l.b16 %v2341
        %v2406 = vunpack.c.l.b16 %v2342
        %v2407 = vunpack.c.l.b16 %v2343
        %v2408 = vunpack.c.l.b16 %v2344
        %v2409 = vunpack.c.l.b16 %v2345
        %v2410 = vunpack.c.l.b16 %v2346
        %v2411 = vunpack.c.l.b16 %v2347
        %v2412 = vunpack.c.l.b16 %v2348
        %v2413 = vunpack.c.l.b16 %v2349
        %v2414 = vunpack.c.l.b16 %v2350
        %v2415 = vunpack.c.l.b16 %v2351
        %v2416 = vunpack.c.l.b16 %v2352
        %v2417 = vpack.c.b16 %v2386, %v2385
        %v2418 = vpack.c.b16 %v2388, %v2387
        %v2419 = vpack.c.b16 %v2390, %v2389
        %v2420 = vpack.c.b16 %v2392, %v2391
        %v2421 = vpack.c.b16 %v2394, %v2393
        %v2422 = vpack.c.b16 %v2396, %v2395
        %v2423 = vpack.c.b16 %v2398, %v2397
        %v2424 = vpack.c.b16 %v2400, %v2399
        %v2425 = vpack.c.b16 %v2402, %v2401
        %v2426 = vpack.c.b16 %v2404, %v2403
        %v2427 = vpack.c.b16 %v2406, %v2405
        %v2428 = vpack.c.b16 %v2408, %v2407
        %v2429 = vpack.c.b16 %v2410, %v2409
        %v2430 = vpack.c.b16 %v2412, %v2411
        %v2431 = vpack.c.b16 %v2414, %v2413
        %v2432 = vpack.c.b16 %v2416, %v2415
        %2449 = vmatprep.subr.bf16.mxu0 0
        %2450 = vmatpush1.bf16.msra.mxu0 %v2424
        %2451 = vmatprep.subr.bf16.mxu0 0
        %2452 = vmatpush1.bf16.msra.mxu0 %v2423
        %2453 = vmatprep.subr.bf16.mxu0 0
        %2454 = vmatpush1.bf16.msra.mxu0 %v2422
        %2455 = vmatprep.subr.bf16.mxu0 0
        %2456 = vmatpush1.bf16.msra.mxu0 %v2421
        %2457 = vmatprep.subr.bf16.mxu0 0
        %2458 = vmatpush1.bf16.msra.mxu0 %v2420
        %2459 = vmatprep.subr.bf16.mxu0 0
        %2460 = vmatpush1.bf16.msra.mxu0 %v2419
        %2461 = vmatprep.subr.bf16.mxu0 0
        %2462 = vmatpush1.bf16.msra.mxu0 %v2418
        %2463 = vmatprep.subr.bf16.mxu0 0
        %2464 = vmatpush1.bf16.msra.mxu0 %v2417
        %2465 = vmatprep.subr.bf16.mxu0 0
        %2466 = vmatpush2.bf16.msra.mxu0 %v2432
        %2467 = vmatprep.subr.bf16.mxu0 0
        %2468 = vmatpush2.bf16.msra.mxu0 %v2431
        %2469 = vmatprep.subr.bf16.mxu0 0
        %2470 = vmatpush2.bf16.msra.mxu0 %v2430
        %2471 = vmatprep.subr.bf16.mxu0 0
        %2472 = vmatpush2.bf16.msra.mxu0 %v2429
        %2473 = vmatprep.subr.bf16.mxu0 0
        %2474 = vmatpush2.bf16.msra.mxu0 %v2428
        %2475 = vmatprep.subr.bf16.mxu0 0
        %2476 = vmatpush2.bf16.msra.mxu0 %v2427
        %2477 = vmatprep.subr.bf16.mxu0 0
        %2478 = vmatpush2.bf16.msra.mxu0 %v2426
        %2479 = vmatprep.subr.bf16.mxu0 0
        %2480 = vmatpush2.bf16.msra.mxu0 %v2425
        %2481 = vmatprep.mubr.bf16.mxu0 %v2320
        %2482 = vmatmul.mubr.bf16.gmra.mxu0 %v2319
        %v2483 = vpop.f32.mrf.mxu0
        %v2484 = vadd.f32 0.0, %v2483
        %v2485 = vpop.f32.mrf.mxu0
        %v2486 = vpop.f32.mrf.mxu0
        %v2487 = vpop.f32.mrf.mxu0
        %2488 = vdwg.mxu0
        %2489 = vst [vmem:[#allocation4 + $0x1] sm:$0xff] %v2484
        %v2490 = vld [vmem:[#allocation4] sm:$0xff]
        %v2491 = vpack.c.bf16 %v2490, %v2490
        %v2492 = vld [vmem:[#allocation14] sm:$0xff]
        %v2493 = vld [vmem:[#allocation14 + $0x8] sm:$0xff]
        %v2494 = vld [vmem:[#allocation14 + $0x10] sm:$0xff]
        %v2495 = vld [vmem:[#allocation14 + $0x18] sm:$0xff]
        %v2496 = vld [vmem:[#allocation14 + $0x20] sm:$0xff]
        %v2497 = vld [vmem:[#allocation14 + $0x28] sm:$0xff]
        %v2498 = vld [vmem:[#allocation14 + $0x30] sm:$0xff]
        %v2499 = vld [vmem:[#allocation14 + $0x38] sm:$0xff]
        %v2500 = vld [vmem:[#allocation14 + $0x40] sm:$0xff]
        %v2501 = vld [vmem:[#allocation14 + $0x48] sm:$0xff]
        %v2502 = vld [vmem:[#allocation14 + $0x50] sm:$0xff]
        %v2503 = vld [vmem:[#allocation14 + $0x58] sm:$0xff]
        %v2504 = vld [vmem:[#allocation14 + $0x60] sm:$0xff]
        %v2505 = vld [vmem:[#allocation14 + $0x68] sm:$0xff]
        %v2506 = vld [vmem:[#allocation14 + $0x70] sm:$0xff]
        %v2507 = vld [vmem:[#allocation14 + $0x78] sm:$0xff]
        %v2508 = vld [vmem:[#allocation4 + $0x1] sm:$0xff]
        %v2509 = vpack.c.bf16 %v2508, %v2508
        %s2510 = scalar_lea.vmem [#allocation14], 128
        %v2511 = vld [vmem:[%s2510] sm:$0xff]
        %v2512 = vld [vmem:[%s2510 + $0x8] sm:$0xff]
        %v2513 = vld [vmem:[%s2510 + $0x10] sm:$0xff]
        %v2514 = vld [vmem:[%s2510 + $0x18] sm:$0xff]
        %v2515 = vld [vmem:[%s2510 + $0x20] sm:$0xff]
        %v2516 = vld [vmem:[%s2510 + $0x28] sm:$0xff]
        %v2517 = vld [vmem:[%s2510 + $0x30] sm:$0xff]
        %v2518 = vld [vmem:[%s2510 + $0x38] sm:$0xff]
        %v2519 = vld [vmem:[%s2510 + $0x40] sm:$0xff]
        %v2520 = vld [vmem:[%s2510 + $0x48] sm:$0xff]
        %v2521 = vld [vmem:[%s2510 + $0x50] sm:$0xff]
        %v2522 = vld [vmem:[%s2510 + $0x58] sm:$0xff]
        %v2523 = vld [vmem:[%s2510 + $0x60] sm:$0xff]
        %v2524 = vld [vmem:[%s2510 + $0x68] sm:$0xff]
        %v2525 = vld [vmem:[%s2510 + $0x70] sm:$0xff]
        %v2526 = vld [vmem:[%s2510 + $0x78] sm:$0xff]
        %v2543 = vunpack.c.l.b16 %v2511
        %v2544 = vunpack.c.h.b16 %v2511
        %v2545 = vunpack.c.l.b16 %v2512
        %v2546 = vunpack.c.h.b16 %v2512
        %v2547 = vunpack.c.l.b16 %v2513
        %v2548 = vunpack.c.h.b16 %v2513
        %v2549 = vunpack.c.l.b16 %v2514
        %v2550 = vunpack.c.h.b16 %v2514
        %v2551 = vunpack.c.l.b16 %v2515
        %v2552 = vunpack.c.h.b16 %v2515
        %v2553 = vunpack.c.l.b16 %v2516
        %v2554 = vunpack.c.h.b16 %v2516
        %v2555 = vunpack.c.l.b16 %v2517
        %v2556 = vunpack.c.h.b16 %v2517
        %v2557 = vunpack.c.l.b16 %v2518
        %v2558 = vunpack.c.h.b16 %v2518
        %v2559 = vunpack.c.l.b16 %v2519
        %v2560 = vunpack.c.h.b16 %v2519
        %v2561 = vunpack.c.l.b16 %v2520
        %v2562 = vunpack.c.h.b16 %v2520
        %v2563 = vunpack.c.l.b16 %v2521
        %v2564 = vunpack.c.h.b16 %v2521
        %v2565 = vunpack.c.l.b16 %v2522
        %v2566 = vunpack.c.h.b16 %v2522
        %v2567 = vunpack.c.l.b16 %v2523
        %v2568 = vunpack.c.h.b16 %v2523
        %v2569 = vunpack.c.l.b16 %v2524
        %v2570 = vunpack.c.h.b16 %v2524
        %v2571 = vunpack.c.l.b16 %v2525
        %v2572 = vunpack.c.h.b16 %v2525
        %v2573 = vunpack.c.l.b16 %v2526
        %v2574 = vunpack.c.h.b16 %v2526
        %v2575 = vpack.c.b16 %v2545, %v2543
        %v2576 = vpack.c.b16 %v2546, %v2544
        %v2577 = vpack.c.b16 %v2549, %v2547
        %v2578 = vpack.c.b16 %v2550, %v2548
        %v2579 = vpack.c.b16 %v2553, %v2551
        %v2580 = vpack.c.b16 %v2554, %v2552
        %v2581 = vpack.c.b16 %v2557, %v2555
        %v2582 = vpack.c.b16 %v2558, %v2556
        %v2583 = vpack.c.b16 %v2561, %v2559
        %v2584 = vpack.c.b16 %v2562, %v2560
        %v2585 = vpack.c.b16 %v2565, %v2563
        %v2586 = vpack.c.b16 %v2566, %v2564
        %v2587 = vpack.c.b16 %v2569, %v2567
        %v2588 = vpack.c.b16 %v2570, %v2568
        %v2589 = vpack.c.b16 %v2573, %v2571
        %v2590 = vpack.c.b16 %v2574, %v2572
        %2607 = vmatprep.subr.bf16.mxu0 %v2590
        %2608 = vmatpush1.bf16.msra.mxu0 %v2589
        %2609 = vmatprep.subr.bf16.mxu0 %v2588
        %2610 = vmatpush1.bf16.msra.mxu0 %v2587
        %2611 = vmatprep.subr.bf16.mxu0 %v2586
        %2612 = vmatpush1.bf16.msra.mxu0 %v2585
        %2613 = vmatprep.subr.bf16.mxu0 %v2584
        %2614 = vmatpush1.bf16.msra.mxu0 %v2583
        %2615 = vmatprep.subr.bf16.mxu0 %v2582
        %2616 = vmatpush1.bf16.msra.mxu0 %v2581
        %2617 = vmatprep.subr.bf16.mxu0 %v2580
        %2618 = vmatpush1.bf16.msra.mxu0 %v2579
        %2619 = vmatprep.subr.bf16.mxu0 %v2578
        %2620 = vmatpush1.bf16.msra.mxu0 %v2577
        %2621 = vmatprep.subr.bf16.mxu0 %v2576
        %2622 = vmatpush1.bf16.msra.mxu0 %v2575
        %2623 = vmatprep.subr.bf16.mxu0 0
        %2624 = vmatpush2.bf16.msra.mxu0 0
        %2625 = vmatprep.subr.bf16.mxu0 0
        %2626 = vmatpush2.bf16.msra.mxu0 0
        %2627 = vmatprep.subr.bf16.mxu0 0
        %2628 = vmatpush2.bf16.msra.mxu0 0
        %2629 = vmatprep.subr.bf16.mxu0 0
        %2630 = vmatpush2.bf16.msra.mxu0 0
        %2631 = vmatprep.subr.bf16.mxu0 0
        %2632 = vmatpush2.bf16.msra.mxu0 0
        %2633 = vmatprep.subr.bf16.mxu0 0
        %2634 = vmatpush2.bf16.msra.mxu0 0
        %2635 = vmatprep.subr.bf16.mxu0 0
        %2636 = vmatpush2.bf16.msra.mxu0 0
        %2637 = vmatprep.subr.bf16.mxu0 0
        %2638 = vmatpush2.bf16.msra.mxu0 0
        %2639 = vmatprep.mubr.bf16.mxu0 0
        %2640 = vmatmul.mubr.bf16.gmra.mxu0 %v2509
        %v2641 = vpop.f32.mrf.mxu0
        %v2642 = vadd.f32 0.0, %v2641
        %v2643 = vpop.f32.mrf.mxu0
        %v2644 = vadd.f32 0.0, %v2643
        %v2645 = vpop.f32.mrf.mxu0
        %v2646 = vpop.f32.mrf.mxu0
        %2647 = vdwg.mxu0
        %v2664 = vunpack.c.l.b16 %v2492
        %v2665 = vunpack.c.h.b16 %v2492
        %v2666 = vunpack.c.l.b16 %v2493
        %v2667 = vunpack.c.h.b16 %v2493
        %v2668 = vunpack.c.l.b16 %v2494
        %v2669 = vunpack.c.h.b16 %v2494
        %v2670 = vunpack.c.l.b16 %v2495
        %v2671 = vunpack.c.h.b16 %v2495
        %v2672 = vunpack.c.l.b16 %v2496
        %v2673 = vunpack.c.h.b16 %v2496
        %v2674 = vunpack.c.l.b16 %v2497
        %v2675 = vunpack.c.h.b16 %v2497
        %v2676 = vunpack.c.l.b16 %v2498
        %v2677 = vunpack.c.h.b16 %v2498
        %v2678 = vunpack.c.l.b16 %v2499
        %v2679 = vunpack.c.h.b16 %v2499
        %v2680 = vunpack.c.l.b16 %v2500
        %v2681 = vunpack.c.h.b16 %v2500
        %v2682 = vunpack.c.l.b16 %v2501
        %v2683 = vunpack.c.h.b16 %v2501
        %v2684 = vunpack.c.l.b16 %v2502
        %v2685 = vunpack.c.h.b16 %v2502
        %v2686 = vunpack.c.l.b16 %v2503
        %v2687 = vunpack.c.h.b16 %v2503
        %v2688 = vunpack.c.l.b16 %v2504
        %v2689 = vunpack.c.h.b16 %v2504
        %v2690 = vunpack.c.l.b16 %v2505
        %v2691 = vunpack.c.h.b16 %v2505
        %v2692 = vunpack.c.l.b16 %v2506
        %v2693 = vunpack.c.h.b16 %v2506
        %v2694 = vunpack.c.l.b16 %v2507
        %v2695 = vunpack.c.h.b16 %v2507
        %v2696 = vpack.c.b16 %v2666, %v2664
        %v2697 = vpack.c.b16 %v2667, %v2665
        %v2698 = vpack.c.b16 %v2670, %v2668
        %v2699 = vpack.c.b16 %v2671, %v2669
        %v2700 = vpack.c.b16 %v2674, %v2672
        %v2701 = vpack.c.b16 %v2675, %v2673
        %v2702 = vpack.c.b16 %v2678, %v2676
        %v2703 = vpack.c.b16 %v2679, %v2677
        %v2704 = vpack.c.b16 %v2682, %v2680
        %v2705 = vpack.c.b16 %v2683, %v2681
        %v2706 = vpack.c.b16 %v2686, %v2684
        %v2707 = vpack.c.b16 %v2687, %v2685
        %v2708 = vpack.c.b16 %v2690, %v2688
        %v2709 = vpack.c.b16 %v2691, %v2689
        %v2710 = vpack.c.b16 %v2694, %v2692
        %v2711 = vpack.c.b16 %v2695, %v2693
        %2728 = vmatprep.subr.bf16.mxu0 %v2711
        %2729 = vmatpush1.bf16.msra.mxu0 %v2710
        %2730 = vmatprep.subr.bf16.mxu0 %v2709
        %2731 = vmatpush1.bf16.msra.mxu0 %v2708
        %2732 = vmatprep.subr.bf16.mxu0 %v2707
        %2733 = vmatpush1.bf16.msra.mxu0 %v2706
        %2734 = vmatprep.subr.bf16.mxu0 %v2705
        %2735 = vmatpush1.bf16.msra.mxu0 %v2704
        %2736 = vmatprep.subr.bf16.mxu0 %v2703
        %2737 = vmatpush1.bf16.msra.mxu0 %v2702
        %2738 = vmatprep.subr.bf16.mxu0 %v2701
        %2739 = vmatpush1.bf16.msra.mxu0 %v2700
        %2740 = vmatprep.subr.bf16.mxu0 %v2699
        %2741 = vmatpush1.bf16.msra.mxu0 %v2698
        %2742 = vmatprep.subr.bf16.mxu0 %v2697
        %2743 = vmatpush1.bf16.msra.mxu0 %v2696
        %2744 = vmatprep.subr.bf16.mxu0 0
        %2745 = vmatpush2.bf16.msra.mxu0 0
        %2746 = vmatprep.subr.bf16.mxu0 0
        %2747 = vmatpush2.bf16.msra.mxu0 0
        %2748 = vmatprep.subr.bf16.mxu0 0
        %2749 = vmatpush2.bf16.msra.mxu0 0
        %2750 = vmatprep.subr.bf16.mxu0 0
        %2751 = vmatpush2.bf16.msra.mxu0 0
        %2752 = vmatprep.subr.bf16.mxu0 0
        %2753 = vmatpush2.bf16.msra.mxu0 0
        %2754 = vmatprep.subr.bf16.mxu0 0
        %2755 = vmatpush2.bf16.msra.mxu0 0
        %2756 = vmatprep.subr.bf16.mxu0 0
        %2757 = vmatpush2.bf16.msra.mxu0 0
        %2758 = vmatprep.subr.bf16.mxu0 0
        %2759 = vmatpush2.bf16.msra.mxu0 0
        %2760 = vmatprep.mubr.bf16.mxu0 0
        %2761 = vmatmul.mubr.bf16.gmra.mxu0 %v2491
        %v2762 = vpop.f32.mrf.mxu0
        %v2763 = vadd.f32 %v2642, %v2762
        %v2764 = vpop.f32.mrf.mxu0
        %v2765 = vadd.f32 %v2644, %v2764
        %v2766 = vpop.f32.mrf.mxu0
        %v2767 = vpop.f32.mrf.mxu0
        %2768 = vdwg.mxu0
        %v2769 = vld [vmem:[#allocation4 + $0x2] sm:$0xff]
        %v2770 = vpack.c.bf16 %v2769, %v2769
        %s2771 = scalar_lea.vmem [#allocation14], 256
        %v2772 = vld [vmem:[%s2771] sm:$0xff]
        %v2773 = vld [vmem:[%s2771 + $0x8] sm:$0xff]
        %v2774 = vld [vmem:[%s2771 + $0x10] sm:$0xff]
        %v2775 = vld [vmem:[%s2771 + $0x18] sm:$0xff]
        %v2776 = vld [vmem:[%s2771 + $0x20] sm:$0xff]
        %v2777 = vld [vmem:[%s2771 + $0x28] sm:$0xff]
        %v2778 = vld [vmem:[%s2771 + $0x30] sm:$0xff]
        %v2779 = vld [vmem:[%s2771 + $0x38] sm:$0xff]
        %v2780 = vld [vmem:[%s2771 + $0x40] sm:$0xff]
        %v2781 = vld [vmem:[%s2771 + $0x48] sm:$0xff]
        %v2782 = vld [vmem:[%s2771 + $0x50] sm:$0xff]
        %v2783 = vld [vmem:[%s2771 + $0x58] sm:$0xff]
        %v2784 = vld [vmem:[%s2771 + $0x60] sm:$0xff]
        %v2785 = vld [vmem:[%s2771 + $0x68] sm:$0xff]
        %v2786 = vld [vmem:[%s2771 + $0x70] sm:$0xff]
        %v2787 = vld [vmem:[%s2771 + $0x78] sm:$0xff]
        %v2804 = vunpack.c.l.b16 %v2772
        %v2805 = vunpack.c.h.b16 %v2772
        %v2806 = vunpack.c.l.b16 %v2773
        %v2807 = vunpack.c.h.b16 %v2773
        %v2808 = vunpack.c.l.b16 %v2774
        %v2809 = vunpack.c.h.b16 %v2774
        %v2810 = vunpack.c.l.b16 %v2775
        %v2811 = vunpack.c.h.b16 %v2775
        %v2812 = vunpack.c.l.b16 %v2776
        %v2813 = vunpack.c.h.b16 %v2776
        %v2814 = vunpack.c.l.b16 %v2777
        %v2815 = vunpack.c.h.b16 %v2777
        %v2816 = vunpack.c.l.b16 %v2778
        %v2817 = vunpack.c.h.b16 %v2778
        %v2818 = vunpack.c.l.b16 %v2779
        %v2819 = vunpack.c.h.b16 %v2779
        %v2820 = vunpack.c.l.b16 %v2780
        %v2821 = vunpack.c.h.b16 %v2780
        %v2822 = vunpack.c.l.b16 %v2781
        %v2823 = vunpack.c.h.b16 %v2781
        %v2824 = vunpack.c.l.b16 %v2782
        %v2825 = vunpack.c.h.b16 %v2782
        %v2826 = vunpack.c.l.b16 %v2783
        %v2827 = vunpack.c.h.b16 %v2783
        %v2828 = vunpack.c.l.b16 %v2784
        %v2829 = vunpack.c.h.b16 %v2784
        %v2830 = vunpack.c.l.b16 %v2785
        %v2831 = vunpack.c.h.b16 %v2785
        %v2832 = vunpack.c.l.b16 %v2786
        %v2833 = vunpack.c.h.b16 %v2786
        %v2834 = vunpack.c.l.b16 %v2787
        %v2835 = vunpack.c.h.b16 %v2787
        %v2836 = vpack.c.b16 %v2806, %v2804
        %v2837 = vpack.c.b16 %v2807, %v2805
        %v2838 = vpack.c.b16 %v2810, %v2808
        %v2839 = vpack.c.b16 %v2811, %v2809
        %v2840 = vpack.c.b16 %v2814, %v2812
        %v2841 = vpack.c.b16 %v2815, %v2813
        %v2842 = vpack.c.b16 %v2818, %v2816
        %v2843 = vpack.c.b16 %v2819, %v2817
        %v2844 = vpack.c.b16 %v2822, %v2820
        %v2845 = vpack.c.b16 %v2823, %v2821
        %v2846 = vpack.c.b16 %v2826, %v2824
        %v2847 = vpack.c.b16 %v2827, %v2825
        %v2848 = vpack.c.b16 %v2830, %v2828
        %v2849 = vpack.c.b16 %v2831, %v2829
        %v2850 = vpack.c.b16 %v2834, %v2832
        %v2851 = vpack.c.b16 %v2835, %v2833
        %2868 = vmatprep.subr.bf16.mxu0 %v2851
        %2869 = vmatpush1.bf16.msra.mxu0 %v2850
        %2870 = vmatprep.subr.bf16.mxu0 %v2849
        %2871 = vmatpush1.bf16.msra.mxu0 %v2848
        %2872 = vmatprep.subr.bf16.mxu0 %v2847
        %2873 = vmatpush1.bf16.msra.mxu0 %v2846
        %2874 = vmatprep.subr.bf16.mxu0 %v2845
        %2875 = vmatpush1.bf16.msra.mxu0 %v2844
        %2876 = vmatprep.subr.bf16.mxu0 %v2843
        %2877 = vmatpush1.bf16.msra.mxu0 %v2842
        %2878 = vmatprep.subr.bf16.mxu0 %v2841
        %2879 = vmatpush1.bf16.msra.mxu0 %v2840
        %2880 = vmatprep.subr.bf16.mxu0 %v2839
        %2881 = vmatpush1.bf16.msra.mxu0 %v2838
        %2882 = vmatprep.subr.bf16.mxu0 %v2837
        %2883 = vmatpush1.bf16.msra.mxu0 %v2836
        %2884 = vmatprep.subr.bf16.mxu0 0
        %2885 = vmatpush2.bf16.msra.mxu0 0
        %2886 = vmatprep.subr.bf16.mxu0 0
        %2887 = vmatpush2.bf16.msra.mxu0 0
        %2888 = vmatprep.subr.bf16.mxu0 0
        %2889 = vmatpush2.bf16.msra.mxu0 0
        %2890 = vmatprep.subr.bf16.mxu0 0
        %2891 = vmatpush2.bf16.msra.mxu0 0
        %2892 = vmatprep.subr.bf16.mxu0 0
        %2893 = vmatpush2.bf16.msra.mxu0 0
        %2894 = vmatprep.subr.bf16.mxu0 0
        %2895 = vmatpush2.bf16.msra.mxu0 0
        %2896 = vmatprep.subr.bf16.mxu0 0
        %2897 = vmatpush2.bf16.msra.mxu0 0
        %2898 = vmatprep.subr.bf16.mxu0 0
        %2899 = vmatpush2.bf16.msra.mxu0 0
        %2900 = vmatprep.mubr.bf16.mxu0 0
        %2901 = vmatmul.mubr.bf16.gmra.mxu0 %v2770
        %v2902 = vpop.f32.mrf.mxu0
        %v2903 = vadd.f32 0.0, %v2902
        %v2904 = vpop.f32.mrf.mxu0
        %v2905 = vadd.f32 0.0, %v2904
        %v2906 = vpop.f32.mrf.mxu0
        %v2907 = vpop.f32.mrf.mxu0
        %2908 = vdwg.mxu0
        %v2909 = vadd.f32 %v2763, %v2903
        %v2910 = vadd.f32 %v2765, %v2905
        %v2911 = vld [vmem:[#allocation18] sm:$0x3]
        %v2913 = vlaneseq
        %v2914 = vshrl.u32 %v2913, 7
        %v2915 = vsub.s32 0, %v2914
        %v2916 = vrot.slane %v2911, %v2915
        %v2917 = vlaneseq
        %v2918 = vshrl.u32 %v2917, 7
        %v2919 = vsub.s32 1, %v2918
        %v2920 = vrot.slane %v2911, %v2919
        %v2923 = vadd.f32 %v2909, %v2916
        %v2924 = vadd.f32 %v2910, %v2920
        %v2925 = vmax.f32 %v2923, 0.0
        %v2926 = vmax.f32 %v2924, 0.0
        %s2927 = scalar_lea.vmem [#allocation18], 2
        %v2928 = vld [vmem:[%s2927] sm:$0x3]
        %v2930 = vlaneseq
        %v2931 = vshrl.u32 %v2930, 7
        %v2932 = vsub.s32 0, %v2931
        %v2933 = vrot.slane %v2928, %v2932
        %v2934 = vlaneseq
        %v2935 = vshrl.u32 %v2934, 7
        %v2936 = vsub.s32 1, %v2935
        %v2937 = vrot.slane %v2928, %v2936
        %v2940 = vmul.f32 %v2925, %v2933
        %v2941 = vmul.f32 %v2926, %v2937
        %s2942 = scalar_lea.vmem [#allocation18], 4
        %v2943 = vld [vmem:[%s2942] sm:$0x3]
        %v2945 = vlaneseq
        %v2946 = vshrl.u32 %v2945, 7
        %v2947 = vsub.s32 0, %v2946
        %v2948 = vrot.slane %v2943, %v2947
        %v2949 = vlaneseq
        %v2950 = vshrl.u32 %v2949, 7
        %v2951 = vsub.s32 1, %v2950
        %v2952 = vrot.slane %v2943, %v2951
        %v2955 = vadd.f32 %v2940, %v2948
        %v2956 = vadd.f32 %v2941, %v2952
        %v2957 = vpack.c.bf16 %v2955, %v2955
        %v2958 = vpack.c.bf16 %v2956, %v2956
        %v2959 = vld [vmem:[#allocation24] sm:$0xf]
        %v2960 = vld [vmem:[#allocation24 + $0x4] sm:$0xf]
        %v2961 = vld [vmem:[#allocation24 + $0x8] sm:$0xf]
        %v2962 = vld [vmem:[#allocation24 + $0xc] sm:$0xf]
        %v2963 = vld [vmem:[#allocation24 + $0x10] sm:$0xf]
        %v2964 = vld [vmem:[#allocation24 + $0x14] sm:$0xf]
        %v2965 = vld [vmem:[#allocation24 + $0x18] sm:$0xf]
        %v2966 = vld [vmem:[#allocation24 + $0x1c] sm:$0xf]
        %v2967 = vld [vmem:[#allocation24 + $0x20] sm:$0xf]
        %v2968 = vld [vmem:[#allocation24 + $0x24] sm:$0xf]
        %v2969 = vld [vmem:[#allocation24 + $0x28] sm:$0xf]
        %v2970 = vld [vmem:[#allocation24 + $0x2c] sm:$0xf]
        %v2971 = vld [vmem:[#allocation24 + $0x30] sm:$0xf]
        %v2972 = vld [vmem:[#allocation24 + $0x34] sm:$0xf]
        %v2973 = vld [vmem:[#allocation24 + $0x38] sm:$0xf]
        %v2974 = vld [vmem:[#allocation24 + $0x3c] sm:$0xf]
        %v2975 = vld [vmem:[#allocation24 + $0x40] sm:$0xf]
        %v2976 = vld [vmem:[#allocation24 + $0x44] sm:$0xf]
        %v2977 = vld [vmem:[#allocation24 + $0x48] sm:$0xf]
        %v2978 = vld [vmem:[#allocation24 + $0x4c] sm:$0xf]
        %v2979 = vld [vmem:[#allocation24 + $0x50] sm:$0xf]
        %v2980 = vld [vmem:[#allocation24 + $0x54] sm:$0xf]
        %v2981 = vld [vmem:[#allocation24 + $0x58] sm:$0xf]
        %v2982 = vld [vmem:[#allocation24 + $0x5c] sm:$0xf]
        %v2983 = vld [vmem:[#allocation24 + $0x60] sm:$0xf]
        %v2984 = vld [vmem:[#allocation24 + $0x64] sm:$0xf]
        %v2985 = vld [vmem:[#allocation24 + $0x68] sm:$0xf]
        %v2986 = vld [vmem:[#allocation24 + $0x6c] sm:$0xf]
        %v2987 = vld [vmem:[#allocation24 + $0x70] sm:$0xf]
        %v2988 = vld [vmem:[#allocation24 + $0x74] sm:$0xf]
        %v2989 = vld [vmem:[#allocation24 + $0x78] sm:$0xf]
        %v2990 = vld [vmem:[#allocation24 + $0x7c] sm:$0xf]
        %v2991 = vld [vmem:[#allocation26] sm:$0x1]
        %v2993 = vlaneseq
        %v2994 = vshrl.u32 %v2993, 7
        %v2995 = vsub.s32 0, %v2994
        %v2996 = vrot.slane %v2991, %v2995
        %v3030 = vunpack.c.l.b16 %v2959
        %v3031 = vunpack.c.l.b16 %v2960
        %v3032 = vunpack.c.l.b16 %v2961
        %v3033 = vunpack.c.l.b16 %v2962
        %v3034 = vunpack.c.l.b16 %v2963
        %v3035 = vunpack.c.l.b16 %v2964
        %v3036 = vunpack.c.l.b16 %v2965
        %v3037 = vunpack.c.l.b16 %v2966
        %v3038 = vunpack.c.l.b16 %v2967
        %v3039 = vunpack.c.l.b16 %v2968
        %v3040 = vunpack.c.l.b16 %v2969
        %v3041 = vunpack.c.l.b16 %v2970
        %v3042 = vunpack.c.l.b16 %v2971
        %v3043 = vunpack.c.l.b16 %v2972
        %v3044 = vunpack.c.l.b16 %v2973
        %v3045 = vunpack.c.l.b16 %v2974
        %v3046 = vunpack.c.l.b16 %v2975
        %v3047 = vunpack.c.l.b16 %v2976
        %v3048 = vunpack.c.l.b16 %v2977
        %v3049 = vunpack.c.l.b16 %v2978
        %v3050 = vunpack.c.l.b16 %v2979
        %v3051 = vunpack.c.l.b16 %v2980
        %v3052 = vunpack.c.l.b16 %v2981
        %v3053 = vunpack.c.l.b16 %v2982
        %v3054 = vunpack.c.l.b16 %v2983
        %v3055 = vunpack.c.l.b16 %v2984
        %v3056 = vunpack.c.l.b16 %v2985
        %v3057 = vunpack.c.l.b16 %v2986
        %v3058 = vunpack.c.l.b16 %v2987
        %v3059 = vunpack.c.l.b16 %v2988
        %v3060 = vunpack.c.l.b16 %v2989
        %v3061 = vunpack.c.l.b16 %v2990
        %v3062 = vpack.c.b16 %v3031, %v3030
        %v3063 = vpack.c.b16 %v3033, %v3032
        %v3064 = vpack.c.b16 %v3035, %v3034
        %v3065 = vpack.c.b16 %v3037, %v3036
        %v3066 = vpack.c.b16 %v3039, %v3038
        %v3067 = vpack.c.b16 %v3041, %v3040
        %v3068 = vpack.c.b16 %v3043, %v3042
        %v3069 = vpack.c.b16 %v3045, %v3044
        %v3070 = vpack.c.b16 %v3047, %v3046
        %v3071 = vpack.c.b16 %v3049, %v3048
        %v3072 = vpack.c.b16 %v3051, %v3050
        %v3073 = vpack.c.b16 %v3053, %v3052
        %v3074 = vpack.c.b16 %v3055, %v3054
        %v3075 = vpack.c.b16 %v3057, %v3056
        %v3076 = vpack.c.b16 %v3059, %v3058
        %v3077 = vpack.c.b16 %v3061, %v3060
        %3094 = vmatprep.subr.bf16.mxu0 0
        %3095 = vmatpush1.bf16.msra.mxu0 %v3069
        %3096 = vmatprep.subr.bf16.mxu0 0
        %3097 = vmatpush1.bf16.msra.mxu0 %v3068
        %3098 = vmatprep.subr.bf16.mxu0 0
        %3099 = vmatpush1.bf16.msra.mxu0 %v3067
        %3100 = vmatprep.subr.bf16.mxu0 0
        %3101 = vmatpush1.bf16.msra.mxu0 %v3066
        %3102 = vmatprep.subr.bf16.mxu0 0
        %3103 = vmatpush1.bf16.msra.mxu0 %v3065
        %3104 = vmatprep.subr.bf16.mxu0 0
        %3105 = vmatpush1.bf16.msra.mxu0 %v3064
        %3106 = vmatprep.subr.bf16.mxu0 0
        %3107 = vmatpush1.bf16.msra.mxu0 %v3063
        %3108 = vmatprep.subr.bf16.mxu0 0
        %3109 = vmatpush1.bf16.msra.mxu0 %v3062
        %3110 = vmatprep.subr.bf16.mxu0 0
        %3111 = vmatpush2.bf16.msra.mxu0 %v3077
        %3112 = vmatprep.subr.bf16.mxu0 0
        %3113 = vmatpush2.bf16.msra.mxu0 %v3076
        %3114 = vmatprep.subr.bf16.mxu0 0
        %3115 = vmatpush2.bf16.msra.mxu0 %v3075
        %3116 = vmatprep.subr.bf16.mxu0 0
        %3117 = vmatpush2.bf16.msra.mxu0 %v3074
        %3118 = vmatprep.subr.bf16.mxu0 0
        %3119 = vmatpush2.bf16.msra.mxu0 %v3073
        %3120 = vmatprep.subr.bf16.mxu0 0
        %3121 = vmatpush2.bf16.msra.mxu0 %v3072
        %3122 = vmatprep.subr.bf16.mxu0 0
        %3123 = vmatpush2.bf16.msra.mxu0 %v3071
        %3124 = vmatprep.subr.bf16.mxu0 0
        %3125 = vmatpush2.bf16.msra.mxu0 %v3070
        %3126 = vmatprep.mubr.bf16.mxu0 %v2958
        %3127 = vmatmul.mubr.bf16.gmra.mxu0 %v2957
        %v3128 = vpop.f32.mrf.mxu0
        %v3129 = vadd.f32 %v2996, %v3128
        %v3130 = vpop.f32.mrf.mxu0
        %v3131 = vpop.f32.mrf.mxu0
        %v3132 = vpop.f32.mrf.mxu0
        %3133 = vdwg.mxu0
        %v3134 = vld [vmem:[%s13] sm:$0xf]
        %v3135 = vld [vmem:[%s13 + $0x4] sm:$0xf]
        %v3136 = vpack.c.bf16 %v3129, %v3129
        %v3139 = vunpack.c.l.b16 %v3134
        %v3140 = vunpack.c.l.b16 %v3135
        %v3141 = vpack.c.b16 %v3140, %v3139
        %vm3142 = vcmask 64512
        %v3144 = vsel %vm3142, %v3141, 0
        %vm3146 = vcmask 1043456
        %v3148 = vsel %vm3146, %v3136, 0
        %3150 = vmatprep.subr.bf16.mxu0 0
        %3151 = vmatpush1.bf16.msra.mxu0 0
        %3152 = vmatprep.subr.bf16.mxu0 0
        %3153 = vmatpush1.bf16.msra.mxu0 0
        %3154 = vmatprep.subr.bf16.mxu0 0
        %3155 = vmatpush1.bf16.msra.mxu0 0
        %3156 = vmatprep.subr.bf16.mxu0 0
        %3157 = vmatpush1.bf16.msra.mxu0 0
        %3158 = vmatprep.subr.bf16.mxu0 0
        %3159 = vmatpush1.bf16.msra.mxu0 0
        %3160 = vmatprep.subr.bf16.mxu0 0
        %3161 = vmatpush1.bf16.msra.mxu0 0
        %3162 = vmatprep.subr.bf16.mxu0 0
        %3163 = vmatpush1.bf16.msra.mxu0 0
        %3164 = vmatprep.subr.bf16.mxu0 0
        %3165 = vmatpush1.bf16.msra.mxu0 %v3148
        %3166 = vmatprep.subr.bf16.mxu0 0
        %3167 = vmatpush2.bf16.msra.mxu0 0
        %3168 = vmatprep.subr.bf16.mxu0 0
        %3169 = vmatpush2.bf16.msra.mxu0 0
        %3170 = vmatprep.subr.bf16.mxu0 0
        %3171 = vmatpush2.bf16.msra.mxu0 0
        %3172 = vmatprep.subr.bf16.mxu0 0
        %3173 = vmatpush2.bf16.msra.mxu0 0
        %3174 = vmatprep.subr.bf16.mxu0 0
        %3175 = vmatpush2.bf16.msra.mxu0 0
        %3176 = vmatprep.subr.bf16.mxu0 0
        %3177 = vmatpush2.bf16.msra.mxu0 0
        %3178 = vmatprep.subr.bf16.mxu0 0
        %3179 = vmatpush2.bf16.msra.mxu0 0
        %3180 = vmatprep.subr.bf16.mxu0 0
        %3181 = vmatpush2.bf16.msra.mxu0 0
        %3182 = vmatprep.mubr.bf16.mxu0 0
        %3183 = vmatmul.mubr.bf16.gmra.mxu0 %v3144
        %v3184 = vpop.f32.mrf.mxu0
        %v3185 = vadd.f32 0.0, %v3184
        %v3186 = vpop.f32.mrf.mxu0
        %v3187 = vpop.f32.mrf.mxu0
        %v3188 = vadd.f32 0.0, %v3187
        %v3189 = vpop.f32.mrf.mxu0
        %3190 = vdwg.mxu0
        %v3191 = vpack.c.bf16 %v3188, %v3185
        %v3192 = vld [vmem:[#allocation27] sm:$0xff]
        %v3193 = vld [vmem:[#allocation27 + $0x8] sm:$0xff]
        %v3194 = vld [vmem:[#allocation27 + $0x10] sm:$0xff]
        %v3195 = vld [vmem:[#allocation27 + $0x18] sm:$0xff]
        %v3196 = vld [vmem:[#allocation27 + $0x20] sm:$0xff]
        %v3197 = vld [vmem:[#allocation27 + $0x28] sm:$0xff]
        %v3198 = vld [vmem:[#allocation27 + $0x30] sm:$0xff]
        %v3199 = vld [vmem:[#allocation27 + $0x38] sm:$0xff]
        %v3200 = vld [vmem:[#allocation27 + $0x40] sm:$0xff]
        %v3201 = vld [vmem:[#allocation27 + $0x48] sm:$0xff]
        %v3202 = vld [vmem:[#allocation27 + $0x50] sm:$0xff]
        %v3203 = vld [vmem:[#allocation27 + $0x58] sm:$0xff]
        %v3204 = vld [vmem:[#allocation27 + $0x60] sm:$0xff]
        %v3205 = vld [vmem:[#allocation27 + $0x68] sm:$0xff]
        %v3206 = vld [vmem:[#allocation27 + $0x70] sm:$0xff]
        %v3207 = vld [vmem:[#allocation27 + $0x78] sm:$0xff]
        %v3224 = vunpack.c.l.b16 %v3192
        %v3225 = vunpack.c.h.b16 %v3192
        %v3226 = vunpack.c.l.b16 %v3193
        %v3227 = vunpack.c.h.b16 %v3193
        %v3228 = vunpack.c.l.b16 %v3194
        %v3229 = vunpack.c.h.b16 %v3194
        %v3230 = vunpack.c.l.b16 %v3195
        %v3231 = vunpack.c.h.b16 %v3195
        %v3232 = vunpack.c.l.b16 %v3196
        %v3233 = vunpack.c.h.b16 %v3196
        %v3234 = vunpack.c.l.b16 %v3197
        %v3235 = vunpack.c.h.b16 %v3197
        %v3236 = vunpack.c.l.b16 %v3198
        %v3237 = vunpack.c.h.b16 %v3198
        %v3238 = vunpack.c.l.b16 %v3199
        %v3239 = vunpack.c.h.b16 %v3199
        %v3240 = vunpack.c.l.b16 %v3200
        %v3241 = vunpack.c.h.b16 %v3200
        %v3242 = vunpack.c.l.b16 %v3201
        %v3243 = vunpack.c.h.b16 %v3201
        %v3244 = vunpack.c.l.b16 %v3202
        %v3245 = vunpack.c.h.b16 %v3202
        %v3246 = vunpack.c.l.b16 %v3203
        %v3247 = vunpack.c.h.b16 %v3203
        %v3248 = vunpack.c.l.b16 %v3204
        %v3249 = vunpack.c.h.b16 %v3204
        %v3250 = vunpack.c.l.b16 %v3205
        %v3251 = vunpack.c.h.b16 %v3205
        %v3252 = vunpack.c.l.b16 %v3206
        %v3253 = vunpack.c.h.b16 %v3206
        %v3254 = vunpack.c.l.b16 %v3207
        %v3255 = vunpack.c.h.b16 %v3207
        %v3256 = vpack.c.b16 %v3226, %v3224
        %v3257 = vpack.c.b16 %v3227, %v3225
        %v3258 = vpack.c.b16 %v3230, %v3228
        %v3259 = vpack.c.b16 %v3231, %v3229
        %v3260 = vpack.c.b16 %v3234, %v3232
        %v3261 = vpack.c.b16 %v3235, %v3233
        %v3262 = vpack.c.b16 %v3238, %v3236
        %v3263 = vpack.c.b16 %v3239, %v3237
        %v3264 = vpack.c.b16 %v3242, %v3240
        %v3265 = vpack.c.b16 %v3243, %v3241
        %v3266 = vpack.c.b16 %v3246, %v3244
        %v3267 = vpack.c.b16 %v3247, %v3245
        %v3268 = vpack.c.b16 %v3250, %v3248
        %v3269 = vpack.c.b16 %v3251, %v3249
        %v3270 = vpack.c.b16 %v3254, %v3252
        %v3271 = vpack.c.b16 %v3255, %v3253
        %3288 = vmatprep.subr.bf16.mxu0 %v3271
        %3289 = vmatpush1.bf16.msra.mxu0 %v3270
        %3290 = vmatprep.subr.bf16.mxu0 %v3269
        %3291 = vmatpush1.bf16.msra.mxu0 %v3268
        %3292 = vmatprep.subr.bf16.mxu0 %v3267
        %3293 = vmatpush1.bf16.msra.mxu0 %v3266
        %3294 = vmatprep.subr.bf16.mxu0 %v3265
        %3295 = vmatpush1.bf16.msra.mxu0 %v3264
        %3296 = vmatprep.subr.bf16.mxu0 %v3263
        %3297 = vmatpush1.bf16.msra.mxu0 %v3262
        %3298 = vmatprep.subr.bf16.mxu0 %v3261
        %3299 = vmatpush1.bf16.msra.mxu0 %v3260
        %3300 = vmatprep.subr.bf16.mxu0 %v3259
        %3301 = vmatpush1.bf16.msra.mxu0 %v3258
        %3302 = vmatprep.subr.bf16.mxu0 %v3257
        %3303 = vmatpush1.bf16.msra.mxu0 %v3256
        %3304 = vmatprep.subr.bf16.mxu0 0
        %3305 = vmatpush2.bf16.msra.mxu0 0
        %3306 = vmatprep.subr.bf16.mxu0 0
        %3307 = vmatpush2.bf16.msra.mxu0 0
        %3308 = vmatprep.subr.bf16.mxu0 0
        %3309 = vmatpush2.bf16.msra.mxu0 0
        %3310 = vmatprep.subr.bf16.mxu0 0
        %3311 = vmatpush2.bf16.msra.mxu0 0
        %3312 = vmatprep.subr.bf16.mxu0 0
        %3313 = vmatpush2.bf16.msra.mxu0 0
        %3314 = vmatprep.subr.bf16.mxu0 0
        %3315 = vmatpush2.bf16.msra.mxu0 0
        %3316 = vmatprep.subr.bf16.mxu0 0
        %3317 = vmatpush2.bf16.msra.mxu0 0
        %3318 = vmatprep.subr.bf16.mxu0 0
        %3319 = vmatpush2.bf16.msra.mxu0 0
        %3320 = vmatprep.mubr.bf16.mxu0 0
        %3321 = vmatmul.mubr.bf16.gmra.mxu0 %v3191
        %v3322 = vpop.f32.mrf.mxu0
        %v3323 = vadd.f32 0.0, %v3322
        %v3324 = vpop.f32.mrf.mxu0
        %v3325 = vadd.f32 0.0, %v3324
        %v3326 = vpop.f32.mrf.mxu0
        %v3327 = vadd.f32 0.0, %v3326
        %v3328 = vpop.f32.mrf.mxu0
        %v3329 = vadd.f32 0.0, %v3328
        %3330 = vdwg.mxu0
        %v3335 = vrot.slane %v3323, 7
        %v3336 = vrot.slane %v3325, 7
        %v3337 = vrot.slane %v3327, 7
        %v3338 = vsel %vm1498, %v3335, %v3337
        %v3339 = vrot.slane %v3329, 7
        %v3340 = vsel %vm1498, %v3336, %v3339
        %3347 = vst [vmem:[#allocation7] sm:$0xfe] %v3335
        %3348 = vst [vmem:[#allocation7 + $0x8] sm:$0xfe] %v3336
        %3349 = vst [vmem:[#allocation7 + $0x10] sm:$0xff] %v3338
        %3350 = vst [vmem:[#allocation7 + $0x18] sm:$0xff] %v3340
        %3351 = vst [vmem:[#allocation7 + $0x20] sm:$0x1] %v3337
        %3352 = vst [vmem:[#allocation7 + $0x28] sm:$0x1] %v3339
        %v3353 = vld [vmem:[#allocation7] sm:$0xff]
        %v3354 = vld [vmem:[#allocation7 + $0x8] sm:$0xff]
        %v3355 = vld [vmem:[#allocation7 + $0x10] sm:$0xff]
        %v3356 = vld [vmem:[#allocation7 + $0x18] sm:$0xff]
        %v3357 = vpack.c.bf16 %v3355, %v3353
        %v3358 = vpack.c.bf16 %v3356, %v3354
        %v3359 = vld [vmem:[#allocation29] sm:$0xff]
        %v3360 = vld [vmem:[#allocation29 + $0x8] sm:$0xff]
        %v3361 = vld [vmem:[#allocation29 + $0x10] sm:$0xff]
        %v3362 = vld [vmem:[#allocation29 + $0x18] sm:$0xff]
        %v3363 = vld [vmem:[#allocation29 + $0x20] sm:$0xff]
        %v3364 = vld [vmem:[#allocation29 + $0x28] sm:$0xff]
        %v3365 = vld [vmem:[#allocation29 + $0x30] sm:$0xff]
        %v3366 = vld [vmem:[#allocation29 + $0x38] sm:$0xff]
        %v3367 = vld [vmem:[#allocation29 + $0x40] sm:$0xff]
        %v3368 = vld [vmem:[#allocation29 + $0x48] sm:$0xff]
        %v3369 = vld [vmem:[#allocation29 + $0x50] sm:$0xff]
        %v3370 = vld [vmem:[#allocation29 + $0x58] sm:$0xff]
        %v3371 = vld [vmem:[#allocation29 + $0x60] sm:$0xff]
        %v3372 = vld [vmem:[#allocation29 + $0x68] sm:$0xff]
        %v3373 = vld [vmem:[#allocation29 + $0x70] sm:$0xff]
        %v3374 = vld [vmem:[#allocation29 + $0x78] sm:$0xff]
        %v3375 = vld [vmem:[#allocation29 + $0x80] sm:$0xff]
        %v3376 = vld [vmem:[#allocation29 + $0x88] sm:$0xff]
        %v3377 = vld [vmem:[#allocation29 + $0x90] sm:$0xff]
        %v3378 = vld [vmem:[#allocation29 + $0x98] sm:$0xff]
        %v3379 = vld [vmem:[#allocation29 + $0xa0] sm:$0xff]
        %v3380 = vld [vmem:[#allocation29 + $0xa8] sm:$0xff]
        %v3381 = vld [vmem:[#allocation29 + $0xb0] sm:$0xff]
        %v3382 = vld [vmem:[#allocation29 + $0xb8] sm:$0xff]
        %v3383 = vld [vmem:[#allocation29 + $0xc0] sm:$0xff]
        %v3384 = vld [vmem:[#allocation29 + $0xc8] sm:$0xff]
        %v3385 = vld [vmem:[#allocation29 + $0xd0] sm:$0xff]
        %v3386 = vld [vmem:[#allocation29 + $0xd8] sm:$0xff]
        %v3387 = vld [vmem:[#allocation29 + $0xe0] sm:$0xff]
        %v3388 = vld [vmem:[#allocation29 + $0xe8] sm:$0xff]
        %v3389 = vld [vmem:[#allocation29 + $0xf0] sm:$0xff]
        %v3390 = vld [vmem:[#allocation29 + $0xf8] sm:$0xff]
        %v3391 = vld [vmem:[#allocation7] sm:$0xfe]
        %v3392 = vld [vmem:[#allocation7 + $0x8] sm:$0xfe]
        %v3393 = vld [vmem:[#allocation7 + $0x20] sm:$0x1]
        %v3394 = vld [vmem:[#allocation7 + $0x28] sm:$0x1]
        %v3395 = vpack.c.bf16 %v3355, %v3391
        %v3396 = vpack.c.bf16 %v3356, %v3392
        %v3397 = vpack.c.bf16 %v3393, %v3393
        %v3398 = vpack.c.bf16 %v3394, %v3394
        %s3399 = scalar_lea.vmem [#allocation29], 256
        %v3400 = vld [vmem:[%s3399] sm:$0xff]
        %v3401 = vld [vmem:[%s3399 + $0x8] sm:$0xff]
        %v3402 = vld [vmem:[%s3399 + $0x10] sm:$0xff]
        %v3403 = vld [vmem:[%s3399 + $0x18] sm:$0xff]
        %v3404 = vld [vmem:[%s3399 + $0x20] sm:$0xff]
        %v3405 = vld [vmem:[%s3399 + $0x28] sm:$0xff]
        %v3406 = vld [vmem:[%s3399 + $0x30] sm:$0xff]
        %v3407 = vld [vmem:[%s3399 + $0x38] sm:$0xff]
        %v3408 = vld [vmem:[%s3399 + $0x40] sm:$0xff]
        %v3409 = vld [vmem:[%s3399 + $0x48] sm:$0xff]
        %v3410 = vld [vmem:[%s3399 + $0x50] sm:$0xff]
        %v3411 = vld [vmem:[%s3399 + $0x58] sm:$0xff]
        %v3412 = vld [vmem:[%s3399 + $0x60] sm:$0xff]
        %v3413 = vld [vmem:[%s3399 + $0x68] sm:$0xff]
        %v3414 = vld [vmem:[%s3399 + $0x70] sm:$0xff]
        %v3415 = vld [vmem:[%s3399 + $0x78] sm:$0xff]
        %v3416 = vld [vmem:[%s3399 + $0x80] sm:$0xff]
        %v3417 = vld [vmem:[%s3399 + $0x88] sm:$0xff]
        %v3418 = vld [vmem:[%s3399 + $0x90] sm:$0xff]
        %v3419 = vld [vmem:[%s3399 + $0x98] sm:$0xff]
        %v3420 = vld [vmem:[%s3399 + $0xa0] sm:$0xff]
        %v3421 = vld [vmem:[%s3399 + $0xa8] sm:$0xff]
        %v3422 = vld [vmem:[%s3399 + $0xb0] sm:$0xff]
        %v3423 = vld [vmem:[%s3399 + $0xb8] sm:$0xff]
        %v3424 = vld [vmem:[%s3399 + $0xc0] sm:$0xff]
        %v3425 = vld [vmem:[%s3399 + $0xc8] sm:$0xff]
        %v3426 = vld [vmem:[%s3399 + $0xd0] sm:$0xff]
        %v3427 = vld [vmem:[%s3399 + $0xd8] sm:$0xff]
        %v3428 = vld [vmem:[%s3399 + $0xe0] sm:$0xff]
        %v3429 = vld [vmem:[%s3399 + $0xe8] sm:$0xff]
        %v3430 = vld [vmem:[%s3399 + $0xf0] sm:$0xff]
        %v3431 = vld [vmem:[%s3399 + $0xf8] sm:$0xff]
        %vm3432 = vsmask.f32 7424
        %v3434 = vshrl.u32 %v3395, 16
        %v3436 = vshll.u32 %v3395, 16
        %v3438 = vrot.slane %v3436, 1
        %v3439 = vor.u32 %v3434, %v3438
        %v3441 = vshll.u32 %v3397, 16
        %v3443 = vrot.slane %v3441, 1
        %v3444 = vsel %vm3432, %v3439, %v3443
        %v3446 = vshrl.u32 %v3396, 16
        %v3448 = vshll.u32 %v3396, 16
        %v3450 = vrot.slane %v3448, 1
        %v3451 = vor.u32 %v3446, %v3450
        %v3453 = vshll.u32 %v3398, 16
        %v3455 = vrot.slane %v3453, 1
        %v3456 = vsel %vm3432, %v3451, %v3455
        %v3491 = vunpack.c.l.b16 %v3400
        %v3492 = vunpack.c.h.b16 %v3400
        %v3493 = vunpack.c.l.b16 %v3401
        %v3494 = vunpack.c.h.b16 %v3401
        %v3495 = vunpack.c.l.b16 %v3402
        %v3496 = vunpack.c.h.b16 %v3402
        %v3497 = vunpack.c.l.b16 %v3403
        %v3498 = vunpack.c.h.b16 %v3403
        %v3499 = vunpack.c.l.b16 %v3404
        %v3500 = vunpack.c.h.b16 %v3404
        %v3501 = vunpack.c.l.b16 %v3405
        %v3502 = vunpack.c.h.b16 %v3405
        %v3503 = vunpack.c.l.b16 %v3406
        %v3504 = vunpack.c.h.b16 %v3406
        %v3505 = vunpack.c.l.b16 %v3407
        %v3506 = vunpack.c.h.b16 %v3407
        %v3507 = vunpack.c.l.b16 %v3408
        %v3508 = vunpack.c.h.b16 %v3408
        %v3509 = vunpack.c.l.b16 %v3409
        %v3510 = vunpack.c.h.b16 %v3409
        %v3511 = vunpack.c.l.b16 %v3410
        %v3512 = vunpack.c.h.b16 %v3410
        %v3513 = vunpack.c.l.b16 %v3411
        %v3514 = vunpack.c.h.b16 %v3411
        %v3515 = vunpack.c.l.b16 %v3412
        %v3516 = vunpack.c.h.b16 %v3412
        %v3517 = vunpack.c.l.b16 %v3413
        %v3518 = vunpack.c.h.b16 %v3413
        %v3519 = vunpack.c.l.b16 %v3414
        %v3520 = vunpack.c.h.b16 %v3414
        %v3521 = vunpack.c.l.b16 %v3415
        %v3522 = vunpack.c.h.b16 %v3415
        %v3523 = vunpack.c.l.b16 %v3416
        %v3524 = vunpack.c.h.b16 %v3416
        %v3525 = vunpack.c.l.b16 %v3417
        %v3526 = vunpack.c.h.b16 %v3417
        %v3527 = vunpack.c.l.b16 %v3418
        %v3528 = vunpack.c.h.b16 %v3418
        %v3529 = vunpack.c.l.b16 %v3419
        %v3530 = vunpack.c.h.b16 %v3419
        %v3531 = vunpack.c.l.b16 %v3420
        %v3532 = vunpack.c.h.b16 %v3420
        %v3533 = vunpack.c.l.b16 %v3421
        %v3534 = vunpack.c.h.b16 %v3421
        %v3535 = vunpack.c.l.b16 %v3422
        %v3536 = vunpack.c.h.b16 %v3422
        %v3537 = vunpack.c.l.b16 %v3423
        %v3538 = vunpack.c.h.b16 %v3423
        %v3539 = vunpack.c.l.b16 %v3424
        %v3540 = vunpack.c.h.b16 %v3424
        %v3541 = vunpack.c.l.b16 %v3425
        %v3542 = vunpack.c.h.b16 %v3425
        %v3543 = vunpack.c.l.b16 %v3426
        %v3544 = vunpack.c.h.b16 %v3426
        %v3545 = vunpack.c.l.b16 %v3427
        %v3546 = vunpack.c.h.b16 %v3427
        %v3547 = vunpack.c.l.b16 %v3428
        %v3548 = vunpack.c.h.b16 %v3428
        %v3549 = vunpack.c.l.b16 %v3429
        %v3550 = vunpack.c.h.b16 %v3429
        %v3551 = vunpack.c.l.b16 %v3430
        %v3552 = vunpack.c.h.b16 %v3430
        %v3553 = vunpack.c.l.b16 %v3431
        %v3554 = vunpack.c.h.b16 %v3431
        %v3555 = vpack.c.b16 %v3493, %v3491
        %v3556 = vpack.c.b16 %v3494, %v3492
        %v3557 = vpack.c.b16 %v3497, %v3495
        %v3558 = vpack.c.b16 %v3498, %v3496
        %v3559 = vpack.c.b16 %v3501, %v3499
        %v3560 = vpack.c.b16 %v3502, %v3500
        %v3561 = vpack.c.b16 %v3505, %v3503
        %v3562 = vpack.c.b16 %v3506, %v3504
        %v3563 = vpack.c.b16 %v3509, %v3507
        %v3564 = vpack.c.b16 %v3510, %v3508
        %v3565 = vpack.c.b16 %v3513, %v3511
        %v3566 = vpack.c.b16 %v3514, %v3512
        %v3567 = vpack.c.b16 %v3517, %v3515
        %v3568 = vpack.c.b16 %v3518, %v3516
        %v3569 = vpack.c.b16 %v3521, %v3519
        %v3570 = vpack.c.b16 %v3522, %v3520
        %v3571 = vpack.c.b16 %v3525, %v3523
        %v3572 = vpack.c.b16 %v3526, %v3524
        %v3573 = vpack.c.b16 %v3529, %v3527
        %v3574 = vpack.c.b16 %v3530, %v3528
        %v3575 = vpack.c.b16 %v3533, %v3531
        %v3576 = vpack.c.b16 %v3534, %v3532
        %v3577 = vpack.c.b16 %v3537, %v3535
        %v3578 = vpack.c.b16 %v3538, %v3536
        %v3579 = vpack.c.b16 %v3541, %v3539
        %v3580 = vpack.c.b16 %v3542, %v3540
        %v3581 = vpack.c.b16 %v3545, %v3543
        %v3582 = vpack.c.b16 %v3546, %v3544
        %v3583 = vpack.c.b16 %v3549, %v3547
        %v3584 = vpack.c.b16 %v3550, %v3548
        %v3585 = vpack.c.b16 %v3553, %v3551
        %v3586 = vpack.c.b16 %v3554, %v3552
        %3619 = vmatprep.subr.bf16.mxu0 %v3570
        %3620 = vmatpush1.bf16.msra.mxu0 %v3569
        %3621 = vmatprep.subr.bf16.mxu0 %v3568
        %3622 = vmatpush1.bf16.msra.mxu0 %v3567
        %3623 = vmatprep.subr.bf16.mxu0 %v3566
        %3624 = vmatpush1.bf16.msra.mxu0 %v3565
        %3625 = vmatprep.subr.bf16.mxu0 %v3564
        %3626 = vmatpush1.bf16.msra.mxu0 %v3563
        %3627 = vmatprep.subr.bf16.mxu0 %v3562
        %3628 = vmatpush1.bf16.msra.mxu0 %v3561
        %3629 = vmatprep.subr.bf16.mxu0 %v3560
        %3630 = vmatpush1.bf16.msra.mxu0 %v3559
        %3631 = vmatprep.subr.bf16.mxu0 %v3558
        %3632 = vmatpush1.bf16.msra.mxu0 %v3557
        %3633 = vmatprep.subr.bf16.mxu0 %v3556
        %3634 = vmatpush1.bf16.msra.mxu0 %v3555
        %3635 = vmatprep.subr.bf16.mxu0 %v3586
        %3636 = vmatpush2.bf16.msra.mxu0 %v3585
        %3637 = vmatprep.subr.bf16.mxu0 %v3584
        %3638 = vmatpush2.bf16.msra.mxu0 %v3583
        %3639 = vmatprep.subr.bf16.mxu0 %v3582
        %3640 = vmatpush2.bf16.msra.mxu0 %v3581
        %3641 = vmatprep.subr.bf16.mxu0 %v3580
        %3642 = vmatpush2.bf16.msra.mxu0 %v3579
        %3643 = vmatprep.subr.bf16.mxu0 %v3578
        %3644 = vmatpush2.bf16.msra.mxu0 %v3577
        %3645 = vmatprep.subr.bf16.mxu0 %v3576
        %3646 = vmatpush2.bf16.msra.mxu0 %v3575
        %3647 = vmatprep.subr.bf16.mxu0 %v3574
        %3648 = vmatpush2.bf16.msra.mxu0 %v3573
        %3649 = vmatprep.subr.bf16.mxu0 %v3572
        %3650 = vmatpush2.bf16.msra.mxu0 %v3571
        %3651 = vmatprep.mubr.bf16.mxu0 %v3456
        %3652 = vmatmul.mubr.bf16.gmra.mxu0 %v3444
        %v3653 = vpop.f32.mrf.mxu0
        %v3654 = vadd.f32 0.0, %v3653
        %v3655 = vpop.f32.mrf.mxu0
        %v3656 = vadd.f32 0.0, %v3655
        %v3657 = vpop.f32.mrf.mxu0
        %v3658 = vadd.f32 0.0, %v3657
        %v3659 = vpop.f32.mrf.mxu0
        %v3660 = vadd.f32 0.0, %v3659
        %3661 = vdwg.mxu0
        %v3694 = vunpack.c.l.b16 %v3359
        %v3695 = vunpack.c.h.b16 %v3359
        %v3696 = vunpack.c.l.b16 %v3360
        %v3697 = vunpack.c.h.b16 %v3360
        %v3698 = vunpack.c.l.b16 %v3361
        %v3699 = vunpack.c.h.b16 %v3361
        %v3700 = vunpack.c.l.b16 %v3362
        %v3701 = vunpack.c.h.b16 %v3362
        %v3702 = vunpack.c.l.b16 %v3363
        %v3703 = vunpack.c.h.b16 %v3363
        %v3704 = vunpack.c.l.b16 %v3364
        %v3705 = vunpack.c.h.b16 %v3364
        %v3706 = vunpack.c.l.b16 %v3365
        %v3707 = vunpack.c.h.b16 %v3365
        %v3708 = vunpack.c.l.b16 %v3366
        %v3709 = vunpack.c.h.b16 %v3366
        %v3710 = vunpack.c.l.b16 %v3367
        %v3711 = vunpack.c.h.b16 %v3367
        %v3712 = vunpack.c.l.b16 %v3368
        %v3713 = vunpack.c.h.b16 %v3368
        %v3714 = vunpack.c.l.b16 %v3369
        %v3715 = vunpack.c.h.b16 %v3369
        %v3716 = vunpack.c.l.b16 %v3370
        %v3717 = vunpack.c.h.b16 %v3370
        %v3718 = vunpack.c.l.b16 %v3371
        %v3719 = vunpack.c.h.b16 %v3371
        %v3720 = vunpack.c.l.b16 %v3372
        %v3721 = vunpack.c.h.b16 %v3372
        %v3722 = vunpack.c.l.b16 %v3373
        %v3723 = vunpack.c.h.b16 %v3373
        %v3724 = vunpack.c.l.b16 %v3374
        %v3725 = vunpack.c.h.b16 %v3374
        %v3726 = vunpack.c.l.b16 %v3375
        %v3727 = vunpack.c.h.b16 %v3375
        %v3728 = vunpack.c.l.b16 %v3376
        %v3729 = vunpack.c.h.b16 %v3376
        %v3730 = vunpack.c.l.b16 %v3377
        %v3731 = vunpack.c.h.b16 %v3377
        %v3732 = vunpack.c.l.b16 %v3378
        %v3733 = vunpack.c.h.b16 %v3378
        %v3734 = vunpack.c.l.b16 %v3379
        %v3735 = vunpack.c.h.b16 %v3379
        %v3736 = vunpack.c.l.b16 %v3380
        %v3737 = vunpack.c.h.b16 %v3380
        %v3738 = vunpack.c.l.b16 %v3381
        %v3739 = vunpack.c.h.b16 %v3381
        %v3740 = vunpack.c.l.b16 %v3382
        %v3741 = vunpack.c.h.b16 %v3382
        %v3742 = vunpack.c.l.b16 %v3383
        %v3743 = vunpack.c.h.b16 %v3383
        %v3744 = vunpack.c.l.b16 %v3384
        %v3745 = vunpack.c.h.b16 %v3384
        %v3746 = vunpack.c.l.b16 %v3385
        %v3747 = vunpack.c.h.b16 %v3385
        %v3748 = vunpack.c.l.b16 %v3386
        %v3749 = vunpack.c.h.b16 %v3386
        %v3750 = vunpack.c.l.b16 %v3387
        %v3751 = vunpack.c.h.b16 %v3387
        %v3752 = vunpack.c.l.b16 %v3388
        %v3753 = vunpack.c.h.b16 %v3388
        %v3754 = vunpack.c.l.b16 %v3389
        %v3755 = vunpack.c.h.b16 %v3389
        %v3756 = vunpack.c.l.b16 %v3390
        %v3757 = vunpack.c.h.b16 %v3390
        %v3758 = vpack.c.b16 %v3696, %v3694
        %v3759 = vpack.c.b16 %v3697, %v3695
        %v3760 = vpack.c.b16 %v3700, %v3698
        %v3761 = vpack.c.b16 %v3701, %v3699
        %v3762 = vpack.c.b16 %v3704, %v3702
        %v3763 = vpack.c.b16 %v3705, %v3703
        %v3764 = vpack.c.b16 %v3708, %v3706
        %v3765 = vpack.c.b16 %v3709, %v3707
        %v3766 = vpack.c.b16 %v3712, %v3710
        %v3767 = vpack.c.b16 %v3713, %v3711
        %v3768 = vpack.c.b16 %v3716, %v3714
        %v3769 = vpack.c.b16 %v3717, %v3715
        %v3770 = vpack.c.b16 %v3720, %v3718
        %v3771 = vpack.c.b16 %v3721, %v3719
        %v3772 = vpack.c.b16 %v3724, %v3722
        %v3773 = vpack.c.b16 %v3725, %v3723
        %v3774 = vpack.c.b16 %v3728, %v3726
        %v3775 = vpack.c.b16 %v3729, %v3727
        %v3776 = vpack.c.b16 %v3732, %v3730
        %v3777 = vpack.c.b16 %v3733, %v3731
        %v3778 = vpack.c.b16 %v3736, %v3734
        %v3779 = vpack.c.b16 %v3737, %v3735
        %v3780 = vpack.c.b16 %v3740, %v3738
        %v3781 = vpack.c.b16 %v3741, %v3739
        %v3782 = vpack.c.b16 %v3744, %v3742
        %v3783 = vpack.c.b16 %v3745, %v3743
        %v3784 = vpack.c.b16 %v3748, %v3746
        %v3785 = vpack.c.b16 %v3749, %v3747
        %v3786 = vpack.c.b16 %v3752, %v3750
        %v3787 = vpack.c.b16 %v3753, %v3751
        %v3788 = vpack.c.b16 %v3756, %v3754
        %v3789 = vpack.c.b16 %v3757, %v3755
        %3822 = vmatprep.subr.bf16.mxu0 %v3773
        %3823 = vmatpush1.bf16.msra.mxu0 %v3772
        %3824 = vmatprep.subr.bf16.mxu0 %v3771
        %3825 = vmatpush1.bf16.msra.mxu0 %v3770
        %3826 = vmatprep.subr.bf16.mxu0 %v3769
        %3827 = vmatpush1.bf16.msra.mxu0 %v3768
        %3828 = vmatprep.subr.bf16.mxu0 %v3767
        %3829 = vmatpush1.bf16.msra.mxu0 %v3766
        %3830 = vmatprep.subr.bf16.mxu0 %v3765
        %3831 = vmatpush1.bf16.msra.mxu0 %v3764
        %3832 = vmatprep.subr.bf16.mxu0 %v3763
        %3833 = vmatpush1.bf16.msra.mxu0 %v3762
        %3834 = vmatprep.subr.bf16.mxu0 %v3761
        %3835 = vmatpush1.bf16.msra.mxu0 %v3760
        %3836 = vmatprep.subr.bf16.mxu0 %v3759
        %3837 = vmatpush1.bf16.msra.mxu0 %v3758
        %3838 = vmatprep.subr.bf16.mxu0 %v3789
        %3839 = vmatpush2.bf16.msra.mxu0 %v3788
        %3840 = vmatprep.subr.bf16.mxu0 %v3787
        %3841 = vmatpush2.bf16.msra.mxu0 %v3786
        %3842 = vmatprep.subr.bf16.mxu0 %v3785
        %3843 = vmatpush2.bf16.msra.mxu0 %v3784
        %3844 = vmatprep.subr.bf16.mxu0 %v3783
        %3845 = vmatpush2.bf16.msra.mxu0 %v3782
        %3846 = vmatprep.subr.bf16.mxu0 %v3781
        %3847 = vmatpush2.bf16.msra.mxu0 %v3780
        %3848 = vmatprep.subr.bf16.mxu0 %v3779
        %3849 = vmatpush2.bf16.msra.mxu0 %v3778
        %3850 = vmatprep.subr.bf16.mxu0 %v3777
        %3851 = vmatpush2.bf16.msra.mxu0 %v3776
        %3852 = vmatprep.subr.bf16.mxu0 %v3775
        %3853 = vmatpush2.bf16.msra.mxu0 %v3774
        %3854 = vmatprep.mubr.bf16.mxu0 %v3358
        %3855 = vmatmul.mubr.bf16.gmra.mxu0 %v3357
        %v3856 = vpop.f32.mrf.mxu0
        %v3857 = vadd.f32 %v3654, %v3856
        %v3858 = vpop.f32.mrf.mxu0
        %v3859 = vadd.f32 %v3656, %v3858
        %v3860 = vpop.f32.mrf.mxu0
        %v3861 = vadd.f32 %v3658, %v3860
        %v3862 = vpop.f32.mrf.mxu0
        %v3863 = vadd.f32 %v3660, %v3862
        %3864 = vdwg.mxu0
        %v3865 = vld [vmem:[#allocation7] sm:$0xfc]
        %v3866 = vld [vmem:[#allocation7 + $0x8] sm:$0xfc]
        %v3867 = vld [vmem:[#allocation7 + $0x20] sm:$0x3]
        %v3868 = vld [vmem:[#allocation7 + $0x28] sm:$0x3]
        %v3869 = vpack.c.bf16 %v3355, %v3865
        %v3870 = vpack.c.bf16 %v3356, %v3866
        %v3871 = vpack.c.bf16 %v3867, %v3867
        %v3872 = vpack.c.bf16 %v3868, %v3868
        %s3873 = scalar_lea.vmem [#allocation29], 512
        %v3874 = vld [vmem:[%s3873] sm:$0xff]
        %v3875 = vld [vmem:[%s3873 + $0x8] sm:$0xff]
        %v3876 = vld [vmem:[%s3873 + $0x10] sm:$0xff]
        %v3877 = vld [vmem:[%s3873 + $0x18] sm:$0xff]
        %v3878 = vld [vmem:[%s3873 + $0x20] sm:$0xff]
        %v3879 = vld [vmem:[%s3873 + $0x28] sm:$0xff]
        %v3880 = vld [vmem:[%s3873 + $0x30] sm:$0xff]
        %v3881 = vld [vmem:[%s3873 + $0x38] sm:$0xff]
        %v3882 = vld [vmem:[%s3873 + $0x40] sm:$0xff]
        %v3883 = vld [vmem:[%s3873 + $0x48] sm:$0xff]
        %v3884 = vld [vmem:[%s3873 + $0x50] sm:$0xff]
        %v3885 = vld [vmem:[%s3873 + $0x58] sm:$0xff]
        %v3886 = vld [vmem:[%s3873 + $0x60] sm:$0xff]
        %v3887 = vld [vmem:[%s3873 + $0x68] sm:$0xff]
        %v3888 = vld [vmem:[%s3873 + $0x70] sm:$0xff]
        %v3889 = vld [vmem:[%s3873 + $0x78] sm:$0xff]
        %v3890 = vld [vmem:[%s3873 + $0x80] sm:$0xff]
        %v3891 = vld [vmem:[%s3873 + $0x88] sm:$0xff]
        %v3892 = vld [vmem:[%s3873 + $0x90] sm:$0xff]
        %v3893 = vld [vmem:[%s3873 + $0x98] sm:$0xff]
        %v3894 = vld [vmem:[%s3873 + $0xa0] sm:$0xff]
        %v3895 = vld [vmem:[%s3873 + $0xa8] sm:$0xff]
        %v3896 = vld [vmem:[%s3873 + $0xb0] sm:$0xff]
        %v3897 = vld [vmem:[%s3873 + $0xb8] sm:$0xff]
        %v3898 = vld [vmem:[%s3873 + $0xc0] sm:$0xff]
        %v3899 = vld [vmem:[%s3873 + $0xc8] sm:$0xff]
        %v3900 = vld [vmem:[%s3873 + $0xd0] sm:$0xff]
        %v3901 = vld [vmem:[%s3873 + $0xd8] sm:$0xff]
        %v3902 = vld [vmem:[%s3873 + $0xe0] sm:$0xff]
        %v3903 = vld [vmem:[%s3873 + $0xe8] sm:$0xff]
        %v3904 = vld [vmem:[%s3873 + $0xf0] sm:$0xff]
        %v3905 = vld [vmem:[%s3873 + $0xf8] sm:$0xff]
        %vm3910 = vcmask 1046528
        %v3911 = vrot.slane %v3869, 1
        %v3912 = vrot.slane %v3871, 1
        %v3913 = vsel %vm3910, %v3911, %v3912
        %v3914 = vrot.slane %v3870, 1
        %v3915 = vrot.slane %v3872, 1
        %v3916 = vsel %vm3910, %v3914, %v3915
        %v3951 = vunpack.c.l.b16 %v3874
        %v3952 = vunpack.c.h.b16 %v3874
        %v3953 = vunpack.c.l.b16 %v3875
        %v3954 = vunpack.c.h.b16 %v3875
        %v3955 = vunpack.c.l.b16 %v3876
        %v3956 = vunpack.c.h.b16 %v3876
        %v3957 = vunpack.c.l.b16 %v3877
        %v3958 = vunpack.c.h.b16 %v3877
        %v3959 = vunpack.c.l.b16 %v3878
        %v3960 = vunpack.c.h.b16 %v3878
        %v3961 = vunpack.c.l.b16 %v3879
        %v3962 = vunpack.c.h.b16 %v3879
        %v3963 = vunpack.c.l.b16 %v3880
        %v3964 = vunpack.c.h.b16 %v3880
        %v3965 = vunpack.c.l.b16 %v3881
        %v3966 = vunpack.c.h.b16 %v3881
        %v3967 = vunpack.c.l.b16 %v3882
        %v3968 = vunpack.c.h.b16 %v3882
        %v3969 = vunpack.c.l.b16 %v3883
        %v3970 = vunpack.c.h.b16 %v3883
        %v3971 = vunpack.c.l.b16 %v3884
        %v3972 = vunpack.c.h.b16 %v3884
        %v3973 = vunpack.c.l.b16 %v3885
        %v3974 = vunpack.c.h.b16 %v3885
        %v3975 = vunpack.c.l.b16 %v3886
        %v3976 = vunpack.c.h.b16 %v3886
        %v3977 = vunpack.c.l.b16 %v3887
        %v3978 = vunpack.c.h.b16 %v3887
        %v3979 = vunpack.c.l.b16 %v3888
        %v3980 = vunpack.c.h.b16 %v3888
        %v3981 = vunpack.c.l.b16 %v3889
        %v3982 = vunpack.c.h.b16 %v3889
        %v3983 = vunpack.c.l.b16 %v3890
        %v3984 = vunpack.c.h.b16 %v3890
        %v3985 = vunpack.c.l.b16 %v3891
        %v3986 = vunpack.c.h.b16 %v3891
        %v3987 = vunpack.c.l.b16 %v3892
        %v3988 = vunpack.c.h.b16 %v3892
        %v3989 = vunpack.c.l.b16 %v3893
        %v3990 = vunpack.c.h.b16 %v3893
        %v3991 = vunpack.c.l.b16 %v3894
        %v3992 = vunpack.c.h.b16 %v3894
        %v3993 = vunpack.c.l.b16 %v3895
        %v3994 = vunpack.c.h.b16 %v3895
        %v3995 = vunpack.c.l.b16 %v3896
        %v3996 = vunpack.c.h.b16 %v3896
        %v3997 = vunpack.c.l.b16 %v3897
        %v3998 = vunpack.c.h.b16 %v3897
        %v3999 = vunpack.c.l.b16 %v3898
        %v4000 = vunpack.c.h.b16 %v3898
        %v4001 = vunpack.c.l.b16 %v3899
        %v4002 = vunpack.c.h.b16 %v3899
        %v4003 = vunpack.c.l.b16 %v3900
        %v4004 = vunpack.c.h.b16 %v3900
        %v4005 = vunpack.c.l.b16 %v3901
        %v4006 = vunpack.c.h.b16 %v3901
        %v4007 = vunpack.c.l.b16 %v3902
        %v4008 = vunpack.c.h.b16 %v3902
        %v4009 = vunpack.c.l.b16 %v3903
        %v4010 = vunpack.c.h.b16 %v3903
        %v4011 = vunpack.c.l.b16 %v3904
        %v4012 = vunpack.c.h.b16 %v3904
        %v4013 = vunpack.c.l.b16 %v3905
        %v4014 = vunpack.c.h.b16 %v3905
        %v4015 = vpack.c.b16 %v3953, %v3951
        %v4016 = vpack.c.b16 %v3954, %v3952
        %v4017 = vpack.c.b16 %v3957, %v3955
        %v4018 = vpack.c.b16 %v3958, %v3956
        %v4019 = vpack.c.b16 %v3961, %v3959
        %v4020 = vpack.c.b16 %v3962, %v3960
        %v4021 = vpack.c.b16 %v3965, %v3963
        %v4022 = vpack.c.b16 %v3966, %v3964
        %v4023 = vpack.c.b16 %v3969, %v3967
        %v4024 = vpack.c.b16 %v3970, %v3968
        %v4025 = vpack.c.b16 %v3973, %v3971
        %v4026 = vpack.c.b16 %v3974, %v3972
        %v4027 = vpack.c.b16 %v3977, %v3975
        %v4028 = vpack.c.b16 %v3978, %v3976
        %v4029 = vpack.c.b16 %v3981, %v3979
        %v4030 = vpack.c.b16 %v3982, %v3980
        %v4031 = vpack.c.b16 %v3985, %v3983
        %v4032 = vpack.c.b16 %v3986, %v3984
        %v4033 = vpack.c.b16 %v3989, %v3987
        %v4034 = vpack.c.b16 %v3990, %v3988
        %v4035 = vpack.c.b16 %v3993, %v3991
        %v4036 = vpack.c.b16 %v3994, %v3992
        %v4037 = vpack.c.b16 %v3997, %v3995
        %v4038 = vpack.c.b16 %v3998, %v3996
        %v4039 = vpack.c.b16 %v4001, %v3999
        %v4040 = vpack.c.b16 %v4002, %v4000
        %v4041 = vpack.c.b16 %v4005, %v4003
        %v4042 = vpack.c.b16 %v4006, %v4004
        %v4043 = vpack.c.b16 %v4009, %v4007
        %v4044 = vpack.c.b16 %v4010, %v4008
        %v4045 = vpack.c.b16 %v4013, %v4011
        %v4046 = vpack.c.b16 %v4014, %v4012
        %4079 = vmatprep.subr.bf16.mxu0 %v4030
        %4080 = vmatpush1.bf16.msra.mxu0 %v4029
        %4081 = vmatprep.subr.bf16.mxu0 %v4028
        %4082 = vmatpush1.bf16.msra.mxu0 %v4027
        %4083 = vmatprep.subr.bf16.mxu0 %v4026
        %4084 = vmatpush1.bf16.msra.mxu0 %v4025
        %4085 = vmatprep.subr.bf16.mxu0 %v4024
        %4086 = vmatpush1.bf16.msra.mxu0 %v4023
        %4087 = vmatprep.subr.bf16.mxu0 %v4022
        %4088 = vmatpush1.bf16.msra.mxu0 %v4021
        %4089 = vmatprep.subr.bf16.mxu0 %v4020
        %4090 = vmatpush1.bf16.msra.mxu0 %v4019
        %4091 = vmatprep.subr.bf16.mxu0 %v4018
        %4092 = vmatpush1.bf16.msra.mxu0 %v4017
        %4093 = vmatprep.subr.bf16.mxu0 %v4016
        %4094 = vmatpush1.bf16.msra.mxu0 %v4015
        %4095 = vmatprep.subr.bf16.mxu0 %v4046
        %4096 = vmatpush2.bf16.msra.mxu0 %v4045
        %4097 = vmatprep.subr.bf16.mxu0 %v4044
        %4098 = vmatpush2.bf16.msra.mxu0 %v4043
        %4099 = vmatprep.subr.bf16.mxu0 %v4042
        %4100 = vmatpush2.bf16.msra.mxu0 %v4041
        %4101 = vmatprep.subr.bf16.mxu0 %v4040
        %4102 = vmatpush2.bf16.msra.mxu0 %v4039
        %4103 = vmatprep.subr.bf16.mxu0 %v4038
        %4104 = vmatpush2.bf16.msra.mxu0 %v4037
        %4105 = vmatprep.subr.bf16.mxu0 %v4036
        %4106 = vmatpush2.bf16.msra.mxu0 %v4035
        %4107 = vmatprep.subr.bf16.mxu0 %v4034
        %4108 = vmatpush2.bf16.msra.mxu0 %v4033
        %4109 = vmatprep.subr.bf16.mxu0 %v4032
        %4110 = vmatpush2.bf16.msra.mxu0 %v4031
        %4111 = vmatprep.mubr.bf16.mxu0 %v3916
        %4112 = vmatmul.mubr.bf16.gmra.mxu0 %v3913
        %v4113 = vpop.f32.mrf.mxu0
        %v4114 = vadd.f32 0.0, %v4113
        %v4115 = vpop.f32.mrf.mxu0
        %v4116 = vadd.f32 0.0, %v4115
        %v4117 = vpop.f32.mrf.mxu0
        %v4118 = vadd.f32 0.0, %v4117
        %v4119 = vpop.f32.mrf.mxu0
        %v4120 = vadd.f32 0.0, %v4119
        %4121 = vdwg.mxu0
        %v4122 = vadd.f32 %v3857, %v4114
        %v4123 = vadd.f32 %v3859, %v4116
        %v4124 = vadd.f32 %v3861, %v4118
        %v4125 = vadd.f32 %v3863, %v4120
        %v4126 = vld [vmem:[#allocation6] sm:$0xff]
        %v4127 = vld [vmem:[#allocation6 + $0x8] sm:$0xff]
        %v4128 = vld [vmem:[#allocation6 + $0x10] sm:$0xff]
        %v4129 = vld [vmem:[#allocation6 + $0x18] sm:$0xff]
        %v4130 = vpack.c.bf16 %v4128, %v4126
        %v4131 = vpack.c.bf16 %v4129, %v4127
        %v4132 = vld [vmem:[#allocation30] sm:$0xff]
        %v4133 = vld [vmem:[#allocation30 + $0x8] sm:$0xff]
        %v4134 = vld [vmem:[#allocation30 + $0x10] sm:$0xff]
        %v4135 = vld [vmem:[#allocation30 + $0x18] sm:$0xff]
        %v4136 = vld [vmem:[#allocation30 + $0x20] sm:$0xff]
        %v4137 = vld [vmem:[#allocation30 + $0x28] sm:$0xff]
        %v4138 = vld [vmem:[#allocation30 + $0x30] sm:$0xff]
        %v4139 = vld [vmem:[#allocation30 + $0x38] sm:$0xff]
        %v4140 = vld [vmem:[#allocation30 + $0x40] sm:$0xff]
        %v4141 = vld [vmem:[#allocation30 + $0x48] sm:$0xff]
        %v4142 = vld [vmem:[#allocation30 + $0x50] sm:$0xff]
        %v4143 = vld [vmem:[#allocation30 + $0x58] sm:$0xff]
        %v4144 = vld [vmem:[#allocation30 + $0x60] sm:$0xff]
        %v4145 = vld [vmem:[#allocation30 + $0x68] sm:$0xff]
        %v4146 = vld [vmem:[#allocation30 + $0x70] sm:$0xff]
        %v4147 = vld [vmem:[#allocation30 + $0x78] sm:$0xff]
        %v4148 = vld [vmem:[#allocation30 + $0x80] sm:$0xff]
        %v4149 = vld [vmem:[#allocation30 + $0x88] sm:$0xff]
        %v4150 = vld [vmem:[#allocation30 + $0x90] sm:$0xff]
        %v4151 = vld [vmem:[#allocation30 + $0x98] sm:$0xff]
        %v4152 = vld [vmem:[#allocation30 + $0xa0] sm:$0xff]
        %v4153 = vld [vmem:[#allocation30 + $0xa8] sm:$0xff]
        %v4154 = vld [vmem:[#allocation30 + $0xb0] sm:$0xff]
        %v4155 = vld [vmem:[#allocation30 + $0xb8] sm:$0xff]
        %v4156 = vld [vmem:[#allocation30 + $0xc0] sm:$0xff]
        %v4157 = vld [vmem:[#allocation30 + $0xc8] sm:$0xff]
        %v4158 = vld [vmem:[#allocation30 + $0xd0] sm:$0xff]
        %v4159 = vld [vmem:[#allocation30 + $0xd8] sm:$0xff]
        %v4160 = vld [vmem:[#allocation30 + $0xe0] sm:$0xff]
        %v4161 = vld [vmem:[#allocation30 + $0xe8] sm:$0xff]
        %v4162 = vld [vmem:[#allocation30 + $0xf0] sm:$0xff]
        %v4163 = vld [vmem:[#allocation30 + $0xf8] sm:$0xff]
        %v4196 = vunpack.c.l.b16 %v4132
        %v4197 = vunpack.c.h.b16 %v4132
        %v4198 = vunpack.c.l.b16 %v4133
        %v4199 = vunpack.c.h.b16 %v4133
        %v4200 = vunpack.c.l.b16 %v4134
        %v4201 = vunpack.c.h.b16 %v4134
        %v4202 = vunpack.c.l.b16 %v4135
        %v4203 = vunpack.c.h.b16 %v4135
        %v4204 = vunpack.c.l.b16 %v4136
        %v4205 = vunpack.c.h.b16 %v4136
        %v4206 = vunpack.c.l.b16 %v4137
        %v4207 = vunpack.c.h.b16 %v4137
        %v4208 = vunpack.c.l.b16 %v4138
        %v4209 = vunpack.c.h.b16 %v4138
        %v4210 = vunpack.c.l.b16 %v4139
        %v4211 = vunpack.c.h.b16 %v4139
        %v4212 = vunpack.c.l.b16 %v4140
        %v4213 = vunpack.c.h.b16 %v4140
        %v4214 = vunpack.c.l.b16 %v4141
        %v4215 = vunpack.c.h.b16 %v4141
        %v4216 = vunpack.c.l.b16 %v4142
        %v4217 = vunpack.c.h.b16 %v4142
        %v4218 = vunpack.c.l.b16 %v4143
        %v4219 = vunpack.c.h.b16 %v4143
        %v4220 = vunpack.c.l.b16 %v4144
        %v4221 = vunpack.c.h.b16 %v4144
        %v4222 = vunpack.c.l.b16 %v4145
        %v4223 = vunpack.c.h.b16 %v4145
        %v4224 = vunpack.c.l.b16 %v4146
        %v4225 = vunpack.c.h.b16 %v4146
        %v4226 = vunpack.c.l.b16 %v4147
        %v4227 = vunpack.c.h.b16 %v4147
        %v4228 = vunpack.c.l.b16 %v4148
        %v4229 = vunpack.c.h.b16 %v4148
        %v4230 = vunpack.c.l.b16 %v4149
        %v4231 = vunpack.c.h.b16 %v4149
        %v4232 = vunpack.c.l.b16 %v4150
        %v4233 = vunpack.c.h.b16 %v4150
        %v4234 = vunpack.c.l.b16 %v4151
        %v4235 = vunpack.c.h.b16 %v4151
        %v4236 = vunpack.c.l.b16 %v4152
        %v4237 = vunpack.c.h.b16 %v4152
        %v4238 = vunpack.c.l.b16 %v4153
        %v4239 = vunpack.c.h.b16 %v4153
        %v4240 = vunpack.c.l.b16 %v4154
        %v4241 = vunpack.c.h.b16 %v4154
        %v4242 = vunpack.c.l.b16 %v4155
        %v4243 = vunpack.c.h.b16 %v4155
        %v4244 = vunpack.c.l.b16 %v4156
        %v4245 = vunpack.c.h.b16 %v4156
        %v4246 = vunpack.c.l.b16 %v4157
        %v4247 = vunpack.c.h.b16 %v4157
        %v4248 = vunpack.c.l.b16 %v4158
        %v4249 = vunpack.c.h.b16 %v4158
        %v4250 = vunpack.c.l.b16 %v4159
        %v4251 = vunpack.c.h.b16 %v4159
        %v4252 = vunpack.c.l.b16 %v4160
        %v4253 = vunpack.c.h.b16 %v4160
        %v4254 = vunpack.c.l.b16 %v4161
        %v4255 = vunpack.c.h.b16 %v4161
        %v4256 = vunpack.c.l.b16 %v4162
        %v4257 = vunpack.c.h.b16 %v4162
        %v4258 = vunpack.c.l.b16 %v4163
        %v4259 = vunpack.c.h.b16 %v4163
        %v4260 = vpack.c.b16 %v4198, %v4196
        %v4261 = vpack.c.b16 %v4199, %v4197
        %v4262 = vpack.c.b16 %v4202, %v4200
        %v4263 = vpack.c.b16 %v4203, %v4201
        %v4264 = vpack.c.b16 %v4206, %v4204
        %v4265 = vpack.c.b16 %v4207, %v4205
        %v4266 = vpack.c.b16 %v4210, %v4208
        %v4267 = vpack.c.b16 %v4211, %v4209
        %v4268 = vpack.c.b16 %v4214, %v4212
        %v4269 = vpack.c.b16 %v4215, %v4213
        %v4270 = vpack.c.b16 %v4218, %v4216
        %v4271 = vpack.c.b16 %v4219, %v4217
        %v4272 = vpack.c.b16 %v4222, %v4220
        %v4273 = vpack.c.b16 %v4223, %v4221
        %v4274 = vpack.c.b16 %v4226, %v4224
        %v4275 = vpack.c.b16 %v4227, %v4225
        %v4276 = vpack.c.b16 %v4230, %v4228
        %v4277 = vpack.c.b16 %v4231, %v4229
        %v4278 = vpack.c.b16 %v4234, %v4232
        %v4279 = vpack.c.b16 %v4235, %v4233
        %v4280 = vpack.c.b16 %v4238, %v4236
        %v4281 = vpack.c.b16 %v4239, %v4237
        %v4282 = vpack.c.b16 %v4242, %v4240
        %v4283 = vpack.c.b16 %v4243, %v4241
        %v4284 = vpack.c.b16 %v4246, %v4244
        %v4285 = vpack.c.b16 %v4247, %v4245
        %v4286 = vpack.c.b16 %v4250, %v4248
        %v4287 = vpack.c.b16 %v4251, %v4249
        %v4288 = vpack.c.b16 %v4254, %v4252
        %v4289 = vpack.c.b16 %v4255, %v4253
        %v4290 = vpack.c.b16 %v4258, %v4256
        %v4291 = vpack.c.b16 %v4259, %v4257
        %4324 = vmatprep.subr.bf16.mxu0 %v4275
        %4325 = vmatpush1.bf16.msra.mxu0 %v4274
        %4326 = vmatprep.subr.bf16.mxu0 %v4273
        %4327 = vmatpush1.bf16.msra.mxu0 %v4272
        %4328 = vmatprep.subr.bf16.mxu0 %v4271
        %4329 = vmatpush1.bf16.msra.mxu0 %v4270
        %4330 = vmatprep.subr.bf16.mxu0 %v4269
        %4331 = vmatpush1.bf16.msra.mxu0 %v4268
        %4332 = vmatprep.subr.bf16.mxu0 %v4267
        %4333 = vmatpush1.bf16.msra.mxu0 %v4266
        %4334 = vmatprep.subr.bf16.mxu0 %v4265
        %4335 = vmatpush1.bf16.msra.mxu0 %v4264
        %4336 = vmatprep.subr.bf16.mxu0 %v4263
        %4337 = vmatpush1.bf16.msra.mxu0 %v4262
        %4338 = vmatprep.subr.bf16.mxu0 %v4261
        %4339 = vmatpush1.bf16.msra.mxu0 %v4260
        %4340 = vmatprep.subr.bf16.mxu0 %v4291
        %4341 = vmatpush2.bf16.msra.mxu0 %v4290
        %4342 = vmatprep.subr.bf16.mxu0 %v4289
        %4343 = vmatpush2.bf16.msra.mxu0 %v4288
        %4344 = vmatprep.subr.bf16.mxu0 %v4287
        %4345 = vmatpush2.bf16.msra.mxu0 %v4286
        %4346 = vmatprep.subr.bf16.mxu0 %v4285
        %4347 = vmatpush2.bf16.msra.mxu0 %v4284
        %4348 = vmatprep.subr.bf16.mxu0 %v4283
        %4349 = vmatpush2.bf16.msra.mxu0 %v4282
        %4350 = vmatprep.subr.bf16.mxu0 %v4281
        %4351 = vmatpush2.bf16.msra.mxu0 %v4280
        %4352 = vmatprep.subr.bf16.mxu0 %v4279
        %4353 = vmatpush2.bf16.msra.mxu0 %v4278
        %4354 = vmatprep.subr.bf16.mxu0 %v4277
        %4355 = vmatpush2.bf16.msra.mxu0 %v4276
        %4356 = vmatprep.mubr.bf16.mxu0 %v4131
        %4357 = vmatmul.mubr.bf16.gmra.mxu0 %v4130
        %v4358 = vpop.f32.mrf.mxu0
        %v4359 = vadd.f32 0.0, %v4358
        %v4360 = vpop.f32.mrf.mxu0
        %v4361 = vadd.f32 0.0, %v4360
        %v4362 = vpop.f32.mrf.mxu0
        %v4363 = vadd.f32 0.0, %v4362
        %v4364 = vpop.f32.mrf.mxu0
        %v4365 = vadd.f32 0.0, %v4364
        %4366 = vdwg.mxu0
        %v4367 = vadd.f32 %v4122, %v4359
        %v4368 = vadd.f32 %v4123, %v4361
        %v4369 = vadd.f32 %v4124, %v4363
        %v4370 = vadd.f32 %v4125, %v4365
        %v4371 = vld [vmem:[#allocation6] sm:$0xfe]
        %v4372 = vld [vmem:[#allocation6 + $0x8] sm:$0xfe]
        %v4373 = vld [vmem:[#allocation6 + $0x10] sm:$0xff]
        %v4374 = vld [vmem:[#allocation6 + $0x18] sm:$0xff]
        %v4375 = vld [vmem:[#allocation6 + $0x20] sm:$0x1]
        %v4376 = vld [vmem:[#allocation6 + $0x28] sm:$0x1]
        %v4377 = vpack.c.bf16 %v4373, %v4371
        %v4378 = vpack.c.bf16 %v4374, %v4372
        %v4379 = vpack.c.bf16 %v4375, %v4375
        %v4380 = vpack.c.bf16 %v4376, %v4376
        %s4381 = scalar_lea.vmem [#allocation30], 256
        %v4382 = vld [vmem:[%s4381] sm:$0xff]
        %v4383 = vld [vmem:[%s4381 + $0x8] sm:$0xff]
        %v4384 = vld [vmem:[%s4381 + $0x10] sm:$0xff]
        %v4385 = vld [vmem:[%s4381 + $0x18] sm:$0xff]
        %v4386 = vld [vmem:[%s4381 + $0x20] sm:$0xff]
        %v4387 = vld [vmem:[%s4381 + $0x28] sm:$0xff]
        %v4388 = vld [vmem:[%s4381 + $0x30] sm:$0xff]
        %v4389 = vld [vmem:[%s4381 + $0x38] sm:$0xff]
        %v4390 = vld [vmem:[%s4381 + $0x40] sm:$0xff]
        %v4391 = vld [vmem:[%s4381 + $0x48] sm:$0xff]
        %v4392 = vld [vmem:[%s4381 + $0x50] sm:$0xff]
        %v4393 = vld [vmem:[%s4381 + $0x58] sm:$0xff]
        %v4394 = vld [vmem:[%s4381 + $0x60] sm:$0xff]
        %v4395 = vld [vmem:[%s4381 + $0x68] sm:$0xff]
        %v4396 = vld [vmem:[%s4381 + $0x70] sm:$0xff]
        %v4397 = vld [vmem:[%s4381 + $0x78] sm:$0xff]
        %v4398 = vld [vmem:[%s4381 + $0x80] sm:$0xff]
        %v4399 = vld [vmem:[%s4381 + $0x88] sm:$0xff]
        %v4400 = vld [vmem:[%s4381 + $0x90] sm:$0xff]
        %v4401 = vld [vmem:[%s4381 + $0x98] sm:$0xff]
        %v4402 = vld [vmem:[%s4381 + $0xa0] sm:$0xff]
        %v4403 = vld [vmem:[%s4381 + $0xa8] sm:$0xff]
        %v4404 = vld [vmem:[%s4381 + $0xb0] sm:$0xff]
        %v4405 = vld [vmem:[%s4381 + $0xb8] sm:$0xff]
        %v4406 = vld [vmem:[%s4381 + $0xc0] sm:$0xff]
        %v4407 = vld [vmem:[%s4381 + $0xc8] sm:$0xff]
        %v4408 = vld [vmem:[%s4381 + $0xd0] sm:$0xff]
        %v4409 = vld [vmem:[%s4381 + $0xd8] sm:$0xff]
        %v4410 = vld [vmem:[%s4381 + $0xe0] sm:$0xff]
        %v4411 = vld [vmem:[%s4381 + $0xe8] sm:$0xff]
        %v4412 = vld [vmem:[%s4381 + $0xf0] sm:$0xff]
        %v4413 = vld [vmem:[%s4381 + $0xf8] sm:$0xff]
        %v4415 = vshrl.u32 %v4377, 16
        %v4417 = vshll.u32 %v4377, 16
        %v4419 = vrot.slane %v4417, 1
        %v4420 = vor.u32 %v4415, %v4419
        %v4422 = vshll.u32 %v4379, 16
        %v4424 = vrot.slane %v4422, 1
        %v4425 = vsel %vm3432, %v4420, %v4424
        %v4427 = vshrl.u32 %v4378, 16
        %v4429 = vshll.u32 %v4378, 16
        %v4431 = vrot.slane %v4429, 1
        %v4432 = vor.u32 %v4427, %v4431
        %v4434 = vshll.u32 %v4380, 16
        %v4436 = vrot.slane %v4434, 1
        %v4437 = vsel %vm3432, %v4432, %v4436
        %v4472 = vunpack.c.l.b16 %v4382
        %v4473 = vunpack.c.h.b16 %v4382
        %v4474 = vunpack.c.l.b16 %v4383
        %v4475 = vunpack.c.h.b16 %v4383
        %v4476 = vunpack.c.l.b16 %v4384
        %v4477 = vunpack.c.h.b16 %v4384
        %v4478 = vunpack.c.l.b16 %v4385
        %v4479 = vunpack.c.h.b16 %v4385
        %v4480 = vunpack.c.l.b16 %v4386
        %v4481 = vunpack.c.h.b16 %v4386
        %v4482 = vunpack.c.l.b16 %v4387
        %v4483 = vunpack.c.h.b16 %v4387
        %v4484 = vunpack.c.l.b16 %v4388
        %v4485 = vunpack.c.h.b16 %v4388
        %v4486 = vunpack.c.l.b16 %v4389
        %v4487 = vunpack.c.h.b16 %v4389
        %v4488 = vunpack.c.l.b16 %v4390
        %v4489 = vunpack.c.h.b16 %v4390
        %v4490 = vunpack.c.l.b16 %v4391
        %v4491 = vunpack.c.h.b16 %v4391
        %v4492 = vunpack.c.l.b16 %v4392
        %v4493 = vunpack.c.h.b16 %v4392
        %v4494 = vunpack.c.l.b16 %v4393
        %v4495 = vunpack.c.h.b16 %v4393
        %v4496 = vunpack.c.l.b16 %v4394
        %v4497 = vunpack.c.h.b16 %v4394
        %v4498 = vunpack.c.l.b16 %v4395
        %v4499 = vunpack.c.h.b16 %v4395
        %v4500 = vunpack.c.l.b16 %v4396
        %v4501 = vunpack.c.h.b16 %v4396
        %v4502 = vunpack.c.l.b16 %v4397
        %v4503 = vunpack.c.h.b16 %v4397
        %v4504 = vunpack.c.l.b16 %v4398
        %v4505 = vunpack.c.h.b16 %v4398
        %v4506 = vunpack.c.l.b16 %v4399
        %v4507 = vunpack.c.h.b16 %v4399
        %v4508 = vunpack.c.l.b16 %v4400
        %v4509 = vunpack.c.h.b16 %v4400
        %v4510 = vunpack.c.l.b16 %v4401
        %v4511 = vunpack.c.h.b16 %v4401
        %v4512 = vunpack.c.l.b16 %v4402
        %v4513 = vunpack.c.h.b16 %v4402
        %v4514 = vunpack.c.l.b16 %v4403
        %v4515 = vunpack.c.h.b16 %v4403
        %v4516 = vunpack.c.l.b16 %v4404
        %v4517 = vunpack.c.h.b16 %v4404
        %v4518 = vunpack.c.l.b16 %v4405
        %v4519 = vunpack.c.h.b16 %v4405
        %v4520 = vunpack.c.l.b16 %v4406
        %v4521 = vunpack.c.h.b16 %v4406
        %v4522 = vunpack.c.l.b16 %v4407
        %v4523 = vunpack.c.h.b16 %v4407
        %v4524 = vunpack.c.l.b16 %v4408
        %v4525 = vunpack.c.h.b16 %v4408
        %v4526 = vunpack.c.l.b16 %v4409
        %v4527 = vunpack.c.h.b16 %v4409
        %v4528 = vunpack.c.l.b16 %v4410
        %v4529 = vunpack.c.h.b16 %v4410
        %v4530 = vunpack.c.l.b16 %v4411
        %v4531 = vunpack.c.h.b16 %v4411
        %v4532 = vunpack.c.l.b16 %v4412
        %v4533 = vunpack.c.h.b16 %v4412
        %v4534 = vunpack.c.l.b16 %v4413
        %v4535 = vunpack.c.h.b16 %v4413
        %v4536 = vpack.c.b16 %v4474, %v4472
        %v4537 = vpack.c.b16 %v4475, %v4473
        %v4538 = vpack.c.b16 %v4478, %v4476
        %v4539 = vpack.c.b16 %v4479, %v4477
        %v4540 = vpack.c.b16 %v4482, %v4480
        %v4541 = vpack.c.b16 %v4483, %v4481
        %v4542 = vpack.c.b16 %v4486, %v4484
        %v4543 = vpack.c.b16 %v4487, %v4485
        %v4544 = vpack.c.b16 %v4490, %v4488
        %v4545 = vpack.c.b16 %v4491, %v4489
        %v4546 = vpack.c.b16 %v4494, %v4492
        %v4547 = vpack.c.b16 %v4495, %v4493
        %v4548 = vpack.c.b16 %v4498, %v4496
        %v4549 = vpack.c.b16 %v4499, %v4497
        %v4550 = vpack.c.b16 %v4502, %v4500
        %v4551 = vpack.c.b16 %v4503, %v4501
        %v4552 = vpack.c.b16 %v4506, %v4504
        %v4553 = vpack.c.b16 %v4507, %v4505
        %v4554 = vpack.c.b16 %v4510, %v4508
        %v4555 = vpack.c.b16 %v4511, %v4509
        %v4556 = vpack.c.b16 %v4514, %v4512
        %v4557 = vpack.c.b16 %v4515, %v4513
        %v4558 = vpack.c.b16 %v4518, %v4516
        %v4559 = vpack.c.b16 %v4519, %v4517
        %v4560 = vpack.c.b16 %v4522, %v4520
        %v4561 = vpack.c.b16 %v4523, %v4521
        %v4562 = vpack.c.b16 %v4526, %v4524
        %v4563 = vpack.c.b16 %v4527, %v4525
        %v4564 = vpack.c.b16 %v4530, %v4528
        %v4565 = vpack.c.b16 %v4531, %v4529
        %v4566 = vpack.c.b16 %v4534, %v4532
        %v4567 = vpack.c.b16 %v4535, %v4533
        %4600 = vmatprep.subr.bf16.mxu0 %v4551
        %4601 = vmatpush1.bf16.msra.mxu0 %v4550
        %4602 = vmatprep.subr.bf16.mxu0 %v4549
        %4603 = vmatpush1.bf16.msra.mxu0 %v4548
        %4604 = vmatprep.subr.bf16.mxu0 %v4547
        %4605 = vmatpush1.bf16.msra.mxu0 %v4546
        %4606 = vmatprep.subr.bf16.mxu0 %v4545
        %4607 = vmatpush1.bf16.msra.mxu0 %v4544
        %4608 = vmatprep.subr.bf16.mxu0 %v4543
        %4609 = vmatpush1.bf16.msra.mxu0 %v4542
        %4610 = vmatprep.subr.bf16.mxu0 %v4541
        %4611 = vmatpush1.bf16.msra.mxu0 %v4540
        %4612 = vmatprep.subr.bf16.mxu0 %v4539
        %4613 = vmatpush1.bf16.msra.mxu0 %v4538
        %4614 = vmatprep.subr.bf16.mxu0 %v4537
        %4615 = vmatpush1.bf16.msra.mxu0 %v4536
        %4616 = vmatprep.subr.bf16.mxu0 %v4567
        %4617 = vmatpush2.bf16.msra.mxu0 %v4566
        %4618 = vmatprep.subr.bf16.mxu0 %v4565
        %4619 = vmatpush2.bf16.msra.mxu0 %v4564
        %4620 = vmatprep.subr.bf16.mxu0 %v4563
        %4621 = vmatpush2.bf16.msra.mxu0 %v4562
        %4622 = vmatprep.subr.bf16.mxu0 %v4561
        %4623 = vmatpush2.bf16.msra.mxu0 %v4560
        %4624 = vmatprep.subr.bf16.mxu0 %v4559
        %4625 = vmatpush2.bf16.msra.mxu0 %v4558
        %4626 = vmatprep.subr.bf16.mxu0 %v4557
        %4627 = vmatpush2.bf16.msra.mxu0 %v4556
        %4628 = vmatprep.subr.bf16.mxu0 %v4555
        %4629 = vmatpush2.bf16.msra.mxu0 %v4554
        %4630 = vmatprep.subr.bf16.mxu0 %v4553
        %4631 = vmatpush2.bf16.msra.mxu0 %v4552
        %4632 = vmatprep.mubr.bf16.mxu0 %v4437
        %4633 = vmatmul.mubr.bf16.gmra.mxu0 %v4425
        %v4634 = vpop.f32.mrf.mxu0
        %v4635 = vadd.f32 0.0, %v4634
        %v4636 = vpop.f32.mrf.mxu0
        %v4637 = vadd.f32 0.0, %v4636
        %v4638 = vpop.f32.mrf.mxu0
        %v4639 = vadd.f32 0.0, %v4638
        %v4640 = vpop.f32.mrf.mxu0
        %v4641 = vadd.f32 0.0, %v4640
        %4642 = vdwg.mxu0
        %v4643 = vadd.f32 %v4367, %v4635
        %v4644 = vadd.f32 %v4368, %v4637
        %v4645 = vadd.f32 %v4369, %v4639
        %v4646 = vadd.f32 %v4370, %v4641
        %v4647 = vld [vmem:[#allocation6] sm:$0xfc]
        %v4648 = vld [vmem:[#allocation6 + $0x8] sm:$0xfc]
        %v4649 = vld [vmem:[#allocation6 + $0x20] sm:$0x3]
        %v4650 = vld [vmem:[#allocation6 + $0x28] sm:$0x3]
        %v4651 = vpack.c.bf16 %v4373, %v4647
        %v4652 = vpack.c.bf16 %v4374, %v4648
        %v4653 = vpack.c.bf16 %v4649, %v4649
        %v4654 = vpack.c.bf16 %v4650, %v4650
        %s4655 = scalar_lea.vmem [#allocation30], 512
        %v4656 = vld [vmem:[%s4655] sm:$0xff]
        %v4657 = vld [vmem:[%s4655 + $0x8] sm:$0xff]
        %v4658 = vld [vmem:[%s4655 + $0x10] sm:$0xff]
        %v4659 = vld [vmem:[%s4655 + $0x18] sm:$0xff]
        %v4660 = vld [vmem:[%s4655 + $0x20] sm:$0xff]
        %v4661 = vld [vmem:[%s4655 + $0x28] sm:$0xff]
        %v4662 = vld [vmem:[%s4655 + $0x30] sm:$0xff]
        %v4663 = vld [vmem:[%s4655 + $0x38] sm:$0xff]
        %v4664 = vld [vmem:[%s4655 + $0x40] sm:$0xff]
        %v4665 = vld [vmem:[%s4655 + $0x48] sm:$0xff]
        %v4666 = vld [vmem:[%s4655 + $0x50] sm:$0xff]
        %v4667 = vld [vmem:[%s4655 + $0x58] sm:$0xff]
        %v4668 = vld [vmem:[%s4655 + $0x60] sm:$0xff]
        %v4669 = vld [vmem:[%s4655 + $0x68] sm:$0xff]
        %v4670 = vld [vmem:[%s4655 + $0x70] sm:$0xff]
        %v4671 = vld [vmem:[%s4655 + $0x78] sm:$0xff]
        %v4672 = vld [vmem:[%s4655 + $0x80] sm:$0xff]
        %v4673 = vld [vmem:[%s4655 + $0x88] sm:$0xff]
        %v4674 = vld [vmem:[%s4655 + $0x90] sm:$0xff]
        %v4675 = vld [vmem:[%s4655 + $0x98] sm:$0xff]
        %v4676 = vld [vmem:[%s4655 + $0xa0] sm:$0xff]
        %v4677 = vld [vmem:[%s4655 + $0xa8] sm:$0xff]
        %v4678 = vld [vmem:[%s4655 + $0xb0] sm:$0xff]
        %v4679 = vld [vmem:[%s4655 + $0xb8] sm:$0xff]
        %v4680 = vld [vmem:[%s4655 + $0xc0] sm:$0xff]
        %v4681 = vld [vmem:[%s4655 + $0xc8] sm:$0xff]
        %v4682 = vld [vmem:[%s4655 + $0xd0] sm:$0xff]
        %v4683 = vld [vmem:[%s4655 + $0xd8] sm:$0xff]
        %v4684 = vld [vmem:[%s4655 + $0xe0] sm:$0xff]
        %v4685 = vld [vmem:[%s4655 + $0xe8] sm:$0xff]
        %v4686 = vld [vmem:[%s4655 + $0xf0] sm:$0xff]
        %v4687 = vld [vmem:[%s4655 + $0xf8] sm:$0xff]
        %v4692 = vrot.slane %v4651, 1
        %v4693 = vrot.slane %v4653, 1
        %v4694 = vsel %vm3910, %v4692, %v4693
        %v4695 = vrot.slane %v4652, 1
        %v4696 = vrot.slane %v4654, 1
        %v4697 = vsel %vm3910, %v4695, %v4696
        %v4732 = vunpack.c.l.b16 %v4656
        %v4733 = vunpack.c.h.b16 %v4656
        %v4734 = vunpack.c.l.b16 %v4657
        %v4735 = vunpack.c.h.b16 %v4657
        %v4736 = vunpack.c.l.b16 %v4658
        %v4737 = vunpack.c.h.b16 %v4658
        %v4738 = vunpack.c.l.b16 %v4659
        %v4739 = vunpack.c.h.b16 %v4659
        %v4740 = vunpack.c.l.b16 %v4660
        %v4741 = vunpack.c.h.b16 %v4660
        %v4742 = vunpack.c.l.b16 %v4661
        %v4743 = vunpack.c.h.b16 %v4661
        %v4744 = vunpack.c.l.b16 %v4662
        %v4745 = vunpack.c.h.b16 %v4662
        %v4746 = vunpack.c.l.b16 %v4663
        %v4747 = vunpack.c.h.b16 %v4663
        %v4748 = vunpack.c.l.b16 %v4664
        %v4749 = vunpack.c.h.b16 %v4664
        %v4750 = vunpack.c.l.b16 %v4665
        %v4751 = vunpack.c.h.b16 %v4665
        %v4752 = vunpack.c.l.b16 %v4666
        %v4753 = vunpack.c.h.b16 %v4666
        %v4754 = vunpack.c.l.b16 %v4667
        %v4755 = vunpack.c.h.b16 %v4667
        %v4756 = vunpack.c.l.b16 %v4668
        %v4757 = vunpack.c.h.b16 %v4668
        %v4758 = vunpack.c.l.b16 %v4669
        %v4759 = vunpack.c.h.b16 %v4669
        %v4760 = vunpack.c.l.b16 %v4670
        %v4761 = vunpack.c.h.b16 %v4670
        %v4762 = vunpack.c.l.b16 %v4671
        %v4763 = vunpack.c.h.b16 %v4671
        %v4764 = vunpack.c.l.b16 %v4672
        %v4765 = vunpack.c.h.b16 %v4672
        %v4766 = vunpack.c.l.b16 %v4673
        %v4767 = vunpack.c.h.b16 %v4673
        %v4768 = vunpack.c.l.b16 %v4674
        %v4769 = vunpack.c.h.b16 %v4674
        %v4770 = vunpack.c.l.b16 %v4675
        %v4771 = vunpack.c.h.b16 %v4675
        %v4772 = vunpack.c.l.b16 %v4676
        %v4773 = vunpack.c.h.b16 %v4676
        %v4774 = vunpack.c.l.b16 %v4677
        %v4775 = vunpack.c.h.b16 %v4677
        %v4776 = vunpack.c.l.b16 %v4678
        %v4777 = vunpack.c.h.b16 %v4678
        %v4778 = vunpack.c.l.b16 %v4679
        %v4779 = vunpack.c.h.b16 %v4679
        %v4780 = vunpack.c.l.b16 %v4680
        %v4781 = vunpack.c.h.b16 %v4680
        %v4782 = vunpack.c.l.b16 %v4681
        %v4783 = vunpack.c.h.b16 %v4681
        %v4784 = vunpack.c.l.b16 %v4682
        %v4785 = vunpack.c.h.b16 %v4682
        %v4786 = vunpack.c.l.b16 %v4683
        %v4787 = vunpack.c.h.b16 %v4683
        %v4788 = vunpack.c.l.b16 %v4684
        %v4789 = vunpack.c.h.b16 %v4684
        %v4790 = vunpack.c.l.b16 %v4685
        %v4791 = vunpack.c.h.b16 %v4685
        %v4792 = vunpack.c.l.b16 %v4686
        %v4793 = vunpack.c.h.b16 %v4686
        %v4794 = vunpack.c.l.b16 %v4687
        %v4795 = vunpack.c.h.b16 %v4687
        %v4796 = vpack.c.b16 %v4734, %v4732
        %v4797 = vpack.c.b16 %v4735, %v4733
        %v4798 = vpack.c.b16 %v4738, %v4736
        %v4799 = vpack.c.b16 %v4739, %v4737
        %v4800 = vpack.c.b16 %v4742, %v4740
        %v4801 = vpack.c.b16 %v4743, %v4741
        %v4802 = vpack.c.b16 %v4746, %v4744
        %v4803 = vpack.c.b16 %v4747, %v4745
        %v4804 = vpack.c.b16 %v4750, %v4748
        %v4805 = vpack.c.b16 %v4751, %v4749
        %v4806 = vpack.c.b16 %v4754, %v4752
        %v4807 = vpack.c.b16 %v4755, %v4753
        %v4808 = vpack.c.b16 %v4758, %v4756
        %v4809 = vpack.c.b16 %v4759, %v4757
        %v4810 = vpack.c.b16 %v4762, %v4760
        %v4811 = vpack.c.b16 %v4763, %v4761
        %v4812 = vpack.c.b16 %v4766, %v4764
        %v4813 = vpack.c.b16 %v4767, %v4765
        %v4814 = vpack.c.b16 %v4770, %v4768
        %v4815 = vpack.c.b16 %v4771, %v4769
        %v4816 = vpack.c.b16 %v4774, %v4772
        %v4817 = vpack.c.b16 %v4775, %v4773
        %v4818 = vpack.c.b16 %v4778, %v4776
        %v4819 = vpack.c.b16 %v4779, %v4777
        %v4820 = vpack.c.b16 %v4782, %v4780
        %v4821 = vpack.c.b16 %v4783, %v4781
        %v4822 = vpack.c.b16 %v4786, %v4784
        %v4823 = vpack.c.b16 %v4787, %v4785
        %v4824 = vpack.c.b16 %v4790, %v4788
        %v4825 = vpack.c.b16 %v4791, %v4789
        %v4826 = vpack.c.b16 %v4794, %v4792
        %v4827 = vpack.c.b16 %v4795, %v4793
        %4860 = vmatprep.subr.bf16.mxu0 %v4811
        %4861 = vmatpush1.bf16.msra.mxu0 %v4810
        %4862 = vmatprep.subr.bf16.mxu0 %v4809
        %4863 = vmatpush1.bf16.msra.mxu0 %v4808
        %4864 = vmatprep.subr.bf16.mxu0 %v4807
        %4865 = vmatpush1.bf16.msra.mxu0 %v4806
        %4866 = vmatprep.subr.bf16.mxu0 %v4805
        %4867 = vmatpush1.bf16.msra.mxu0 %v4804
        %4868 = vmatprep.subr.bf16.mxu0 %v4803
        %4869 = vmatpush1.bf16.msra.mxu0 %v4802
        %4870 = vmatprep.subr.bf16.mxu0 %v4801
        %4871 = vmatpush1.bf16.msra.mxu0 %v4800
        %4872 = vmatprep.subr.bf16.mxu0 %v4799
        %4873 = vmatpush1.bf16.msra.mxu0 %v4798
        %4874 = vmatprep.subr.bf16.mxu0 %v4797
        %4875 = vmatpush1.bf16.msra.mxu0 %v4796
        %4876 = vmatprep.subr.bf16.mxu0 %v4827
        %4877 = vmatpush2.bf16.msra.mxu0 %v4826
        %4878 = vmatprep.subr.bf16.mxu0 %v4825
        %4879 = vmatpush2.bf16.msra.mxu0 %v4824
        %4880 = vmatprep.subr.bf16.mxu0 %v4823
        %4881 = vmatpush2.bf16.msra.mxu0 %v4822
        %4882 = vmatprep.subr.bf16.mxu0 %v4821
        %4883 = vmatpush2.bf16.msra.mxu0 %v4820
        %4884 = vmatprep.subr.bf16.mxu0 %v4819
        %4885 = vmatpush2.bf16.msra.mxu0 %v4818
        %4886 = vmatprep.subr.bf16.mxu0 %v4817
        %4887 = vmatpush2.bf16.msra.mxu0 %v4816
        %4888 = vmatprep.subr.bf16.mxu0 %v4815
        %4889 = vmatpush2.bf16.msra.mxu0 %v4814
        %4890 = vmatprep.subr.bf16.mxu0 %v4813
        %4891 = vmatpush2.bf16.msra.mxu0 %v4812
        %4892 = vmatprep.mubr.bf16.mxu0 %v4697
        %4893 = vmatmul.mubr.bf16.gmra.mxu0 %v4694
        %v4894 = vpop.f32.mrf.mxu0
        %v4895 = vadd.f32 0.0, %v4894
        %v4896 = vpop.f32.mrf.mxu0
        %v4897 = vadd.f32 0.0, %v4896
        %v4898 = vpop.f32.mrf.mxu0
        %v4899 = vadd.f32 0.0, %v4898
        %v4900 = vpop.f32.mrf.mxu0
        %v4901 = vadd.f32 0.0, %v4900
        %4902 = vdwg.mxu0
        %v4903 = vadd.f32 %v4643, %v4895
        %v4904 = vadd.f32 %v4644, %v4897
        %v4905 = vadd.f32 %v4645, %v4899
        %v4906 = vadd.f32 %v4646, %v4901
        %v4907 = vld [vmem:[#allocation32] sm:$0x3]
        %v4909 = vlaneseq
        %v4910 = vshrl.u32 %v4909, 7
        %v4911 = vsub.s32 0, %v4910
        %v4912 = vrot.slane %v4907, %v4911
        %v4913 = vlaneseq
        %v4914 = vshrl.u32 %v4913, 7
        %v4915 = vsub.s32 1, %v4914
        %v4916 = vrot.slane %v4907, %v4915
        %v4919 = vadd.f32 %v4903, %v4912
        %v4920 = vadd.f32 %v4904, %v4916
        %v4921 = vadd.f32 %v4905, %v4912
        %v4922 = vadd.f32 %v4906, %v4916
        %v4923 = vmax.f32 %v4919, 0.0
        %v4924 = vmax.f32 %v4920, 0.0
        %v4925 = vmax.f32 %v4921, 0.0
        %v4926 = vmax.f32 %v4922, 0.0
        %s4927 = scalar_lea.vmem [#allocation32], 2
        %v4928 = vld [vmem:[%s4927] sm:$0x3]
        %v4930 = vlaneseq
        %v4931 = vshrl.u32 %v4930, 7
        %v4932 = vsub.s32 0, %v4931
        %v4933 = vrot.slane %v4928, %v4932
        %v4934 = vlaneseq
        %v4935 = vshrl.u32 %v4934, 7
        %v4936 = vsub.s32 1, %v4935
        %v4937 = vrot.slane %v4928, %v4936
        %v4940 = vmul.f32 %v4923, %v4933
        %v4941 = vmul.f32 %v4924, %v4937
        %v4942 = vmul.f32 %v4925, %v4933
        %v4943 = vmul.f32 %v4926, %v4937
        %s4944 = scalar_lea.vmem [#allocation32], 4
        %v4945 = vld [vmem:[%s4944] sm:$0x3]
        %v4947 = vlaneseq
        %v4948 = vshrl.u32 %v4947, 7
        %v4949 = vsub.s32 0, %v4948
        %v4950 = vrot.slane %v4945, %v4949
        %v4951 = vlaneseq
        %v4952 = vshrl.u32 %v4951, 7
        %v4953 = vsub.s32 1, %v4952
        %v4954 = vrot.slane %v4945, %v4953
        %v4957 = vadd.f32 %v4940, %v4950
        %v4958 = vadd.f32 %v4941, %v4954
        %v4959 = vadd.f32 %v4942, %v4950
        %v4960 = vadd.f32 %v4943, %v4954
        %v4961 = vpack.c.bf16 %v4959, %v4957
        %v4962 = vpack.c.bf16 %v4960, %v4958
        %v4963 = vld [vmem:[#allocation33] sm:$0xf]
        %v4964 = vld [vmem:[#allocation33 + $0x4] sm:$0xf]
        %v4965 = vld [vmem:[#allocation33 + $0x8] sm:$0xf]
        %v4966 = vld [vmem:[#allocation33 + $0xc] sm:$0xf]
        %v4967 = vld [vmem:[#allocation33 + $0x10] sm:$0xf]
        %v4968 = vld [vmem:[#allocation33 + $0x14] sm:$0xf]
        %v4969 = vld [vmem:[#allocation33 + $0x18] sm:$0xf]
        %v4970 = vld [vmem:[#allocation33 + $0x1c] sm:$0xf]
        %v4971 = vld [vmem:[#allocation33 + $0x20] sm:$0xf]
        %v4972 = vld [vmem:[#allocation33 + $0x24] sm:$0xf]
        %v4973 = vld [vmem:[#allocation33 + $0x28] sm:$0xf]
        %v4974 = vld [vmem:[#allocation33 + $0x2c] sm:$0xf]
        %v4975 = vld [vmem:[#allocation33 + $0x30] sm:$0xf]
        %v4976 = vld [vmem:[#allocation33 + $0x34] sm:$0xf]
        %v4977 = vld [vmem:[#allocation33 + $0x38] sm:$0xf]
        %v4978 = vld [vmem:[#allocation33 + $0x3c] sm:$0xf]
        %v4979 = vld [vmem:[#allocation33 + $0x40] sm:$0xf]
        %v4980 = vld [vmem:[#allocation33 + $0x44] sm:$0xf]
        %v4981 = vld [vmem:[#allocation33 + $0x48] sm:$0xf]
        %v4982 = vld [vmem:[#allocation33 + $0x4c] sm:$0xf]
        %v4983 = vld [vmem:[#allocation33 + $0x50] sm:$0xf]
        %v4984 = vld [vmem:[#allocation33 + $0x54] sm:$0xf]
        %v4985 = vld [vmem:[#allocation33 + $0x58] sm:$0xf]
        %v4986 = vld [vmem:[#allocation33 + $0x5c] sm:$0xf]
        %v4987 = vld [vmem:[#allocation33 + $0x60] sm:$0xf]
        %v4988 = vld [vmem:[#allocation33 + $0x64] sm:$0xf]
        %v4989 = vld [vmem:[#allocation33 + $0x68] sm:$0xf]
        %v4990 = vld [vmem:[#allocation33 + $0x6c] sm:$0xf]
        %v4991 = vld [vmem:[#allocation33 + $0x70] sm:$0xf]
        %v4992 = vld [vmem:[#allocation33 + $0x74] sm:$0xf]
        %v4993 = vld [vmem:[#allocation33 + $0x78] sm:$0xf]
        %v4994 = vld [vmem:[#allocation33 + $0x7c] sm:$0xf]
        %v4995 = vld [vmem:[#allocation35] sm:$0x1]
        %v4997 = vlaneseq
        %v4998 = vshrl.u32 %v4997, 7
        %v4999 = vsub.s32 0, %v4998
        %v5000 = vrot.slane %v4995, %v4999
        %v5034 = vunpack.c.l.b16 %v4963
        %v5035 = vunpack.c.l.b16 %v4964
        %v5036 = vunpack.c.l.b16 %v4965
        %v5037 = vunpack.c.l.b16 %v4966
        %v5038 = vunpack.c.l.b16 %v4967
        %v5039 = vunpack.c.l.b16 %v4968
        %v5040 = vunpack.c.l.b16 %v4969
        %v5041 = vunpack.c.l.b16 %v4970
        %v5042 = vunpack.c.l.b16 %v4971
        %v5043 = vunpack.c.l.b16 %v4972
        %v5044 = vunpack.c.l.b16 %v4973
        %v5045 = vunpack.c.l.b16 %v4974
        %v5046 = vunpack.c.l.b16 %v4975
        %v5047 = vunpack.c.l.b16 %v4976
        %v5048 = vunpack.c.l.b16 %v4977
        %v5049 = vunpack.c.l.b16 %v4978
        %v5050 = vunpack.c.l.b16 %v4979
        %v5051 = vunpack.c.l.b16 %v4980
        %v5052 = vunpack.c.l.b16 %v4981
        %v5053 = vunpack.c.l.b16 %v4982
        %v5054 = vunpack.c.l.b16 %v4983
        %v5055 = vunpack.c.l.b16 %v4984
        %v5056 = vunpack.c.l.b16 %v4985
        %v5057 = vunpack.c.l.b16 %v4986
        %v5058 = vunpack.c.l.b16 %v4987
        %v5059 = vunpack.c.l.b16 %v4988
        %v5060 = vunpack.c.l.b16 %v4989
        %v5061 = vunpack.c.l.b16 %v4990
        %v5062 = vunpack.c.l.b16 %v4991
        %v5063 = vunpack.c.l.b16 %v4992
        %v5064 = vunpack.c.l.b16 %v4993
        %v5065 = vunpack.c.l.b16 %v4994
        %v5066 = vpack.c.b16 %v5035, %v5034
        %v5067 = vpack.c.b16 %v5037, %v5036
        %v5068 = vpack.c.b16 %v5039, %v5038
        %v5069 = vpack.c.b16 %v5041, %v5040
        %v5070 = vpack.c.b16 %v5043, %v5042
        %v5071 = vpack.c.b16 %v5045, %v5044
        %v5072 = vpack.c.b16 %v5047, %v5046
        %v5073 = vpack.c.b16 %v5049, %v5048
        %v5074 = vpack.c.b16 %v5051, %v5050
        %v5075 = vpack.c.b16 %v5053, %v5052
        %v5076 = vpack.c.b16 %v5055, %v5054
        %v5077 = vpack.c.b16 %v5057, %v5056
        %v5078 = vpack.c.b16 %v5059, %v5058
        %v5079 = vpack.c.b16 %v5061, %v5060
        %v5080 = vpack.c.b16 %v5063, %v5062
        %v5081 = vpack.c.b16 %v5065, %v5064
        %5098 = vmatprep.subr.bf16.mxu0 0
        %5099 = vmatpush1.bf16.msra.mxu0 %v5073
        %5100 = vmatprep.subr.bf16.mxu0 0
        %5101 = vmatpush1.bf16.msra.mxu0 %v5072
        %5102 = vmatprep.subr.bf16.mxu0 0
        %5103 = vmatpush1.bf16.msra.mxu0 %v5071
        %5104 = vmatprep.subr.bf16.mxu0 0
        %5105 = vmatpush1.bf16.msra.mxu0 %v5070
        %5106 = vmatprep.subr.bf16.mxu0 0
        %5107 = vmatpush1.bf16.msra.mxu0 %v5069
        %5108 = vmatprep.subr.bf16.mxu0 0
        %5109 = vmatpush1.bf16.msra.mxu0 %v5068
        %5110 = vmatprep.subr.bf16.mxu0 0
        %5111 = vmatpush1.bf16.msra.mxu0 %v5067
        %5112 = vmatprep.subr.bf16.mxu0 0
        %5113 = vmatpush1.bf16.msra.mxu0 %v5066
        %5114 = vmatprep.subr.bf16.mxu0 0
        %5115 = vmatpush2.bf16.msra.mxu0 %v5081
        %5116 = vmatprep.subr.bf16.mxu0 0
        %5117 = vmatpush2.bf16.msra.mxu0 %v5080
        %5118 = vmatprep.subr.bf16.mxu0 0
        %5119 = vmatpush2.bf16.msra.mxu0 %v5079
        %5120 = vmatprep.subr.bf16.mxu0 0
        %5121 = vmatpush2.bf16.msra.mxu0 %v5078
        %5122 = vmatprep.subr.bf16.mxu0 0
        %5123 = vmatpush2.bf16.msra.mxu0 %v5077
        %5124 = vmatprep.subr.bf16.mxu0 0
        %5125 = vmatpush2.bf16.msra.mxu0 %v5076
        %5126 = vmatprep.subr.bf16.mxu0 0
        %5127 = vmatpush2.bf16.msra.mxu0 %v5075
        %5128 = vmatprep.subr.bf16.mxu0 0
        %5129 = vmatpush2.bf16.msra.mxu0 %v5074
        %5130 = vmatprep.mubr.bf16.mxu0 %v4962
        %5131 = vmatmul.mubr.bf16.gmra.mxu0 %v4961
        %v5132 = vpop.f32.mrf.mxu0
        %v5133 = vadd.f32 %v5000, %v5132
        %v5134 = vpop.f32.mrf.mxu0
        %v5135 = vpop.f32.mrf.mxu0
        %v5136 = vadd.f32 %v5000, %v5135
        %v5137 = vpop.f32.mrf.mxu0
        %5138 = vdwg.mxu0
        %v5139 = vld [vmem:[%s20] sm:$0xf]
        %v5140 = vld [vmem:[%s20 + $0x4] sm:$0xf]
        %v5141 = vld [vmem:[%s20 + $0x8] sm:$0xf]
        %v5142 = vld [vmem:[%s20 + $0xc] sm:$0xf]
        %v5143 = vpack.c.bf16 %v5136, %v5133
        %v5148 = vunpack.c.l.b16 %v5139
        %v5149 = vunpack.c.l.b16 %v5140
        %v5150 = vunpack.c.l.b16 %v5141
        %v5151 = vunpack.c.l.b16 %v5142
        %v5152 = vpack.c.b16 %v5149, %v5148
        %v5153 = vpack.c.b16 %v5151, %v5150
        %v5155 = vsel %vm2274, %v5152, 0
        %v5158 = vsel %vm2274, %v5153, 0
        %5160 = vmatprep.subr.bf16.mxu0 0
        %5161 = vmatpush1.bf16.msra.mxu0 0
        %5162 = vmatprep.subr.bf16.mxu0 0
        %5163 = vmatpush1.bf16.msra.mxu0 0
        %5164 = vmatprep.subr.bf16.mxu0 0
        %5165 = vmatpush1.bf16.msra.mxu0 0
        %5166 = vmatprep.subr.bf16.mxu0 0
        %5167 = vmatpush1.bf16.msra.mxu0 0
        %5168 = vmatprep.subr.bf16.mxu0 0
        %5169 = vmatpush1.bf16.msra.mxu0 0
        %5170 = vmatprep.subr.bf16.mxu0 0
        %5171 = vmatpush1.bf16.msra.mxu0 0
        %5172 = vmatprep.subr.bf16.mxu0 0
        %5173 = vmatpush1.bf16.msra.mxu0 0
        %5174 = vmatprep.subr.bf16.mxu0 0
        %5175 = vmatpush1.bf16.msra.mxu0 %v5143
        %5176 = vmatprep.subr.bf16.mxu0 0
        %5177 = vmatpush2.bf16.msra.mxu0 0
        %5178 = vmatprep.subr.bf16.mxu0 0
        %5179 = vmatpush2.bf16.msra.mxu0 0
        %5180 = vmatprep.subr.bf16.mxu0 0
        %5181 = vmatpush2.bf16.msra.mxu0 0
        %5182 = vmatprep.subr.bf16.mxu0 0
        %5183 = vmatpush2.bf16.msra.mxu0 0
        %5184 = vmatprep.subr.bf16.mxu0 0
        %5185 = vmatpush2.bf16.msra.mxu0 0
        %5186 = vmatprep.subr.bf16.mxu0 0
        %5187 = vmatpush2.bf16.msra.mxu0 0
        %5188 = vmatprep.subr.bf16.mxu0 0
        %5189 = vmatpush2.bf16.msra.mxu0 0
        %5190 = vmatprep.subr.bf16.mxu0 0
        %5191 = vmatpush2.bf16.msra.mxu0 0
        %5192 = vmatprep.mubr.bf16.mxu0 0
        %5193 = vmatmul.mubr.bf16.gmra.mxu0 %v5155
        %v5194 = vpop.f32.mrf.mxu0
        %v5195 = vadd.f32 0.0, %v5194
        %v5196 = vpop.f32.mrf.mxu0
        %v5197 = vpop.f32.mrf.mxu0
        %v5198 = vadd.f32 0.0, %v5197
        %v5199 = vpop.f32.mrf.mxu0
        %5200 = vmatprep.mubr.bf16.mxu0 0
        %5201 = vmatmul.mubr.bf16.gmra.mxu0 %v5158
        %v5202 = vpop.f32.mrf.mxu0
        %v5203 = vadd.f32 0.0, %v5202
        %v5204 = vpop.f32.mrf.mxu0
        %v5205 = vpop.f32.mrf.mxu0
        %v5206 = vadd.f32 0.0, %v5205
        %v5207 = vpop.f32.mrf.mxu0
        %5208 = vdwg.mxu0
        %v5209 = vpack.c.bf16 %v5198, %v5195
        %v5210 = vpack.c.bf16 %v5206, %v5203
        %v5211 = vld [vmem:[#allocation36] sm:$0xff]
        %v5212 = vld [vmem:[#allocation36 + $0x8] sm:$0xff]
        %v5213 = vld [vmem:[#allocation36 + $0x10] sm:$0xff]
        %v5214 = vld [vmem:[#allocation36 + $0x18] sm:$0xff]
        %v5215 = vld [vmem:[#allocation36 + $0x20] sm:$0xff]
        %v5216 = vld [vmem:[#allocation36 + $0x28] sm:$0xff]
        %v5217 = vld [vmem:[#allocation36 + $0x30] sm:$0xff]
        %v5218 = vld [vmem:[#allocation36 + $0x38] sm:$0xff]
        %v5219 = vld [vmem:[#allocation36 + $0x40] sm:$0xff]
        %v5220 = vld [vmem:[#allocation36 + $0x48] sm:$0xff]
        %v5221 = vld [vmem:[#allocation36 + $0x50] sm:$0xff]
        %v5222 = vld [vmem:[#allocation36 + $0x58] sm:$0xff]
        %v5223 = vld [vmem:[#allocation36 + $0x60] sm:$0xff]
        %v5224 = vld [vmem:[#allocation36 + $0x68] sm:$0xff]
        %v5225 = vld [vmem:[#allocation36 + $0x70] sm:$0xff]
        %v5226 = vld [vmem:[#allocation36 + $0x78] sm:$0xff]
        %v5243 = vunpack.c.l.b16 %v5211
        %v5244 = vunpack.c.h.b16 %v5211
        %v5245 = vunpack.c.l.b16 %v5212
        %v5246 = vunpack.c.h.b16 %v5212
        %v5247 = vunpack.c.l.b16 %v5213
        %v5248 = vunpack.c.h.b16 %v5213
        %v5249 = vunpack.c.l.b16 %v5214
        %v5250 = vunpack.c.h.b16 %v5214
        %v5251 = vunpack.c.l.b16 %v5215
        %v5252 = vunpack.c.h.b16 %v5215
        %v5253 = vunpack.c.l.b16 %v5216
        %v5254 = vunpack.c.h.b16 %v5216
        %v5255 = vunpack.c.l.b16 %v5217
        %v5256 = vunpack.c.h.b16 %v5217
        %v5257 = vunpack.c.l.b16 %v5218
        %v5258 = vunpack.c.h.b16 %v5218
        %v5259 = vunpack.c.l.b16 %v5219
        %v5260 = vunpack.c.h.b16 %v5219
        %v5261 = vunpack.c.l.b16 %v5220
        %v5262 = vunpack.c.h.b16 %v5220
        %v5263 = vunpack.c.l.b16 %v5221
        %v5264 = vunpack.c.h.b16 %v5221
        %v5265 = vunpack.c.l.b16 %v5222
        %v5266 = vunpack.c.h.b16 %v5222
        %v5267 = vunpack.c.l.b16 %v5223
        %v5268 = vunpack.c.h.b16 %v5223
        %v5269 = vunpack.c.l.b16 %v5224
        %v5270 = vunpack.c.h.b16 %v5224
        %v5271 = vunpack.c.l.b16 %v5225
        %v5272 = vunpack.c.h.b16 %v5225
        %v5273 = vunpack.c.l.b16 %v5226
        %v5274 = vunpack.c.h.b16 %v5226
        %v5275 = vpack.c.b16 %v5245, %v5243
        %v5276 = vpack.c.b16 %v5246, %v5244
        %v5277 = vpack.c.b16 %v5249, %v5247
        %v5278 = vpack.c.b16 %v5250, %v5248
        %v5279 = vpack.c.b16 %v5253, %v5251
        %v5280 = vpack.c.b16 %v5254, %v5252
        %v5281 = vpack.c.b16 %v5257, %v5255
        %v5282 = vpack.c.b16 %v5258, %v5256
        %v5283 = vpack.c.b16 %v5261, %v5259
        %v5284 = vpack.c.b16 %v5262, %v5260
        %v5285 = vpack.c.b16 %v5265, %v5263
        %v5286 = vpack.c.b16 %v5266, %v5264
        %v5287 = vpack.c.b16 %v5269, %v5267
        %v5288 = vpack.c.b16 %v5270, %v5268
        %v5289 = vpack.c.b16 %v5273, %v5271
        %v5290 = vpack.c.b16 %v5274, %v5272
        %5307 = vmatprep.subr.bf16.mxu0 %v5290
        %5308 = vmatpush1.bf16.msra.mxu0 %v5289
        %5309 = vmatprep.subr.bf16.mxu0 %v5288
        %5310 = vmatpush1.bf16.msra.mxu0 %v5287
        %5311 = vmatprep.subr.bf16.mxu0 %v5286
        %5312 = vmatpush1.bf16.msra.mxu0 %v5285
        %5313 = vmatprep.subr.bf16.mxu0 %v5284
        %5314 = vmatpush1.bf16.msra.mxu0 %v5283
        %5315 = vmatprep.subr.bf16.mxu0 %v5282
        %5316 = vmatpush1.bf16.msra.mxu0 %v5281
        %5317 = vmatprep.subr.bf16.mxu0 %v5280
        %5318 = vmatpush1.bf16.msra.mxu0 %v5279
        %5319 = vmatprep.subr.bf16.mxu0 %v5278
        %5320 = vmatpush1.bf16.msra.mxu0 %v5277
        %5321 = vmatprep.subr.bf16.mxu0 %v5276
        %5322 = vmatpush1.bf16.msra.mxu0 %v5275
        %5323 = vmatprep.subr.bf16.mxu0 0
        %5324 = vmatpush2.bf16.msra.mxu0 0
        %5325 = vmatprep.subr.bf16.mxu0 0
        %5326 = vmatpush2.bf16.msra.mxu0 0
        %5327 = vmatprep.subr.bf16.mxu0 0
        %5328 = vmatpush2.bf16.msra.mxu0 0
        %5329 = vmatprep.subr.bf16.mxu0 0
        %5330 = vmatpush2.bf16.msra.mxu0 0
        %5331 = vmatprep.subr.bf16.mxu0 0
        %5332 = vmatpush2.bf16.msra.mxu0 0
        %5333 = vmatprep.subr.bf16.mxu0 0
        %5334 = vmatpush2.bf16.msra.mxu0 0
        %5335 = vmatprep.subr.bf16.mxu0 0
        %5336 = vmatpush2.bf16.msra.mxu0 0
        %5337 = vmatprep.subr.bf16.mxu0 0
        %5338 = vmatpush2.bf16.msra.mxu0 0
        %5339 = vmatprep.mubr.bf16.mxu0 0
        %5340 = vmatmul.mubr.bf16.gmra.mxu0 %v5209
        %v5341 = vpop.f32.mrf.mxu0
        %v5342 = vadd.f32 0.0, %v5341
        %v5343 = vpop.f32.mrf.mxu0
        %v5344 = vadd.f32 0.0, %v5343
        %v5345 = vpop.f32.mrf.mxu0
        %v5346 = vadd.f32 0.0, %v5345
        %v5347 = vpop.f32.mrf.mxu0
        %v5348 = vadd.f32 0.0, %v5347
        %5349 = vmatprep.mubr.bf16.mxu0 0
        %5350 = vmatmul.mubr.bf16.gmra.mxu0 %v5210
        %v5351 = vpop.f32.mrf.mxu0
        %v5352 = vadd.f32 0.0, %v5351
        %v5353 = vpop.f32.mrf.mxu0
        %v5354 = vadd.f32 0.0, %v5353
        %v5355 = vpop.f32.mrf.mxu0
        %v5356 = vadd.f32 0.0, %v5355
        %v5357 = vpop.f32.mrf.mxu0
        %v5358 = vadd.f32 0.0, %v5357
        %5359 = vdwg.mxu0
        %v5368 = vrot.slane %v5342, 7
        %v5369 = vrot.slane %v5344, 7
        %v5370 = vrot.slane %v5346, 7
        %v5371 = vsel %vm1498, %v5368, %v5370
        %v5372 = vrot.slane %v5348, 7
        %v5373 = vsel %vm1498, %v5369, %v5372
        %v5374 = vrot.slane %v5352, 7
        %v5375 = vsel %vm1498, %v5370, %v5374
        %v5376 = vrot.slane %v5354, 7
        %v5377 = vsel %vm1498, %v5372, %v5376
        %v5378 = vrot.slane %v5356, 7
        %v5379 = vsel %vm1498, %v5374, %v5378
        %v5380 = vrot.slane %v5358, 7
        %v5381 = vsel %vm1498, %v5376, %v5380
        %5392 = vst [vmem:[#allocation8] sm:$0xfe] %v5368
        %5393 = vst [vmem:[#allocation8 + $0x8] sm:$0xfe] %v5369
        %5394 = vst [vmem:[#allocation8 + $0x10] sm:$0xff] %v5371
        %5395 = vst [vmem:[#allocation8 + $0x18] sm:$0xff] %v5373
        %5396 = vst [vmem:[#allocation8 + $0x20] sm:$0xff] %v5375
        %5397 = vst [vmem:[#allocation8 + $0x28] sm:$0xff] %v5377
        %5398 = vst [vmem:[#allocation8 + $0x30] sm:$0xff] %v5379
        %5399 = vst [vmem:[#allocation8 + $0x38] sm:$0xff] %v5381
        %5400 = vst [vmem:[#allocation8 + $0x40] sm:$0x1] %v5378
        %5401 = vst [vmem:[#allocation8 + $0x48] sm:$0x1] %v5380
        %v5402 = vld [vmem:[#allocation8] sm:$0xff]
        %v5403 = vld [vmem:[#allocation8 + $0x8] sm:$0xff]
        %v5404 = vld [vmem:[#allocation8 + $0x10] sm:$0xff]
        %v5405 = vld [vmem:[#allocation8 + $0x18] sm:$0xff]
        %v5406 = vld [vmem:[#allocation8 + $0x20] sm:$0xff]
        %v5407 = vld [vmem:[#allocation8 + $0x28] sm:$0xff]
        %v5408 = vld [vmem:[#allocation8 + $0x30] sm:$0xff]
        %v5409 = vld [vmem:[#allocation8 + $0x38] sm:$0xff]
        %v5410 = vpack.c.bf16 %v5404, %v5402
        %v5411 = vpack.c.bf16 %v5405, %v5403
        %v5412 = vpack.c.bf16 %v5408, %v5406
        %v5413 = vpack.c.bf16 %v5409, %v5407
        %v5414 = vld [vmem:[#allocation38] sm:$0xff]
        %v5415 = vld [vmem:[#allocation38 + $0x8] sm:$0xff]
        %v5416 = vld [vmem:[#allocation38 + $0x10] sm:$0xff]
        %v5417 = vld [vmem:[#allocation38 + $0x18] sm:$0xff]
        %v5418 = vld [vmem:[#allocation38 + $0x20] sm:$0xff]
        %v5419 = vld [vmem:[#allocation38 + $0x28] sm:$0xff]
        %v5420 = vld [vmem:[#allocation38 + $0x30] sm:$0xff]
        %v5421 = vld [vmem:[#allocation38 + $0x38] sm:$0xff]
        %v5422 = vld [vmem:[#allocation38 + $0x40] sm:$0xff]
        %v5423 = vld [vmem:[#allocation38 + $0x48] sm:$0xff]
        %v5424 = vld [vmem:[#allocation38 + $0x50] sm:$0xff]
        %v5425 = vld [vmem:[#allocation38 + $0x58] sm:$0xff]
        %v5426 = vld [vmem:[#allocation38 + $0x60] sm:$0xff]
        %v5427 = vld [vmem:[#allocation38 + $0x68] sm:$0xff]
        %v5428 = vld [vmem:[#allocation38 + $0x70] sm:$0xff]
        %v5429 = vld [vmem:[#allocation38 + $0x78] sm:$0xff]
        %v5430 = vld [vmem:[#allocation38 + $0x80] sm:$0xff]
        %v5431 = vld [vmem:[#allocation38 + $0x88] sm:$0xff]
        %v5432 = vld [vmem:[#allocation38 + $0x90] sm:$0xff]
        %v5433 = vld [vmem:[#allocation38 + $0x98] sm:$0xff]
        %v5434 = vld [vmem:[#allocation38 + $0xa0] sm:$0xff]
        %v5435 = vld [vmem:[#allocation38 + $0xa8] sm:$0xff]
        %v5436 = vld [vmem:[#allocation38 + $0xb0] sm:$0xff]
        %v5437 = vld [vmem:[#allocation38 + $0xb8] sm:$0xff]
        %v5438 = vld [vmem:[#allocation38 + $0xc0] sm:$0xff]
        %v5439 = vld [vmem:[#allocation38 + $0xc8] sm:$0xff]
        %v5440 = vld [vmem:[#allocation38 + $0xd0] sm:$0xff]
        %v5441 = vld [vmem:[#allocation38 + $0xd8] sm:$0xff]
        %v5442 = vld [vmem:[#allocation38 + $0xe0] sm:$0xff]
        %v5443 = vld [vmem:[#allocation38 + $0xe8] sm:$0xff]
        %v5444 = vld [vmem:[#allocation38 + $0xf0] sm:$0xff]
        %v5445 = vld [vmem:[#allocation38 + $0xf8] sm:$0xff]
        %v5446 = vld [vmem:[#allocation8] sm:$0xfe]
        %v5447 = vld [vmem:[#allocation8 + $0x8] sm:$0xfe]
        %v5448 = vld [vmem:[#allocation8 + $0x40] sm:$0x1]
        %v5449 = vld [vmem:[#allocation8 + $0x48] sm:$0x1]
        %v5450 = vpack.c.bf16 %v5404, %v5446
        %v5451 = vpack.c.bf16 %v5405, %v5447
        %v5452 = vpack.c.bf16 %v5448, %v5448
        %v5453 = vpack.c.bf16 %v5449, %v5449
        %s5454 = scalar_lea.vmem [#allocation38], 256
        %v5455 = vld [vmem:[%s5454] sm:$0xff]
        %v5456 = vld [vmem:[%s5454 + $0x8] sm:$0xff]
        %v5457 = vld [vmem:[%s5454 + $0x10] sm:$0xff]
        %v5458 = vld [vmem:[%s5454 + $0x18] sm:$0xff]
        %v5459 = vld [vmem:[%s5454 + $0x20] sm:$0xff]
        %v5460 = vld [vmem:[%s5454 + $0x28] sm:$0xff]
        %v5461 = vld [vmem:[%s5454 + $0x30] sm:$0xff]
        %v5462 = vld [vmem:[%s5454 + $0x38] sm:$0xff]
        %v5463 = vld [vmem:[%s5454 + $0x40] sm:$0xff]
        %v5464 = vld [vmem:[%s5454 + $0x48] sm:$0xff]
        %v5465 = vld [vmem:[%s5454 + $0x50] sm:$0xff]
        %v5466 = vld [vmem:[%s5454 + $0x58] sm:$0xff]
        %v5467 = vld [vmem:[%s5454 + $0x60] sm:$0xff]
        %v5468 = vld [vmem:[%s5454 + $0x68] sm:$0xff]
        %v5469 = vld [vmem:[%s5454 + $0x70] sm:$0xff]
        %v5470 = vld [vmem:[%s5454 + $0x78] sm:$0xff]
        %v5471 = vld [vmem:[%s5454 + $0x80] sm:$0xff]
        %v5472 = vld [vmem:[%s5454 + $0x88] sm:$0xff]
        %v5473 = vld [vmem:[%s5454 + $0x90] sm:$0xff]
        %v5474 = vld [vmem:[%s5454 + $0x98] sm:$0xff]
        %v5475 = vld [vmem:[%s5454 + $0xa0] sm:$0xff]
        %v5476 = vld [vmem:[%s5454 + $0xa8] sm:$0xff]
        %v5477 = vld [vmem:[%s5454 + $0xb0] sm:$0xff]
        %v5478 = vld [vmem:[%s5454 + $0xb8] sm:$0xff]
        %v5479 = vld [vmem:[%s5454 + $0xc0] sm:$0xff]
        %v5480 = vld [vmem:[%s5454 + $0xc8] sm:$0xff]
        %v5481 = vld [vmem:[%s5454 + $0xd0] sm:$0xff]
        %v5482 = vld [vmem:[%s5454 + $0xd8] sm:$0xff]
        %v5483 = vld [vmem:[%s5454 + $0xe0] sm:$0xff]
        %v5484 = vld [vmem:[%s5454 + $0xe8] sm:$0xff]
        %v5485 = vld [vmem:[%s5454 + $0xf0] sm:$0xff]
        %v5486 = vld [vmem:[%s5454 + $0xf8] sm:$0xff]
        %v5488 = vshrl.u32 %v5450, 16
        %v5490 = vshll.u32 %v5450, 16
        %v5492 = vrot.slane %v5490, 1
        %v5493 = vor.u32 %v5488, %v5492
        %v5495 = vshll.u32 %v5412, 16
        %v5497 = vrot.slane %v5495, 1
        %v5498 = vsel %vm3432, %v5493, %v5497
        %v5500 = vshrl.u32 %v5451, 16
        %v5502 = vshll.u32 %v5451, 16
        %v5504 = vrot.slane %v5502, 1
        %v5505 = vor.u32 %v5500, %v5504
        %v5507 = vshll.u32 %v5413, 16
        %v5509 = vrot.slane %v5507, 1
        %v5510 = vsel %vm3432, %v5505, %v5509
        %v5511 = vshrl.u32 %v5412, 16
        %v5513 = vor.u32 %v5511, %v5497
        %v5515 = vshll.u32 %v5452, 16
        %v5517 = vrot.slane %v5515, 1
        %v5518 = vsel %vm3432, %v5513, %v5517
        %v5519 = vshrl.u32 %v5413, 16
        %v5521 = vor.u32 %v5519, %v5509
        %v5523 = vshll.u32 %v5453, 16
        %v5525 = vrot.slane %v5523, 1
        %v5526 = vsel %vm3432, %v5521, %v5525
        %v5563 = vunpack.c.l.b16 %v5455
        %v5564 = vunpack.c.h.b16 %v5455
        %v5565 = vunpack.c.l.b16 %v5456
        %v5566 = vunpack.c.h.b16 %v5456
        %v5567 = vunpack.c.l.b16 %v5457
        %v5568 = vunpack.c.h.b16 %v5457
        %v5569 = vunpack.c.l.b16 %v5458
        %v5570 = vunpack.c.h.b16 %v5458
        %v5571 = vunpack.c.l.b16 %v5459
        %v5572 = vunpack.c.h.b16 %v5459
        %v5573 = vunpack.c.l.b16 %v5460
        %v5574 = vunpack.c.h.b16 %v5460
        %v5575 = vunpack.c.l.b16 %v5461
        %v5576 = vunpack.c.h.b16 %v5461
        %v5577 = vunpack.c.l.b16 %v5462
        %v5578 = vunpack.c.h.b16 %v5462
        %v5579 = vunpack.c.l.b16 %v5463
        %v5580 = vunpack.c.h.b16 %v5463
        %v5581 = vunpack.c.l.b16 %v5464
        %v5582 = vunpack.c.h.b16 %v5464
        %v5583 = vunpack.c.l.b16 %v5465
        %v5584 = vunpack.c.h.b16 %v5465
        %v5585 = vunpack.c.l.b16 %v5466
        %v5586 = vunpack.c.h.b16 %v5466
        %v5587 = vunpack.c.l.b16 %v5467
        %v5588 = vunpack.c.h.b16 %v5467
        %v5589 = vunpack.c.l.b16 %v5468
        %v5590 = vunpack.c.h.b16 %v5468
        %v5591 = vunpack.c.l.b16 %v5469
        %v5592 = vunpack.c.h.b16 %v5469
        %v5593 = vunpack.c.l.b16 %v5470
        %v5594 = vunpack.c.h.b16 %v5470
        %v5595 = vunpack.c.l.b16 %v5471
        %v5596 = vunpack.c.h.b16 %v5471
        %v5597 = vunpack.c.l.b16 %v5472
        %v5598 = vunpack.c.h.b16 %v5472
        %v5599 = vunpack.c.l.b16 %v5473
        %v5600 = vunpack.c.h.b16 %v5473
        %v5601 = vunpack.c.l.b16 %v5474
        %v5602 = vunpack.c.h.b16 %v5474
        %v5603 = vunpack.c.l.b16 %v5475
        %v5604 = vunpack.c.h.b16 %v5475
        %v5605 = vunpack.c.l.b16 %v5476
        %v5606 = vunpack.c.h.b16 %v5476
        %v5607 = vunpack.c.l.b16 %v5477
        %v5608 = vunpack.c.h.b16 %v5477
        %v5609 = vunpack.c.l.b16 %v5478
        %v5610 = vunpack.c.h.b16 %v5478
        %v5611 = vunpack.c.l.b16 %v5479
        %v5612 = vunpack.c.h.b16 %v5479
        %v5613 = vunpack.c.l.b16 %v5480
        %v5614 = vunpack.c.h.b16 %v5480
        %v5615 = vunpack.c.l.b16 %v5481
        %v5616 = vunpack.c.h.b16 %v5481
        %v5617 = vunpack.c.l.b16 %v5482
        %v5618 = vunpack.c.h.b16 %v5482
        %v5619 = vunpack.c.l.b16 %v5483
        %v5620 = vunpack.c.h.b16 %v5483
        %v5621 = vunpack.c.l.b16 %v5484
        %v5622 = vunpack.c.h.b16 %v5484
        %v5623 = vunpack.c.l.b16 %v5485
        %v5624 = vunpack.c.h.b16 %v5485
        %v5625 = vunpack.c.l.b16 %v5486
        %v5626 = vunpack.c.h.b16 %v5486
        %v5627 = vpack.c.b16 %v5565, %v5563
        %v5628 = vpack.c.b16 %v5566, %v5564
        %v5629 = vpack.c.b16 %v5569, %v5567
        %v5630 = vpack.c.b16 %v5570, %v5568
        %v5631 = vpack.c.b16 %v5573, %v5571
        %v5632 = vpack.c.b16 %v5574, %v5572
        %v5633 = vpack.c.b16 %v5577, %v5575
        %v5634 = vpack.c.b16 %v5578, %v5576
        %v5635 = vpack.c.b16 %v5581, %v5579
        %v5636 = vpack.c.b16 %v5582, %v5580
        %v5637 = vpack.c.b16 %v5585, %v5583
        %v5638 = vpack.c.b16 %v5586, %v5584
        %v5639 = vpack.c.b16 %v5589, %v5587
        %v5640 = vpack.c.b16 %v5590, %v5588
        %v5641 = vpack.c.b16 %v5593, %v5591
        %v5642 = vpack.c.b16 %v5594, %v5592
        %v5643 = vpack.c.b16 %v5597, %v5595
        %v5644 = vpack.c.b16 %v5598, %v5596
        %v5645 = vpack.c.b16 %v5601, %v5599
        %v5646 = vpack.c.b16 %v5602, %v5600
        %v5647 = vpack.c.b16 %v5605, %v5603
        %v5648 = vpack.c.b16 %v5606, %v5604
        %v5649 = vpack.c.b16 %v5609, %v5607
        %v5650 = vpack.c.b16 %v5610, %v5608
        %v5651 = vpack.c.b16 %v5613, %v5611
        %v5652 = vpack.c.b16 %v5614, %v5612
        %v5653 = vpack.c.b16 %v5617, %v5615
        %v5654 = vpack.c.b16 %v5618, %v5616
        %v5655 = vpack.c.b16 %v5621, %v5619
        %v5656 = vpack.c.b16 %v5622, %v5620
        %v5657 = vpack.c.b16 %v5625, %v5623
        %v5658 = vpack.c.b16 %v5626, %v5624
        %5691 = vmatprep.subr.bf16.mxu0 %v5642
        %5692 = vmatpush1.bf16.msra.mxu0 %v5641
        %5693 = vmatprep.subr.bf16.mxu0 %v5640
        %5694 = vmatpush1.bf16.msra.mxu0 %v5639
        %5695 = vmatprep.subr.bf16.mxu0 %v5638
        %5696 = vmatpush1.bf16.msra.mxu0 %v5637
        %5697 = vmatprep.subr.bf16.mxu0 %v5636
        %5698 = vmatpush1.bf16.msra.mxu0 %v5635
        %5699 = vmatprep.subr.bf16.mxu0 %v5634
        %5700 = vmatpush1.bf16.msra.mxu0 %v5633
        %5701 = vmatprep.subr.bf16.mxu0 %v5632
        %5702 = vmatpush1.bf16.msra.mxu0 %v5631
        %5703 = vmatprep.subr.bf16.mxu0 %v5630
        %5704 = vmatpush1.bf16.msra.mxu0 %v5629
        %5705 = vmatprep.subr.bf16.mxu0 %v5628
        %5706 = vmatpush1.bf16.msra.mxu0 %v5627
        %5707 = vmatprep.subr.bf16.mxu0 %v5658
        %5708 = vmatpush2.bf16.msra.mxu0 %v5657
        %5709 = vmatprep.subr.bf16.mxu0 %v5656
        %5710 = vmatpush2.bf16.msra.mxu0 %v5655
        %5711 = vmatprep.subr.bf16.mxu0 %v5654
        %5712 = vmatpush2.bf16.msra.mxu0 %v5653
        %5713 = vmatprep.subr.bf16.mxu0 %v5652
        %5714 = vmatpush2.bf16.msra.mxu0 %v5651
        %5715 = vmatprep.subr.bf16.mxu0 %v5650
        %5716 = vmatpush2.bf16.msra.mxu0 %v5649
        %5717 = vmatprep.subr.bf16.mxu0 %v5648
        %5718 = vmatpush2.bf16.msra.mxu0 %v5647
        %5719 = vmatprep.subr.bf16.mxu0 %v5646
        %5720 = vmatpush2.bf16.msra.mxu0 %v5645
        %5721 = vmatprep.subr.bf16.mxu0 %v5644
        %5722 = vmatpush2.bf16.msra.mxu0 %v5643
        %5723 = vmatprep.mubr.bf16.mxu0 %v5510
        %5724 = vmatmul.mubr.bf16.gmra.mxu0 %v5498
        %v5725 = vpop.f32.mrf.mxu0
        %v5726 = vadd.f32 0.0, %v5725
        %v5727 = vpop.f32.mrf.mxu0
        %v5728 = vadd.f32 0.0, %v5727
        %v5729 = vpop.f32.mrf.mxu0
        %v5730 = vadd.f32 0.0, %v5729
        %v5731 = vpop.f32.mrf.mxu0
        %v5732 = vadd.f32 0.0, %v5731
        %5733 = vmatprep.mubr.bf16.mxu0 %v5526
        %5734 = vmatmul.mubr.bf16.gmra.mxu0 %v5518
        %v5735 = vpop.f32.mrf.mxu0
        %v5736 = vadd.f32 0.0, %v5735
        %v5737 = vpop.f32.mrf.mxu0
        %v5738 = vadd.f32 0.0, %v5737
        %v5739 = vpop.f32.mrf.mxu0
        %v5740 = vadd.f32 0.0, %v5739
        %v5741 = vpop.f32.mrf.mxu0
        %v5742 = vadd.f32 0.0, %v5741
        %5743 = vdwg.mxu0
        %v5776 = vunpack.c.l.b16 %v5414
        %v5777 = vunpack.c.h.b16 %v5414
        %v5778 = vunpack.c.l.b16 %v5415
        %v5779 = vunpack.c.h.b16 %v5415
        %v5780 = vunpack.c.l.b16 %v5416
        %v5781 = vunpack.c.h.b16 %v5416
        %v5782 = vunpack.c.l.b16 %v5417
        %v5783 = vunpack.c.h.b16 %v5417
        %v5784 = vunpack.c.l.b16 %v5418
        %v5785 = vunpack.c.h.b16 %v5418
        %v5786 = vunpack.c.l.b16 %v5419
        %v5787 = vunpack.c.h.b16 %v5419
        %v5788 = vunpack.c.l.b16 %v5420
        %v5789 = vunpack.c.h.b16 %v5420
        %v5790 = vunpack.c.l.b16 %v5421
        %v5791 = vunpack.c.h.b16 %v5421
        %v5792 = vunpack.c.l.b16 %v5422
        %v5793 = vunpack.c.h.b16 %v5422
        %v5794 = vunpack.c.l.b16 %v5423
        %v5795 = vunpack.c.h.b16 %v5423
        %v5796 = vunpack.c.l.b16 %v5424
        %v5797 = vunpack.c.h.b16 %v5424
        %v5798 = vunpack.c.l.b16 %v5425
        %v5799 = vunpack.c.h.b16 %v5425
        %v5800 = vunpack.c.l.b16 %v5426
        %v5801 = vunpack.c.h.b16 %v5426
        %v5802 = vunpack.c.l.b16 %v5427
        %v5803 = vunpack.c.h.b16 %v5427
        %v5804 = vunpack.c.l.b16 %v5428
        %v5805 = vunpack.c.h.b16 %v5428
        %v5806 = vunpack.c.l.b16 %v5429
        %v5807 = vunpack.c.h.b16 %v5429
        %v5808 = vunpack.c.l.b16 %v5430
        %v5809 = vunpack.c.h.b16 %v5430
        %v5810 = vunpack.c.l.b16 %v5431
        %v5811 = vunpack.c.h.b16 %v5431
        %v5812 = vunpack.c.l.b16 %v5432
        %v5813 = vunpack.c.h.b16 %v5432
        %v5814 = vunpack.c.l.b16 %v5433
        %v5815 = vunpack.c.h.b16 %v5433
        %v5816 = vunpack.c.l.b16 %v5434
        %v5817 = vunpack.c.h.b16 %v5434
        %v5818 = vunpack.c.l.b16 %v5435
        %v5819 = vunpack.c.h.b16 %v5435
        %v5820 = vunpack.c.l.b16 %v5436
        %v5821 = vunpack.c.h.b16 %v5436
        %v5822 = vunpack.c.l.b16 %v5437
        %v5823 = vunpack.c.h.b16 %v5437
        %v5824 = vunpack.c.l.b16 %v5438
        %v5825 = vunpack.c.h.b16 %v5438
        %v5826 = vunpack.c.l.b16 %v5439
        %v5827 = vunpack.c.h.b16 %v5439
        %v5828 = vunpack.c.l.b16 %v5440
        %v5829 = vunpack.c.h.b16 %v5440
        %v5830 = vunpack.c.l.b16 %v5441
        %v5831 = vunpack.c.h.b16 %v5441
        %v5832 = vunpack.c.l.b16 %v5442
        %v5833 = vunpack.c.h.b16 %v5442
        %v5834 = vunpack.c.l.b16 %v5443
        %v5835 = vunpack.c.h.b16 %v5443
        %v5836 = vunpack.c.l.b16 %v5444
        %v5837 = vunpack.c.h.b16 %v5444
        %v5838 = vunpack.c.l.b16 %v5445
        %v5839 = vunpack.c.h.b16 %v5445
        %v5840 = vpack.c.b16 %v5778, %v5776
        %v5841 = vpack.c.b16 %v5779, %v5777
        %v5842 = vpack.c.b16 %v5782, %v5780
        %v5843 = vpack.c.b16 %v5783, %v5781
        %v5844 = vpack.c.b16 %v5786, %v5784
        %v5845 = vpack.c.b16 %v5787, %v5785
        %v5846 = vpack.c.b16 %v5790, %v5788
        %v5847 = vpack.c.b16 %v5791, %v5789
        %v5848 = vpack.c.b16 %v5794, %v5792
        %v5849 = vpack.c.b16 %v5795, %v5793
        %v5850 = vpack.c.b16 %v5798, %v5796
        %v5851 = vpack.c.b16 %v5799, %v5797
        %v5852 = vpack.c.b16 %v5802, %v5800
        %v5853 = vpack.c.b16 %v5803, %v5801
        %v5854 = vpack.c.b16 %v5806, %v5804
        %v5855 = vpack.c.b16 %v5807, %v5805
        %v5856 = vpack.c.b16 %v5810, %v5808
        %v5857 = vpack.c.b16 %v5811, %v5809
        %v5858 = vpack.c.b16 %v5814, %v5812
        %v5859 = vpack.c.b16 %v5815, %v5813
        %v5860 = vpack.c.b16 %v5818, %v5816
        %v5861 = vpack.c.b16 %v5819, %v5817
        %v5862 = vpack.c.b16 %v5822, %v5820
        %v5863 = vpack.c.b16 %v5823, %v5821
        %v5864 = vpack.c.b16 %v5826, %v5824
        %v5865 = vpack.c.b16 %v5827, %v5825
        %v5866 = vpack.c.b16 %v5830, %v5828
        %v5867 = vpack.c.b16 %v5831, %v5829
        %v5868 = vpack.c.b16 %v5834, %v5832
        %v5869 = vpack.c.b16 %v5835, %v5833
        %v5870 = vpack.c.b16 %v5838, %v5836
        %v5871 = vpack.c.b16 %v5839, %v5837
        %5904 = vmatprep.subr.bf16.mxu0 %v5855
        %5905 = vmatpush1.bf16.msra.mxu0 %v5854
        %5906 = vmatprep.subr.bf16.mxu0 %v5853
        %5907 = vmatpush1.bf16.msra.mxu0 %v5852
        %5908 = vmatprep.subr.bf16.mxu0 %v5851
        %5909 = vmatpush1.bf16.msra.mxu0 %v5850
        %5910 = vmatprep.subr.bf16.mxu0 %v5849
        %5911 = vmatpush1.bf16.msra.mxu0 %v5848
        %5912 = vmatprep.subr.bf16.mxu0 %v5847
        %5913 = vmatpush1.bf16.msra.mxu0 %v5846
        %5914 = vmatprep.subr.bf16.mxu0 %v5845
        %5915 = vmatpush1.bf16.msra.mxu0 %v5844
        %5916 = vmatprep.subr.bf16.mxu0 %v5843
        %5917 = vmatpush1.bf16.msra.mxu0 %v5842
        %5918 = vmatprep.subr.bf16.mxu0 %v5841
        %5919 = vmatpush1.bf16.msra.mxu0 %v5840
        %5920 = vmatprep.subr.bf16.mxu0 %v5871
        %5921 = vmatpush2.bf16.msra.mxu0 %v5870
        %5922 = vmatprep.subr.bf16.mxu0 %v5869
        %5923 = vmatpush2.bf16.msra.mxu0 %v5868
        %5924 = vmatprep.subr.bf16.mxu0 %v5867
        %5925 = vmatpush2.bf16.msra.mxu0 %v5866
        %5926 = vmatprep.subr.bf16.mxu0 %v5865
        %5927 = vmatpush2.bf16.msra.mxu0 %v5864
        %5928 = vmatprep.subr.bf16.mxu0 %v5863
        %5929 = vmatpush2.bf16.msra.mxu0 %v5862
        %5930 = vmatprep.subr.bf16.mxu0 %v5861
        %5931 = vmatpush2.bf16.msra.mxu0 %v5860
        %5932 = vmatprep.subr.bf16.mxu0 %v5859
        %5933 = vmatpush2.bf16.msra.mxu0 %v5858
        %5934 = vmatprep.subr.bf16.mxu0 %v5857
        %5935 = vmatpush2.bf16.msra.mxu0 %v5856
        %5936 = vmatprep.mubr.bf16.mxu0 %v5411
        %5937 = vmatmul.mubr.bf16.gmra.mxu0 %v5410
        %v5938 = vpop.f32.mrf.mxu0
        %v5939 = vadd.f32 %v5726, %v5938
        %v5940 = vpop.f32.mrf.mxu0
        %v5941 = vadd.f32 %v5728, %v5940
        %v5942 = vpop.f32.mrf.mxu0
        %v5943 = vadd.f32 %v5730, %v5942
        %v5944 = vpop.f32.mrf.mxu0
        %v5945 = vadd.f32 %v5732, %v5944
        %5946 = vmatprep.mubr.bf16.mxu0 %v5413
        %5947 = vmatmul.mubr.bf16.gmra.mxu0 %v5412
        %v5948 = vpop.f32.mrf.mxu0
        %v5949 = vadd.f32 %v5736, %v5948
        %v5950 = vpop.f32.mrf.mxu0
        %v5951 = vadd.f32 %v5738, %v5950
        %v5952 = vpop.f32.mrf.mxu0
        %v5953 = vadd.f32 %v5740, %v5952
        %v5954 = vpop.f32.mrf.mxu0
        %v5955 = vadd.f32 %v5742, %v5954
        %5956 = vdwg.mxu0
        %v5957 = vld [vmem:[#allocation8] sm:$0xfc]
        %v5958 = vld [vmem:[#allocation8 + $0x8] sm:$0xfc]
        %v5959 = vld [vmem:[#allocation8 + $0x40] sm:$0x3]
        %v5960 = vld [vmem:[#allocation8 + $0x48] sm:$0x3]
        %v5961 = vpack.c.bf16 %v5404, %v5957
        %v5962 = vpack.c.bf16 %v5405, %v5958
        %v5963 = vpack.c.bf16 %v5959, %v5959
        %v5964 = vpack.c.bf16 %v5960, %v5960
        %s5965 = scalar_lea.vmem [#allocation38], 512
        %v5966 = vld [vmem:[%s5965] sm:$0xff]
        %v5967 = vld [vmem:[%s5965 + $0x8] sm:$0xff]
        %v5968 = vld [vmem:[%s5965 + $0x10] sm:$0xff]
        %v5969 = vld [vmem:[%s5965 + $0x18] sm:$0xff]
        %v5970 = vld [vmem:[%s5965 + $0x20] sm:$0xff]
        %v5971 = vld [vmem:[%s5965 + $0x28] sm:$0xff]
        %v5972 = vld [vmem:[%s5965 + $0x30] sm:$0xff]
        %v5973 = vld [vmem:[%s5965 + $0x38] sm:$0xff]
        %v5974 = vld [vmem:[%s5965 + $0x40] sm:$0xff]
        %v5975 = vld [vmem:[%s5965 + $0x48] sm:$0xff]
        %v5976 = vld [vmem:[%s5965 + $0x50] sm:$0xff]
        %v5977 = vld [vmem:[%s5965 + $0x58] sm:$0xff]
        %v5978 = vld [vmem:[%s5965 + $0x60] sm:$0xff]
        %v5979 = vld [vmem:[%s5965 + $0x68] sm:$0xff]
        %v5980 = vld [vmem:[%s5965 + $0x70] sm:$0xff]
        %v5981 = vld [vmem:[%s5965 + $0x78] sm:$0xff]
        %v5982 = vld [vmem:[%s5965 + $0x80] sm:$0xff]
        %v5983 = vld [vmem:[%s5965 + $0x88] sm:$0xff]
        %v5984 = vld [vmem:[%s5965 + $0x90] sm:$0xff]
        %v5985 = vld [vmem:[%s5965 + $0x98] sm:$0xff]
        %v5986 = vld [vmem:[%s5965 + $0xa0] sm:$0xff]
        %v5987 = vld [vmem:[%s5965 + $0xa8] sm:$0xff]
        %v5988 = vld [vmem:[%s5965 + $0xb0] sm:$0xff]
        %v5989 = vld [vmem:[%s5965 + $0xb8] sm:$0xff]
        %v5990 = vld [vmem:[%s5965 + $0xc0] sm:$0xff]
        %v5991 = vld [vmem:[%s5965 + $0xc8] sm:$0xff]
        %v5992 = vld [vmem:[%s5965 + $0xd0] sm:$0xff]
        %v5993 = vld [vmem:[%s5965 + $0xd8] sm:$0xff]
        %v5994 = vld [vmem:[%s5965 + $0xe0] sm:$0xff]
        %v5995 = vld [vmem:[%s5965 + $0xe8] sm:$0xff]
        %v5996 = vld [vmem:[%s5965 + $0xf0] sm:$0xff]
        %v5997 = vld [vmem:[%s5965 + $0xf8] sm:$0xff]
        %v6004 = vrot.slane %v5961, 1
        %v6005 = vrot.slane %v5412, 1
        %v6006 = vsel %vm3910, %v6004, %v6005
        %v6007 = vrot.slane %v5962, 1
        %v6008 = vrot.slane %v5413, 1
        %v6009 = vsel %vm3910, %v6007, %v6008
        %v6010 = vrot.slane %v5963, 1
        %v6011 = vsel %vm3910, %v6005, %v6010
        %v6012 = vrot.slane %v5964, 1
        %v6013 = vsel %vm3910, %v6008, %v6012
        %v6050 = vunpack.c.l.b16 %v5966
        %v6051 = vunpack.c.h.b16 %v5966
        %v6052 = vunpack.c.l.b16 %v5967
        %v6053 = vunpack.c.h.b16 %v5967
        %v6054 = vunpack.c.l.b16 %v5968
        %v6055 = vunpack.c.h.b16 %v5968
        %v6056 = vunpack.c.l.b16 %v5969
        %v6057 = vunpack.c.h.b16 %v5969
        %v6058 = vunpack.c.l.b16 %v5970
        %v6059 = vunpack.c.h.b16 %v5970
        %v6060 = vunpack.c.l.b16 %v5971
        %v6061 = vunpack.c.h.b16 %v5971
        %v6062 = vunpack.c.l.b16 %v5972
        %v6063 = vunpack.c.h.b16 %v5972
        %v6064 = vunpack.c.l.b16 %v5973
        %v6065 = vunpack.c.h.b16 %v5973
        %v6066 = vunpack.c.l.b16 %v5974
        %v6067 = vunpack.c.h.b16 %v5974
        %v6068 = vunpack.c.l.b16 %v5975
        %v6069 = vunpack.c.h.b16 %v5975
        %v6070 = vunpack.c.l.b16 %v5976
        %v6071 = vunpack.c.h.b16 %v5976
        %v6072 = vunpack.c.l.b16 %v5977
        %v6073 = vunpack.c.h.b16 %v5977
        %v6074 = vunpack.c.l.b16 %v5978
        %v6075 = vunpack.c.h.b16 %v5978
        %v6076 = vunpack.c.l.b16 %v5979
        %v6077 = vunpack.c.h.b16 %v5979
        %v6078 = vunpack.c.l.b16 %v5980
        %v6079 = vunpack.c.h.b16 %v5980
        %v6080 = vunpack.c.l.b16 %v5981
        %v6081 = vunpack.c.h.b16 %v5981
        %v6082 = vunpack.c.l.b16 %v5982
        %v6083 = vunpack.c.h.b16 %v5982
        %v6084 = vunpack.c.l.b16 %v5983
        %v6085 = vunpack.c.h.b16 %v5983
        %v6086 = vunpack.c.l.b16 %v5984
        %v6087 = vunpack.c.h.b16 %v5984
        %v6088 = vunpack.c.l.b16 %v5985
        %v6089 = vunpack.c.h.b16 %v5985
        %v6090 = vunpack.c.l.b16 %v5986
        %v6091 = vunpack.c.h.b16 %v5986
        %v6092 = vunpack.c.l.b16 %v5987
        %v6093 = vunpack.c.h.b16 %v5987
        %v6094 = vunpack.c.l.b16 %v5988
        %v6095 = vunpack.c.h.b16 %v5988
        %v6096 = vunpack.c.l.b16 %v5989
        %v6097 = vunpack.c.h.b16 %v5989
        %v6098 = vunpack.c.l.b16 %v5990
        %v6099 = vunpack.c.h.b16 %v5990
        %v6100 = vunpack.c.l.b16 %v5991
        %v6101 = vunpack.c.h.b16 %v5991
        %v6102 = vunpack.c.l.b16 %v5992
        %v6103 = vunpack.c.h.b16 %v5992
        %v6104 = vunpack.c.l.b16 %v5993
        %v6105 = vunpack.c.h.b16 %v5993
        %v6106 = vunpack.c.l.b16 %v5994
        %v6107 = vunpack.c.h.b16 %v5994
        %v6108 = vunpack.c.l.b16 %v5995
        %v6109 = vunpack.c.h.b16 %v5995
        %v6110 = vunpack.c.l.b16 %v5996
        %v6111 = vunpack.c.h.b16 %v5996
        %v6112 = vunpack.c.l.b16 %v5997
        %v6113 = vunpack.c.h.b16 %v5997
        %v6114 = vpack.c.b16 %v6052, %v6050
        %v6115 = vpack.c.b16 %v6053, %v6051
        %v6116 = vpack.c.b16 %v6056, %v6054
        %v6117 = vpack.c.b16 %v6057, %v6055
        %v6118 = vpack.c.b16 %v6060, %v6058
        %v6119 = vpack.c.b16 %v6061, %v6059
        %v6120 = vpack.c.b16 %v6064, %v6062
        %v6121 = vpack.c.b16 %v6065, %v6063
        %v6122 = vpack.c.b16 %v6068, %v6066
        %v6123 = vpack.c.b16 %v6069, %v6067
        %v6124 = vpack.c.b16 %v6072, %v6070
        %v6125 = vpack.c.b16 %v6073, %v6071
        %v6126 = vpack.c.b16 %v6076, %v6074
        %v6127 = vpack.c.b16 %v6077, %v6075
        %v6128 = vpack.c.b16 %v6080, %v6078
        %v6129 = vpack.c.b16 %v6081, %v6079
        %v6130 = vpack.c.b16 %v6084, %v6082
        %v6131 = vpack.c.b16 %v6085, %v6083
        %v6132 = vpack.c.b16 %v6088, %v6086
        %v6133 = vpack.c.b16 %v6089, %v6087
        %v6134 = vpack.c.b16 %v6092, %v6090
        %v6135 = vpack.c.b16 %v6093, %v6091
        %v6136 = vpack.c.b16 %v6096, %v6094
        %v6137 = vpack.c.b16 %v6097, %v6095
        %v6138 = vpack.c.b16 %v6100, %v6098
        %v6139 = vpack.c.b16 %v6101, %v6099
        %v6140 = vpack.c.b16 %v6104, %v6102
        %v6141 = vpack.c.b16 %v6105, %v6103
        %v6142 = vpack.c.b16 %v6108, %v6106
        %v6143 = vpack.c.b16 %v6109, %v6107
        %v6144 = vpack.c.b16 %v6112, %v6110
        %v6145 = vpack.c.b16 %v6113, %v6111
        %6178 = vmatprep.subr.bf16.mxu0 %v6129
        %6179 = vmatpush1.bf16.msra.mxu0 %v6128
        %6180 = vmatprep.subr.bf16.mxu0 %v6127
        %6181 = vmatpush1.bf16.msra.mxu0 %v6126
        %6182 = vmatprep.subr.bf16.mxu0 %v6125
        %6183 = vmatpush1.bf16.msra.mxu0 %v6124
        %6184 = vmatprep.subr.bf16.mxu0 %v6123
        %6185 = vmatpush1.bf16.msra.mxu0 %v6122
        %6186 = vmatprep.subr.bf16.mxu0 %v6121
        %6187 = vmatpush1.bf16.msra.mxu0 %v6120
        %6188 = vmatprep.subr.bf16.mxu0 %v6119
        %6189 = vmatpush1.bf16.msra.mxu0 %v6118
        %6190 = vmatprep.subr.bf16.mxu0 %v6117
        %6191 = vmatpush1.bf16.msra.mxu0 %v6116
        %6192 = vmatprep.subr.bf16.mxu0 %v6115
        %6193 = vmatpush1.bf16.msra.mxu0 %v6114
        %6194 = vmatprep.subr.bf16.mxu0 %v6145
        %6195 = vmatpush2.bf16.msra.mxu0 %v6144
        %6196 = vmatprep.subr.bf16.mxu0 %v6143
        %6197 = vmatpush2.bf16.msra.mxu0 %v6142
        %6198 = vmatprep.subr.bf16.mxu0 %v6141
        %6199 = vmatpush2.bf16.msra.mxu0 %v6140
        %6200 = vmatprep.subr.bf16.mxu0 %v6139
        %6201 = vmatpush2.bf16.msra.mxu0 %v6138
        %6202 = vmatprep.subr.bf16.mxu0 %v6137
        %6203 = vmatpush2.bf16.msra.mxu0 %v6136
        %6204 = vmatprep.subr.bf16.mxu0 %v6135
        %6205 = vmatpush2.bf16.msra.mxu0 %v6134
        %6206 = vmatprep.subr.bf16.mxu0 %v6133
        %6207 = vmatpush2.bf16.msra.mxu0 %v6132
        %6208 = vmatprep.subr.bf16.mxu0 %v6131
        %6209 = vmatpush2.bf16.msra.mxu0 %v6130
        %6210 = vmatprep.mubr.bf16.mxu0 %v6009
        %6211 = vmatmul.mubr.bf16.gmra.mxu0 %v6006
        %v6212 = vpop.f32.mrf.mxu0
        %v6213 = vadd.f32 0.0, %v6212
        %v6214 = vpop.f32.mrf.mxu0
        %v6215 = vadd.f32 0.0, %v6214
        %v6216 = vpop.f32.mrf.mxu0
        %v6217 = vadd.f32 0.0, %v6216
        %v6218 = vpop.f32.mrf.mxu0
        %v6219 = vadd.f32 0.0, %v6218
        %6220 = vmatprep.mubr.bf16.mxu0 %v6013
        %6221 = vmatmul.mubr.bf16.gmra.mxu0 %v6011
        %v6222 = vpop.f32.mrf.mxu0
        %v6223 = vadd.f32 0.0, %v6222
        %v6224 = vpop.f32.mrf.mxu0
        %v6225 = vadd.f32 0.0, %v6224
        %v6226 = vpop.f32.mrf.mxu0
        %v6227 = vadd.f32 0.0, %v6226
        %v6228 = vpop.f32.mrf.mxu0
        %v6229 = vadd.f32 0.0, %v6228
        %6230 = vdwg.mxu0
        %v6231 = vadd.f32 %v5939, %v6213
        %v6232 = vadd.f32 %v5941, %v6215
        %v6233 = vadd.f32 %v5943, %v6217
        %v6234 = vadd.f32 %v5945, %v6219
        %v6235 = vadd.f32 %v5949, %v6223
        %v6236 = vadd.f32 %v5951, %v6225
        %v6237 = vadd.f32 %v5953, %v6227
        %v6238 = vadd.f32 %v5955, %v6229
        %v6239 = vld [vmem:[#allocation5] sm:$0xff]
        %v6240 = vld [vmem:[#allocation5 + $0x8] sm:$0xff]
        %v6241 = vld [vmem:[#allocation5 + $0x10] sm:$0xff]
        %v6242 = vld [vmem:[#allocation5 + $0x18] sm:$0xff]
        %v6243 = vld [vmem:[#allocation5 + $0x20] sm:$0xff]
        %v6244 = vld [vmem:[#allocation5 + $0x28] sm:$0xff]
        %v6245 = vld [vmem:[#allocation5 + $0x30] sm:$0xff]
        %v6246 = vld [vmem:[#allocation5 + $0x38] sm:$0xff]
        %v6247 = vpack.c.bf16 %v6241, %v6239
        %v6248 = vpack.c.bf16 %v6242, %v6240
        %v6249 = vpack.c.bf16 %v6245, %v6243
        %v6250 = vpack.c.bf16 %v6246, %v6244
        %v6251 = vld [vmem:[#allocation39] sm:$0xff]
        %v6252 = vld [vmem:[#allocation39 + $0x8] sm:$0xff]
        %v6253 = vld [vmem:[#allocation39 + $0x10] sm:$0xff]
        %v6254 = vld [vmem:[#allocation39 + $0x18] sm:$0xff]
        %v6255 = vld [vmem:[#allocation39 + $0x20] sm:$0xff]
        %v6256 = vld [vmem:[#allocation39 + $0x28] sm:$0xff]
        %v6257 = vld [vmem:[#allocation39 + $0x30] sm:$0xff]
        %v6258 = vld [vmem:[#allocation39 + $0x38] sm:$0xff]
        %v6259 = vld [vmem:[#allocation39 + $0x40] sm:$0xff]
        %v6260 = vld [vmem:[#allocation39 + $0x48] sm:$0xff]
        %v6261 = vld [vmem:[#allocation39 + $0x50] sm:$0xff]
        %v6262 = vld [vmem:[#allocation39 + $0x58] sm:$0xff]
        %v6263 = vld [vmem:[#allocation39 + $0x60] sm:$0xff]
        %v6264 = vld [vmem:[#allocation39 + $0x68] sm:$0xff]
        %v6265 = vld [vmem:[#allocation39 + $0x70] sm:$0xff]
        %v6266 = vld [vmem:[#allocation39 + $0x78] sm:$0xff]
        %v6267 = vld [vmem:[#allocation39 + $0x80] sm:$0xff]
        %v6268 = vld [vmem:[#allocation39 + $0x88] sm:$0xff]
        %v6269 = vld [vmem:[#allocation39 + $0x90] sm:$0xff]
        %v6270 = vld [vmem:[#allocation39 + $0x98] sm:$0xff]
        %v6271 = vld [vmem:[#allocation39 + $0xa0] sm:$0xff]
        %v6272 = vld [vmem:[#allocation39 + $0xa8] sm:$0xff]
        %v6273 = vld [vmem:[#allocation39 + $0xb0] sm:$0xff]
        %v6274 = vld [vmem:[#allocation39 + $0xb8] sm:$0xff]
        %v6275 = vld [vmem:[#allocation39 + $0xc0] sm:$0xff]
        %v6276 = vld [vmem:[#allocation39 + $0xc8] sm:$0xff]
        %v6277 = vld [vmem:[#allocation39 + $0xd0] sm:$0xff]
        %v6278 = vld [vmem:[#allocation39 + $0xd8] sm:$0xff]
        %v6279 = vld [vmem:[#allocation39 + $0xe0] sm:$0xff]
        %v6280 = vld [vmem:[#allocation39 + $0xe8] sm:$0xff]
        %v6281 = vld [vmem:[#allocation39 + $0xf0] sm:$0xff]
        %v6282 = vld [vmem:[#allocation39 + $0xf8] sm:$0xff]
        %v6315 = vunpack.c.l.b16 %v6251
        %v6316 = vunpack.c.h.b16 %v6251
        %v6317 = vunpack.c.l.b16 %v6252
        %v6318 = vunpack.c.h.b16 %v6252
        %v6319 = vunpack.c.l.b16 %v6253
        %v6320 = vunpack.c.h.b16 %v6253
        %v6321 = vunpack.c.l.b16 %v6254
        %v6322 = vunpack.c.h.b16 %v6254
        %v6323 = vunpack.c.l.b16 %v6255
        %v6324 = vunpack.c.h.b16 %v6255
        %v6325 = vunpack.c.l.b16 %v6256
        %v6326 = vunpack.c.h.b16 %v6256
        %v6327 = vunpack.c.l.b16 %v6257
        %v6328 = vunpack.c.h.b16 %v6257
        %v6329 = vunpack.c.l.b16 %v6258
        %v6330 = vunpack.c.h.b16 %v6258
        %v6331 = vunpack.c.l.b16 %v6259
        %v6332 = vunpack.c.h.b16 %v6259
        %v6333 = vunpack.c.l.b16 %v6260
        %v6334 = vunpack.c.h.b16 %v6260
        %v6335 = vunpack.c.l.b16 %v6261
        %v6336 = vunpack.c.h.b16 %v6261
        %v6337 = vunpack.c.l.b16 %v6262
        %v6338 = vunpack.c.h.b16 %v6262
        %v6339 = vunpack.c.l.b16 %v6263
        %v6340 = vunpack.c.h.b16 %v6263
        %v6341 = vunpack.c.l.b16 %v6264
        %v6342 = vunpack.c.h.b16 %v6264
        %v6343 = vunpack.c.l.b16 %v6265
        %v6344 = vunpack.c.h.b16 %v6265
        %v6345 = vunpack.c.l.b16 %v6266
        %v6346 = vunpack.c.h.b16 %v6266
        %v6347 = vunpack.c.l.b16 %v6267
        %v6348 = vunpack.c.h.b16 %v6267
        %v6349 = vunpack.c.l.b16 %v6268
        %v6350 = vunpack.c.h.b16 %v6268
        %v6351 = vunpack.c.l.b16 %v6269
        %v6352 = vunpack.c.h.b16 %v6269
        %v6353 = vunpack.c.l.b16 %v6270
        %v6354 = vunpack.c.h.b16 %v6270
        %v6355 = vunpack.c.l.b16 %v6271
        %v6356 = vunpack.c.h.b16 %v6271
        %v6357 = vunpack.c.l.b16 %v6272
        %v6358 = vunpack.c.h.b16 %v6272
        %v6359 = vunpack.c.l.b16 %v6273
        %v6360 = vunpack.c.h.b16 %v6273
        %v6361 = vunpack.c.l.b16 %v6274
        %v6362 = vunpack.c.h.b16 %v6274
        %v6363 = vunpack.c.l.b16 %v6275
        %v6364 = vunpack.c.h.b16 %v6275
        %v6365 = vunpack.c.l.b16 %v6276
        %v6366 = vunpack.c.h.b16 %v6276
        %v6367 = vunpack.c.l.b16 %v6277
        %v6368 = vunpack.c.h.b16 %v6277
        %v6369 = vunpack.c.l.b16 %v6278
        %v6370 = vunpack.c.h.b16 %v6278
        %v6371 = vunpack.c.l.b16 %v6279
        %v6372 = vunpack.c.h.b16 %v6279
        %v6373 = vunpack.c.l.b16 %v6280
        %v6374 = vunpack.c.h.b16 %v6280
        %v6375 = vunpack.c.l.b16 %v6281
        %v6376 = vunpack.c.h.b16 %v6281
        %v6377 = vunpack.c.l.b16 %v6282
        %v6378 = vunpack.c.h.b16 %v6282
        %v6379 = vpack.c.b16 %v6317, %v6315
        %v6380 = vpack.c.b16 %v6318, %v6316
        %v6381 = vpack.c.b16 %v6321, %v6319
        %v6382 = vpack.c.b16 %v6322, %v6320
        %v6383 = vpack.c.b16 %v6325, %v6323
        %v6384 = vpack.c.b16 %v6326, %v6324
        %v6385 = vpack.c.b16 %v6329, %v6327
        %v6386 = vpack.c.b16 %v6330, %v6328
        %v6387 = vpack.c.b16 %v6333, %v6331
        %v6388 = vpack.c.b16 %v6334, %v6332
        %v6389 = vpack.c.b16 %v6337, %v6335
        %v6390 = vpack.c.b16 %v6338, %v6336
        %v6391 = vpack.c.b16 %v6341, %v6339
        %v6392 = vpack.c.b16 %v6342, %v6340
        %v6393 = vpack.c.b16 %v6345, %v6343
        %v6394 = vpack.c.b16 %v6346, %v6344
        %v6395 = vpack.c.b16 %v6349, %v6347
        %v6396 = vpack.c.b16 %v6350, %v6348
        %v6397 = vpack.c.b16 %v6353, %v6351
        %v6398 = vpack.c.b16 %v6354, %v6352
        %v6399 = vpack.c.b16 %v6357, %v6355
        %v6400 = vpack.c.b16 %v6358, %v6356
        %v6401 = vpack.c.b16 %v6361, %v6359
        %v6402 = vpack.c.b16 %v6362, %v6360
        %v6403 = vpack.c.b16 %v6365, %v6363
        %v6404 = vpack.c.b16 %v6366, %v6364
        %v6405 = vpack.c.b16 %v6369, %v6367
        %v6406 = vpack.c.b16 %v6370, %v6368
        %v6407 = vpack.c.b16 %v6373, %v6371
        %v6408 = vpack.c.b16 %v6374, %v6372
        %v6409 = vpack.c.b16 %v6377, %v6375
        %v6410 = vpack.c.b16 %v6378, %v6376
        %6443 = vmatprep.subr.bf16.mxu0 %v6394
        %6444 = vmatpush1.bf16.msra.mxu0 %v6393
        %6445 = vmatprep.subr.bf16.mxu0 %v6392
        %6446 = vmatpush1.bf16.msra.mxu0 %v6391
        %6447 = vmatprep.subr.bf16.mxu0 %v6390
        %6448 = vmatpush1.bf16.msra.mxu0 %v6389
        %6449 = vmatprep.subr.bf16.mxu0 %v6388
        %6450 = vmatpush1.bf16.msra.mxu0 %v6387
        %6451 = vmatprep.subr.bf16.mxu0 %v6386
        %6452 = vmatpush1.bf16.msra.mxu0 %v6385
        %6453 = vmatprep.subr.bf16.mxu0 %v6384
        %6454 = vmatpush1.bf16.msra.mxu0 %v6383
        %6455 = vmatprep.subr.bf16.mxu0 %v6382
        %6456 = vmatpush1.bf16.msra.mxu0 %v6381
        %6457 = vmatprep.subr.bf16.mxu0 %v6380
        %6458 = vmatpush1.bf16.msra.mxu0 %v6379
        %6459 = vmatprep.subr.bf16.mxu0 %v6410
        %6460 = vmatpush2.bf16.msra.mxu0 %v6409
        %6461 = vmatprep.subr.bf16.mxu0 %v6408
        %6462 = vmatpush2.bf16.msra.mxu0 %v6407
        %6463 = vmatprep.subr.bf16.mxu0 %v6406
        %6464 = vmatpush2.bf16.msra.mxu0 %v6405
        %6465 = vmatprep.subr.bf16.mxu0 %v6404
        %6466 = vmatpush2.bf16.msra.mxu0 %v6403
        %6467 = vmatprep.subr.bf16.mxu0 %v6402
        %6468 = vmatpush2.bf16.msra.mxu0 %v6401
        %6469 = vmatprep.subr.bf16.mxu0 %v6400
        %6470 = vmatpush2.bf16.msra.mxu0 %v6399
        %6471 = vmatprep.subr.bf16.mxu0 %v6398
        %6472 = vmatpush2.bf16.msra.mxu0 %v6397
        %6473 = vmatprep.subr.bf16.mxu0 %v6396
        %6474 = vmatpush2.bf16.msra.mxu0 %v6395
        %6475 = vmatprep.mubr.bf16.mxu0 %v6248
        %6476 = vmatmul.mubr.bf16.gmra.mxu0 %v6247
        %v6477 = vpop.f32.mrf.mxu0
        %v6478 = vadd.f32 0.0, %v6477
        %v6479 = vpop.f32.mrf.mxu0
        %v6480 = vadd.f32 0.0, %v6479
        %v6481 = vpop.f32.mrf.mxu0
        %v6482 = vadd.f32 0.0, %v6481
        %v6483 = vpop.f32.mrf.mxu0
        %v6484 = vadd.f32 0.0, %v6483
        %6485 = vmatprep.mubr.bf16.mxu0 %v6250
        %6486 = vmatmul.mubr.bf16.gmra.mxu0 %v6249
        %v6487 = vpop.f32.mrf.mxu0
        %v6488 = vadd.f32 0.0, %v6487
        %v6489 = vpop.f32.mrf.mxu0
        %v6490 = vadd.f32 0.0, %v6489
        %v6491 = vpop.f32.mrf.mxu0
        %v6492 = vadd.f32 0.0, %v6491
        %v6493 = vpop.f32.mrf.mxu0
        %v6494 = vadd.f32 0.0, %v6493
        %6495 = vdwg.mxu0
        %v6496 = vadd.f32 %v6231, %v6478
        %v6497 = vadd.f32 %v6232, %v6480
        %v6498 = vadd.f32 %v6233, %v6482
        %v6499 = vadd.f32 %v6234, %v6484
        %v6500 = vadd.f32 %v6235, %v6488
        %v6501 = vadd.f32 %v6236, %v6490
        %v6502 = vadd.f32 %v6237, %v6492
        %v6503 = vadd.f32 %v6238, %v6494
        %v6504 = vld [vmem:[#allocation5] sm:$0xfe]
        %v6505 = vld [vmem:[#allocation5 + $0x8] sm:$0xfe]
        %v6506 = vld [vmem:[#allocation5 + $0x10] sm:$0xff]
        %v6507 = vld [vmem:[#allocation5 + $0x18] sm:$0xff]
        %v6508 = vld [vmem:[#allocation5 + $0x20] sm:$0xff]
        %v6509 = vld [vmem:[#allocation5 + $0x28] sm:$0xff]
        %v6510 = vld [vmem:[#allocation5 + $0x30] sm:$0xff]
        %v6511 = vld [vmem:[#allocation5 + $0x38] sm:$0xff]
        %v6512 = vld [vmem:[#allocation5 + $0x40] sm:$0x1]
        %v6513 = vld [vmem:[#allocation5 + $0x48] sm:$0x1]
        %v6514 = vpack.c.bf16 %v6506, %v6504
        %v6515 = vpack.c.bf16 %v6507, %v6505
        %v6516 = vpack.c.bf16 %v6510, %v6508
        %v6517 = vpack.c.bf16 %v6511, %v6509
        %v6518 = vpack.c.bf16 %v6512, %v6512
        %v6519 = vpack.c.bf16 %v6513, %v6513
        %s6520 = scalar_lea.vmem [#allocation39], 256
        %v6521 = vld [vmem:[%s6520] sm:$0xff]
        %v6522 = vld [vmem:[%s6520 + $0x8] sm:$0xff]
        %v6523 = vld [vmem:[%s6520 + $0x10] sm:$0xff]
        %v6524 = vld [vmem:[%s6520 + $0x18] sm:$0xff]
        %v6525 = vld [vmem:[%s6520 + $0x20] sm:$0xff]
        %v6526 = vld [vmem:[%s6520 + $0x28] sm:$0xff]
        %v6527 = vld [vmem:[%s6520 + $0x30] sm:$0xff]
        %v6528 = vld [vmem:[%s6520 + $0x38] sm:$0xff]
        %v6529 = vld [vmem:[%s6520 + $0x40] sm:$0xff]
        %v6530 = vld [vmem:[%s6520 + $0x48] sm:$0xff]
        %v6531 = vld [vmem:[%s6520 + $0x50] sm:$0xff]
        %v6532 = vld [vmem:[%s6520 + $0x58] sm:$0xff]
        %v6533 = vld [vmem:[%s6520 + $0x60] sm:$0xff]
        %v6534 = vld [vmem:[%s6520 + $0x68] sm:$0xff]
        %v6535 = vld [vmem:[%s6520 + $0x70] sm:$0xff]
        %v6536 = vld [vmem:[%s6520 + $0x78] sm:$0xff]
        %v6537 = vld [vmem:[%s6520 + $0x80] sm:$0xff]
        %v6538 = vld [vmem:[%s6520 + $0x88] sm:$0xff]
        %v6539 = vld [vmem:[%s6520 + $0x90] sm:$0xff]
        %v6540 = vld [vmem:[%s6520 + $0x98] sm:$0xff]
        %v6541 = vld [vmem:[%s6520 + $0xa0] sm:$0xff]
        %v6542 = vld [vmem:[%s6520 + $0xa8] sm:$0xff]
        %v6543 = vld [vmem:[%s6520 + $0xb0] sm:$0xff]
        %v6544 = vld [vmem:[%s6520 + $0xb8] sm:$0xff]
        %v6545 = vld [vmem:[%s6520 + $0xc0] sm:$0xff]
        %v6546 = vld [vmem:[%s6520 + $0xc8] sm:$0xff]
        %v6547 = vld [vmem:[%s6520 + $0xd0] sm:$0xff]
        %v6548 = vld [vmem:[%s6520 + $0xd8] sm:$0xff]
        %v6549 = vld [vmem:[%s6520 + $0xe0] sm:$0xff]
        %v6550 = vld [vmem:[%s6520 + $0xe8] sm:$0xff]
        %v6551 = vld [vmem:[%s6520 + $0xf0] sm:$0xff]
        %v6552 = vld [vmem:[%s6520 + $0xf8] sm:$0xff]
        %v6554 = vshrl.u32 %v6514, 16
        %v6556 = vshll.u32 %v6514, 16
        %v6558 = vrot.slane %v6556, 1
        %v6559 = vor.u32 %v6554, %v6558
        %v6561 = vshll.u32 %v6516, 16
        %v6563 = vrot.slane %v6561, 1
        %v6564 = vsel %vm3432, %v6559, %v6563
        %v6566 = vshrl.u32 %v6515, 16
        %v6568 = vshll.u32 %v6515, 16
        %v6570 = vrot.slane %v6568, 1
        %v6571 = vor.u32 %v6566, %v6570
        %v6573 = vshll.u32 %v6517, 16
        %v6575 = vrot.slane %v6573, 1
        %v6576 = vsel %vm3432, %v6571, %v6575
        %v6577 = vshrl.u32 %v6516, 16
        %v6579 = vor.u32 %v6577, %v6563
        %v6581 = vshll.u32 %v6518, 16
        %v6583 = vrot.slane %v6581, 1
        %v6584 = vsel %vm3432, %v6579, %v6583
        %v6585 = vshrl.u32 %v6517, 16
        %v6587 = vor.u32 %v6585, %v6575
        %v6589 = vshll.u32 %v6519, 16
        %v6591 = vrot.slane %v6589, 1
        %v6592 = vsel %vm3432, %v6587, %v6591
        %v6629 = vunpack.c.l.b16 %v6521
        %v6630 = vunpack.c.h.b16 %v6521
        %v6631 = vunpack.c.l.b16 %v6522
        %v6632 = vunpack.c.h.b16 %v6522
        %v6633 = vunpack.c.l.b16 %v6523
        %v6634 = vunpack.c.h.b16 %v6523
        %v6635 = vunpack.c.l.b16 %v6524
        %v6636 = vunpack.c.h.b16 %v6524
        %v6637 = vunpack.c.l.b16 %v6525
        %v6638 = vunpack.c.h.b16 %v6525
        %v6639 = vunpack.c.l.b16 %v6526
        %v6640 = vunpack.c.h.b16 %v6526
        %v6641 = vunpack.c.l.b16 %v6527
        %v6642 = vunpack.c.h.b16 %v6527
        %v6643 = vunpack.c.l.b16 %v6528
        %v6644 = vunpack.c.h.b16 %v6528
        %v6645 = vunpack.c.l.b16 %v6529
        %v6646 = vunpack.c.h.b16 %v6529
        %v6647 = vunpack.c.l.b16 %v6530
        %v6648 = vunpack.c.h.b16 %v6530
        %v6649 = vunpack.c.l.b16 %v6531
        %v6650 = vunpack.c.h.b16 %v6531
        %v6651 = vunpack.c.l.b16 %v6532
        %v6652 = vunpack.c.h.b16 %v6532
        %v6653 = vunpack.c.l.b16 %v6533
        %v6654 = vunpack.c.h.b16 %v6533
        %v6655 = vunpack.c.l.b16 %v6534
        %v6656 = vunpack.c.h.b16 %v6534
        %v6657 = vunpack.c.l.b16 %v6535
        %v6658 = vunpack.c.h.b16 %v6535
        %v6659 = vunpack.c.l.b16 %v6536
        %v6660 = vunpack.c.h.b16 %v6536
        %v6661 = vunpack.c.l.b16 %v6537
        %v6662 = vunpack.c.h.b16 %v6537
        %v6663 = vunpack.c.l.b16 %v6538
        %v6664 = vunpack.c.h.b16 %v6538
        %v6665 = vunpack.c.l.b16 %v6539
        %v6666 = vunpack.c.h.b16 %v6539
        %v6667 = vunpack.c.l.b16 %v6540
        %v6668 = vunpack.c.h.b16 %v6540
        %v6669 = vunpack.c.l.b16 %v6541
        %v6670 = vunpack.c.h.b16 %v6541
        %v6671 = vunpack.c.l.b16 %v6542
        %v6672 = vunpack.c.h.b16 %v6542
        %v6673 = vunpack.c.l.b16 %v6543
        %v6674 = vunpack.c.h.b16 %v6543
        %v6675 = vunpack.c.l.b16 %v6544
        %v6676 = vunpack.c.h.b16 %v6544
        %v6677 = vunpack.c.l.b16 %v6545
        %v6678 = vunpack.c.h.b16 %v6545
        %v6679 = vunpack.c.l.b16 %v6546
        %v6680 = vunpack.c.h.b16 %v6546
        %v6681 = vunpack.c.l.b16 %v6547
        %v6682 = vunpack.c.h.b16 %v6547
        %v6683 = vunpack.c.l.b16 %v6548
        %v6684 = vunpack.c.h.b16 %v6548
        %v6685 = vunpack.c.l.b16 %v6549
        %v6686 = vunpack.c.h.b16 %v6549
        %v6687 = vunpack.c.l.b16 %v6550
        %v6688 = vunpack.c.h.b16 %v6550
        %v6689 = vunpack.c.l.b16 %v6551
        %v6690 = vunpack.c.h.b16 %v6551
        %v6691 = vunpack.c.l.b16 %v6552
        %v6692 = vunpack.c.h.b16 %v6552
        %v6693 = vpack.c.b16 %v6631, %v6629
        %v6694 = vpack.c.b16 %v6632, %v6630
        %v6695 = vpack.c.b16 %v6635, %v6633
        %v6696 = vpack.c.b16 %v6636, %v6634
        %v6697 = vpack.c.b16 %v6639, %v6637
        %v6698 = vpack.c.b16 %v6640, %v6638
        %v6699 = vpack.c.b16 %v6643, %v6641
        %v6700 = vpack.c.b16 %v6644, %v6642
        %v6701 = vpack.c.b16 %v6647, %v6645
        %v6702 = vpack.c.b16 %v6648, %v6646
        %v6703 = vpack.c.b16 %v6651, %v6649
        %v6704 = vpack.c.b16 %v6652, %v6650
        %v6705 = vpack.c.b16 %v6655, %v6653
        %v6706 = vpack.c.b16 %v6656, %v6654
        %v6707 = vpack.c.b16 %v6659, %v6657
        %v6708 = vpack.c.b16 %v6660, %v6658
        %v6709 = vpack.c.b16 %v6663, %v6661
        %v6710 = vpack.c.b16 %v6664, %v6662
        %v6711 = vpack.c.b16 %v6667, %v6665
        %v6712 = vpack.c.b16 %v6668, %v6666
        %v6713 = vpack.c.b16 %v6671, %v6669
        %v6714 = vpack.c.b16 %v6672, %v6670
        %v6715 = vpack.c.b16 %v6675, %v6673
        %v6716 = vpack.c.b16 %v6676, %v6674
        %v6717 = vpack.c.b16 %v6679, %v6677
        %v6718 = vpack.c.b16 %v6680, %v6678
        %v6719 = vpack.c.b16 %v6683, %v6681
        %v6720 = vpack.c.b16 %v6684, %v6682
        %v6721 = vpack.c.b16 %v6687, %v6685
        %v6722 = vpack.c.b16 %v6688, %v6686
        %v6723 = vpack.c.b16 %v6691, %v6689
        %v6724 = vpack.c.b16 %v6692, %v6690
        %6757 = vmatprep.subr.bf16.mxu0 %v6708
        %6758 = vmatpush1.bf16.msra.mxu0 %v6707
        %6759 = vmatprep.subr.bf16.mxu0 %v6706
        %6760 = vmatpush1.bf16.msra.mxu0 %v6705
        %6761 = vmatprep.subr.bf16.mxu0 %v6704
        %6762 = vmatpush1.bf16.msra.mxu0 %v6703
        %6763 = vmatprep.subr.bf16.mxu0 %v6702
        %6764 = vmatpush1.bf16.msra.mxu0 %v6701
        %6765 = vmatprep.subr.bf16.mxu0 %v6700
        %6766 = vmatpush1.bf16.msra.mxu0 %v6699
        %6767 = vmatprep.subr.bf16.mxu0 %v6698
        %6768 = vmatpush1.bf16.msra.mxu0 %v6697
        %6769 = vmatprep.subr.bf16.mxu0 %v6696
        %6770 = vmatpush1.bf16.msra.mxu0 %v6695
        %6771 = vmatprep.subr.bf16.mxu0 %v6694
        %6772 = vmatpush1.bf16.msra.mxu0 %v6693
        %6773 = vmatprep.subr.bf16.mxu0 %v6724
        %6774 = vmatpush2.bf16.msra.mxu0 %v6723
        %6775 = vmatprep.subr.bf16.mxu0 %v6722
        %6776 = vmatpush2.bf16.msra.mxu0 %v6721
        %6777 = vmatprep.subr.bf16.mxu0 %v6720
        %6778 = vmatpush2.bf16.msra.mxu0 %v6719
        %6779 = vmatprep.subr.bf16.mxu0 %v6718
        %6780 = vmatpush2.bf16.msra.mxu0 %v6717
        %6781 = vmatprep.subr.bf16.mxu0 %v6716
        %6782 = vmatpush2.bf16.msra.mxu0 %v6715
        %6783 = vmatprep.subr.bf16.mxu0 %v6714
        %6784 = vmatpush2.bf16.msra.mxu0 %v6713
        %6785 = vmatprep.subr.bf16.mxu0 %v6712
        %6786 = vmatpush2.bf16.msra.mxu0 %v6711
        %6787 = vmatprep.subr.bf16.mxu0 %v6710
        %6788 = vmatpush2.bf16.msra.mxu0 %v6709
        %6789 = vmatprep.mubr.bf16.mxu0 %v6576
        %6790 = vmatmul.mubr.bf16.gmra.mxu0 %v6564
        %v6791 = vpop.f32.mrf.mxu0
        %v6792 = vadd.f32 0.0, %v6791
        %v6793 = vpop.f32.mrf.mxu0
        %v6794 = vadd.f32 0.0, %v6793
        %v6795 = vpop.f32.mrf.mxu0
        %v6796 = vadd.f32 0.0, %v6795
        %v6797 = vpop.f32.mrf.mxu0
        %v6798 = vadd.f32 0.0, %v6797
        %6799 = vmatprep.mubr.bf16.mxu0 %v6592
        %6800 = vmatmul.mubr.bf16.gmra.mxu0 %v6584
        %v6801 = vpop.f32.mrf.mxu0
        %v6802 = vadd.f32 0.0, %v6801
        %v6803 = vpop.f32.mrf.mxu0
        %v6804 = vadd.f32 0.0, %v6803
        %v6805 = vpop.f32.mrf.mxu0
        %v6806 = vadd.f32 0.0, %v6805
        %v6807 = vpop.f32.mrf.mxu0
        %v6808 = vadd.f32 0.0, %v6807
        %6809 = vdwg.mxu0
        %v6810 = vadd.f32 %v6496, %v6792
        %v6811 = vadd.f32 %v6497, %v6794
        %v6812 = vadd.f32 %v6498, %v6796
        %v6813 = vadd.f32 %v6499, %v6798
        %v6814 = vadd.f32 %v6500, %v6802
        %v6815 = vadd.f32 %v6501, %v6804
        %v6816 = vadd.f32 %v6502, %v6806
        %v6817 = vadd.f32 %v6503, %v6808
        %v6818 = vld [vmem:[#allocation5] sm:$0xfc]
        %v6819 = vld [vmem:[#allocation5 + $0x8] sm:$0xfc]
        %v6820 = vld [vmem:[#allocation5 + $0x40] sm:$0x3]
        %v6821 = vld [vmem:[#allocation5 + $0x48] sm:$0x3]
        %v6822 = vpack.c.bf16 %v6506, %v6818
        %v6823 = vpack.c.bf16 %v6507, %v6819
        %v6824 = vpack.c.bf16 %v6820, %v6820
        %v6825 = vpack.c.bf16 %v6821, %v6821
        %s6826 = scalar_lea.vmem [#allocation39], 512
        %v6827 = vld [vmem:[%s6826] sm:$0xff]
        %v6828 = vld [vmem:[%s6826 + $0x8] sm:$0xff]
        %v6829 = vld [vmem:[%s6826 + $0x10] sm:$0xff]
        %v6830 = vld [vmem:[%s6826 + $0x18] sm:$0xff]
        %v6831 = vld [vmem:[%s6826 + $0x20] sm:$0xff]
        %v6832 = vld [vmem:[%s6826 + $0x28] sm:$0xff]
        %v6833 = vld [vmem:[%s6826 + $0x30] sm:$0xff]
        %v6834 = vld [vmem:[%s6826 + $0x38] sm:$0xff]
        %v6835 = vld [vmem:[%s6826 + $0x40] sm:$0xff]
        %v6836 = vld [vmem:[%s6826 + $0x48] sm:$0xff]
        %v6837 = vld [vmem:[%s6826 + $0x50] sm:$0xff]
        %v6838 = vld [vmem:[%s6826 + $0x58] sm:$0xff]
        %v6839 = vld [vmem:[%s6826 + $0x60] sm:$0xff]
        %v6840 = vld [vmem:[%s6826 + $0x68] sm:$0xff]
        %v6841 = vld [vmem:[%s6826 + $0x70] sm:$0xff]
        %v6842 = vld [vmem:[%s6826 + $0x78] sm:$0xff]
        %v6843 = vld [vmem:[%s6826 + $0x80] sm:$0xff]
        %v6844 = vld [vmem:[%s6826 + $0x88] sm:$0xff]
        %v6845 = vld [vmem:[%s6826 + $0x90] sm:$0xff]
        %v6846 = vld [vmem:[%s6826 + $0x98] sm:$0xff]
        %v6847 = vld [vmem:[%s6826 + $0xa0] sm:$0xff]
        %v6848 = vld [vmem:[%s6826 + $0xa8] sm:$0xff]
        %v6849 = vld [vmem:[%s6826 + $0xb0] sm:$0xff]
        %v6850 = vld [vmem:[%s6826 + $0xb8] sm:$0xff]
        %v6851 = vld [vmem:[%s6826 + $0xc0] sm:$0xff]
        %v6852 = vld [vmem:[%s6826 + $0xc8] sm:$0xff]
        %v6853 = vld [vmem:[%s6826 + $0xd0] sm:$0xff]
        %v6854 = vld [vmem:[%s6826 + $0xd8] sm:$0xff]
        %v6855 = vld [vmem:[%s6826 + $0xe0] sm:$0xff]
        %v6856 = vld [vmem:[%s6826 + $0xe8] sm:$0xff]
        %v6857 = vld [vmem:[%s6826 + $0xf0] sm:$0xff]
        %v6858 = vld [vmem:[%s6826 + $0xf8] sm:$0xff]
        %v6865 = vrot.slane %v6822, 1
        %v6866 = vrot.slane %v6516, 1
        %v6867 = vsel %vm3910, %v6865, %v6866
        %v6868 = vrot.slane %v6823, 1
        %v6869 = vrot.slane %v6517, 1
        %v6870 = vsel %vm3910, %v6868, %v6869
        %v6871 = vrot.slane %v6824, 1
        %v6872 = vsel %vm3910, %v6866, %v6871
        %v6873 = vrot.slane %v6825, 1
        %v6874 = vsel %vm3910, %v6869, %v6873
        %v6911 = vunpack.c.l.b16 %v6827
        %v6912 = vunpack.c.h.b16 %v6827
        %v6913 = vunpack.c.l.b16 %v6828
        %v6914 = vunpack.c.h.b16 %v6828
        %v6915 = vunpack.c.l.b16 %v6829
        %v6916 = vunpack.c.h.b16 %v6829
        %v6917 = vunpack.c.l.b16 %v6830
        %v6918 = vunpack.c.h.b16 %v6830
        %v6919 = vunpack.c.l.b16 %v6831
        %v6920 = vunpack.c.h.b16 %v6831
        %v6921 = vunpack.c.l.b16 %v6832
        %v6922 = vunpack.c.h.b16 %v6832
        %v6923 = vunpack.c.l.b16 %v6833
        %v6924 = vunpack.c.h.b16 %v6833
        %v6925 = vunpack.c.l.b16 %v6834
        %v6926 = vunpack.c.h.b16 %v6834
        %v6927 = vunpack.c.l.b16 %v6835
        %v6928 = vunpack.c.h.b16 %v6835
        %v6929 = vunpack.c.l.b16 %v6836
        %v6930 = vunpack.c.h.b16 %v6836
        %v6931 = vunpack.c.l.b16 %v6837
        %v6932 = vunpack.c.h.b16 %v6837
        %v6933 = vunpack.c.l.b16 %v6838
        %v6934 = vunpack.c.h.b16 %v6838
        %v6935 = vunpack.c.l.b16 %v6839
        %v6936 = vunpack.c.h.b16 %v6839
        %v6937 = vunpack.c.l.b16 %v6840
        %v6938 = vunpack.c.h.b16 %v6840
        %v6939 = vunpack.c.l.b16 %v6841
        %v6940 = vunpack.c.h.b16 %v6841
        %v6941 = vunpack.c.l.b16 %v6842
        %v6942 = vunpack.c.h.b16 %v6842
        %v6943 = vunpack.c.l.b16 %v6843
        %v6944 = vunpack.c.h.b16 %v6843
        %v6945 = vunpack.c.l.b16 %v6844
        %v6946 = vunpack.c.h.b16 %v6844
        %v6947 = vunpack.c.l.b16 %v6845
        %v6948 = vunpack.c.h.b16 %v6845
        %v6949 = vunpack.c.l.b16 %v6846
        %v6950 = vunpack.c.h.b16 %v6846
        %v6951 = vunpack.c.l.b16 %v6847
        %v6952 = vunpack.c.h.b16 %v6847
        %v6953 = vunpack.c.l.b16 %v6848
        %v6954 = vunpack.c.h.b16 %v6848
        %v6955 = vunpack.c.l.b16 %v6849
        %v6956 = vunpack.c.h.b16 %v6849
        %v6957 = vunpack.c.l.b16 %v6850
        %v6958 = vunpack.c.h.b16 %v6850
        %v6959 = vunpack.c.l.b16 %v6851
        %v6960 = vunpack.c.h.b16 %v6851
        %v6961 = vunpack.c.l.b16 %v6852
        %v6962 = vunpack.c.h.b16 %v6852
        %v6963 = vunpack.c.l.b16 %v6853
        %v6964 = vunpack.c.h.b16 %v6853
        %v6965 = vunpack.c.l.b16 %v6854
        %v6966 = vunpack.c.h.b16 %v6854
        %v6967 = vunpack.c.l.b16 %v6855
        %v6968 = vunpack.c.h.b16 %v6855
        %v6969 = vunpack.c.l.b16 %v6856
        %v6970 = vunpack.c.h.b16 %v6856
        %v6971 = vunpack.c.l.b16 %v6857
        %v6972 = vunpack.c.h.b16 %v6857
        %v6973 = vunpack.c.l.b16 %v6858
        %v6974 = vunpack.c.h.b16 %v6858
        %v6975 = vpack.c.b16 %v6913, %v6911
        %v6976 = vpack.c.b16 %v6914, %v6912
        %v6977 = vpack.c.b16 %v6917, %v6915
        %v6978 = vpack.c.b16 %v6918, %v6916
        %v6979 = vpack.c.b16 %v6921, %v6919
        %v6980 = vpack.c.b16 %v6922, %v6920
        %v6981 = vpack.c.b16 %v6925, %v6923
        %v6982 = vpack.c.b16 %v6926, %v6924
        %v6983 = vpack.c.b16 %v6929, %v6927
        %v6984 = vpack.c.b16 %v6930, %v6928
        %v6985 = vpack.c.b16 %v6933, %v6931
        %v6986 = vpack.c.b16 %v6934, %v6932
        %v6987 = vpack.c.b16 %v6937, %v6935
        %v6988 = vpack.c.b16 %v6938, %v6936
        %v6989 = vpack.c.b16 %v6941, %v6939
        %v6990 = vpack.c.b16 %v6942, %v6940
        %v6991 = vpack.c.b16 %v6945, %v6943
        %v6992 = vpack.c.b16 %v6946, %v6944
        %v6993 = vpack.c.b16 %v6949, %v6947
        %v6994 = vpack.c.b16 %v6950, %v6948
        %v6995 = vpack.c.b16 %v6953, %v6951
        %v6996 = vpack.c.b16 %v6954, %v6952
        %v6997 = vpack.c.b16 %v6957, %v6955
        %v6998 = vpack.c.b16 %v6958, %v6956
        %v6999 = vpack.c.b16 %v6961, %v6959
        %v7000 = vpack.c.b16 %v6962, %v6960
        %v7001 = vpack.c.b16 %v6965, %v6963
        %v7002 = vpack.c.b16 %v6966, %v6964
        %v7003 = vpack.c.b16 %v6969, %v6967
        %v7004 = vpack.c.b16 %v6970, %v6968
        %v7005 = vpack.c.b16 %v6973, %v6971
        %v7006 = vpack.c.b16 %v6974, %v6972
        %7039 = vmatprep.subr.bf16.mxu0 %v6990
        %7040 = vmatpush1.bf16.msra.mxu0 %v6989
        %7041 = vmatprep.subr.bf16.mxu0 %v6988
        %7042 = vmatpush1.bf16.msra.mxu0 %v6987
        %7043 = vmatprep.subr.bf16.mxu0 %v6986
        %7044 = vmatpush1.bf16.msra.mxu0 %v6985
        %7045 = vmatprep.subr.bf16.mxu0 %v6984
        %7046 = vmatpush1.bf16.msra.mxu0 %v6983
        %7047 = vmatprep.subr.bf16.mxu0 %v6982
        %7048 = vmatpush1.bf16.msra.mxu0 %v6981
        %7049 = vmatprep.subr.bf16.mxu0 %v6980
        %7050 = vmatpush1.bf16.msra.mxu0 %v6979
        %7051 = vmatprep.subr.bf16.mxu0 %v6978
        %7052 = vmatpush1.bf16.msra.mxu0 %v6977
        %7053 = vmatprep.subr.bf16.mxu0 %v6976
        %7054 = vmatpush1.bf16.msra.mxu0 %v6975
        %7055 = vmatprep.subr.bf16.mxu0 %v7006
        %7056 = vmatpush2.bf16.msra.mxu0 %v7005
        %7057 = vmatprep.subr.bf16.mxu0 %v7004
        %7058 = vmatpush2.bf16.msra.mxu0 %v7003
        %7059 = vmatprep.subr.bf16.mxu0 %v7002
        %7060 = vmatpush2.bf16.msra.mxu0 %v7001
        %7061 = vmatprep.subr.bf16.mxu0 %v7000
        %7062 = vmatpush2.bf16.msra.mxu0 %v6999
        %7063 = vmatprep.subr.bf16.mxu0 %v6998
        %7064 = vmatpush2.bf16.msra.mxu0 %v6997
        %7065 = vmatprep.subr.bf16.mxu0 %v6996
        %7066 = vmatpush2.bf16.msra.mxu0 %v6995
        %7067 = vmatprep.subr.bf16.mxu0 %v6994
        %7068 = vmatpush2.bf16.msra.mxu0 %v6993
        %7069 = vmatprep.subr.bf16.mxu0 %v6992
        %7070 = vmatpush2.bf16.msra.mxu0 %v6991
        %7071 = vmatprep.mubr.bf16.mxu0 %v6870
        %7072 = vmatmul.mubr.bf16.gmra.mxu0 %v6867
        %v7073 = vpop.f32.mrf.mxu0
        %v7074 = vadd.f32 0.0, %v7073
        %v7075 = vpop.f32.mrf.mxu0
        %v7076 = vadd.f32 0.0, %v7075
        %v7077 = vpop.f32.mrf.mxu0
        %v7078 = vadd.f32 0.0, %v7077
        %v7079 = vpop.f32.mrf.mxu0
        %v7080 = vadd.f32 0.0, %v7079
        %7081 = vmatprep.mubr.bf16.mxu0 %v6874
        %7082 = vmatmul.mubr.bf16.gmra.mxu0 %v6872
        %v7083 = vpop.f32.mrf.mxu0
        %v7084 = vadd.f32 0.0, %v7083
        %v7085 = vpop.f32.mrf.mxu0
        %v7086 = vadd.f32 0.0, %v7085
        %v7087 = vpop.f32.mrf.mxu0
        %v7088 = vadd.f32 0.0, %v7087
        %v7089 = vpop.f32.mrf.mxu0
        %v7090 = vadd.f32 0.0, %v7089
        %7091 = vdwg.mxu0
        %v7092 = vadd.f32 %v6810, %v7074
        %v7093 = vadd.f32 %v6811, %v7076
        %v7094 = vadd.f32 %v6812, %v7078
        %v7095 = vadd.f32 %v6813, %v7080
        %v7096 = vadd.f32 %v6814, %v7084
        %v7097 = vadd.f32 %v6815, %v7086
        %v7098 = vadd.f32 %v6816, %v7088
        %v7099 = vadd.f32 %v6817, %v7090
        %v7100 = vld [vmem:[%s24] sm:$0x3]
        %v7102 = vlaneseq
        %v7103 = vshrl.u32 %v7102, 7
        %v7104 = vsub.s32 0, %v7103
        %v7105 = vrot.slane %v7100, %v7104
        %v7106 = vlaneseq
        %v7107 = vshrl.u32 %v7106, 7
        %v7108 = vsub.s32 1, %v7107
        %v7109 = vrot.slane %v7100, %v7108
        %v7112 = vadd.f32 %v7092, %v7105
        %v7113 = vadd.f32 %v7093, %v7109
        %v7114 = vadd.f32 %v7094, %v7105
        %v7115 = vadd.f32 %v7095, %v7109
        %v7116 = vadd.f32 %v7096, %v7105
        %v7117 = vadd.f32 %v7097, %v7109
        %v7118 = vadd.f32 %v7098, %v7105
        %v7119 = vadd.f32 %v7099, %v7109
        %v7120 = vmax.f32 %v7112, 0.0
        %v7121 = vmax.f32 %v7113, 0.0
        %v7122 = vmax.f32 %v7114, 0.0
        %v7123 = vmax.f32 %v7115, 0.0
        %v7124 = vmax.f32 %v7116, 0.0
        %v7125 = vmax.f32 %v7117, 0.0
        %v7126 = vmax.f32 %v7118, 0.0
        %v7127 = vmax.f32 %v7119, 0.0
        %s7128 = scalar_lea.vmem %s24, 2
        %v7129 = vld [vmem:[%s7128] sm:$0x3]
        %v7131 = vlaneseq
        %v7132 = vshrl.u32 %v7131, 7
        %v7133 = vsub.s32 0, %v7132
        %v7134 = vrot.slane %v7129, %v7133
        %v7135 = vlaneseq
        %v7136 = vshrl.u32 %v7135, 7
        %v7137 = vsub.s32 1, %v7136
        %v7138 = vrot.slane %v7129, %v7137
        %v7141 = vmul.f32 %v7120, %v7134
        %v7142 = vmul.f32 %v7121, %v7138
        %v7143 = vmul.f32 %v7122, %v7134
        %v7144 = vmul.f32 %v7123, %v7138
        %v7145 = vmul.f32 %v7124, %v7134
        %v7146 = vmul.f32 %v7125, %v7138
        %v7147 = vmul.f32 %v7126, %v7134
        %v7148 = vmul.f32 %v7127, %v7138
        %s7149 = scalar_lea.vmem %s24, 4
        %v7150 = vld [vmem:[%s7149] sm:$0x3]
        %v7152 = vlaneseq
        %v7153 = vshrl.u32 %v7152, 7
        %v7154 = vsub.s32 0, %v7153
        %v7155 = vrot.slane %v7150, %v7154
        %v7156 = vlaneseq
        %v7157 = vshrl.u32 %v7156, 7
        %v7158 = vsub.s32 1, %v7157
        %v7159 = vrot.slane %v7150, %v7158
        %v7162 = vadd.f32 %v7141, %v7155
        %v7163 = vadd.f32 %v7142, %v7159
        %v7164 = vadd.f32 %v7143, %v7155
        %v7165 = vadd.f32 %v7144, %v7159
        %v7166 = vadd.f32 %v7145, %v7155
        %v7167 = vadd.f32 %v7146, %v7159
        %v7168 = vadd.f32 %v7147, %v7155
        %v7169 = vadd.f32 %v7148, %v7159
        %v7170 = vpack.c.bf16 %v7164, %v7162
        %v7171 = vpack.c.bf16 %v7165, %v7163
        %v7172 = vpack.c.bf16 %v7168, %v7166
        %v7173 = vpack.c.bf16 %v7169, %v7167
        %v7174 = vld [vmem:[%s25] sm:$0xf]
        %v7175 = vld [vmem:[%s25 + $0x4] sm:$0xf]
        %v7176 = vld [vmem:[%s25 + $0x8] sm:$0xf]
        %v7177 = vld [vmem:[%s25 + $0xc] sm:$0xf]
        %v7178 = vld [vmem:[%s25 + $0x10] sm:$0xf]
        %v7179 = vld [vmem:[%s25 + $0x14] sm:$0xf]
        %v7180 = vld [vmem:[%s25 + $0x18] sm:$0xf]
        %v7181 = vld [vmem:[%s25 + $0x1c] sm:$0xf]
        %v7182 = vld [vmem:[%s25 + $0x20] sm:$0xf]
        %v7183 = vld [vmem:[%s25 + $0x24] sm:$0xf]
        %v7184 = vld [vmem:[%s25 + $0x28] sm:$0xf]
        %v7185 = vld [vmem:[%s25 + $0x2c] sm:$0xf]
        %v7186 = vld [vmem:[%s25 + $0x30] sm:$0xf]
        %v7187 = vld [vmem:[%s25 + $0x34] sm:$0xf]
        %v7188 = vld [vmem:[%s25 + $0x38] sm:$0xf]
        %v7189 = vld [vmem:[%s25 + $0x3c] sm:$0xf]
        %v7190 = vld [vmem:[%s25 + $0x40] sm:$0xf]
        %v7191 = vld [vmem:[%s25 + $0x44] sm:$0xf]
        %v7192 = vld [vmem:[%s25 + $0x48] sm:$0xf]
        %v7193 = vld [vmem:[%s25 + $0x4c] sm:$0xf]
        %v7194 = vld [vmem:[%s25 + $0x50] sm:$0xf]
        %v7195 = vld [vmem:[%s25 + $0x54] sm:$0xf]
        %v7196 = vld [vmem:[%s25 + $0x58] sm:$0xf]
        %v7197 = vld [vmem:[%s25 + $0x5c] sm:$0xf]
        %v7198 = vld [vmem:[%s25 + $0x60] sm:$0xf]
        %v7199 = vld [vmem:[%s25 + $0x64] sm:$0xf]
        %v7200 = vld [vmem:[%s25 + $0x68] sm:$0xf]
        %v7201 = vld [vmem:[%s25 + $0x6c] sm:$0xf]
        %v7202 = vld [vmem:[%s25 + $0x70] sm:$0xf]
        %v7203 = vld [vmem:[%s25 + $0x74] sm:$0xf]
        %v7204 = vld [vmem:[%s25 + $0x78] sm:$0xf]
        %v7205 = vld [vmem:[%s25 + $0x7c] sm:$0xf]
        %v7206 = vld [vmem:[%s26] sm:$0x1]
        %v7208 = vlaneseq
        %v7209 = vshrl.u32 %v7208, 7
        %v7210 = vsub.s32 0, %v7209
        %v7211 = vrot.slane %v7206, %v7210
        %v7245 = vunpack.c.l.b16 %v7174
        %v7246 = vunpack.c.l.b16 %v7175
        %v7247 = vunpack.c.l.b16 %v7176
        %v7248 = vunpack.c.l.b16 %v7177
        %v7249 = vunpack.c.l.b16 %v7178
        %v7250 = vunpack.c.l.b16 %v7179
        %v7251 = vunpack.c.l.b16 %v7180
        %v7252 = vunpack.c.l.b16 %v7181
        %v7253 = vunpack.c.l.b16 %v7182
        %v7254 = vunpack.c.l.b16 %v7183
        %v7255 = vunpack.c.l.b16 %v7184
        %v7256 = vunpack.c.l.b16 %v7185
        %v7257 = vunpack.c.l.b16 %v7186
        %v7258 = vunpack.c.l.b16 %v7187
        %v7259 = vunpack.c.l.b16 %v7188
        %v7260 = vunpack.c.l.b16 %v7189
        %v7261 = vunpack.c.l.b16 %v7190
        %v7262 = vunpack.c.l.b16 %v7191
        %v7263 = vunpack.c.l.b16 %v7192
        %v7264 = vunpack.c.l.b16 %v7193
        %v7265 = vunpack.c.l.b16 %v7194
        %v7266 = vunpack.c.l.b16 %v7195
        %v7267 = vunpack.c.l.b16 %v7196
        %v7268 = vunpack.c.l.b16 %v7197
        %v7269 = vunpack.c.l.b16 %v7198
        %v7270 = vunpack.c.l.b16 %v7199
        %v7271 = vunpack.c.l.b16 %v7200
        %v7272 = vunpack.c.l.b16 %v7201
        %v7273 = vunpack.c.l.b16 %v7202
        %v7274 = vunpack.c.l.b16 %v7203
        %v7275 = vunpack.c.l.b16 %v7204
        %v7276 = vunpack.c.l.b16 %v7205
        %v7277 = vpack.c.b16 %v7246, %v7245
        %v7278 = vpack.c.b16 %v7248, %v7247
        %v7279 = vpack.c.b16 %v7250, %v7249
        %v7280 = vpack.c.b16 %v7252, %v7251
        %v7281 = vpack.c.b16 %v7254, %v7253
        %v7282 = vpack.c.b16 %v7256, %v7255
        %v7283 = vpack.c.b16 %v7258, %v7257
        %v7284 = vpack.c.b16 %v7260, %v7259
        %v7285 = vpack.c.b16 %v7262, %v7261
        %v7286 = vpack.c.b16 %v7264, %v7263
        %v7287 = vpack.c.b16 %v7266, %v7265
        %v7288 = vpack.c.b16 %v7268, %v7267
        %v7289 = vpack.c.b16 %v7270, %v7269
        %v7290 = vpack.c.b16 %v7272, %v7271
        %v7291 = vpack.c.b16 %v7274, %v7273
        %v7292 = vpack.c.b16 %v7276, %v7275
        %7309 = vmatprep.subr.bf16.mxu0 0
        %7310 = vmatpush1.bf16.msra.mxu0 %v7284
        %7311 = vmatprep.subr.bf16.mxu0 0
        %7312 = vmatpush1.bf16.msra.mxu0 %v7283
        %7313 = vmatprep.subr.bf16.mxu0 0
        %7314 = vmatpush1.bf16.msra.mxu0 %v7282
        %7315 = vmatprep.subr.bf16.mxu0 0
        %7316 = vmatpush1.bf16.msra.mxu0 %v7281
        %7317 = vmatprep.subr.bf16.mxu0 0
        %7318 = vmatpush1.bf16.msra.mxu0 %v7280
        %7319 = vmatprep.subr.bf16.mxu0 0
        %7320 = vmatpush1.bf16.msra.mxu0 %v7279
        %7321 = vmatprep.subr.bf16.mxu0 0
        %7322 = vmatpush1.bf16.msra.mxu0 %v7278
        %7323 = vmatprep.subr.bf16.mxu0 0
        %7324 = vmatpush1.bf16.msra.mxu0 %v7277
        %7325 = vmatprep.subr.bf16.mxu0 0
        %7326 = vmatpush2.bf16.msra.mxu0 %v7292
        %7327 = vmatprep.subr.bf16.mxu0 0
        %7328 = vmatpush2.bf16.msra.mxu0 %v7291
        %7329 = vmatprep.subr.bf16.mxu0 0
        %7330 = vmatpush2.bf16.msra.mxu0 %v7290
        %7331 = vmatprep.subr.bf16.mxu0 0
        %7332 = vmatpush2.bf16.msra.mxu0 %v7289
        %7333 = vmatprep.subr.bf16.mxu0 0
        %7334 = vmatpush2.bf16.msra.mxu0 %v7288
        %7335 = vmatprep.subr.bf16.mxu0 0
        %7336 = vmatpush2.bf16.msra.mxu0 %v7287
        %7337 = vmatprep.subr.bf16.mxu0 0
        %7338 = vmatpush2.bf16.msra.mxu0 %v7286
        %7339 = vmatprep.subr.bf16.mxu0 0
        %7340 = vmatpush2.bf16.msra.mxu0 %v7285
        %7341 = vmatprep.mubr.bf16.mxu0 %v7171
        %7342 = vmatmul.mubr.bf16.gmra.mxu0 %v7170
        %v7343 = vpop.f32.mrf.mxu0
        %v7344 = vadd.f32 %v7211, %v7343
        %v7345 = vpop.f32.mrf.mxu0
        %v7346 = vpop.f32.mrf.mxu0
        %v7347 = vadd.f32 %v7211, %v7346
        %v7348 = vpop.f32.mrf.mxu0
        %7349 = vmatprep.mubr.bf16.mxu0 %v7173
        %7350 = vmatmul.mubr.bf16.gmra.mxu0 %v7172
        %v7351 = vpop.f32.mrf.mxu0
        %v7352 = vadd.f32 %v7211, %v7351
        %v7353 = vpop.f32.mrf.mxu0
        %v7354 = vpop.f32.mrf.mxu0
        %v7355 = vadd.f32 %v7211, %v7354
        %v7356 = vpop.f32.mrf.mxu0
        %7357 = vdwg.mxu0
        %v7358 = vmax.f32 %v7344, 0.0
        %v7359 = vmax.f32 %v7347, 0.0
        %v7360 = vmax.f32 %v7352, 0.0
        %v7361 = vmax.f32 %v7355, 0.0
        %v7362 = vmin.f32 %v7358, 1.0
        %v7363 = vmin.f32 %v7359, 1.0
        %v7364 = vmin.f32 %v7360, 1.0
        %v7365 = vmin.f32 %v7361, 1.0
        %7366 = vst.msk [vmem:[%s1096] sm:$0xff] %vm1138, %v7362
        %7367 = vst.msk [vmem:[%s1096 + $0x8] sm:$0xff] %vm1138, %v7363
        %7368 = vst.msk [vmem:[%s1096 + $0x10] sm:$0xff] %vm1138, %v7364
        %7369 = vst.msk [vmem:[%s1096 + $0x18] sm:$0xff] %vm1138, %v7365
        %s7370 = sand.u32 %s632, 1
        %s7371 = scalar_lea.sflag [#allocation11], %s7370
        %s7372 = sand.u32 %s632, 1
        %s7373 = smul.addr %s7372, 32
        %s7374 = scalar_lea.vmem [#allocation41], %s7373
        // Predicated region
        $region209: #{tpu_custom_call.1} parent=127 // pred_check
          %p7375 = pneg %p642
        $region210: #{tpu_custom_call.1} parent=127 // pred_check_branch
          %7377 = sbr.rel (%p7375) target = $region212
        $region211: #{tpu_custom_call.1} parent=127 // pred_region
          %s7379 = ssub.s32 512, 512
          %7380 = vsyncadd %s7371, %s7379
          %s7381 = smul.addr %s52, 4
          %s7382 = smul.addr %s7381, 128
          %s7383 = scalar_lea.hbm %s27, %s7382
          %s7384 = sshll.u32 %s7374, 4
          %s7385 = int_to_ptr.vmem [resolvable:$true] %s7384
          %7390 = dma.vmem_to_hbm [thread:$0]  %s7385, 512, %s7383, %s7371, 128, 128, 8
        $region212: #{tpu_custom_call.1} parent=127 // pred_fallthru
          _
      $region128: #{tpu_custom_call.1} parent=5 // pred_fallthru
        _
      %p7391 = scmp.le.s32.totalorder 2, %s47
      // Predicated region
      $region213: #{tpu_custom_call.1} parent=5 // pred_check
        %p7392 = pneg %p7391
      $region214: #{tpu_custom_call.1} parent=5 // pred_check_branch
        %7394 = sbr.rel (%p7392) target = $region216
      $region215: #{tpu_custom_call.1} parent=5 // pred_region
        %s7395 = ssub.s32 %s47, 2
        // Predicated region
        $region217: #{tpu_custom_call.1} parent=215 // pred_check
          %p7396 = pneg %p648
        $region218: #{tpu_custom_call.1} parent=215 // pred_check_branch
          %7398 = sbr.rel (%p7396) target = $region220
        $region219: #{tpu_custom_call.1} parent=215 // pred_region
          %s7399 = sand.u32 %s633, 1
          %s7400 = scalar_lea.sflag [#allocation11], %s7399
          %s7401 = sand.u32 %s633, 1
          %s7402 = smul.addr %s7401, 32
          %s7403 = scalar_lea.vmem [#allocation41], %s7402
          %7404 = dma.done %s7400, 512
        $region220: #{tpu_custom_call.1} parent=215 // pred_fallthru
          _
      $region216: #{tpu_custom_call.1} parent=5 // pred_fallthru
        _
    $region6: #{tpu_custom_call.1} parent=1 // loop_footer
      %s51 = sadd.s32 1, %s47
    $region7: #{tpu_custom_call.1} parent=1 // loop_footer_branch
      %46 = sbr.rel target = $region3
    $region8: #{tpu_custom_call.1} parent=1 // loop_exit
      _
    %7405 = vsyncpa [#allocation10], 1
    %s7406 = scalar_lea.sflag [#allocation10], 1
    %7407 = vsyncpa %s7406, 1
    %7408 = vsyncpa [#allocation13], 1
    %7409 = vsyncpa [#allocation16], 1
    %7410 = vsyncpa [#allocation19], 1
    %7411 = vsyncpa [#allocation22], 1
    %7412 = vsyncpa [#allocation25], 1
    %7413 = vsyncpa [#allocation28], 1
    %7414 = vsyncpa [#allocation31], 1
    %7415 = vsyncpa [#allocation34], 1
    %7416 = vsyncpa [#allocation37], 1
    %7417 = vsyncpa [#allocation40], 1
    %7418 = vsyncpa [#allocation11], 1
    %s7419 = scalar_lea.sflag [#allocation11], 1
    %7420 = vsyncpa %s7419, 1

</llo_original>
